<compile_context>
chip_gen: v6e
topology: v6e:2x2x1
jax: 0.10.0
libtpu: 0.0.40
codegen_flags: <defaults>
</compile_context>

<pallas_src>
import functools

import jax
import jax.numpy as jnp
from jax.experimental import pallas as pl
from jax.experimental.pallas import tpu as pltpu

_MIB = 1024 * 1024
_W_TILE_BUDGET_BYTES = 8 * _MIB   # cap on the per-step resident weight tile (v7x: 64 MiB VMEM/TC)


def sine_layer_kernel(i_ref, x_ref, w_ref, b_ref, gamma_ref, beta_ref, o_ref, *,
                      omega_0):
    # i_ref:     (1,)           SMEM  scalar-prefetched layer index (used by index_maps)
    # x_ref:     (TB, F_in)     VMEM  batch tile of activations
    # w_ref:     (F_in, TN)     VMEM  pre-transposed torch weight tile (batch-resident)
    # b_ref:     (1, TN)        VMEM
    # gamma_ref: (TB, TN)       VMEM  layer dim squeezed away by BlockSpec
    # beta_ref:  (TB, TN)       VMEM
    # o_ref:     (TB, TN)       VMEM
    del i_ref  # layer selection happens entirely in the gamma/beta index_maps
    y = jnp.dot(x_ref[...], w_ref[...], preferred_element_type=jnp.float32)
    # Fold omega_0 into the pre-activation in-kernel (free VALU filler under DMA on
    # v5e/v6e); do NOT pre-scale gamma on the host.
    y = omega_0 * (y + b_ref[...].astype(jnp.float32))
    g = gamma_ref[...].astype(jnp.float32)
    be = beta_ref[...].astype(jnp.float32)
    # TODO(synk): if a v7x bundle dump shows the 4 VALU slots binding (sin polynomial
    # at 3.2 TB/s with bf16 I/O), move the g*y+be chain to packed bf16 and keep only
    # the sin argument in f32.
    o_ref[...] = jnp.sin(g * y + be).astype(o_ref.dtype)


def _vmem_caps():
    """(tile-sizing budget, vmem_limit_bytes) — generation-aware, conservative."""
    try:
        cap = int(pltpu.get_tpu_info().vmem_capacity_bytes)
    except Exception:  # noqa: BLE001 — fall back to the smallest generation (v7x: 64 MiB/TC)
        cap = 64 * _MIB
    budget = min(cap // 2, 24 * _MIB)      # leaves room for f32 temporaries / compiler scratch
    limit = min(cap * 3 // 4, 2 * budget)  # explicit scoped-VMEM limit (v5e default is only 16 MiB)
    return budget, limit


def _pick_tiles(batch, f_in, f_out, itemsizes, vmem_budget, *, min_grid_steps=8):
    """Dtype- and generation-aware tile selection.

    Counts the grid-resident W/b tile (single-buffered) plus the double-buffered
    x/gamma/beta/out blocks at their real itemsizes.  Prefers >=512-row batch tiles
    but keeps >=min_grid_steps grid steps so the pipeline overlaps DMA with compute
    (>=4 steps per TC on v7x megacore).
    """
    x_sz, w_sz, b_sz, gb_sz, out_sz = itemsizes

    # F_out tile: keep the resident weight tile under ~8 MiB (lane-dense multiple of 128).
    tn = f_out
    if f_in * f_out * w_sz > _W_TILE_BUDGET_BYTES and f_out > 128:
        tn = max(128, (_W_TILE_BUDGET_BYTES // (f_in * w_sz)) // 128 * 128)
        tn = min(tn, f_out)

    resident = f_in * tn * w_sz + tn * b_sz                    # single-buffered W/b tile
    per_row = 2 * (f_in * x_sz + tn * (2 * gb_sz + out_sz))    # double-buffered blocks
    avail = max(vmem_budget - resident, per_row * 8)
    tb = max(8, (avail // per_row // 8) * 8)
    tb = min(tb, 2048)

    # Keep >= min_grid_steps batch tiles, but never shrink below 512 rows to do so.
    if batch >= min_grid_steps * 512:
        steps_cap = max(512, ((-(-batch // min_grid_steps)) // 8) * 8)
        tb = min(tb, steps_cap)
    tb = min(tb, batch)
    if tb < batch:
        tb = max(8, (tb // 8) * 8)
    return tb, tn


def sine_layer_forward(x, w_t, b, gamma, beta, i, *, omega_0=30.0, tb=None, tn=None,
                       out_dtype=None, gamma_beta_buffers=2):
    """Pallas implementation of SineLayer.forward(input, gamma, beta, i).

    x:     [B, F_in]
    w_t:   [F_in, F_out]   (transposed vs torch's [out, in] weight)
    b:     [1, F_out]
    gamma: [L, B, F_out]
    beta:  [L, B, F_out]
    i:     layer index (python int or int32 scalar; may be traced -> no recompiles)

    out_dtype defaults to x.dtype (bf16 in -> bf16 out halves the store traffic of
    an HBM-bound op).  gamma_beta_buffers>2 requests deeper pipelining on the
    dominant gamma/beta streams (only if profiling shows exposed DMA).
    """
    B, f_in = x.shape
    f_out = w_t.shape[1]
    if out_dtype is None:
        out_dtype = x.dtype

    itemsizes = (x.dtype.itemsize, w_t.dtype.itemsize, b.dtype.itemsize,
                 gamma.dtype.itemsize, jnp.dtype(out_dtype).itemsize)
    vmem_budget, vmem_limit = _vmem_caps()
    auto_tb, auto_tn = _pick_tiles(B, f_in, f_out, itemsizes, vmem_budget)
    tb = auto_tb if tb is None else min(tb, B)
    tn = auto_tn if tn is None else min(tn, f_out)

    n_b = -(-B // tb)
    n_n = -(-f_out // tn)

    i_arr = jnp.asarray(i, dtype=jnp.int32).reshape((1,))
    kernel = functools.partial(sine_layer_kernel, omega_0=omega_0)

    # Deeper buffering for the dominant gamma/beta streams (opt-in after profiling).
    gb_kw = {} if gamma_beta_buffers == 2 else {
        "pipeline_mode": pl.Buffered(gamma_beta_buffers)}

    grid_spec = pltpu.PrefetchScalarGridSpec(
        num_scalar_prefetch=1,
        grid=(n_b, n_n),   # batch outer, F_out inner -> x fetched once per batch tile
        in_specs=[
            # batch-tiled activations (constant across the inner F_out axis)
            pl.BlockSpec((tb, f_in), lambda g, n, i_ref: (g, 0)),
            # weight / bias tiles, resident across the batch axis
            pl.BlockSpec((f_in, tn), lambda g, n, i_ref: (0, n)),
            pl.BlockSpec((1, tn), lambda g, n, i_ref: (0, n)),
            # layer i of gamma / beta selected via the prefetched scalar;
            # leading size-1 layer dim squeezed so the kernel sees 2-D tiles.
            pl.BlockSpec((pl.Squeezed(), tb, tn),
                         lambda g, n, i_ref: (i_ref[0], g, n), **gb_kw),
            pl.BlockSpec((pl.Squeezed(), tb, tn),
                         lambda g, n, i_ref: (i_ref[0], g, n), **gb_kw),
        ],
        out_specs=pl.BlockSpec((tb, tn), lambda g, n, i_ref: (g, n)),
    )

    x_sz, w_sz, b_sz, gb_sz, out_sz = itemsizes
    cost = pl.CostEstimate(
        flops=2 * B * f_in * f_out + 3 * B * f_out,
        transcendentals=B * f_out,
        bytes_accessed=(B * f_in * x_sz
                        + (n_b if n_n > 1 else 1) * f_in * f_out * w_sz
                        + f_out * b_sz
                        + 2 * B * f_out * gb_sz       # gamma[i] + beta[i]
                        + B * f_out * out_sz),
    )

    return pl.pallas_call(
        kernel,
        out_shape=jax.ShapeDtypeStruct((B, f_out), out_dtype),
        grid_spec=grid_spec,
        cost_estimate=cost,
        compiler_params=pltpu.CompilerParams(
            # both grid axes are independent -> shardable across v7x's two TCs
            dimension_semantics=("parallel", "parallel"),
            vmem_limit_bytes=vmem_limit,
        ),
    )(i_arr, x, w_t, b, gamma, beta)


def init_sine_layer_params(key, in_features, out_features, *, is_first=True,
                           omega_0=30.0, bias=True):
    """Re-implementation of SineLayer.init_weights (+ torch Linear default bias init)."""
    kw, kb = jax.random.split(key)
    if is_first:
        bound_w = 1.0 / in_features
    else:
        bound_w = float(jnp.sqrt(6.0 / in_features) / omega_0)
    # torch stores weight as [out, in]; we keep the transposed [in, out] layout.
    w_t = jax.random.uniform(kw, (in_features, out_features), jnp.float32,
                             minval=-bound_w, maxval=bound_w)
    if bias:
        bound_b = 1.0 / float(jnp.sqrt(jnp.float32(in_features)))
        b = jax.random.uniform(kb, (1, out_features), jnp.float32,
                               minval=-bound_b, maxval=bound_b)
    else:
        b = jnp.zeros((1, out_features), jnp.float32)
    return w_t, b


if __name__ == "__main__":
    key = jax.random.PRNGKey(0)
    k_param, k_x, k_g, k_b = jax.random.split(key, 4)

    # Lane-dense F_OUT (multiple of 128); B large enough that the auto-picked
    # 512-row batch tile yields 8 grid steps (>=4 per TC on v7x) so the DMA
    # pipeline actually overlaps compute.
    B, F_IN, F_OUT, N_LAYERS = 4096, 64, 128, 4
    OMEGA_0 = 30.0
    layer_idx = 2

    w_t, b = init_sine_layer_params(k_param, F_IN, F_OUT, is_first=True,
                                    omega_0=OMEGA_0, bias=True)
    x = jax.random.normal(k_x, (B, F_IN), jnp.float32)
    gamma = jax.random.normal(k_g, (N_LAYERS, B, F_OUT), jnp.float32)
    beta = jax.random.normal(k_b, (N_LAYERS, B, F_OUT), jnp.float32)

    # --- f32 path -----------------------------------------------------------
    out = sine_layer_forward(x, w_t, b, gamma, beta, layer_idx, omega_0=OMEGA_0)
    out = jax.block_until_ready(out)
    ref = jnp.sin(gamma[layer_idx] * OMEGA_0 * (x @ w_t + b) + beta[layer_idx])
    assert out.shape == (B, F_OUT) and out.dtype == jnp.float32
    assert jnp.allclose(out, ref, atol=2e-3, rtol=2e-3), "f32 mismatch vs reference"

    # --- bf16 path: bf16 in -> bf16 out (halves the dominant HBM traffic) ----
    x16, w16, b16 = (a.astype(jnp.bfloat16) for a in (x, w_t, b))
    g16, be16 = gamma.astype(jnp.bfloat16), beta.astype(jnp.bfloat16)
    out16 = sine_layer_forward(x16, w16, b16, g16, be16, layer_idx, omega_0=OMEGA_0)
    out16 = jax.block_until_ready(out16)
    assert out16.dtype == jnp.bfloat16
    ref16 = jnp.sin(
        g16[layer_idx].astype(jnp.float32) * OMEGA_0
        * (x16.astype(jnp.float32) @ w16.astype(jnp.float32)
           + b16.astype(jnp.float32))
        + be16[layer_idx].astype(jnp.float32))
    assert jnp.allclose(out16.astype(jnp.float32), ref16, atol=3e-2, rtol=3e-2), \
        "bf16 mismatch vs reference"

    print("KERNEL_OK")
</pallas_src>

<mosaic_0001>
module attributes {stable_mosaic.version = 11 : i64} {
  func.func @sine_layer_kernel(%arg0: i32, %arg1: i32, %arg2: memref<1xi32, #tpu.memory_space<smem>>, %arg3: memref<512x64xf32, #tpu.memory_space<vmem>>, %arg4: memref<64x128xf32, #tpu.memory_space<vmem>>, %arg5: memref<1x128xf32, #tpu.memory_space<vmem>>, %arg6: memref<1x512x128xf32, #tpu.memory_space<vmem>>, %arg7: memref<1x512x128xf32, #tpu.memory_space<vmem>>, %arg8: memref<512x128xf32, #tpu.memory_space<vmem>>) attributes {dimension_semantics = [#tpu.dimension_semantics<parallel>, #tpu.dimension_semantics<parallel>], iteration_bounds = array<i64: 8, 1>, scalar_prefetch = 1 : i64, scratch_operands = 0 : i64, tpu.core_type = #tpu.core_type<tc>, window_params = [{transform_indices = @transform_0, window_bounds = array<i64: 512, 64>}, {transform_indices = @transform_1, window_bounds = array<i64: 64, 128>}, {transform_indices = @transform_2, window_bounds = array<i64: 1, 128>}, {transform_indices = @transform_3, window_bounds = array<i64: 1, 512, 128>}, {transform_indices = @transform_4, window_bounds = array<i64: 1, 512, 128>}, {transform_indices = @transform_5, window_bounds = array<i64: 512, 128>}]} {
    %c0 = arith.constant 0 : index
    %c0_0 = arith.constant 0 : index
    %0 = vector.load %arg3[%c0, %c0_0] : memref<512x64xf32, #tpu.memory_space<vmem>>, vector<512x64xf32>
    %c0_1 = arith.constant 0 : index
    %c0_2 = arith.constant 0 : index
    %1 = vector.load %arg4[%c0_1, %c0_2] : memref<64x128xf32, #tpu.memory_space<vmem>>, vector<64x128xf32>
    %cst = arith.constant dense<0.000000e+00> : vector<512x128xf32>
    %2 = tpu.matmul %0, %1, %cst {dimension_numbers = #tpu.dot_dimension_numbers<[1], [0], [0], [1], [0, 0, 1, 1], [], []>} : vector<512x64xf32>, vector<64x128xf32>, vector<512x128xf32> -> vector<512x128xf32>
    %c0_3 = arith.constant 0 : index
    %c0_4 = arith.constant 0 : index
    %3 = vector.load %arg5[%c0_3, %c0_4] : memref<1x128xf32, #tpu.memory_space<vmem>>, vector<1x128xf32>
    %4 = vector.broadcast %3 : vector<1x128xf32> to vector<512x128xf32>
    %5 = arith.addf %2, %4 : vector<512x128xf32>
    %cst_5 = arith.constant 3.000000e+01 : f32
    %6 = vector.broadcast %cst_5 : f32 to vector<512x128xf32>
    %7 = arith.mulf %6, %5 : vector<512x128xf32>
    %c0_6 = arith.constant 0 : index
    %c0_7 = arith.constant 0 : index
    %c0_8 = arith.constant 0 : index
    %8 = vector.load %arg6[%c0_6, %c0_7, %c0_8] : memref<1x512x128xf32, #tpu.memory_space<vmem>>, vector<1x512x128xf32>
    %9 = vector.shape_cast %8 : vector<1x512x128xf32> to vector<512x128xf32>
    %c0_9 = arith.constant 0 : index
    %c0_10 = arith.constant 0 : index
    %c0_11 = arith.constant 0 : index
    %10 = vector.load %arg7[%c0_9, %c0_10, %c0_11] : memref<1x512x128xf32, #tpu.memory_space<vmem>>, vector<1x512x128xf32>
    %11 = vector.shape_cast %10 : vector<1x512x128xf32> to vector<512x128xf32>
    %12 = arith.mulf %9, %7 : vector<512x128xf32>
    %13 = arith.addf %12, %11 : vector<512x128xf32>
    %14 = math.sin %13 : vector<512x128xf32>
    %c0_12 = arith.constant 0 : index
    %c0_13 = arith.constant 0 : index
    %15 = vector.load %arg8[%c0_12, %c0_13] : memref<512x128xf32, #tpu.memory_space<vmem>>, vector<512x128xf32>
    tpu.vector_store %arg8[%c0_12, %c0_13], %14 {strides = array<i32>} : memref<512x128xf32, #tpu.memory_space<vmem>>, vector<512x128xf32>,
    return
  }
  func.func @transform_0(%arg0: i32, %arg1: i32, %arg2: memref<1xi32, #tpu.memory_space<smem>>) -> (i32, i32) {
    %c0_i32 = arith.constant 0 : i32
    %c0_i32_0 = arith.constant 0 : i32
    return %arg0, %c0_i32 : i32, i32
  }
  func.func @transform_1(%arg0: i32, %arg1: i32, %arg2: memref<1xi32, #tpu.memory_space<smem>>) -> (i32, i32) {
    %c0_i32 = arith.constant 0 : i32
    %c0_i32_0 = arith.constant 0 : i32
    return %c0_i32, %arg1 : i32, i32
  }
  func.func @transform_2(%arg0: i32, %arg1: i32, %arg2: memref<1xi32, #tpu.memory_space<smem>>) -> (i32, i32) {
    %c0_i32 = arith.constant 0 : i32
    %c0_i32_0 = arith.constant 0 : i32
    return %c0_i32, %arg1 : i32, i32
  }
  func.func @transform_3(%arg0: i32, %arg1: i32, %arg2: memref<1xi32, #tpu.memory_space<smem>>) -> (i32, i32, i32) {
    %c0 = arith.constant 0 : index
    %0 = memref.load %arg2[%c0] : memref<1xi32, #tpu.memory_space<smem>>
    %c0_i32 = arith.constant 0 : i32
    return %0, %arg0, %arg1 : i32, i32, i32
  }
  func.func @transform_4(%arg0: i32, %arg1: i32, %arg2: memref<1xi32, #tpu.memory_space<smem>>) -> (i32, i32, i32) {
    %c0 = arith.constant 0 : index
    %0 = memref.load %arg2[%c0] : memref<1xi32, #tpu.memory_space<smem>>
    %c0_i32 = arith.constant 0 : i32
    return %0, %arg0, %arg1 : i32, i32, i32
  }
  func.func @transform_5(%arg0: i32, %arg1: i32, %arg2: memref<1xi32, #tpu.memory_space<smem>>) -> (i32, i32) {
    %c0_i32 = arith.constant 0 : i32
    return %arg0, %arg1 : i32, i32
  }
}

</mosaic_0001>

<llo_original>
// kernel: tpu_custom_call.1
$region0: #{tpu_custom_call.1}
  #allocation0 [shape = 'u32[]', space=smem, size = 0x4, offset = 0x4, fixed_abs, tag = 'smem constant byte address 0x4 - core index']
  #allocation1 [shape = 'u32[144,128]{1,0:T(1,128)}', space=vmem, size = 0x12000, scoped, tag = 'internal scratch']
  #allocation2 [shape = 's32[1]{0}', space=sflag, size = 0x4, scoped, tag = 'scoped memory for tpu_custom_call.1']
  #allocation3 [shape = 's32[1]{0:T(128)S(6)}', space=smem, size = 0x200, scoped, tag = 'prefetched SMEM operand 0']
  %s0 = inlined_call_operand.<no memory space> [shape: s32[1], index: 0, kind: input, shape index: {}]
  %s1 = inlined_call_operand.vmem [shape: f32[4096,64], index: 1, kind: input, shape index: {}]
  %s2 = inlined_call_operand.hbm [shape: f32[64,128], index: 2, kind: input, shape index: {}]
  %s3 = inlined_call_operand.hbm [shape: f32[1,128], index: 3, kind: input, shape index: {}]
  %s4 = inlined_call_operand.hbm [shape: f32[4,4096,128], index: 4, kind: input, shape index: {}]
  %s5 = inlined_call_operand.hbm [shape: f32[4,4096,128], index: 5, kind: input, shape index: {}]
  %s6 = inlined_call_operand.hbm [shape: f32[4096,128], index: 6, kind: output, shape index: {}]
  %s7 = sld [smem:[#allocation0]]
  $region69: #{tpu_custom_call.1} parent=0
    _
  %s9 = ssub.s32 1, %s7
  %s10 = scalar_select 0, %s9, %s7
  %11 = sst [smem:[#allocation3]] %s0
  $region1: #{tpu_custom_call.1} parent=0
    #allocation4 [shape = 'u8[32768]{0}', space=vmem, size = 0x8000, scoped, tag = 'input window, operand 2, single buffered']
    #allocation5 [shape = 's32[2]{0}', space=sflag, size = 0x8, scoped, tag = 'scoped memory for tpu_custom_call.1']
    #allocation6 [shape = 's32[2]{0}', space=sflag, size = 0x8, scoped, tag = 'scoped memory for tpu_custom_call.1']
    #allocation7 [shape = 'u8[512]{0}', space=vmem, size = 0x400, scoped, tag = 'input window, operand 3, single buffered']
    #allocation8 [shape = 's32[1]{0}', space=sflag, size = 0x4, scoped, tag = 'scoped memory for tpu_custom_call.1']
    #allocation9 [shape = 'u8[524288]{0}', space=vmem, size = 0x80000, scoped, tag = 'input window, operand 4']
    #allocation10 [shape = 'u8[524288]{0}', space=vmem, size = 0x80000, scoped, tag = 'input window, operand 5']
    #allocation11 [shape = 'u8[524288]{0}', space=vmem, size = 0x80000, scoped, tag = 'output window, operand 0']
    %12 = vsyncpa [#allocation5], 0
    %13 = vsyncpa [#allocation8], 0
    %14 = vsyncpa [#allocation6], 0
    %s15 = scalar_lea.sflag [#allocation6], 1
    %16 = vsyncpa %s15, 0
    loop: start=0, step=1, limit=10
    $region2: #{tpu_custom_call.1} parent=1 // loop_pre_header
      _
    $region3: #{tpu_custom_call.1} parent=1 // loop_header
      %s18 = sphi 0, %s22
      %p19 = scmp.ge.s32.totalorder %s18, 10
      %s25 = sphi 0, %s37
      %s26 = sphi 0, %s33
      %s27 = sphi 0, %s25
      %s28 = sphi 0, %s26
      %s29 = sphi 0, %s27
      %s30 = sphi 0, %s28
      %s40 = sphi 0, %s42
      %s43 = sphi 0, %s40
      %s44 = sphi 0, %s43
      %s60 = sphi 0, %s44
      %s66 = sphi 0, %s68
      %s69 = sphi 0, %s66
      %s70 = sphi 0, %s69
      %s86 = sphi 0, %s70
      %s92 = sphi 0, %s94
      %s95 = sphi 0, %s92
      %s96 = sphi 0, %s95
      %s112 = sphi 0, %s96
      %s124 = sphi 0, %s126
      %s127 = sphi 0, %s124
      %s128 = sphi 0, %s127
      %s144 = sphi 0, %s128
      %s156 = sphi 0, %s158
      %s159 = sphi 0, %s156
      %s160 = sphi 0, %s159
      %s176 = sphi 0, %s160
      %s184 = sphi 0, %s186
      %s187 = sphi 0, %s184
      %s188 = sphi 0, %s187
      %s204 = sphi 0, %s188
    $region4: #{tpu_custom_call.1} parent=1 // loop_header_branch
      %21 = sbr.rel (%p19) target = $region8
    $region5: #{tpu_custom_call.1} parent=1 // loop_body
      %s23 = ssub.s32 %s18, 1
      %s24 = ssub.s32 %s18, 2
      %s31 = sadd.s32 1, %s26
      %p32 = scmp.ge.s32.totalorder %s31, 1
      %s33 = scalar_select %p32, 0, %s31
      %s34 = sadd.s32 1, %s25
      %s35 = scalar_select %p32, %s34, %s25
      %p36 = scmp.ge.s32.totalorder %s35, 8
      %s37 = scalar_select %p36, 0, %s35
      %s38 = ssub.s32 %s25, %s37
      %p39 = scmp.eq.s32.totalorder %s38, 0
      %s41 = sadd.s32 %s40, 1
      %s42 = scalar_select %p39, %s40, %s41
      %p45 = pneg %p39
      %p46 = scmp.eq.s32.totalorder %s18, 7
      %p47 = por %p45, %p46
      %p48 = scmp.ne.s32.totalorder %s40, %s43
      %p49 = scmp.eq.s32.totalorder %s18, 0
      %p50 = por %p48, %p49
      %p51 = scmp.ne.s32.totalorder %s40, %s43
      %p52 = scmp.eq.s32.totalorder %s23, 7
      %p53 = por %p51, %p52
      %p54 = scmp.ne.s32.totalorder %s43, %s44
      %p55 = scmp.eq.s32.totalorder %s23, 0
      %p56 = por %p54, %p55
      %p57 = scmp.ne.s32.totalorder %s43, %s44
      %p58 = scmp.eq.s32.totalorder %s24, 7
      %p59 = por %p57, %p58
      %p61 = scmp.ne.s32.totalorder %s44, %s60
      %p62 = scmp.eq.s32.totalorder %s24, 0
      %p63 = por %p61, %p62
      %s64 = ssub.s32 %s26, %s33
      %p65 = scmp.eq.s32.totalorder %s64, 0
      %s67 = sadd.s32 %s66, 1
      %s68 = scalar_select %p65, %s66, %s67
      %p71 = pneg %p65
      %p72 = scmp.eq.s32.totalorder %s18, 7
      %p73 = por %p71, %p72
      %p74 = scmp.ne.s32.totalorder %s66, %s69
      %p75 = scmp.eq.s32.totalorder %s18, 0
      %p76 = por %p74, %p75
      %p77 = scmp.ne.s32.totalorder %s66, %s69
      %p78 = scmp.eq.s32.totalorder %s23, 7
      %p79 = por %p77, %p78
      %p80 = scmp.ne.s32.totalorder %s69, %s70
      %p81 = scmp.eq.s32.totalorder %s23, 0
      %p82 = por %p80, %p81
      %p83 = scmp.ne.s32.totalorder %s69, %s70
      %p84 = scmp.eq.s32.totalorder %s24, 7
      %p85 = por %p83, %p84
      %p87 = scmp.ne.s32.totalorder %s70, %s86
      %p88 = scmp.eq.s32.totalorder %s24, 0
      %p89 = por %p87, %p88
      %s90 = ssub.s32 %s26, %s33
      %p91 = scmp.eq.s32.totalorder %s90, 0
      %s93 = sadd.s32 %s92, 1
      %s94 = scalar_select %p91, %s92, %s93
      %p97 = pneg %p91
      %p98 = scmp.eq.s32.totalorder %s18, 7
      %p99 = por %p97, %p98
      %p100 = scmp.ne.s32.totalorder %s92, %s95
      %p101 = scmp.eq.s32.totalorder %s18, 0
      %p102 = por %p100, %p101
      %p103 = scmp.ne.s32.totalorder %s92, %s95
      %p104 = scmp.eq.s32.totalorder %s23, 7
      %p105 = por %p103, %p104
      %p106 = scmp.ne.s32.totalorder %s95, %s96
      %p107 = scmp.eq.s32.totalorder %s23, 0
      %p108 = por %p106, %p107
      %p109 = scmp.ne.s32.totalorder %s95, %s96
      %p110 = scmp.eq.s32.totalorder %s24, 7
      %p111 = por %p109, %p110
      %p113 = scmp.ne.s32.totalorder %s96, %s112
      %p114 = scmp.eq.s32.totalorder %s24, 0
      %p115 = por %p113, %p114
      %s116 = sld [smem:[#allocation3]]
      %s117 = sld [smem:[#allocation3]]
      %s118 = ssub.s32 %s116, %s117
      %s119 = ssub.s32 %s25, %s37
      %s120 = sor.u32 %s118, %s119
      %s121 = ssub.s32 %s26, %s33
      %s122 = sor.u32 %s120, %s121
      %p123 = scmp.eq.s32.totalorder %s122, 0
      %s125 = sadd.s32 %s124, 1
      %s126 = scalar_select %p123, %s124, %s125
      %p129 = pneg %p123
      %p130 = scmp.eq.s32.totalorder %s18, 7
      %p131 = por %p129, %p130
      %p132 = scmp.ne.s32.totalorder %s124, %s127
      %p133 = scmp.eq.s32.totalorder %s18, 0
      %p134 = por %p132, %p133
      %p135 = scmp.ne.s32.totalorder %s124, %s127
      %p136 = scmp.eq.s32.totalorder %s23, 7
      %p137 = por %p135, %p136
      %p138 = scmp.ne.s32.totalorder %s127, %s128
      %p139 = scmp.eq.s32.totalorder %s23, 0
      %p140 = por %p138, %p139
      %p141 = scmp.ne.s32.totalorder %s127, %s128
      %p142 = scmp.eq.s32.totalorder %s24, 7
      %p143 = por %p141, %p142
      %p145 = scmp.ne.s32.totalorder %s128, %s144
      %p146 = scmp.eq.s32.totalorder %s24, 0
      %p147 = por %p145, %p146
      %s148 = sld [smem:[#allocation3]]
      %s149 = sld [smem:[#allocation3]]
      %s150 = ssub.s32 %s148, %s149
      %s151 = ssub.s32 %s25, %s37
      %s152 = sor.u32 %s150, %s151
      %s153 = ssub.s32 %s26, %s33
      %s154 = sor.u32 %s152, %s153
      %p155 = scmp.eq.s32.totalorder %s154, 0
      %s157 = sadd.s32 %s156, 1
      %s158 = scalar_select %p155, %s156, %s157
      %p161 = pneg %p155
      %p162 = scmp.eq.s32.totalorder %s18, 7
      %p163 = por %p161, %p162
      %p164 = scmp.ne.s32.totalorder %s156, %s159
      %p165 = scmp.eq.s32.totalorder %s18, 0
      %p166 = por %p164, %p165
      %p167 = scmp.ne.s32.totalorder %s156, %s159
      %p168 = scmp.eq.s32.totalorder %s23, 7
      %p169 = por %p167, %p168
      %p170 = scmp.ne.s32.totalorder %s159, %s160
      %p171 = scmp.eq.s32.totalorder %s23, 0
      %p172 = por %p170, %p171
      %p173 = scmp.ne.s32.totalorder %s159, %s160
      %p174 = scmp.eq.s32.totalorder %s24, 7
      %p175 = por %p173, %p174
      %p177 = scmp.ne.s32.totalorder %s160, %s176
      %p178 = scmp.eq.s32.totalorder %s24, 0
      %p179 = por %p177, %p178
      %s180 = ssub.s32 %s25, %s37
      %s181 = ssub.s32 %s26, %s33
      %s182 = sor.u32 %s180, %s181
      %p183 = scmp.eq.s32.totalorder %s182, 0
      %s185 = sadd.s32 %s184, 1
      %s186 = scalar_select %p183, %s184, %s185
      %p189 = pneg %p183
      %p190 = scmp.eq.s32.totalorder %s18, 7
      %p191 = por %p189, %p190
      %p192 = scmp.ne.s32.totalorder %s184, %s187
      %p193 = scmp.eq.s32.totalorder %s18, 0
      %p194 = por %p192, %p193
      %p195 = scmp.ne.s32.totalorder %s184, %s187
      %p196 = scmp.eq.s32.totalorder %s23, 7
      %p197 = por %p195, %p196
      %p198 = scmp.ne.s32.totalorder %s187, %s188
      %p199 = scmp.eq.s32.totalorder %s23, 0
      %p200 = por %p198, %p199
      %p201 = scmp.ne.s32.totalorder %s187, %s188
      %p202 = scmp.eq.s32.totalorder %s24, 7
      %p203 = por %p201, %p202
      %p205 = scmp.ne.s32.totalorder %s188, %s204
      %p206 = scmp.eq.s32.totalorder %s24, 0
      %p207 = por %p205, %p206
      %p208 = scmp.le.s32.totalorder 1, %s18
      %p209 = scmp.lt.s32.totalorder %s18, 9
      %p210 = pnand %p208, %p209
      %p211 = pneg %p210
      // Predicated region
      $region9: #{tpu_custom_call.1} parent=5 // pred_check
        _
      $region10: #{tpu_custom_call.1} parent=5 // pred_check_branch
        %213 = sbr.rel (%p210) target = $region12
      $region11: #{tpu_custom_call.1} parent=5 // pred_region
        %s214 = ssub.s32 %s18, 1
        // Predicated region
        $region13: #{tpu_custom_call.1} parent=11 // pred_check
          %p215 = pneg %p82
        $region14: #{tpu_custom_call.1} parent=11 // pred_check_branch
          %217 = sbr.rel (%p215) target = $region16
        $region15: #{tpu_custom_call.1} parent=11 // pred_region
          %s219 = ssub.s32 1024, 1024
          %220 = vsyncadd [#allocation5], %s219
          %s221 = smul.addr %s28, 128
          %s222 = scalar_lea.hbm %s2, %s221
          %s223 = sshll.u32 [#allocation4], 4
          %s224 = int_to_ptr.vmem [resolvable:$true] %s223
          %229 = dma.hbm_to_vmem [thread:$0]  %s222, 1024, %s224, [#allocation5], 128, 128, 8
        $region16: #{tpu_custom_call.1} parent=11 // pred_fallthru
          _
        // Predicated region
        $region17: #{tpu_custom_call.1} parent=11 // pred_check
          %p230 = pneg %p108
        $region18: #{tpu_custom_call.1} parent=11 // pred_check_branch
          %232 = sbr.rel (%p230) target = $region20
        $region19: #{tpu_custom_call.1} parent=11 // pred_region
          %s234 = ssub.s32 16, 16
          %235 = vsyncadd [#allocation8], %s234
          %s236 = smul.addr %s28, 16
          %s237 = scalar_lea.hbm %s3, %s236
          %s239 = sshll.u32 [#allocation7], 4
          %s240 = int_to_ptr.vmem [resolvable:$true] %s239
          %242 = dma.hbm_to_vmem [thread:$0]  %s237, 16, %s240, [#allocation8]
        $region20: #{tpu_custom_call.1} parent=11 // pred_fallthru
          _
      $region12: #{tpu_custom_call.1} parent=5 // pred_fallthru
        _
      %p243 = scmp.lt.s32.totalorder %s18, 8
      // Predicated region
      $region21: #{tpu_custom_call.1} parent=5 // pred_check
        %p244 = pneg %p243
      $region22: #{tpu_custom_call.1} parent=5 // pred_check_branch
        %246 = sbr.rel (%p244) target = $region24
      $region23: #{tpu_custom_call.1} parent=5 // pred_region
        // Predicated region
        $region25: #{tpu_custom_call.1} parent=23 // pred_check
          %p247 = pneg %p50
        $region26: #{tpu_custom_call.1} parent=23 // pred_check_branch
          %249 = sbr.rel (%p247) target = $region28
        $region27: #{tpu_custom_call.1} parent=23 // pred_region
          %s250 = smul.u32 64, %s25
          %p251 = scmp.lt.s32.totalorder %s250, 511
          %s252 = scalar_select %p251, %s250, 511
          %s253 = smul.addr %s252, 8
          %s254 = scalar_lea.vmem %s1, %s253
          %s255 = smul.u32 64, %s25
        $region28: #{tpu_custom_call.1} parent=23 // pred_fallthru
          _
        // Predicated region
        $region29: #{tpu_custom_call.1} parent=23 // pred_check
          %p256 = pneg %p134
        $region30: #{tpu_custom_call.1} parent=23 // pred_check_branch
          %258 = sbr.rel (%p256) target = $region32
        $region31: #{tpu_custom_call.1} parent=23 // pred_region
          %s259 = sand.u32 %s18, 1
          %s260 = scalar_lea.sflag [#allocation5], %s259
          %s261 = sand.u32 %s124, 1
          %s262 = smul.addr %s261, 512
          %s263 = scalar_lea.vmem [#allocation9], %s262
          %s264 = sld [smem:[#allocation3]]
          %s265 = smul.u32 64, %s25
          %s267 = ssub.s32 8192, 8192
          %268 = vsyncadd %s260, %s267
          %s269 = sadd.s32 %s26, %s265
          %s270 = smul.addr %s264, 512
          %s271 = sadd.s32 %s269, %s270
          %s272 = smul.addr %s271, 128
          %s273 = scalar_lea.hbm %s4, %s272
          %s274 = sshll.u32 %s263, 4
          %s275 = int_to_ptr.vmem [resolvable:$true] %s274
          %280 = dma.hbm_to_vmem [thread:$0]  %s273, 8192, %s275, %s260, 128, 128, 8
        $region32: #{tpu_custom_call.1} parent=23 // pred_fallthru
          _
        // Predicated region
        $region33: #{tpu_custom_call.1} parent=23 // pred_check
          %p281 = pneg %p166
        $region34: #{tpu_custom_call.1} parent=23 // pred_check_branch
          %283 = sbr.rel (%p281) target = $region36
        $region35: #{tpu_custom_call.1} parent=23 // pred_region
          %s284 = sand.u32 %s18, 1
          %s285 = scalar_lea.sflag [#allocation5], %s284
          %s286 = sand.u32 %s156, 1
          %s287 = smul.addr %s286, 512
          %s288 = scalar_lea.vmem [#allocation10], %s287
          %s289 = sld [smem:[#allocation3]]
          %s290 = smul.u32 64, %s25
          %s292 = ssub.s32 8192, 8192
          %293 = vsyncadd %s285, %s292
          %s294 = sadd.s32 %s26, %s290
          %s295 = smul.addr %s289, 512
          %s296 = sadd.s32 %s294, %s295
          %s297 = smul.addr %s296, 128
          %s298 = scalar_lea.hbm %s5, %s297
          %s299 = sshll.u32 %s288, 4
          %s300 = int_to_ptr.vmem [resolvable:$true] %s299
          %305 = dma.hbm_to_vmem [thread:$0]  %s298, 8192, %s300, %s285, 128, 128, 8
        $region36: #{tpu_custom_call.1} parent=23 // pred_fallthru
          _
      $region24: #{tpu_custom_call.1} parent=5 // pred_fallthru
        _
      %p306 = scmp.le.s32.totalorder 1, %s18
      %p307 = scmp.lt.s32.totalorder %s18, 9
      %p308 = pnand %p306, %p307
      %p309 = pneg %p308
      // Predicated region
      $region37: #{tpu_custom_call.1} parent=5 // pred_check
        _
      $region38: #{tpu_custom_call.1} parent=5 // pred_check_branch
        %311 = sbr.rel (%p308) target = $region40
      $region39: #{tpu_custom_call.1} parent=5 // pred_region
        %s312 = ssub.s32 %s18, 1
        // Predicated region
        $region41: #{tpu_custom_call.1} parent=39 // pred_check
          %p313 = pneg %p82
        $region42: #{tpu_custom_call.1} parent=39 // pred_check_branch
          %315 = sbr.rel (%p313) target = $region44
        $region43: #{tpu_custom_call.1} parent=39 // pred_region
          %316 = dma.done [#allocation5], 1024
        $region44: #{tpu_custom_call.1} parent=39 // pred_fallthru
          _
        // Predicated region
        $region45: #{tpu_custom_call.1} parent=39 // pred_check
          %p317 = pneg %p108
        $region46: #{tpu_custom_call.1} parent=39 // pred_check_branch
          %319 = sbr.rel (%p317) target = $region48
        $region47: #{tpu_custom_call.1} parent=39 // pred_region
          %320 = dma.done [#allocation8], 16
        $region48: #{tpu_custom_call.1} parent=39 // pred_fallthru
          _
        %s321 = sand.u32 %s23, 1
        %s322 = scalar_lea.sflag [#allocation5], %s321
        %s323 = sand.u32 %s127, 1
        %s324 = smul.addr %s323, 512
        %s325 = scalar_lea.vmem [#allocation9], %s324
        // Predicated region
        $region49: #{tpu_custom_call.1} parent=39 // pred_check
          %p326 = pneg %p140
        $region50: #{tpu_custom_call.1} parent=39 // pred_check_branch
          %328 = sbr.rel (%p326) target = $region52
        $region51: #{tpu_custom_call.1} parent=39 // pred_region
          %329 = dma.done %s322, 8192
        $region52: #{tpu_custom_call.1} parent=39 // pred_fallthru
          _
        %s330 = sand.u32 %s23, 1
        %s331 = scalar_lea.sflag [#allocation5], %s330
        %s332 = sand.u32 %s159, 1
        %s333 = smul.addr %s332, 512
        %s334 = scalar_lea.vmem [#allocation10], %s333
        // Predicated region
        $region53: #{tpu_custom_call.1} parent=39 // pred_check
          %p335 = pneg %p172
        $region54: #{tpu_custom_call.1} parent=39 // pred_check_branch
          %337 = sbr.rel (%p335) target = $region56
        $region55: #{tpu_custom_call.1} parent=39 // pred_region
          %338 = dma.done %s331, 8192
        $region56: #{tpu_custom_call.1} parent=39 // pred_fallthru
          _
        %s339 = smul.u32 64, %s27
        %p340 = scmp.lt.s32.totalorder %s339, 511
        %s341 = scalar_select %p340, %s339, 511
        %s342 = smul.addr %s341, 8
        %s343 = scalar_lea.vmem %s1, %s342
        %p344 = pneg %p56
        %p345 = pneg %p53
        %p346 = pneg %p82
        %p347 = pneg %p79
        %p348 = pneg %p108
        %p349 = pneg %p105
        %s350 = sand.u32 %s23, 1
        %s351 = scalar_lea.sflag [#allocation5], %s350
        %s352 = sand.u32 %s127, 1
        %s353 = smul.addr %s352, 512
        %s354 = scalar_lea.vmem [#allocation9], %s353
        %p355 = pneg %p140
        %p356 = pneg %p137
        %s357 = sand.u32 %s23, 1
        %s358 = scalar_lea.sflag [#allocation5], %s357
        %s359 = sand.u32 %s159, 1
        %s360 = smul.addr %s359, 512
        %s361 = scalar_lea.vmem [#allocation10], %s360
        %p362 = pneg %p172
        %p363 = pneg %p169
        %p364 = pneg %p200
        %p365 = pneg %p197
        %s366 = sand.u32 %s187, 1
        %s367 = scalar_lea.sflag [#allocation6], %s366
        %s368 = sand.u32 %s187, 1
        %s369 = smul.addr %s368, 512
        %s370 = scalar_lea.vmem [#allocation11], %s369
        %s371 = smul.u32 64, %s27
        %p372 = scmp.lt.s32.totalorder %s371, 511
        %s373 = scalar_select %p372, %s371, 511
        %s374 = smul.addr %s373, 8
        %s375 = scalar_lea.vmem %s1, %s374
        %s376 = smul.u32 64, %s27
        %s377 = sld [smem:[#allocation3]]
        %s378 = smul.u32 64, %s27
        %s379 = sld [smem:[#allocation3]]
        %s380 = smul.u32 64, %s27
        %s381 = smul.u32 64, %s27
        %v382 = vld [vmem:[%s375] sm:$0xff]
        %v383 = vld [vmem:[%s375 + $0x8] sm:$0xff]
        %v384 = vld [vmem:[%s375 + $0x10] sm:$0xff]
        %v385 = vld [vmem:[%s375 + $0x18] sm:$0xff]
        %v386 = vld [vmem:[%s375 + $0x20] sm:$0xff]
        %v387 = vld [vmem:[%s375 + $0x28] sm:$0xff]
        %v388 = vld [vmem:[%s375 + $0x30] sm:$0xff]
        %v389 = vld [vmem:[%s375 + $0x38] sm:$0xff]
        %v390 = vld [vmem:[%s375 + $0x40] sm:$0xff]
        %v391 = vld [vmem:[%s375 + $0x48] sm:$0xff]
        %v392 = vld [vmem:[%s375 + $0x50] sm:$0xff]
        %v393 = vld [vmem:[%s375 + $0x58] sm:$0xff]
        %v394 = vld [vmem:[%s375 + $0x60] sm:$0xff]
        %v395 = vld [vmem:[%s375 + $0x68] sm:$0xff]
        %v396 = vld [vmem:[%s375 + $0x70] sm:$0xff]
        %v397 = vld [vmem:[%s375 + $0x78] sm:$0xff]
        %v398 = vld [vmem:[%s375 + $0x80] sm:$0xff]
        %v399 = vld [vmem:[%s375 + $0x88] sm:$0xff]
        %v400 = vld [vmem:[%s375 + $0x90] sm:$0xff]
        %v401 = vld [vmem:[%s375 + $0x98] sm:$0xff]
        %v402 = vld [vmem:[%s375 + $0xa0] sm:$0xff]
        %v403 = vld [vmem:[%s375 + $0xa8] sm:$0xff]
        %v404 = vld [vmem:[%s375 + $0xb0] sm:$0xff]
        %v405 = vld [vmem:[%s375 + $0xb8] sm:$0xff]
        %v406 = vld [vmem:[%s375 + $0xc0] sm:$0xff]
        %v407 = vld [vmem:[%s375 + $0xc8] sm:$0xff]
        %v408 = vld [vmem:[%s375 + $0xd0] sm:$0xff]
        %v409 = vld [vmem:[%s375 + $0xd8] sm:$0xff]
        %v410 = vld [vmem:[%s375 + $0xe0] sm:$0xff]
        %v411 = vld [vmem:[%s375 + $0xe8] sm:$0xff]
        %v412 = vld [vmem:[%s375 + $0xf0] sm:$0xff]
        %v413 = vld [vmem:[%s375 + $0xf8] sm:$0xff]
        %v414 = vld [vmem:[%s375 + $0x100] sm:$0xff]
        %v415 = vld [vmem:[%s375 + $0x108] sm:$0xff]
        %v416 = vld [vmem:[%s375 + $0x110] sm:$0xff]
        %v417 = vld [vmem:[%s375 + $0x118] sm:$0xff]
        %v418 = vld [vmem:[%s375 + $0x120] sm:$0xff]
        %v419 = vld [vmem:[%s375 + $0x128] sm:$0xff]
        %v420 = vld [vmem:[%s375 + $0x130] sm:$0xff]
        %v421 = vld [vmem:[%s375 + $0x138] sm:$0xff]
        %v422 = vld [vmem:[%s375 + $0x140] sm:$0xff]
        %v423 = vld [vmem:[%s375 + $0x148] sm:$0xff]
        %v424 = vld [vmem:[%s375 + $0x150] sm:$0xff]
        %v425 = vld [vmem:[%s375 + $0x158] sm:$0xff]
        %v426 = vld [vmem:[%s375 + $0x160] sm:$0xff]
        %v427 = vld [vmem:[%s375 + $0x168] sm:$0xff]
        %v428 = vld [vmem:[%s375 + $0x170] sm:$0xff]
        %v429 = vld [vmem:[%s375 + $0x178] sm:$0xff]
        %v430 = vld [vmem:[%s375 + $0x180] sm:$0xff]
        %v431 = vld [vmem:[%s375 + $0x188] sm:$0xff]
        %v432 = vld [vmem:[%s375 + $0x190] sm:$0xff]
        %v433 = vld [vmem:[%s375 + $0x198] sm:$0xff]
        %v434 = vld [vmem:[%s375 + $0x1a0] sm:$0xff]
        %v435 = vld [vmem:[%s375 + $0x1a8] sm:$0xff]
        %v436 = vld [vmem:[%s375 + $0x1b0] sm:$0xff]
        %v437 = vld [vmem:[%s375 + $0x1b8] sm:$0xff]
        %v438 = vld [vmem:[%s375 + $0x1c0] sm:$0xff]
        %v439 = vld [vmem:[%s375 + $0x1c8] sm:$0xff]
        %v440 = vld [vmem:[%s375 + $0x1d0] sm:$0xff]
        %v441 = vld [vmem:[%s375 + $0x1d8] sm:$0xff]
        %v442 = vld [vmem:[%s375 + $0x1e0] sm:$0xff]
        %v443 = vld [vmem:[%s375 + $0x1e8] sm:$0xff]
        %v444 = vld [vmem:[%s375 + $0x1f0] sm:$0xff]
        %v445 = vld [vmem:[%s375 + $0x1f8] sm:$0xff]
        %v446 = vld [vmem:[#allocation4] sm:$0xff]
        %v447 = vld [vmem:[#allocation4 + $0x8] sm:$0xff]
        %v448 = vld [vmem:[#allocation4 + $0x10] sm:$0xff]
        %v449 = vld [vmem:[#allocation4 + $0x18] sm:$0xff]
        %v450 = vld [vmem:[#allocation4 + $0x20] sm:$0xff]
        %v451 = vld [vmem:[#allocation4 + $0x28] sm:$0xff]
        %v452 = vld [vmem:[#allocation4 + $0x30] sm:$0xff]
        %v453 = vld [vmem:[#allocation4 + $0x38] sm:$0xff]
        %v454 = vld [vmem:[#allocation7] sm:$0x1]
        %v456 = vlaneseq
        %v457 = vshrl.u32 %v456, 7
        %v458 = vsub.s32 0, %v457
        %v459 = vrot.slane %v454, %v458
        %vm461 = vcmask 523264
        %v463 = vsel %vm461, %v382, 0
        %v466 = vsel %vm461, %v383, 0
        %v469 = vsel %vm461, %v384, 0
        %v472 = vsel %vm461, %v385, 0
        %v475 = vsel %vm461, %v386, 0
        %v478 = vsel %vm461, %v387, 0
        %v481 = vsel %vm461, %v388, 0
        %v484 = vsel %vm461, %v389, 0
        %v487 = vsel %vm461, %v390, 0
        %v490 = vsel %vm461, %v391, 0
        %v493 = vsel %vm461, %v392, 0
        %v496 = vsel %vm461, %v393, 0
        %v499 = vsel %vm461, %v394, 0
        %v502 = vsel %vm461, %v395, 0
        %v505 = vsel %vm461, %v396, 0
        %v508 = vsel %vm461, %v397, 0
        %v511 = vsel %vm461, %v398, 0
        %v514 = vsel %vm461, %v399, 0
        %v517 = vsel %vm461, %v400, 0
        %v520 = vsel %vm461, %v401, 0
        %v523 = vsel %vm461, %v402, 0
        %v526 = vsel %vm461, %v403, 0
        %v529 = vsel %vm461, %v404, 0
        %v532 = vsel %vm461, %v405, 0
        %v535 = vsel %vm461, %v406, 0
        %v538 = vsel %vm461, %v407, 0
        %v541 = vsel %vm461, %v408, 0
        %v544 = vsel %vm461, %v409, 0
        %v547 = vsel %vm461, %v410, 0
        %v550 = vsel %vm461, %v411, 0
        %v553 = vsel %vm461, %v412, 0
        %v556 = vsel %vm461, %v413, 0
        %v559 = vsel %vm461, %v414, 0
        %v562 = vsel %vm461, %v415, 0
        %v565 = vsel %vm461, %v416, 0
        %v568 = vsel %vm461, %v417, 0
        %v571 = vsel %vm461, %v418, 0
        %v574 = vsel %vm461, %v419, 0
        %v577 = vsel %vm461, %v420, 0
        %v580 = vsel %vm461, %v421, 0
        %v583 = vsel %vm461, %v422, 0
        %v586 = vsel %vm461, %v423, 0
        %v589 = vsel %vm461, %v424, 0
        %v592 = vsel %vm461, %v425, 0
        %v595 = vsel %vm461, %v426, 0
        %v598 = vsel %vm461, %v427, 0
        %v601 = vsel %vm461, %v428, 0
        %v604 = vsel %vm461, %v429, 0
        %v607 = vsel %vm461, %v430, 0
        %v610 = vsel %vm461, %v431, 0
        %v613 = vsel %vm461, %v432, 0
        %v616 = vsel %vm461, %v433, 0
        %v619 = vsel %vm461, %v434, 0
        %v622 = vsel %vm461, %v435, 0
        %v625 = vsel %vm461, %v436, 0
        %v628 = vsel %vm461, %v437, 0
        %v631 = vsel %vm461, %v438, 0
        %v634 = vsel %vm461, %v439, 0
        %v637 = vsel %vm461, %v440, 0
        %v640 = vsel %vm461, %v441, 0
        %v643 = vsel %vm461, %v442, 0
        %v646 = vsel %vm461, %v443, 0
        %v649 = vsel %vm461, %v444, 0
        %v652 = vsel %vm461, %v445, 0
        %654 = vmatprep.subr.mxu0 0.0
        %655 = vmatpush1.msra.mxu0 0.0
        %656 = vmatprep.subr.mxu0 0.0
        %657 = vmatpush1.msra.mxu0 0.0
        %658 = vmatprep.subr.mxu0 0.0
        %659 = vmatpush1.msra.mxu0 0.0
        %660 = vmatprep.subr.mxu0 0.0
        %661 = vmatpush1.msra.mxu0 0.0
        %662 = vmatprep.subr.mxu0 0.0
        %663 = vmatpush1.msra.mxu0 0.0
        %664 = vmatprep.subr.mxu0 0.0
        %665 = vmatpush1.msra.mxu0 0.0
        %666 = vmatprep.subr.mxu0 0.0
        %667 = vmatpush1.msra.mxu0 0.0
        %668 = vmatprep.subr.mxu0 0.0
        %669 = vmatpush1.msra.mxu0 0.0
        %670 = vmatprep.subr.mxu0 0.0
        %671 = vmatpush1.msra.mxu0 %v453
        %672 = vmatprep.subr.mxu0 0.0
        %673 = vmatpush1.msra.mxu0 %v452
        %674 = vmatprep.subr.mxu0 0.0
        %675 = vmatpush1.msra.mxu0 %v451
        %676 = vmatprep.subr.mxu0 0.0
        %677 = vmatpush1.msra.mxu0 %v450
        %678 = vmatprep.subr.mxu0 0.0
        %679 = vmatpush1.msra.mxu0 %v449
        %680 = vmatprep.subr.mxu0 0.0
        %681 = vmatpush1.msra.mxu0 %v448
        %682 = vmatprep.subr.mxu0 0.0
        %683 = vmatpush1.msra.mxu0 %v447
        %684 = vmatprep.subr.mxu0 0.0
        %685 = vmatpush1.msra.mxu0 %v446
        %686 = vmatprep.subr.mxu0 0.0
        %687 = vmatpush2.msra.mxu0 0.0
        %688 = vmatprep.subr.mxu0 0.0
        %689 = vmatpush2.msra.mxu0 0.0
        %690 = vmatprep.subr.mxu0 0.0
        %691 = vmatpush2.msra.mxu0 0.0
        %692 = vmatprep.subr.mxu0 0.0
        %693 = vmatpush2.msra.mxu0 0.0
        %694 = vmatprep.subr.mxu0 0.0
        %695 = vmatpush2.msra.mxu0 0.0
        %696 = vmatprep.subr.mxu0 0.0
        %697 = vmatpush2.msra.mxu0 0.0
        %698 = vmatprep.subr.mxu0 0.0
        %699 = vmatpush2.msra.mxu0 0.0
        %700 = vmatprep.subr.mxu0 0.0
        %701 = vmatpush2.msra.mxu0 0.0
        %702 = vmatprep.subr.mxu0 0.0
        %703 = vmatpush2.msra.mxu0 0.0
        %704 = vmatprep.subr.mxu0 0.0
        %705 = vmatpush2.msra.mxu0 0.0
        %706 = vmatprep.subr.mxu0 0.0
        %707 = vmatpush2.msra.mxu0 0.0
        %708 = vmatprep.subr.mxu0 0.0
        %709 = vmatpush2.msra.mxu0 0.0
        %710 = vmatprep.subr.mxu0 0.0
        %711 = vmatpush2.msra.mxu0 0.0
        %712 = vmatprep.subr.mxu0 0.0
        %713 = vmatpush2.msra.mxu0 0.0
        %714 = vmatprep.subr.mxu0 0.0
        %715 = vmatpush2.msra.mxu0 0.0
        %716 = vmatprep.subr.mxu0 0.0
        %717 = vmatpush2.msra.mxu0 0.0
        %718 = vmatprep.mubr.f32.mxu0 0.0
        %719 = vmatmul.mubr.f32.gmra.mxu0 %v463
        %v720 = vpop.f32.mrf.mxu0
        %v721 = vadd.f32 %v459, %v720
        %v722 = vpop.f32.mrf.mxu0
        %723 = vmatprep.mubr.f32.mxu0 0.0
        %724 = vmatmul.mubr.f32.gmra.mxu0 %v466
        %v725 = vpop.f32.mrf.mxu0
        %v726 = vadd.f32 %v459, %v725
        %v727 = vpop.f32.mrf.mxu0
        %728 = vmatprep.mubr.f32.mxu0 0.0
        %729 = vmatmul.mubr.f32.gmra.mxu0 %v469
        %v730 = vpop.f32.mrf.mxu0
        %v731 = vadd.f32 %v459, %v730
        %v732 = vpop.f32.mrf.mxu0
        %733 = vmatprep.mubr.f32.mxu0 0.0
        %734 = vmatmul.mubr.f32.gmra.mxu0 %v472
        %v735 = vpop.f32.mrf.mxu0
        %v736 = vadd.f32 %v459, %v735
        %v737 = vpop.f32.mrf.mxu0
        %738 = vmatprep.mubr.f32.mxu0 0.0
        %739 = vmatmul.mubr.f32.gmra.mxu0 %v475
        %v740 = vpop.f32.mrf.mxu0
        %v741 = vadd.f32 %v459, %v740
        %v742 = vpop.f32.mrf.mxu0
        %743 = vmatprep.mubr.f32.mxu0 0.0
        %744 = vmatmul.mubr.f32.gmra.mxu0 %v478
        %v745 = vpop.f32.mrf.mxu0
        %v746 = vadd.f32 %v459, %v745
        %v747 = vpop.f32.mrf.mxu0
        %748 = vmatprep.mubr.f32.mxu0 0.0
        %749 = vmatmul.mubr.f32.gmra.mxu0 %v481
        %v750 = vpop.f32.mrf.mxu0
        %v751 = vadd.f32 %v459, %v750
        %v752 = vpop.f32.mrf.mxu0
        %753 = vmatprep.mubr.f32.mxu0 0.0
        %754 = vmatmul.mubr.f32.gmra.mxu0 %v484
        %v755 = vpop.f32.mrf.mxu0
        %v756 = vadd.f32 %v459, %v755
        %v757 = vpop.f32.mrf.mxu0
        %758 = vmatprep.mubr.f32.mxu0 0.0
        %759 = vmatmul.mubr.f32.gmra.mxu0 %v487
        %v760 = vpop.f32.mrf.mxu0
        %v761 = vadd.f32 %v459, %v760
        %v762 = vpop.f32.mrf.mxu0
        %763 = vmatprep.mubr.f32.mxu0 0.0
        %764 = vmatmul.mubr.f32.gmra.mxu0 %v490
        %v765 = vpop.f32.mrf.mxu0
        %v766 = vadd.f32 %v459, %v765
        %v767 = vpop.f32.mrf.mxu0
        %768 = vmatprep.mubr.f32.mxu0 0.0
        %769 = vmatmul.mubr.f32.gmra.mxu0 %v493
        %v770 = vpop.f32.mrf.mxu0
        %v771 = vadd.f32 %v459, %v770
        %v772 = vpop.f32.mrf.mxu0
        %773 = vmatprep.mubr.f32.mxu0 0.0
        %774 = vmatmul.mubr.f32.gmra.mxu0 %v496
        %v775 = vpop.f32.mrf.mxu0
        %v776 = vadd.f32 %v459, %v775
        %v777 = vpop.f32.mrf.mxu0
        %778 = vmatprep.mubr.f32.mxu0 0.0
        %779 = vmatmul.mubr.f32.gmra.mxu0 %v499
        %v780 = vpop.f32.mrf.mxu0
        %v781 = vadd.f32 %v459, %v780
        %v782 = vpop.f32.mrf.mxu0
        %783 = vmatprep.mubr.f32.mxu0 0.0
        %784 = vmatmul.mubr.f32.gmra.mxu0 %v502
        %v785 = vpop.f32.mrf.mxu0
        %v786 = vadd.f32 %v459, %v785
        %v787 = vpop.f32.mrf.mxu0
        %788 = vmatprep.mubr.f32.mxu0 0.0
        %789 = vmatmul.mubr.f32.gmra.mxu0 %v505
        %v790 = vpop.f32.mrf.mxu0
        %v791 = vadd.f32 %v459, %v790
        %v792 = vpop.f32.mrf.mxu0
        %793 = vmatprep.mubr.f32.mxu0 0.0
        %794 = vmatmul.mubr.f32.gmra.mxu0 %v508
        %v795 = vpop.f32.mrf.mxu0
        %v796 = vadd.f32 %v459, %v795
        %v797 = vpop.f32.mrf.mxu0
        %798 = vmatprep.mubr.f32.mxu0 0.0
        %799 = vmatmul.mubr.f32.gmra.mxu0 %v511
        %v800 = vpop.f32.mrf.mxu0
        %v801 = vadd.f32 %v459, %v800
        %v802 = vpop.f32.mrf.mxu0
        %803 = vmatprep.mubr.f32.mxu0 0.0
        %804 = vmatmul.mubr.f32.gmra.mxu0 %v514
        %v805 = vpop.f32.mrf.mxu0
        %v806 = vadd.f32 %v459, %v805
        %v807 = vpop.f32.mrf.mxu0
        %808 = vmatprep.mubr.f32.mxu0 0.0
        %809 = vmatmul.mubr.f32.gmra.mxu0 %v517
        %v810 = vpop.f32.mrf.mxu0
        %v811 = vadd.f32 %v459, %v810
        %v812 = vpop.f32.mrf.mxu0
        %813 = vmatprep.mubr.f32.mxu0 0.0
        %814 = vmatmul.mubr.f32.gmra.mxu0 %v520
        %v815 = vpop.f32.mrf.mxu0
        %v816 = vadd.f32 %v459, %v815
        %v817 = vpop.f32.mrf.mxu0
        %818 = vmatprep.mubr.f32.mxu0 0.0
        %819 = vmatmul.mubr.f32.gmra.mxu0 %v523
        %v820 = vpop.f32.mrf.mxu0
        %v821 = vadd.f32 %v459, %v820
        %v822 = vpop.f32.mrf.mxu0
        %823 = vmatprep.mubr.f32.mxu0 0.0
        %824 = vmatmul.mubr.f32.gmra.mxu0 %v526
        %v825 = vpop.f32.mrf.mxu0
        %v826 = vadd.f32 %v459, %v825
        %v827 = vpop.f32.mrf.mxu0
        %828 = vmatprep.mubr.f32.mxu0 0.0
        %829 = vmatmul.mubr.f32.gmra.mxu0 %v529
        %v830 = vpop.f32.mrf.mxu0
        %v831 = vadd.f32 %v459, %v830
        %v832 = vpop.f32.mrf.mxu0
        %833 = vmatprep.mubr.f32.mxu0 0.0
        %834 = vmatmul.mubr.f32.gmra.mxu0 %v532
        %v835 = vpop.f32.mrf.mxu0
        %v836 = vadd.f32 %v459, %v835
        %v837 = vpop.f32.mrf.mxu0
        %838 = vmatprep.mubr.f32.mxu0 0.0
        %839 = vmatmul.mubr.f32.gmra.mxu0 %v535
        %v840 = vpop.f32.mrf.mxu0
        %v841 = vadd.f32 %v459, %v840
        %v842 = vpop.f32.mrf.mxu0
        %843 = vmatprep.mubr.f32.mxu0 0.0
        %844 = vmatmul.mubr.f32.gmra.mxu0 %v538
        %v845 = vpop.f32.mrf.mxu0
        %v846 = vadd.f32 %v459, %v845
        %v847 = vpop.f32.mrf.mxu0
        %848 = vmatprep.mubr.f32.mxu0 0.0
        %849 = vmatmul.mubr.f32.gmra.mxu0 %v541
        %v850 = vpop.f32.mrf.mxu0
        %v851 = vadd.f32 %v459, %v850
        %v852 = vpop.f32.mrf.mxu0
        %853 = vmatprep.mubr.f32.mxu0 0.0
        %854 = vmatmul.mubr.f32.gmra.mxu0 %v544
        %v855 = vpop.f32.mrf.mxu0
        %v856 = vadd.f32 %v459, %v855
        %v857 = vpop.f32.mrf.mxu0
        %858 = vmatprep.mubr.f32.mxu0 0.0
        %859 = vmatmul.mubr.f32.gmra.mxu0 %v547
        %v860 = vpop.f32.mrf.mxu0
        %v861 = vadd.f32 %v459, %v860
        %v862 = vpop.f32.mrf.mxu0
        %863 = vmatprep.mubr.f32.mxu0 0.0
        %864 = vmatmul.mubr.f32.gmra.mxu0 %v550
        %v865 = vpop.f32.mrf.mxu0
        %v866 = vadd.f32 %v459, %v865
        %v867 = vpop.f32.mrf.mxu0
        %868 = vmatprep.mubr.f32.mxu0 0.0
        %869 = vmatmul.mubr.f32.gmra.mxu0 %v553
        %v870 = vpop.f32.mrf.mxu0
        %v871 = vadd.f32 %v459, %v870
        %v872 = vpop.f32.mrf.mxu0
        %873 = vmatprep.mubr.f32.mxu0 0.0
        %874 = vmatmul.mubr.f32.gmra.mxu0 %v556
        %v875 = vpop.f32.mrf.mxu0
        %v876 = vadd.f32 %v459, %v875
        %v877 = vpop.f32.mrf.mxu0
        %878 = vmatprep.mubr.f32.mxu0 0.0
        %879 = vmatmul.mubr.f32.gmra.mxu0 %v559
        %v880 = vpop.f32.mrf.mxu0
        %v881 = vadd.f32 %v459, %v880
        %v882 = vpop.f32.mrf.mxu0
        %883 = vmatprep.mubr.f32.mxu0 0.0
        %884 = vmatmul.mubr.f32.gmra.mxu0 %v562
        %v885 = vpop.f32.mrf.mxu0
        %v886 = vadd.f32 %v459, %v885
        %v887 = vpop.f32.mrf.mxu0
        %888 = vmatprep.mubr.f32.mxu0 0.0
        %889 = vmatmul.mubr.f32.gmra.mxu0 %v565
        %v890 = vpop.f32.mrf.mxu0
        %v891 = vadd.f32 %v459, %v890
        %v892 = vpop.f32.mrf.mxu0
        %893 = vmatprep.mubr.f32.mxu0 0.0
        %894 = vmatmul.mubr.f32.gmra.mxu0 %v568
        %v895 = vpop.f32.mrf.mxu0
        %v896 = vadd.f32 %v459, %v895
        %v897 = vpop.f32.mrf.mxu0
        %898 = vmatprep.mubr.f32.mxu0 0.0
        %899 = vmatmul.mubr.f32.gmra.mxu0 %v571
        %v900 = vpop.f32.mrf.mxu0
        %v901 = vadd.f32 %v459, %v900
        %v902 = vpop.f32.mrf.mxu0
        %903 = vmatprep.mubr.f32.mxu0 0.0
        %904 = vmatmul.mubr.f32.gmra.mxu0 %v574
        %v905 = vpop.f32.mrf.mxu0
        %v906 = vadd.f32 %v459, %v905
        %v907 = vpop.f32.mrf.mxu0
        %908 = vmatprep.mubr.f32.mxu0 0.0
        %909 = vmatmul.mubr.f32.gmra.mxu0 %v577
        %v910 = vpop.f32.mrf.mxu0
        %v911 = vadd.f32 %v459, %v910
        %v912 = vpop.f32.mrf.mxu0
        %913 = vmatprep.mubr.f32.mxu0 0.0
        %914 = vmatmul.mubr.f32.gmra.mxu0 %v580
        %v915 = vpop.f32.mrf.mxu0
        %v916 = vadd.f32 %v459, %v915
        %v917 = vpop.f32.mrf.mxu0
        %918 = vmatprep.mubr.f32.mxu0 0.0
        %919 = vmatmul.mubr.f32.gmra.mxu0 %v583
        %v920 = vpop.f32.mrf.mxu0
        %v921 = vadd.f32 %v459, %v920
        %v922 = vpop.f32.mrf.mxu0
        %923 = vmatprep.mubr.f32.mxu0 0.0
        %924 = vmatmul.mubr.f32.gmra.mxu0 %v586
        %v925 = vpop.f32.mrf.mxu0
        %v926 = vadd.f32 %v459, %v925
        %v927 = vpop.f32.mrf.mxu0
        %928 = vmatprep.mubr.f32.mxu0 0.0
        %929 = vmatmul.mubr.f32.gmra.mxu0 %v589
        %v930 = vpop.f32.mrf.mxu0
        %v931 = vadd.f32 %v459, %v930
        %v932 = vpop.f32.mrf.mxu0
        %933 = vmatprep.mubr.f32.mxu0 0.0
        %934 = vmatmul.mubr.f32.gmra.mxu0 %v592
        %v935 = vpop.f32.mrf.mxu0
        %v936 = vadd.f32 %v459, %v935
        %v937 = vpop.f32.mrf.mxu0
        %938 = vmatprep.mubr.f32.mxu0 0.0
        %939 = vmatmul.mubr.f32.gmra.mxu0 %v595
        %v940 = vpop.f32.mrf.mxu0
        %v941 = vadd.f32 %v459, %v940
        %v942 = vpop.f32.mrf.mxu0
        %943 = vmatprep.mubr.f32.mxu0 0.0
        %944 = vmatmul.mubr.f32.gmra.mxu0 %v598
        %v945 = vpop.f32.mrf.mxu0
        %v946 = vadd.f32 %v459, %v945
        %v947 = vpop.f32.mrf.mxu0
        %948 = vmatprep.mubr.f32.mxu0 0.0
        %949 = vmatmul.mubr.f32.gmra.mxu0 %v601
        %v950 = vpop.f32.mrf.mxu0
        %v951 = vadd.f32 %v459, %v950
        %v952 = vpop.f32.mrf.mxu0
        %953 = vmatprep.mubr.f32.mxu0 0.0
        %954 = vmatmul.mubr.f32.gmra.mxu0 %v604
        %v955 = vpop.f32.mrf.mxu0
        %v956 = vadd.f32 %v459, %v955
        %v957 = vpop.f32.mrf.mxu0
        %958 = vmatprep.mubr.f32.mxu0 0.0
        %959 = vmatmul.mubr.f32.gmra.mxu0 %v607
        %v960 = vpop.f32.mrf.mxu0
        %v961 = vadd.f32 %v459, %v960
        %v962 = vpop.f32.mrf.mxu0
        %963 = vmatprep.mubr.f32.mxu0 0.0
        %964 = vmatmul.mubr.f32.gmra.mxu0 %v610
        %v965 = vpop.f32.mrf.mxu0
        %v966 = vadd.f32 %v459, %v965
        %v967 = vpop.f32.mrf.mxu0
        %968 = vmatprep.mubr.f32.mxu0 0.0
        %969 = vmatmul.mubr.f32.gmra.mxu0 %v613
        %v970 = vpop.f32.mrf.mxu0
        %v971 = vadd.f32 %v459, %v970
        %v972 = vpop.f32.mrf.mxu0
        %973 = vmatprep.mubr.f32.mxu0 0.0
        %974 = vmatmul.mubr.f32.gmra.mxu0 %v616
        %v975 = vpop.f32.mrf.mxu0
        %v976 = vadd.f32 %v459, %v975
        %v977 = vpop.f32.mrf.mxu0
        %978 = vmatprep.mubr.f32.mxu0 0.0
        %979 = vmatmul.mubr.f32.gmra.mxu0 %v619
        %v980 = vpop.f32.mrf.mxu0
        %v981 = vadd.f32 %v459, %v980
        %v982 = vpop.f32.mrf.mxu0
        %983 = vmatprep.mubr.f32.mxu0 0.0
        %984 = vmatmul.mubr.f32.gmra.mxu0 %v622
        %v985 = vpop.f32.mrf.mxu0
        %v986 = vadd.f32 %v459, %v985
        %v987 = vpop.f32.mrf.mxu0
        %988 = vmatprep.mubr.f32.mxu0 0.0
        %989 = vmatmul.mubr.f32.gmra.mxu0 %v625
        %v990 = vpop.f32.mrf.mxu0
        %v991 = vadd.f32 %v459, %v990
        %v992 = vpop.f32.mrf.mxu0
        %993 = vmatprep.mubr.f32.mxu0 0.0
        %994 = vmatmul.mubr.f32.gmra.mxu0 %v628
        %v995 = vpop.f32.mrf.mxu0
        %v996 = vadd.f32 %v459, %v995
        %v997 = vpop.f32.mrf.mxu0
        %998 = vmatprep.mubr.f32.mxu0 0.0
        %999 = vmatmul.mubr.f32.gmra.mxu0 %v631
        %v1000 = vpop.f32.mrf.mxu0
        %v1001 = vadd.f32 %v459, %v1000
        %v1002 = vpop.f32.mrf.mxu0
        %1003 = vmatprep.mubr.f32.mxu0 0.0
        %1004 = vmatmul.mubr.f32.gmra.mxu0 %v634
        %v1005 = vpop.f32.mrf.mxu0
        %v1006 = vadd.f32 %v459, %v1005
        %v1007 = vpop.f32.mrf.mxu0
        %1008 = vmatprep.mubr.f32.mxu0 0.0
        %1009 = vmatmul.mubr.f32.gmra.mxu0 %v637
        %v1010 = vpop.f32.mrf.mxu0
        %v1011 = vadd.f32 %v459, %v1010
        %v1012 = vpop.f32.mrf.mxu0
        %1013 = vmatprep.mubr.f32.mxu0 0.0
        %1014 = vmatmul.mubr.f32.gmra.mxu0 %v640
        %v1015 = vpop.f32.mrf.mxu0
        %v1016 = vadd.f32 %v459, %v1015
        %v1017 = vpop.f32.mrf.mxu0
        %1018 = vmatprep.mubr.f32.mxu0 0.0
        %1019 = vmatmul.mubr.f32.gmra.mxu0 %v643
        %v1020 = vpop.f32.mrf.mxu0
        %v1021 = vadd.f32 %v459, %v1020
        %v1022 = vpop.f32.mrf.mxu0
        %1023 = vmatprep.mubr.f32.mxu0 0.0
        %1024 = vmatmul.mubr.f32.gmra.mxu0 %v646
        %v1025 = vpop.f32.mrf.mxu0
        %v1026 = vadd.f32 %v459, %v1025
        %v1027 = vpop.f32.mrf.mxu0
        %1028 = vmatprep.mubr.f32.mxu0 0.0
        %1029 = vmatmul.mubr.f32.gmra.mxu0 %v649
        %v1030 = vpop.f32.mrf.mxu0
        %v1031 = vadd.f32 %v459, %v1030
        %v1032 = vpop.f32.mrf.mxu0
        %1033 = vmatprep.mubr.f32.mxu0 0.0
        %1034 = vmatmul.mubr.f32.gmra.mxu0 %v652
        %v1035 = vpop.f32.mrf.mxu0
        %v1036 = vadd.f32 %v459, %v1035
        %v1037 = vpop.f32.mrf.mxu0
        %1038 = vdwg.mxu0
        %v1039 = vmul.f32 %v721, 30.0
        %v1040 = vmul.f32 %v726, 30.0
        %v1041 = vmul.f32 %v731, 30.0
        %v1042 = vmul.f32 %v736, 30.0
        %v1043 = vmul.f32 %v741, 30.0
        %v1044 = vmul.f32 %v746, 30.0
        %v1045 = vmul.f32 %v751, 30.0
        %v1046 = vmul.f32 %v756, 30.0
        %v1047 = vmul.f32 %v761, 30.0
        %v1048 = vmul.f32 %v766, 30.0
        %v1049 = vmul.f32 %v771, 30.0
        %v1050 = vmul.f32 %v776, 30.0
        %v1051 = vmul.f32 %v781, 30.0
        %v1052 = vmul.f32 %v786, 30.0
        %v1053 = vmul.f32 %v791, 30.0
        %v1054 = vmul.f32 %v796, 30.0
        %v1055 = vmul.f32 %v801, 30.0
        %v1056 = vmul.f32 %v806, 30.0
        %v1057 = vmul.f32 %v811, 30.0
        %v1058 = vmul.f32 %v816, 30.0
        %v1059 = vmul.f32 %v821, 30.0
        %v1060 = vmul.f32 %v826, 30.0
        %v1061 = vmul.f32 %v831, 30.0
        %v1062 = vmul.f32 %v836, 30.0
        %v1063 = vmul.f32 %v841, 30.0
        %v1064 = vmul.f32 %v846, 30.0
        %v1065 = vmul.f32 %v851, 30.0
        %v1066 = vmul.f32 %v856, 30.0
        %v1067 = vmul.f32 %v861, 30.0
        %v1068 = vmul.f32 %v866, 30.0
        %v1069 = vmul.f32 %v871, 30.0
        %v1070 = vmul.f32 %v876, 30.0
        %v1071 = vmul.f32 %v881, 30.0
        %v1072 = vmul.f32 %v886, 30.0
        %v1073 = vmul.f32 %v891, 30.0
        %v1074 = vmul.f32 %v896, 30.0
        %v1075 = vmul.f32 %v901, 30.0
        %v1076 = vmul.f32 %v906, 30.0
        %v1077 = vmul.f32 %v911, 30.0
        %v1078 = vmul.f32 %v916, 30.0
        %v1079 = vmul.f32 %v921, 30.0
        %v1080 = vmul.f32 %v926, 30.0
        %v1081 = vmul.f32 %v931, 30.0
        %v1082 = vmul.f32 %v936, 30.0
        %v1083 = vmul.f32 %v941, 30.0
        %v1084 = vmul.f32 %v946, 30.0
        %v1085 = vmul.f32 %v951, 30.0
        %v1086 = vmul.f32 %v956, 30.0
        %v1087 = vmul.f32 %v961, 30.0
        %v1088 = vmul.f32 %v966, 30.0
        %v1089 = vmul.f32 %v971, 30.0
        %v1090 = vmul.f32 %v976, 30.0
        %v1091 = vmul.f32 %v981, 30.0
        %v1092 = vmul.f32 %v986, 30.0
        %v1093 = vmul.f32 %v991, 30.0
        %v1094 = vmul.f32 %v996, 30.0
        %v1095 = vmul.f32 %v1001, 30.0
        %v1096 = vmul.f32 %v1006, 30.0
        %v1097 = vmul.f32 %v1011, 30.0
        %v1098 = vmul.f32 %v1016, 30.0
        %v1099 = vmul.f32 %v1021, 30.0
        %v1100 = vmul.f32 %v1026, 30.0
        %v1101 = vmul.f32 %v1031, 30.0
        %v1102 = vmul.f32 %v1036, 30.0
        %v1103 = vld [vmem:[%s325] sm:$0xff]
        %v1104 = vld [vmem:[%s325 + $0x8] sm:$0xff]
        %v1105 = vld [vmem:[%s325 + $0x10] sm:$0xff]
        %v1106 = vld [vmem:[%s325 + $0x18] sm:$0xff]
        %v1107 = vld [vmem:[%s325 + $0x20] sm:$0xff]
        %v1108 = vld [vmem:[%s325 + $0x28] sm:$0xff]
        %v1109 = vld [vmem:[%s325 + $0x30] sm:$0xff]
        %v1110 = vld [vmem:[%s325 + $0x38] sm:$0xff]
        %v1111 = vld [vmem:[%s325 + $0x40] sm:$0xff]
        %v1112 = vld [vmem:[%s325 + $0x48] sm:$0xff]
        %v1113 = vld [vmem:[%s325 + $0x50] sm:$0xff]
        %v1114 = vld [vmem:[%s325 + $0x58] sm:$0xff]
        %v1115 = vld [vmem:[%s325 + $0x60] sm:$0xff]
        %v1116 = vld [vmem:[%s325 + $0x68] sm:$0xff]
        %v1117 = vld [vmem:[%s325 + $0x70] sm:$0xff]
        %v1118 = vld [vmem:[%s325 + $0x78] sm:$0xff]
        %v1119 = vld [vmem:[%s325 + $0x80] sm:$0xff]
        %v1120 = vld [vmem:[%s325 + $0x88] sm:$0xff]
        %v1121 = vld [vmem:[%s325 + $0x90] sm:$0xff]
        %v1122 = vld [vmem:[%s325 + $0x98] sm:$0xff]
        %v1123 = vld [vmem:[%s325 + $0xa0] sm:$0xff]
        %v1124 = vld [vmem:[%s325 + $0xa8] sm:$0xff]
        %v1125 = vld [vmem:[%s325 + $0xb0] sm:$0xff]
        %v1126 = vld [vmem:[%s325 + $0xb8] sm:$0xff]
        %v1127 = vld [vmem:[%s325 + $0xc0] sm:$0xff]
        %v1128 = vld [vmem:[%s325 + $0xc8] sm:$0xff]
        %v1129 = vld [vmem:[%s325 + $0xd0] sm:$0xff]
        %v1130 = vld [vmem:[%s325 + $0xd8] sm:$0xff]
        %v1131 = vld [vmem:[%s325 + $0xe0] sm:$0xff]
        %v1132 = vld [vmem:[%s325 + $0xe8] sm:$0xff]
        %v1133 = vld [vmem:[%s325 + $0xf0] sm:$0xff]
        %v1134 = vld [vmem:[%s325 + $0xf8] sm:$0xff]
        %v1135 = vld [vmem:[%s325 + $0x100] sm:$0xff]
        %v1136 = vld [vmem:[%s325 + $0x108] sm:$0xff]
        %v1137 = vld [vmem:[%s325 + $0x110] sm:$0xff]
        %v1138 = vld [vmem:[%s325 + $0x118] sm:$0xff]
        %v1139 = vld [vmem:[%s325 + $0x120] sm:$0xff]
        %v1140 = vld [vmem:[%s325 + $0x128] sm:$0xff]
        %v1141 = vld [vmem:[%s325 + $0x130] sm:$0xff]
        %v1142 = vld [vmem:[%s325 + $0x138] sm:$0xff]
        %v1143 = vld [vmem:[%s325 + $0x140] sm:$0xff]
        %v1144 = vld [vmem:[%s325 + $0x148] sm:$0xff]
        %v1145 = vld [vmem:[%s325 + $0x150] sm:$0xff]
        %v1146 = vld [vmem:[%s325 + $0x158] sm:$0xff]
        %v1147 = vld [vmem:[%s325 + $0x160] sm:$0xff]
        %v1148 = vld [vmem:[%s325 + $0x168] sm:$0xff]
        %v1149 = vld [vmem:[%s325 + $0x170] sm:$0xff]
        %v1150 = vld [vmem:[%s325 + $0x178] sm:$0xff]
        %v1151 = vld [vmem:[%s325 + $0x180] sm:$0xff]
        %v1152 = vld [vmem:[%s325 + $0x188] sm:$0xff]
        %v1153 = vld [vmem:[%s325 + $0x190] sm:$0xff]
        %v1154 = vld [vmem:[%s325 + $0x198] sm:$0xff]
        %v1155 = vld [vmem:[%s325 + $0x1a0] sm:$0xff]
        %v1156 = vld [vmem:[%s325 + $0x1a8] sm:$0xff]
        %v1157 = vld [vmem:[%s325 + $0x1b0] sm:$0xff]
        %v1158 = vld [vmem:[%s325 + $0x1b8] sm:$0xff]
        %v1159 = vld [vmem:[%s325 + $0x1c0] sm:$0xff]
        %v1160 = vld [vmem:[%s325 + $0x1c8] sm:$0xff]
        %v1161 = vld [vmem:[%s325 + $0x1d0] sm:$0xff]
        %v1162 = vld [vmem:[%s325 + $0x1d8] sm:$0xff]
        %v1163 = vld [vmem:[%s325 + $0x1e0] sm:$0xff]
        %v1164 = vld [vmem:[%s325 + $0x1e8] sm:$0xff]
        %v1165 = vld [vmem:[%s325 + $0x1f0] sm:$0xff]
        %v1166 = vld [vmem:[%s325 + $0x1f8] sm:$0xff]
        %v1167 = vld [vmem:[%s334] sm:$0xff]
        %v1168 = vld [vmem:[%s334 + $0x8] sm:$0xff]
        %v1169 = vld [vmem:[%s334 + $0x10] sm:$0xff]
        %v1170 = vld [vmem:[%s334 + $0x18] sm:$0xff]
        %v1171 = vld [vmem:[%s334 + $0x20] sm:$0xff]
        %v1172 = vld [vmem:[%s334 + $0x28] sm:$0xff]
        %v1173 = vld [vmem:[%s334 + $0x30] sm:$0xff]
        %v1174 = vld [vmem:[%s334 + $0x38] sm:$0xff]
        %v1175 = vld [vmem:[%s334 + $0x40] sm:$0xff]
        %v1176 = vld [vmem:[%s334 + $0x48] sm:$0xff]
        %v1177 = vld [vmem:[%s334 + $0x50] sm:$0xff]
        %v1178 = vld [vmem:[%s334 + $0x58] sm:$0xff]
        %v1179 = vld [vmem:[%s334 + $0x60] sm:$0xff]
        %v1180 = vld [vmem:[%s334 + $0x68] sm:$0xff]
        %v1181 = vld [vmem:[%s334 + $0x70] sm:$0xff]
        %v1182 = vld [vmem:[%s334 + $0x78] sm:$0xff]
        %v1183 = vld [vmem:[%s334 + $0x80] sm:$0xff]
        %v1184 = vld [vmem:[%s334 + $0x88] sm:$0xff]
        %v1185 = vld [vmem:[%s334 + $0x90] sm:$0xff]
        %v1186 = vld [vmem:[%s334 + $0x98] sm:$0xff]
        %v1187 = vld [vmem:[%s334 + $0xa0] sm:$0xff]
        %v1188 = vld [vmem:[%s334 + $0xa8] sm:$0xff]
        %v1189 = vld [vmem:[%s334 + $0xb0] sm:$0xff]
        %v1190 = vld [vmem:[%s334 + $0xb8] sm:$0xff]
        %v1191 = vld [vmem:[%s334 + $0xc0] sm:$0xff]
        %v1192 = vld [vmem:[%s334 + $0xc8] sm:$0xff]
        %v1193 = vld [vmem:[%s334 + $0xd0] sm:$0xff]
        %v1194 = vld [vmem:[%s334 + $0xd8] sm:$0xff]
        %v1195 = vld [vmem:[%s334 + $0xe0] sm:$0xff]
        %v1196 = vld [vmem:[%s334 + $0xe8] sm:$0xff]
        %v1197 = vld [vmem:[%s334 + $0xf0] sm:$0xff]
        %v1198 = vld [vmem:[%s334 + $0xf8] sm:$0xff]
        %v1199 = vld [vmem:[%s334 + $0x100] sm:$0xff]
        %v1200 = vld [vmem:[%s334 + $0x108] sm:$0xff]
        %v1201 = vld [vmem:[%s334 + $0x110] sm:$0xff]
        %v1202 = vld [vmem:[%s334 + $0x118] sm:$0xff]
        %v1203 = vld [vmem:[%s334 + $0x120] sm:$0xff]
        %v1204 = vld [vmem:[%s334 + $0x128] sm:$0xff]
        %v1205 = vld [vmem:[%s334 + $0x130] sm:$0xff]
        %v1206 = vld [vmem:[%s334 + $0x138] sm:$0xff]
        %v1207 = vld [vmem:[%s334 + $0x140] sm:$0xff]
        %v1208 = vld [vmem:[%s334 + $0x148] sm:$0xff]
        %v1209 = vld [vmem:[%s334 + $0x150] sm:$0xff]
        %v1210 = vld [vmem:[%s334 + $0x158] sm:$0xff]
        %v1211 = vld [vmem:[%s334 + $0x160] sm:$0xff]
        %v1212 = vld [vmem:[%s334 + $0x168] sm:$0xff]
        %v1213 = vld [vmem:[%s334 + $0x170] sm:$0xff]
        %v1214 = vld [vmem:[%s334 + $0x178] sm:$0xff]
        %v1215 = vld [vmem:[%s334 + $0x180] sm:$0xff]
        %v1216 = vld [vmem:[%s334 + $0x188] sm:$0xff]
        %v1217 = vld [vmem:[%s334 + $0x190] sm:$0xff]
        %v1218 = vld [vmem:[%s334 + $0x198] sm:$0xff]
        %v1219 = vld [vmem:[%s334 + $0x1a0] sm:$0xff]
        %v1220 = vld [vmem:[%s334 + $0x1a8] sm:$0xff]
        %v1221 = vld [vmem:[%s334 + $0x1b0] sm:$0xff]
        %v1222 = vld [vmem:[%s334 + $0x1b8] sm:$0xff]
        %v1223 = vld [vmem:[%s334 + $0x1c0] sm:$0xff]
        %v1224 = vld [vmem:[%s334 + $0x1c8] sm:$0xff]
        %v1225 = vld [vmem:[%s334 + $0x1d0] sm:$0xff]
        %v1226 = vld [vmem:[%s334 + $0x1d8] sm:$0xff]
        %v1227 = vld [vmem:[%s334 + $0x1e0] sm:$0xff]
        %v1228 = vld [vmem:[%s334 + $0x1e8] sm:$0xff]
        %v1229 = vld [vmem:[%s334 + $0x1f0] sm:$0xff]
        %v1230 = vld [vmem:[%s334 + $0x1f8] sm:$0xff]
        %v1231 = vmul.f32 %v1103, %v1039
        %v1232 = vmul.f32 %v1104, %v1040
        %v1233 = vmul.f32 %v1105, %v1041
        %v1234 = vmul.f32 %v1106, %v1042
        %v1235 = vmul.f32 %v1107, %v1043
        %v1236 = vmul.f32 %v1108, %v1044
        %v1237 = vmul.f32 %v1109, %v1045
        %v1238 = vmul.f32 %v1110, %v1046
        %v1239 = vmul.f32 %v1111, %v1047
        %v1240 = vmul.f32 %v1112, %v1048
        %v1241 = vmul.f32 %v1113, %v1049
        %v1242 = vmul.f32 %v1114, %v1050
        %v1243 = vmul.f32 %v1115, %v1051
        %v1244 = vmul.f32 %v1116, %v1052
        %v1245 = vmul.f32 %v1117, %v1053
        %v1246 = vmul.f32 %v1118, %v1054
        %v1247 = vmul.f32 %v1119, %v1055
        %v1248 = vmul.f32 %v1120, %v1056
        %v1249 = vmul.f32 %v1121, %v1057
        %v1250 = vmul.f32 %v1122, %v1058
        %v1251 = vmul.f32 %v1123, %v1059
        %v1252 = vmul.f32 %v1124, %v1060
        %v1253 = vmul.f32 %v1125, %v1061
        %v1254 = vmul.f32 %v1126, %v1062
        %v1255 = vmul.f32 %v1127, %v1063
        %v1256 = vmul.f32 %v1128, %v1064
        %v1257 = vmul.f32 %v1129, %v1065
        %v1258 = vmul.f32 %v1130, %v1066
        %v1259 = vmul.f32 %v1131, %v1067
        %v1260 = vmul.f32 %v1132, %v1068
        %v1261 = vmul.f32 %v1133, %v1069
        %v1262 = vmul.f32 %v1134, %v1070
        %v1263 = vmul.f32 %v1135, %v1071
        %v1264 = vmul.f32 %v1136, %v1072
        %v1265 = vmul.f32 %v1137, %v1073
        %v1266 = vmul.f32 %v1138, %v1074
        %v1267 = vmul.f32 %v1139, %v1075
        %v1268 = vmul.f32 %v1140, %v1076
        %v1269 = vmul.f32 %v1141, %v1077
        %v1270 = vmul.f32 %v1142, %v1078
        %v1271 = vmul.f32 %v1143, %v1079
        %v1272 = vmul.f32 %v1144, %v1080
        %v1273 = vmul.f32 %v1145, %v1081
        %v1274 = vmul.f32 %v1146, %v1082
        %v1275 = vmul.f32 %v1147, %v1083
        %v1276 = vmul.f32 %v1148, %v1084
        %v1277 = vmul.f32 %v1149, %v1085
        %v1278 = vmul.f32 %v1150, %v1086
        %v1279 = vmul.f32 %v1151, %v1087
        %v1280 = vmul.f32 %v1152, %v1088
        %v1281 = vmul.f32 %v1153, %v1089
        %v1282 = vmul.f32 %v1154, %v1090
        %v1283 = vmul.f32 %v1155, %v1091
        %v1284 = vmul.f32 %v1156, %v1092
        %v1285 = vmul.f32 %v1157, %v1093
        %v1286 = vmul.f32 %v1158, %v1094
        %v1287 = vmul.f32 %v1159, %v1095
        %v1288 = vmul.f32 %v1160, %v1096
        %v1289 = vmul.f32 %v1161, %v1097
        %v1290 = vmul.f32 %v1162, %v1098
        %v1291 = vmul.f32 %v1163, %v1099
        %v1292 = vmul.f32 %v1164, %v1100
        %v1293 = vmul.f32 %v1165, %v1101
        %v1294 = vmul.f32 %v1166, %v1102
        %v1295 = vadd.f32 %v1231, %v1167
        %v1296 = vadd.f32 %v1232, %v1168
        %v1297 = vadd.f32 %v1233, %v1169
        %v1298 = vadd.f32 %v1234, %v1170
        %v1299 = vadd.f32 %v1235, %v1171
        %v1300 = vadd.f32 %v1236, %v1172
        %v1301 = vadd.f32 %v1237, %v1173
        %v1302 = vadd.f32 %v1238, %v1174
        %v1303 = vadd.f32 %v1239, %v1175
        %v1304 = vadd.f32 %v1240, %v1176
        %v1305 = vadd.f32 %v1241, %v1177
        %v1306 = vadd.f32 %v1242, %v1178
        %v1307 = vadd.f32 %v1243, %v1179
        %v1308 = vadd.f32 %v1244, %v1180
        %v1309 = vadd.f32 %v1245, %v1181
        %v1310 = vadd.f32 %v1246, %v1182
        %v1311 = vadd.f32 %v1247, %v1183
        %v1312 = vadd.f32 %v1248, %v1184
        %v1313 = vadd.f32 %v1249, %v1185
        %v1314 = vadd.f32 %v1250, %v1186
        %v1315 = vadd.f32 %v1251, %v1187
        %v1316 = vadd.f32 %v1252, %v1188
        %v1317 = vadd.f32 %v1253, %v1189
        %v1318 = vadd.f32 %v1254, %v1190
        %v1319 = vadd.f32 %v1255, %v1191
        %v1320 = vadd.f32 %v1256, %v1192
        %v1321 = vadd.f32 %v1257, %v1193
        %v1322 = vadd.f32 %v1258, %v1194
        %v1323 = vadd.f32 %v1259, %v1195
        %v1324 = vadd.f32 %v1260, %v1196
        %v1325 = vadd.f32 %v1261, %v1197
        %v1326 = vadd.f32 %v1262, %v1198
        %v1327 = vadd.f32 %v1263, %v1199
        %v1328 = vadd.f32 %v1264, %v1200
        %v1329 = vadd.f32 %v1265, %v1201
        %v1330 = vadd.f32 %v1266, %v1202
        %v1331 = vadd.f32 %v1267, %v1203
        %v1332 = vadd.f32 %v1268, %v1204
        %v1333 = vadd.f32 %v1269, %v1205
        %v1334 = vadd.f32 %v1270, %v1206
        %v1335 = vadd.f32 %v1271, %v1207
        %v1336 = vadd.f32 %v1272, %v1208
        %v1337 = vadd.f32 %v1273, %v1209
        %v1338 = vadd.f32 %v1274, %v1210
        %v1339 = vadd.f32 %v1275, %v1211
        %v1340 = vadd.f32 %v1276, %v1212
        %v1341 = vadd.f32 %v1277, %v1213
        %v1342 = vadd.f32 %v1278, %v1214
        %v1343 = vadd.f32 %v1279, %v1215
        %v1344 = vadd.f32 %v1280, %v1216
        %v1345 = vadd.f32 %v1281, %v1217
        %v1346 = vadd.f32 %v1282, %v1218
        %v1347 = vadd.f32 %v1283, %v1219
        %v1348 = vadd.f32 %v1284, %v1220
        %v1349 = vadd.f32 %v1285, %v1221
        %v1350 = vadd.f32 %v1286, %v1222
        %v1351 = vadd.f32 %v1287, %v1223
        %v1352 = vadd.f32 %v1288, %v1224
        %v1353 = vadd.f32 %v1289, %v1225
        %v1354 = vadd.f32 %v1290, %v1226
        %v1355 = vadd.f32 %v1291, %v1227
        %v1356 = vadd.f32 %v1292, %v1228
        %v1357 = vadd.f32 %v1293, %v1229
        %v1358 = vadd.f32 %v1294, %v1230
        %v1359 = vand.u32 2147483647, %v1295
        %vm1360 = vcmp.le.f32.partialorder %v1359, 0.7853982
        %vm1361 = vcmp.lt.s32.totalorder %v1295, 0
        %v1362 = vand.u32 %v1295, 2139095040
        %v1363 = vshrl.u32 %v1362, 23
        %v1364 = vsub.s32 %v1363, 127
        %v1365 = vand.u32 2147483647, %v1295
        %v1366 = vand.u32 %v1365, 8388607
        %v1367 = vor.u32 %v1366, 8388608
        %v1368 = vsub.s32 0, %v1367
        %v1369 = vadd.s32 %v1364, 1
        %vm1370 = vcmp.gt.s32.totalorder %v1369, 0
        %v1371 = vsel %vm1370, %v1369, 0
        %v1372 = vshrl.u32 %v1371, 5
        %v1373 = vand.u32 %v1371, 31
        %v1374 = vsub.s32 32, %v1373
        %v1375 = vshrl.u32 683565275, %v1374
        %v1376 = vshll.u32 683565275, %v1373
        %v1377 = vshrl.u32 2475754826, %v1374
        %v1378 = vor.u32 %v1376, %v1377
        %v1379 = vshll.u32 2475754826, %v1373
        %v1380 = vshrl.u32 2131351028, %v1374
        %v1381 = vor.u32 %v1379, %v1380
        %v1382 = vshll.u32 2131351028, %v1373
        %v1383 = vshrl.u32 2102212464, %v1374
        %v1384 = vor.u32 %v1382, %v1383
        %v1385 = vshll.u32 2102212464, %v1373
        %v1386 = vshrl.u32 920167782, %v1374
        %v1387 = vor.u32 %v1385, %v1386
        %v1388 = vshll.u32 920167782, %v1373
        %v1389 = vshrl.u32 1326507024, %v1374
        %v1390 = vor.u32 %v1388, %v1389
        %vm1391 = vcmp.lt.s32.totalorder %v1372, 1
        %vm1392 = vcmp.lt.s32.totalorder %v1372, 2
        %vm1393 = vcmp.lt.s32.totalorder %v1372, 3
        %vm1394 = vcmp.lt.s32.totalorder %v1372, 4
        %v1395 = vsel %vm1391, %v1375, %v1378
        %v1396 = vsel %vm1394, %v1384, 2102212464
        %v1397 = vsel %vm1393, %v1381, %v1396
        %v1398 = vsel %vm1392, %v1395, %v1397
        %v1399 = vsel %vm1391, %v1378, %v1381
        %v1400 = vsel %vm1394, %v1387, 920167782
        %v1401 = vsel %vm1393, %v1384, %v1400
        %v1402 = vsel %vm1392, %v1399, %v1401
        %v1403 = vsel %vm1391, %v1381, %v1384
        %v1404 = vsel %vm1394, %v1390, 1326507024
        %v1405 = vsel %vm1393, %v1387, %v1404
        %v1406 = vsel %vm1392, %v1403, %v1405
        %v1407 = vshll.u32 %v1367, 8
        %v1408 = vmul.u32.u64.compose %v1407, %v1406
        %v1409 = vextract.low.u32 %v1408
        %v1410 = vextract.high.u32 %v1408
        %v1411 = vmul.u32.u64.compose %v1407, %v1402
        %v1412 = vextract.low.u32 %v1411
        %v1413 = vextract.high.u32 %v1411
        %v1414 = vmul.u32 %v1407, %v1398
        %v1415 = vadd.s32 %v1410, %v1412
        %vm1416 = vc.u32 %v1410, %v1412
        %v1417 = vadd.s32 %v1413, 1
        %v1418 = vsel %vm1416, %v1417, %v1413
        %v1419 = vadd.s32 %v1414, %v1418
        %v1420 = vadd.s32 %v1419, 536870912
        %v1421 = vshrl.u32 %v1420, 30
        %v1422 = vshll.u32 %v1421, 30
        %v1423 = vsub.s32 %v1419, %v1422
        %vm1424 = vcmp.lt.s32.totalorder %v1423, 0
        %v1425 = vsub.s32 0, %v1423
        %v1426 = vsel %vm1424, %v1425, %v1423
        %v1427 = vclz %v1426
        %v1428 = vsub.s32 %v1427, 2
        %vm1429 = vcmp.gt.s32.totalorder 0, %v1428
        %v1430 = vsel %vm1429, 0, %v1428
        %v1431 = vsub.s32 32, %v1430
        %v1432 = vshll.u32 %v1423, %v1430
        %v1433 = vshrl.u32 %v1415, %v1431
        %v1434 = vor.u32 %v1432, %v1433
        %v1435 = vsub.s32 4294967266, %v1430
        %v1436 = vadd.s32 %v1435, 127
        %v1437 = vshll.u32 %v1436, 23
        %v1438 = vor.u32 4788187, %v1437
        %v1439 = vand.u32 2147483647, %v1438
        %v1441 = vcvt.s32.f32 %v1434
        %v1442 = vmul.f32 %v1441, %v1439
        %v1443 = vxor.u32 %v1442, 2147483648
        %v1444 = vsel %vm1361, %v1443, %v1442
        %v1445 = vsub.s32 4, %v1421
        %v1446 = vsel %vm1361, %v1445, %v1421
        %v1447 = vsel %vm1360, %v1295, %v1444
        %v1448 = vsel %vm1360, 0, %v1446
        %v1449 = vcosq.f32.pop %v1447
        %v1450 = vsinq.f32.pop %v1447
        %vm1451 = vweird.f32 %v1295
        %v1452 = vadd.s32 %v1448, 3
        %v1453 = vand.u32 %v1452, 3
        %vm1454 = vcmp.lt.s32.totalorder %v1453, 2
        %vm1455 = vcmp.eq.s32.totalorder %v1453, 0
        %v1456 = vxor.u32 %v1450, 2147483648
        %v1457 = vsel %vm1455, %v1449, %v1456
        %vm1458 = vcmp.eq.s32.totalorder %v1453, 2
        %v1459 = vxor.u32 %v1449, 2147483648
        %v1460 = vsel %vm1458, %v1459, %v1450
        %v1461 = vsel %vm1454, %v1457, %v1460
        %v1462 = vsel %vm1451, nan, %v1461
        %v1463 = vand.u32 2147483647, %v1296
        %vm1464 = vcmp.le.f32.partialorder %v1463, 0.7853982
        %vm1465 = vcmp.lt.s32.totalorder %v1296, 0
        %v1466 = vand.u32 %v1296, 2139095040
        %v1467 = vshrl.u32 %v1466, 23
        %v1468 = vsub.s32 %v1467, 127
        %v1469 = vand.u32 2147483647, %v1296
        %v1470 = vand.u32 %v1469, 8388607
        %v1471 = vor.u32 %v1470, 8388608
        %v1472 = vsub.s32 0, %v1471
        %v1473 = vadd.s32 %v1468, 1
        %vm1474 = vcmp.gt.s32.totalorder %v1473, 0
        %v1475 = vsel %vm1474, %v1473, 0
        %v1476 = vshrl.u32 %v1475, 5
        %v1477 = vand.u32 %v1475, 31
        %v1478 = vsub.s32 32, %v1477
        %v1479 = vshrl.u32 683565275, %v1478
        %v1480 = vshll.u32 683565275, %v1477
        %v1481 = vshrl.u32 2475754826, %v1478
        %v1482 = vor.u32 %v1480, %v1481
        %v1483 = vshll.u32 2475754826, %v1477
        %v1484 = vshrl.u32 2131351028, %v1478
        %v1485 = vor.u32 %v1483, %v1484
        %v1486 = vshll.u32 2131351028, %v1477
        %v1487 = vshrl.u32 2102212464, %v1478
        %v1488 = vor.u32 %v1486, %v1487
        %v1489 = vshll.u32 2102212464, %v1477
        %v1490 = vshrl.u32 920167782, %v1478
        %v1491 = vor.u32 %v1489, %v1490
        %v1492 = vshll.u32 920167782, %v1477
        %v1493 = vshrl.u32 1326507024, %v1478
        %v1494 = vor.u32 %v1492, %v1493
        %vm1495 = vcmp.lt.s32.totalorder %v1476, 1
        %vm1496 = vcmp.lt.s32.totalorder %v1476, 2
        %vm1497 = vcmp.lt.s32.totalorder %v1476, 3
        %vm1498 = vcmp.lt.s32.totalorder %v1476, 4
        %v1499 = vsel %vm1495, %v1479, %v1482
        %v1500 = vsel %vm1498, %v1488, 2102212464
        %v1501 = vsel %vm1497, %v1485, %v1500
        %v1502 = vsel %vm1496, %v1499, %v1501
        %v1503 = vsel %vm1495, %v1482, %v1485
        %v1504 = vsel %vm1498, %v1491, 920167782
        %v1505 = vsel %vm1497, %v1488, %v1504
        %v1506 = vsel %vm1496, %v1503, %v1505
        %v1507 = vsel %vm1495, %v1485, %v1488
        %v1508 = vsel %vm1498, %v1494, 1326507024
        %v1509 = vsel %vm1497, %v1491, %v1508
        %v1510 = vsel %vm1496, %v1507, %v1509
        %v1511 = vshll.u32 %v1471, 8
        %v1512 = vmul.u32.u64.compose %v1511, %v1510
        %v1513 = vextract.low.u32 %v1512
        %v1514 = vextract.high.u32 %v1512
        %v1515 = vmul.u32.u64.compose %v1511, %v1506
        %v1516 = vextract.low.u32 %v1515
        %v1517 = vextract.high.u32 %v1515
        %v1518 = vmul.u32 %v1511, %v1502
        %v1519 = vadd.s32 %v1514, %v1516
        %vm1520 = vc.u32 %v1514, %v1516
        %v1521 = vadd.s32 %v1517, 1
        %v1522 = vsel %vm1520, %v1521, %v1517
        %v1523 = vadd.s32 %v1518, %v1522
        %v1524 = vadd.s32 %v1523, 536870912
        %v1525 = vshrl.u32 %v1524, 30
        %v1526 = vshll.u32 %v1525, 30
        %v1527 = vsub.s32 %v1523, %v1526
        %vm1528 = vcmp.lt.s32.totalorder %v1527, 0
        %v1529 = vsub.s32 0, %v1527
        %v1530 = vsel %vm1528, %v1529, %v1527
        %v1531 = vclz %v1530
        %v1532 = vsub.s32 %v1531, 2
        %vm1533 = vcmp.gt.s32.totalorder 0, %v1532
        %v1534 = vsel %vm1533, 0, %v1532
        %v1535 = vsub.s32 32, %v1534
        %v1536 = vshll.u32 %v1527, %v1534
        %v1537 = vshrl.u32 %v1519, %v1535
        %v1538 = vor.u32 %v1536, %v1537
        %v1539 = vsub.s32 4294967266, %v1534
        %v1540 = vadd.s32 %v1539, 127
        %v1541 = vshll.u32 %v1540, 23
        %v1542 = vor.u32 4788187, %v1541
        %v1543 = vand.u32 2147483647, %v1542
        %v1545 = vcvt.s32.f32 %v1538
        %v1546 = vmul.f32 %v1545, %v1543
        %v1547 = vxor.u32 %v1546, 2147483648
        %v1548 = vsel %vm1465, %v1547, %v1546
        %v1549 = vsub.s32 4, %v1525
        %v1550 = vsel %vm1465, %v1549, %v1525
        %v1551 = vsel %vm1464, %v1296, %v1548
        %v1552 = vsel %vm1464, 0, %v1550
        %v1553 = vcosq.f32.pop %v1551
        %v1554 = vsinq.f32.pop %v1551
        %vm1555 = vweird.f32 %v1296
        %v1556 = vadd.s32 %v1552, 3
        %v1557 = vand.u32 %v1556, 3
        %vm1558 = vcmp.lt.s32.totalorder %v1557, 2
        %vm1559 = vcmp.eq.s32.totalorder %v1557, 0
        %v1560 = vxor.u32 %v1554, 2147483648
        %v1561 = vsel %vm1559, %v1553, %v1560
        %vm1562 = vcmp.eq.s32.totalorder %v1557, 2
        %v1563 = vxor.u32 %v1553, 2147483648
        %v1564 = vsel %vm1562, %v1563, %v1554
        %v1565 = vsel %vm1558, %v1561, %v1564
        %v1566 = vsel %vm1555, nan, %v1565
        %v1567 = vand.u32 2147483647, %v1297
        %vm1568 = vcmp.le.f32.partialorder %v1567, 0.7853982
        %vm1569 = vcmp.lt.s32.totalorder %v1297, 0
        %v1570 = vand.u32 %v1297, 2139095040
        %v1571 = vshrl.u32 %v1570, 23
        %v1572 = vsub.s32 %v1571, 127
        %v1573 = vand.u32 2147483647, %v1297
        %v1574 = vand.u32 %v1573, 8388607
        %v1575 = vor.u32 %v1574, 8388608
        %v1576 = vsub.s32 0, %v1575
        %v1577 = vadd.s32 %v1572, 1
        %vm1578 = vcmp.gt.s32.totalorder %v1577, 0
        %v1579 = vsel %vm1578, %v1577, 0
        %v1580 = vshrl.u32 %v1579, 5
        %v1581 = vand.u32 %v1579, 31
        %v1582 = vsub.s32 32, %v1581
        %v1583 = vshrl.u32 683565275, %v1582
        %v1584 = vshll.u32 683565275, %v1581
        %v1585 = vshrl.u32 2475754826, %v1582
        %v1586 = vor.u32 %v1584, %v1585
        %v1587 = vshll.u32 2475754826, %v1581
        %v1588 = vshrl.u32 2131351028, %v1582
        %v1589 = vor.u32 %v1587, %v1588
        %v1590 = vshll.u32 2131351028, %v1581
        %v1591 = vshrl.u32 2102212464, %v1582
        %v1592 = vor.u32 %v1590, %v1591
        %v1593 = vshll.u32 2102212464, %v1581
        %v1594 = vshrl.u32 920167782, %v1582
        %v1595 = vor.u32 %v1593, %v1594
        %v1596 = vshll.u32 920167782, %v1581
        %v1597 = vshrl.u32 1326507024, %v1582
        %v1598 = vor.u32 %v1596, %v1597
        %vm1599 = vcmp.lt.s32.totalorder %v1580, 1
        %vm1600 = vcmp.lt.s32.totalorder %v1580, 2
        %vm1601 = vcmp.lt.s32.totalorder %v1580, 3
        %vm1602 = vcmp.lt.s32.totalorder %v1580, 4
        %v1603 = vsel %vm1599, %v1583, %v1586
        %v1604 = vsel %vm1602, %v1592, 2102212464
        %v1605 = vsel %vm1601, %v1589, %v1604
        %v1606 = vsel %vm1600, %v1603, %v1605
        %v1607 = vsel %vm1599, %v1586, %v1589
        %v1608 = vsel %vm1602, %v1595, 920167782
        %v1609 = vsel %vm1601, %v1592, %v1608
        %v1610 = vsel %vm1600, %v1607, %v1609
        %v1611 = vsel %vm1599, %v1589, %v1592
        %v1612 = vsel %vm1602, %v1598, 1326507024
        %v1613 = vsel %vm1601, %v1595, %v1612
        %v1614 = vsel %vm1600, %v1611, %v1613
        %v1615 = vshll.u32 %v1575, 8
        %v1616 = vmul.u32.u64.compose %v1615, %v1614
        %v1617 = vextract.low.u32 %v1616
        %v1618 = vextract.high.u32 %v1616
        %v1619 = vmul.u32.u64.compose %v1615, %v1610
        %v1620 = vextract.low.u32 %v1619
        %v1621 = vextract.high.u32 %v1619
        %v1622 = vmul.u32 %v1615, %v1606
        %v1623 = vadd.s32 %v1618, %v1620
        %vm1624 = vc.u32 %v1618, %v1620
        %v1625 = vadd.s32 %v1621, 1
        %v1626 = vsel %vm1624, %v1625, %v1621
        %v1627 = vadd.s32 %v1622, %v1626
        %v1628 = vadd.s32 %v1627, 536870912
        %v1629 = vshrl.u32 %v1628, 30
        %v1630 = vshll.u32 %v1629, 30
        %v1631 = vsub.s32 %v1627, %v1630
        %vm1632 = vcmp.lt.s32.totalorder %v1631, 0
        %v1633 = vsub.s32 0, %v1631
        %v1634 = vsel %vm1632, %v1633, %v1631
        %v1635 = vclz %v1634
        %v1636 = vsub.s32 %v1635, 2
        %vm1637 = vcmp.gt.s32.totalorder 0, %v1636
        %v1638 = vsel %vm1637, 0, %v1636
        %v1639 = vsub.s32 32, %v1638
        %v1640 = vshll.u32 %v1631, %v1638
        %v1641 = vshrl.u32 %v1623, %v1639
        %v1642 = vor.u32 %v1640, %v1641
        %v1643 = vsub.s32 4294967266, %v1638
        %v1644 = vadd.s32 %v1643, 127
        %v1645 = vshll.u32 %v1644, 23
        %v1646 = vor.u32 4788187, %v1645
        %v1647 = vand.u32 2147483647, %v1646
        %v1649 = vcvt.s32.f32 %v1642
        %v1650 = vmul.f32 %v1649, %v1647
        %v1651 = vxor.u32 %v1650, 2147483648
        %v1652 = vsel %vm1569, %v1651, %v1650
        %v1653 = vsub.s32 4, %v1629
        %v1654 = vsel %vm1569, %v1653, %v1629
        %v1655 = vsel %vm1568, %v1297, %v1652
        %v1656 = vsel %vm1568, 0, %v1654
        %v1657 = vcosq.f32.pop %v1655
        %v1658 = vsinq.f32.pop %v1655
        %vm1659 = vweird.f32 %v1297
        %v1660 = vadd.s32 %v1656, 3
        %v1661 = vand.u32 %v1660, 3
        %vm1662 = vcmp.lt.s32.totalorder %v1661, 2
        %vm1663 = vcmp.eq.s32.totalorder %v1661, 0
        %v1664 = vxor.u32 %v1658, 2147483648
        %v1665 = vsel %vm1663, %v1657, %v1664
        %vm1666 = vcmp.eq.s32.totalorder %v1661, 2
        %v1667 = vxor.u32 %v1657, 2147483648
        %v1668 = vsel %vm1666, %v1667, %v1658
        %v1669 = vsel %vm1662, %v1665, %v1668
        %v1670 = vsel %vm1659, nan, %v1669
        %v1671 = vand.u32 2147483647, %v1298
        %vm1672 = vcmp.le.f32.partialorder %v1671, 0.7853982
        %vm1673 = vcmp.lt.s32.totalorder %v1298, 0
        %v1674 = vand.u32 %v1298, 2139095040
        %v1675 = vshrl.u32 %v1674, 23
        %v1676 = vsub.s32 %v1675, 127
        %v1677 = vand.u32 2147483647, %v1298
        %v1678 = vand.u32 %v1677, 8388607
        %v1679 = vor.u32 %v1678, 8388608
        %v1680 = vsub.s32 0, %v1679
        %v1681 = vadd.s32 %v1676, 1
        %vm1682 = vcmp.gt.s32.totalorder %v1681, 0
        %v1683 = vsel %vm1682, %v1681, 0
        %v1684 = vshrl.u32 %v1683, 5
        %v1685 = vand.u32 %v1683, 31
        %v1686 = vsub.s32 32, %v1685
        %v1687 = vshrl.u32 683565275, %v1686
        %v1688 = vshll.u32 683565275, %v1685
        %v1689 = vshrl.u32 2475754826, %v1686
        %v1690 = vor.u32 %v1688, %v1689
        %v1691 = vshll.u32 2475754826, %v1685
        %v1692 = vshrl.u32 2131351028, %v1686
        %v1693 = vor.u32 %v1691, %v1692
        %v1694 = vshll.u32 2131351028, %v1685
        %v1695 = vshrl.u32 2102212464, %v1686
        %v1696 = vor.u32 %v1694, %v1695
        %v1697 = vshll.u32 2102212464, %v1685
        %v1698 = vshrl.u32 920167782, %v1686
        %v1699 = vor.u32 %v1697, %v1698
        %v1700 = vshll.u32 920167782, %v1685
        %v1701 = vshrl.u32 1326507024, %v1686
        %v1702 = vor.u32 %v1700, %v1701
        %vm1703 = vcmp.lt.s32.totalorder %v1684, 1
        %vm1704 = vcmp.lt.s32.totalorder %v1684, 2
        %vm1705 = vcmp.lt.s32.totalorder %v1684, 3
        %vm1706 = vcmp.lt.s32.totalorder %v1684, 4
        %v1707 = vsel %vm1703, %v1687, %v1690
        %v1708 = vsel %vm1706, %v1696, 2102212464
        %v1709 = vsel %vm1705, %v1693, %v1708
        %v1710 = vsel %vm1704, %v1707, %v1709
        %v1711 = vsel %vm1703, %v1690, %v1693
        %v1712 = vsel %vm1706, %v1699, 920167782
        %v1713 = vsel %vm1705, %v1696, %v1712
        %v1714 = vsel %vm1704, %v1711, %v1713
        %v1715 = vsel %vm1703, %v1693, %v1696
        %v1716 = vsel %vm1706, %v1702, 1326507024
        %v1717 = vsel %vm1705, %v1699, %v1716
        %v1718 = vsel %vm1704, %v1715, %v1717
        %v1719 = vshll.u32 %v1679, 8
        %v1720 = vmul.u32.u64.compose %v1719, %v1718
        %v1721 = vextract.low.u32 %v1720
        %v1722 = vextract.high.u32 %v1720
        %v1723 = vmul.u32.u64.compose %v1719, %v1714
        %v1724 = vextract.low.u32 %v1723
        %v1725 = vextract.high.u32 %v1723
        %v1726 = vmul.u32 %v1719, %v1710
        %v1727 = vadd.s32 %v1722, %v1724
        %vm1728 = vc.u32 %v1722, %v1724
        %v1729 = vadd.s32 %v1725, 1
        %v1730 = vsel %vm1728, %v1729, %v1725
        %v1731 = vadd.s32 %v1726, %v1730
        %v1732 = vadd.s32 %v1731, 536870912
        %v1733 = vshrl.u32 %v1732, 30
        %v1734 = vshll.u32 %v1733, 30
        %v1735 = vsub.s32 %v1731, %v1734
        %vm1736 = vcmp.lt.s32.totalorder %v1735, 0
        %v1737 = vsub.s32 0, %v1735
        %v1738 = vsel %vm1736, %v1737, %v1735
        %v1739 = vclz %v1738
        %v1740 = vsub.s32 %v1739, 2
        %vm1741 = vcmp.gt.s32.totalorder 0, %v1740
        %v1742 = vsel %vm1741, 0, %v1740
        %v1743 = vsub.s32 32, %v1742
        %v1744 = vshll.u32 %v1735, %v1742
        %v1745 = vshrl.u32 %v1727, %v1743
        %v1746 = vor.u32 %v1744, %v1745
        %v1747 = vsub.s32 4294967266, %v1742
        %v1748 = vadd.s32 %v1747, 127
        %v1749 = vshll.u32 %v1748, 23
        %v1750 = vor.u32 4788187, %v1749
        %v1751 = vand.u32 2147483647, %v1750
        %v1753 = vcvt.s32.f32 %v1746
        %v1754 = vmul.f32 %v1753, %v1751
        %v1755 = vxor.u32 %v1754, 2147483648
        %v1756 = vsel %vm1673, %v1755, %v1754
        %v1757 = vsub.s32 4, %v1733
        %v1758 = vsel %vm1673, %v1757, %v1733
        %v1759 = vsel %vm1672, %v1298, %v1756
        %v1760 = vsel %vm1672, 0, %v1758
        %v1761 = vcosq.f32.pop %v1759
        %v1762 = vsinq.f32.pop %v1759
        %vm1763 = vweird.f32 %v1298
        %v1764 = vadd.s32 %v1760, 3
        %v1765 = vand.u32 %v1764, 3
        %vm1766 = vcmp.lt.s32.totalorder %v1765, 2
        %vm1767 = vcmp.eq.s32.totalorder %v1765, 0
        %v1768 = vxor.u32 %v1762, 2147483648
        %v1769 = vsel %vm1767, %v1761, %v1768
        %vm1770 = vcmp.eq.s32.totalorder %v1765, 2
        %v1771 = vxor.u32 %v1761, 2147483648
        %v1772 = vsel %vm1770, %v1771, %v1762
        %v1773 = vsel %vm1766, %v1769, %v1772
        %v1774 = vsel %vm1763, nan, %v1773
        %v1775 = vand.u32 2147483647, %v1299
        %vm1776 = vcmp.le.f32.partialorder %v1775, 0.7853982
        %vm1777 = vcmp.lt.s32.totalorder %v1299, 0
        %v1778 = vand.u32 %v1299, 2139095040
        %v1779 = vshrl.u32 %v1778, 23
        %v1780 = vsub.s32 %v1779, 127
        %v1781 = vand.u32 2147483647, %v1299
        %v1782 = vand.u32 %v1781, 8388607
        %v1783 = vor.u32 %v1782, 8388608
        %v1784 = vsub.s32 0, %v1783
        %v1785 = vadd.s32 %v1780, 1
        %vm1786 = vcmp.gt.s32.totalorder %v1785, 0
        %v1787 = vsel %vm1786, %v1785, 0
        %v1788 = vshrl.u32 %v1787, 5
        %v1789 = vand.u32 %v1787, 31
        %v1790 = vsub.s32 32, %v1789
        %v1791 = vshrl.u32 683565275, %v1790
        %v1792 = vshll.u32 683565275, %v1789
        %v1793 = vshrl.u32 2475754826, %v1790
        %v1794 = vor.u32 %v1792, %v1793
        %v1795 = vshll.u32 2475754826, %v1789
        %v1796 = vshrl.u32 2131351028, %v1790
        %v1797 = vor.u32 %v1795, %v1796
        %v1798 = vshll.u32 2131351028, %v1789
        %v1799 = vshrl.u32 2102212464, %v1790
        %v1800 = vor.u32 %v1798, %v1799
        %v1801 = vshll.u32 2102212464, %v1789
        %v1802 = vshrl.u32 920167782, %v1790
        %v1803 = vor.u32 %v1801, %v1802
        %v1804 = vshll.u32 920167782, %v1789
        %v1805 = vshrl.u32 1326507024, %v1790
        %v1806 = vor.u32 %v1804, %v1805
        %vm1807 = vcmp.lt.s32.totalorder %v1788, 1
        %vm1808 = vcmp.lt.s32.totalorder %v1788, 2
        %vm1809 = vcmp.lt.s32.totalorder %v1788, 3
        %vm1810 = vcmp.lt.s32.totalorder %v1788, 4
        %v1811 = vsel %vm1807, %v1791, %v1794
        %v1812 = vsel %vm1810, %v1800, 2102212464
        %v1813 = vsel %vm1809, %v1797, %v1812
        %v1814 = vsel %vm1808, %v1811, %v1813
        %v1815 = vsel %vm1807, %v1794, %v1797
        %v1816 = vsel %vm1810, %v1803, 920167782
        %v1817 = vsel %vm1809, %v1800, %v1816
        %v1818 = vsel %vm1808, %v1815, %v1817
        %v1819 = vsel %vm1807, %v1797, %v1800
        %v1820 = vsel %vm1810, %v1806, 1326507024
        %v1821 = vsel %vm1809, %v1803, %v1820
        %v1822 = vsel %vm1808, %v1819, %v1821
        %v1823 = vshll.u32 %v1783, 8
        %v1824 = vmul.u32.u64.compose %v1823, %v1822
        %v1825 = vextract.low.u32 %v1824
        %v1826 = vextract.high.u32 %v1824
        %v1827 = vmul.u32.u64.compose %v1823, %v1818
        %v1828 = vextract.low.u32 %v1827
        %v1829 = vextract.high.u32 %v1827
        %v1830 = vmul.u32 %v1823, %v1814
        %v1831 = vadd.s32 %v1826, %v1828
        %vm1832 = vc.u32 %v1826, %v1828
        %v1833 = vadd.s32 %v1829, 1
        %v1834 = vsel %vm1832, %v1833, %v1829
        %v1835 = vadd.s32 %v1830, %v1834
        %v1836 = vadd.s32 %v1835, 536870912
        %v1837 = vshrl.u32 %v1836, 30
        %v1838 = vshll.u32 %v1837, 30
        %v1839 = vsub.s32 %v1835, %v1838
        %vm1840 = vcmp.lt.s32.totalorder %v1839, 0
        %v1841 = vsub.s32 0, %v1839
        %v1842 = vsel %vm1840, %v1841, %v1839
        %v1843 = vclz %v1842
        %v1844 = vsub.s32 %v1843, 2
        %vm1845 = vcmp.gt.s32.totalorder 0, %v1844
        %v1846 = vsel %vm1845, 0, %v1844
        %v1847 = vsub.s32 32, %v1846
        %v1848 = vshll.u32 %v1839, %v1846
        %v1849 = vshrl.u32 %v1831, %v1847
        %v1850 = vor.u32 %v1848, %v1849
        %v1851 = vsub.s32 4294967266, %v1846
        %v1852 = vadd.s32 %v1851, 127
        %v1853 = vshll.u32 %v1852, 23
        %v1854 = vor.u32 4788187, %v1853
        %v1855 = vand.u32 2147483647, %v1854
        %v1857 = vcvt.s32.f32 %v1850
        %v1858 = vmul.f32 %v1857, %v1855
        %v1859 = vxor.u32 %v1858, 2147483648
        %v1860 = vsel %vm1777, %v1859, %v1858
        %v1861 = vsub.s32 4, %v1837
        %v1862 = vsel %vm1777, %v1861, %v1837
        %v1863 = vsel %vm1776, %v1299, %v1860
        %v1864 = vsel %vm1776, 0, %v1862
        %v1865 = vcosq.f32.pop %v1863
        %v1866 = vsinq.f32.pop %v1863
        %vm1867 = vweird.f32 %v1299
        %v1868 = vadd.s32 %v1864, 3
        %v1869 = vand.u32 %v1868, 3
        %vm1870 = vcmp.lt.s32.totalorder %v1869, 2
        %vm1871 = vcmp.eq.s32.totalorder %v1869, 0
        %v1872 = vxor.u32 %v1866, 2147483648
        %v1873 = vsel %vm1871, %v1865, %v1872
        %vm1874 = vcmp.eq.s32.totalorder %v1869, 2
        %v1875 = vxor.u32 %v1865, 2147483648
        %v1876 = vsel %vm1874, %v1875, %v1866
        %v1877 = vsel %vm1870, %v1873, %v1876
        %v1878 = vsel %vm1867, nan, %v1877
        %v1879 = vand.u32 2147483647, %v1300
        %vm1880 = vcmp.le.f32.partialorder %v1879, 0.7853982
        %vm1881 = vcmp.lt.s32.totalorder %v1300, 0
        %v1882 = vand.u32 %v1300, 2139095040
        %v1883 = vshrl.u32 %v1882, 23
        %v1884 = vsub.s32 %v1883, 127
        %v1885 = vand.u32 2147483647, %v1300
        %v1886 = vand.u32 %v1885, 8388607
        %v1887 = vor.u32 %v1886, 8388608
        %v1888 = vsub.s32 0, %v1887
        %v1889 = vadd.s32 %v1884, 1
        %vm1890 = vcmp.gt.s32.totalorder %v1889, 0
        %v1891 = vsel %vm1890, %v1889, 0
        %v1892 = vshrl.u32 %v1891, 5
        %v1893 = vand.u32 %v1891, 31
        %v1894 = vsub.s32 32, %v1893
        %v1895 = vshrl.u32 683565275, %v1894
        %v1896 = vshll.u32 683565275, %v1893
        %v1897 = vshrl.u32 2475754826, %v1894
        %v1898 = vor.u32 %v1896, %v1897
        %v1899 = vshll.u32 2475754826, %v1893
        %v1900 = vshrl.u32 2131351028, %v1894
        %v1901 = vor.u32 %v1899, %v1900
        %v1902 = vshll.u32 2131351028, %v1893
        %v1903 = vshrl.u32 2102212464, %v1894
        %v1904 = vor.u32 %v1902, %v1903
        %v1905 = vshll.u32 2102212464, %v1893
        %v1906 = vshrl.u32 920167782, %v1894
        %v1907 = vor.u32 %v1905, %v1906
        %v1908 = vshll.u32 920167782, %v1893
        %v1909 = vshrl.u32 1326507024, %v1894
        %v1910 = vor.u32 %v1908, %v1909
        %vm1911 = vcmp.lt.s32.totalorder %v1892, 1
        %vm1912 = vcmp.lt.s32.totalorder %v1892, 2
        %vm1913 = vcmp.lt.s32.totalorder %v1892, 3
        %vm1914 = vcmp.lt.s32.totalorder %v1892, 4
        %v1915 = vsel %vm1911, %v1895, %v1898
        %v1916 = vsel %vm1914, %v1904, 2102212464
        %v1917 = vsel %vm1913, %v1901, %v1916
        %v1918 = vsel %vm1912, %v1915, %v1917
        %v1919 = vsel %vm1911, %v1898, %v1901
        %v1920 = vsel %vm1914, %v1907, 920167782
        %v1921 = vsel %vm1913, %v1904, %v1920
        %v1922 = vsel %vm1912, %v1919, %v1921
        %v1923 = vsel %vm1911, %v1901, %v1904
        %v1924 = vsel %vm1914, %v1910, 1326507024
        %v1925 = vsel %vm1913, %v1907, %v1924
        %v1926 = vsel %vm1912, %v1923, %v1925
        %v1927 = vshll.u32 %v1887, 8
        %v1928 = vmul.u32.u64.compose %v1927, %v1926
        %v1929 = vextract.low.u32 %v1928
        %v1930 = vextract.high.u32 %v1928
        %v1931 = vmul.u32.u64.compose %v1927, %v1922
        %v1932 = vextract.low.u32 %v1931
        %v1933 = vextract.high.u32 %v1931
        %v1934 = vmul.u32 %v1927, %v1918
        %v1935 = vadd.s32 %v1930, %v1932
        %vm1936 = vc.u32 %v1930, %v1932
        %v1937 = vadd.s32 %v1933, 1
        %v1938 = vsel %vm1936, %v1937, %v1933
        %v1939 = vadd.s32 %v1934, %v1938
        %v1940 = vadd.s32 %v1939, 536870912
        %v1941 = vshrl.u32 %v1940, 30
        %v1942 = vshll.u32 %v1941, 30
        %v1943 = vsub.s32 %v1939, %v1942
        %vm1944 = vcmp.lt.s32.totalorder %v1943, 0
        %v1945 = vsub.s32 0, %v1943
        %v1946 = vsel %vm1944, %v1945, %v1943
        %v1947 = vclz %v1946
        %v1948 = vsub.s32 %v1947, 2
        %vm1949 = vcmp.gt.s32.totalorder 0, %v1948
        %v1950 = vsel %vm1949, 0, %v1948
        %v1951 = vsub.s32 32, %v1950
        %v1952 = vshll.u32 %v1943, %v1950
        %v1953 = vshrl.u32 %v1935, %v1951
        %v1954 = vor.u32 %v1952, %v1953
        %v1955 = vsub.s32 4294967266, %v1950
        %v1956 = vadd.s32 %v1955, 127
        %v1957 = vshll.u32 %v1956, 23
        %v1958 = vor.u32 4788187, %v1957
        %v1959 = vand.u32 2147483647, %v1958
        %v1961 = vcvt.s32.f32 %v1954
        %v1962 = vmul.f32 %v1961, %v1959
        %v1963 = vxor.u32 %v1962, 2147483648
        %v1964 = vsel %vm1881, %v1963, %v1962
        %v1965 = vsub.s32 4, %v1941
        %v1966 = vsel %vm1881, %v1965, %v1941
        %v1967 = vsel %vm1880, %v1300, %v1964
        %v1968 = vsel %vm1880, 0, %v1966
        %v1969 = vcosq.f32.pop %v1967
        %v1970 = vsinq.f32.pop %v1967
        %vm1971 = vweird.f32 %v1300
        %v1972 = vadd.s32 %v1968, 3
        %v1973 = vand.u32 %v1972, 3
        %vm1974 = vcmp.lt.s32.totalorder %v1973, 2
        %vm1975 = vcmp.eq.s32.totalorder %v1973, 0
        %v1976 = vxor.u32 %v1970, 2147483648
        %v1977 = vsel %vm1975, %v1969, %v1976
        %vm1978 = vcmp.eq.s32.totalorder %v1973, 2
        %v1979 = vxor.u32 %v1969, 2147483648
        %v1980 = vsel %vm1978, %v1979, %v1970
        %v1981 = vsel %vm1974, %v1977, %v1980
        %v1982 = vsel %vm1971, nan, %v1981
        %v1983 = vand.u32 2147483647, %v1301
        %vm1984 = vcmp.le.f32.partialorder %v1983, 0.7853982
        %vm1985 = vcmp.lt.s32.totalorder %v1301, 0
        %v1986 = vand.u32 %v1301, 2139095040
        %v1987 = vshrl.u32 %v1986, 23
        %v1988 = vsub.s32 %v1987, 127
        %v1989 = vand.u32 2147483647, %v1301
        %v1990 = vand.u32 %v1989, 8388607
        %v1991 = vor.u32 %v1990, 8388608
        %v1992 = vsub.s32 0, %v1991
        %v1993 = vadd.s32 %v1988, 1
        %vm1994 = vcmp.gt.s32.totalorder %v1993, 0
        %v1995 = vsel %vm1994, %v1993, 0
        %v1996 = vshrl.u32 %v1995, 5
        %v1997 = vand.u32 %v1995, 31
        %v1998 = vsub.s32 32, %v1997
        %v1999 = vshrl.u32 683565275, %v1998
        %v2000 = vshll.u32 683565275, %v1997
        %v2001 = vshrl.u32 2475754826, %v1998
        %v2002 = vor.u32 %v2000, %v2001
        %v2003 = vshll.u32 2475754826, %v1997
        %v2004 = vshrl.u32 2131351028, %v1998
        %v2005 = vor.u32 %v2003, %v2004
        %v2006 = vshll.u32 2131351028, %v1997
        %v2007 = vshrl.u32 2102212464, %v1998
        %v2008 = vor.u32 %v2006, %v2007
        %v2009 = vshll.u32 2102212464, %v1997
        %v2010 = vshrl.u32 920167782, %v1998
        %v2011 = vor.u32 %v2009, %v2010
        %v2012 = vshll.u32 920167782, %v1997
        %v2013 = vshrl.u32 1326507024, %v1998
        %v2014 = vor.u32 %v2012, %v2013
        %vm2015 = vcmp.lt.s32.totalorder %v1996, 1
        %vm2016 = vcmp.lt.s32.totalorder %v1996, 2
        %vm2017 = vcmp.lt.s32.totalorder %v1996, 3
        %vm2018 = vcmp.lt.s32.totalorder %v1996, 4
        %v2019 = vsel %vm2015, %v1999, %v2002
        %v2020 = vsel %vm2018, %v2008, 2102212464
        %v2021 = vsel %vm2017, %v2005, %v2020
        %v2022 = vsel %vm2016, %v2019, %v2021
        %v2023 = vsel %vm2015, %v2002, %v2005
        %v2024 = vsel %vm2018, %v2011, 920167782
        %v2025 = vsel %vm2017, %v2008, %v2024
        %v2026 = vsel %vm2016, %v2023, %v2025
        %v2027 = vsel %vm2015, %v2005, %v2008
        %v2028 = vsel %vm2018, %v2014, 1326507024
        %v2029 = vsel %vm2017, %v2011, %v2028
        %v2030 = vsel %vm2016, %v2027, %v2029
        %v2031 = vshll.u32 %v1991, 8
        %v2032 = vmul.u32.u64.compose %v2031, %v2030
        %v2033 = vextract.low.u32 %v2032
        %v2034 = vextract.high.u32 %v2032
        %v2035 = vmul.u32.u64.compose %v2031, %v2026
        %v2036 = vextract.low.u32 %v2035
        %v2037 = vextract.high.u32 %v2035
        %v2038 = vmul.u32 %v2031, %v2022
        %v2039 = vadd.s32 %v2034, %v2036
        %vm2040 = vc.u32 %v2034, %v2036
        %v2041 = vadd.s32 %v2037, 1
        %v2042 = vsel %vm2040, %v2041, %v2037
        %v2043 = vadd.s32 %v2038, %v2042
        %v2044 = vadd.s32 %v2043, 536870912
        %v2045 = vshrl.u32 %v2044, 30
        %v2046 = vshll.u32 %v2045, 30
        %v2047 = vsub.s32 %v2043, %v2046
        %vm2048 = vcmp.lt.s32.totalorder %v2047, 0
        %v2049 = vsub.s32 0, %v2047
        %v2050 = vsel %vm2048, %v2049, %v2047
        %v2051 = vclz %v2050
        %v2052 = vsub.s32 %v2051, 2
        %vm2053 = vcmp.gt.s32.totalorder 0, %v2052
        %v2054 = vsel %vm2053, 0, %v2052
        %v2055 = vsub.s32 32, %v2054
        %v2056 = vshll.u32 %v2047, %v2054
        %v2057 = vshrl.u32 %v2039, %v2055
        %v2058 = vor.u32 %v2056, %v2057
        %v2059 = vsub.s32 4294967266, %v2054
        %v2060 = vadd.s32 %v2059, 127
        %v2061 = vshll.u32 %v2060, 23
        %v2062 = vor.u32 4788187, %v2061
        %v2063 = vand.u32 2147483647, %v2062
        %v2065 = vcvt.s32.f32 %v2058
        %v2066 = vmul.f32 %v2065, %v2063
        %v2067 = vxor.u32 %v2066, 2147483648
        %v2068 = vsel %vm1985, %v2067, %v2066
        %v2069 = vsub.s32 4, %v2045
        %v2070 = vsel %vm1985, %v2069, %v2045
        %v2071 = vsel %vm1984, %v1301, %v2068
        %v2072 = vsel %vm1984, 0, %v2070
        %v2073 = vcosq.f32.pop %v2071
        %v2074 = vsinq.f32.pop %v2071
        %vm2075 = vweird.f32 %v1301
        %v2076 = vadd.s32 %v2072, 3
        %v2077 = vand.u32 %v2076, 3
        %vm2078 = vcmp.lt.s32.totalorder %v2077, 2
        %vm2079 = vcmp.eq.s32.totalorder %v2077, 0
        %v2080 = vxor.u32 %v2074, 2147483648
        %v2081 = vsel %vm2079, %v2073, %v2080
        %vm2082 = vcmp.eq.s32.totalorder %v2077, 2
        %v2083 = vxor.u32 %v2073, 2147483648
        %v2084 = vsel %vm2082, %v2083, %v2074
        %v2085 = vsel %vm2078, %v2081, %v2084
        %v2086 = vsel %vm2075, nan, %v2085
        %v2087 = vand.u32 2147483647, %v1302
        %vm2088 = vcmp.le.f32.partialorder %v2087, 0.7853982
        %vm2089 = vcmp.lt.s32.totalorder %v1302, 0
        %v2090 = vand.u32 %v1302, 2139095040
        %v2091 = vshrl.u32 %v2090, 23
        %v2092 = vsub.s32 %v2091, 127
        %v2093 = vand.u32 2147483647, %v1302
        %v2094 = vand.u32 %v2093, 8388607
        %v2095 = vor.u32 %v2094, 8388608
        %v2096 = vsub.s32 0, %v2095
        %v2097 = vadd.s32 %v2092, 1
        %vm2098 = vcmp.gt.s32.totalorder %v2097, 0
        %v2099 = vsel %vm2098, %v2097, 0
        %v2100 = vshrl.u32 %v2099, 5
        %v2101 = vand.u32 %v2099, 31
        %v2102 = vsub.s32 32, %v2101
        %v2103 = vshrl.u32 683565275, %v2102
        %v2104 = vshll.u32 683565275, %v2101
        %v2105 = vshrl.u32 2475754826, %v2102
        %v2106 = vor.u32 %v2104, %v2105
        %v2107 = vshll.u32 2475754826, %v2101
        %v2108 = vshrl.u32 2131351028, %v2102
        %v2109 = vor.u32 %v2107, %v2108
        %v2110 = vshll.u32 2131351028, %v2101
        %v2111 = vshrl.u32 2102212464, %v2102
        %v2112 = vor.u32 %v2110, %v2111
        %v2113 = vshll.u32 2102212464, %v2101
        %v2114 = vshrl.u32 920167782, %v2102
        %v2115 = vor.u32 %v2113, %v2114
        %v2116 = vshll.u32 920167782, %v2101
        %v2117 = vshrl.u32 1326507024, %v2102
        %v2118 = vor.u32 %v2116, %v2117
        %vm2119 = vcmp.lt.s32.totalorder %v2100, 1
        %vm2120 = vcmp.lt.s32.totalorder %v2100, 2
        %vm2121 = vcmp.lt.s32.totalorder %v2100, 3
        %vm2122 = vcmp.lt.s32.totalorder %v2100, 4
        %v2123 = vsel %vm2119, %v2103, %v2106
        %v2124 = vsel %vm2122, %v2112, 2102212464
        %v2125 = vsel %vm2121, %v2109, %v2124
        %v2126 = vsel %vm2120, %v2123, %v2125
        %v2127 = vsel %vm2119, %v2106, %v2109
        %v2128 = vsel %vm2122, %v2115, 920167782
        %v2129 = vsel %vm2121, %v2112, %v2128
        %v2130 = vsel %vm2120, %v2127, %v2129
        %v2131 = vsel %vm2119, %v2109, %v2112
        %v2132 = vsel %vm2122, %v2118, 1326507024
        %v2133 = vsel %vm2121, %v2115, %v2132
        %v2134 = vsel %vm2120, %v2131, %v2133
        %v2135 = vshll.u32 %v2095, 8
        %v2136 = vmul.u32.u64.compose %v2135, %v2134
        %v2137 = vextract.low.u32 %v2136
        %v2138 = vextract.high.u32 %v2136
        %v2139 = vmul.u32.u64.compose %v2135, %v2130
        %v2140 = vextract.low.u32 %v2139
        %v2141 = vextract.high.u32 %v2139
        %v2142 = vmul.u32 %v2135, %v2126
        %v2143 = vadd.s32 %v2138, %v2140
        %vm2144 = vc.u32 %v2138, %v2140
        %v2145 = vadd.s32 %v2141, 1
        %v2146 = vsel %vm2144, %v2145, %v2141
        %v2147 = vadd.s32 %v2142, %v2146
        %v2148 = vadd.s32 %v2147, 536870912
        %v2149 = vshrl.u32 %v2148, 30
        %v2150 = vshll.u32 %v2149, 30
        %v2151 = vsub.s32 %v2147, %v2150
        %vm2152 = vcmp.lt.s32.totalorder %v2151, 0
        %v2153 = vsub.s32 0, %v2151
        %v2154 = vsel %vm2152, %v2153, %v2151
        %v2155 = vclz %v2154
        %v2156 = vsub.s32 %v2155, 2
        %vm2157 = vcmp.gt.s32.totalorder 0, %v2156
        %v2158 = vsel %vm2157, 0, %v2156
        %v2159 = vsub.s32 32, %v2158
        %v2160 = vshll.u32 %v2151, %v2158
        %v2161 = vshrl.u32 %v2143, %v2159
        %v2162 = vor.u32 %v2160, %v2161
        %v2163 = vsub.s32 4294967266, %v2158
        %v2164 = vadd.s32 %v2163, 127
        %v2165 = vshll.u32 %v2164, 23
        %v2166 = vor.u32 4788187, %v2165
        %v2167 = vand.u32 2147483647, %v2166
        %v2169 = vcvt.s32.f32 %v2162
        %v2170 = vmul.f32 %v2169, %v2167
        %v2171 = vxor.u32 %v2170, 2147483648
        %v2172 = vsel %vm2089, %v2171, %v2170
        %v2173 = vsub.s32 4, %v2149
        %v2174 = vsel %vm2089, %v2173, %v2149
        %v2175 = vsel %vm2088, %v1302, %v2172
        %v2176 = vsel %vm2088, 0, %v2174
        %v2177 = vcosq.f32.pop %v2175
        %v2178 = vsinq.f32.pop %v2175
        %vm2179 = vweird.f32 %v1302
        %v2180 = vadd.s32 %v2176, 3
        %v2181 = vand.u32 %v2180, 3
        %vm2182 = vcmp.lt.s32.totalorder %v2181, 2
        %vm2183 = vcmp.eq.s32.totalorder %v2181, 0
        %v2184 = vxor.u32 %v2178, 2147483648
        %v2185 = vsel %vm2183, %v2177, %v2184
        %vm2186 = vcmp.eq.s32.totalorder %v2181, 2
        %v2187 = vxor.u32 %v2177, 2147483648
        %v2188 = vsel %vm2186, %v2187, %v2178
        %v2189 = vsel %vm2182, %v2185, %v2188
        %v2190 = vsel %vm2179, nan, %v2189
        %v2191 = vand.u32 2147483647, %v1303
        %vm2192 = vcmp.le.f32.partialorder %v2191, 0.7853982
        %vm2193 = vcmp.lt.s32.totalorder %v1303, 0
        %v2194 = vand.u32 %v1303, 2139095040
        %v2195 = vshrl.u32 %v2194, 23
        %v2196 = vsub.s32 %v2195, 127
        %v2197 = vand.u32 2147483647, %v1303
        %v2198 = vand.u32 %v2197, 8388607
        %v2199 = vor.u32 %v2198, 8388608
        %v2200 = vsub.s32 0, %v2199
        %v2201 = vadd.s32 %v2196, 1
        %vm2202 = vcmp.gt.s32.totalorder %v2201, 0
        %v2203 = vsel %vm2202, %v2201, 0
        %v2204 = vshrl.u32 %v2203, 5
        %v2205 = vand.u32 %v2203, 31
        %v2206 = vsub.s32 32, %v2205
        %v2207 = vshrl.u32 683565275, %v2206
        %v2208 = vshll.u32 683565275, %v2205
        %v2209 = vshrl.u32 2475754826, %v2206
        %v2210 = vor.u32 %v2208, %v2209
        %v2211 = vshll.u32 2475754826, %v2205
        %v2212 = vshrl.u32 2131351028, %v2206
        %v2213 = vor.u32 %v2211, %v2212
        %v2214 = vshll.u32 2131351028, %v2205
        %v2215 = vshrl.u32 2102212464, %v2206
        %v2216 = vor.u32 %v2214, %v2215
        %v2217 = vshll.u32 2102212464, %v2205
        %v2218 = vshrl.u32 920167782, %v2206
        %v2219 = vor.u32 %v2217, %v2218
        %v2220 = vshll.u32 920167782, %v2205
        %v2221 = vshrl.u32 1326507024, %v2206
        %v2222 = vor.u32 %v2220, %v2221
        %vm2223 = vcmp.lt.s32.totalorder %v2204, 1
        %vm2224 = vcmp.lt.s32.totalorder %v2204, 2
        %vm2225 = vcmp.lt.s32.totalorder %v2204, 3
        %vm2226 = vcmp.lt.s32.totalorder %v2204, 4
        %v2227 = vsel %vm2223, %v2207, %v2210
        %v2228 = vsel %vm2226, %v2216, 2102212464
        %v2229 = vsel %vm2225, %v2213, %v2228
        %v2230 = vsel %vm2224, %v2227, %v2229
        %v2231 = vsel %vm2223, %v2210, %v2213
        %v2232 = vsel %vm2226, %v2219, 920167782
        %v2233 = vsel %vm2225, %v2216, %v2232
        %v2234 = vsel %vm2224, %v2231, %v2233
        %v2235 = vsel %vm2223, %v2213, %v2216
        %v2236 = vsel %vm2226, %v2222, 1326507024
        %v2237 = vsel %vm2225, %v2219, %v2236
        %v2238 = vsel %vm2224, %v2235, %v2237
        %v2239 = vshll.u32 %v2199, 8
        %v2240 = vmul.u32.u64.compose %v2239, %v2238
        %v2241 = vextract.low.u32 %v2240
        %v2242 = vextract.high.u32 %v2240
        %v2243 = vmul.u32.u64.compose %v2239, %v2234
        %v2244 = vextract.low.u32 %v2243
        %v2245 = vextract.high.u32 %v2243
        %v2246 = vmul.u32 %v2239, %v2230
        %v2247 = vadd.s32 %v2242, %v2244
        %vm2248 = vc.u32 %v2242, %v2244
        %v2249 = vadd.s32 %v2245, 1
        %v2250 = vsel %vm2248, %v2249, %v2245
        %v2251 = vadd.s32 %v2246, %v2250
        %v2252 = vadd.s32 %v2251, 536870912
        %v2253 = vshrl.u32 %v2252, 30
        %v2254 = vshll.u32 %v2253, 30
        %v2255 = vsub.s32 %v2251, %v2254
        %vm2256 = vcmp.lt.s32.totalorder %v2255, 0
        %v2257 = vsub.s32 0, %v2255
        %v2258 = vsel %vm2256, %v2257, %v2255
        %v2259 = vclz %v2258
        %v2260 = vsub.s32 %v2259, 2
        %vm2261 = vcmp.gt.s32.totalorder 0, %v2260
        %v2262 = vsel %vm2261, 0, %v2260
        %v2263 = vsub.s32 32, %v2262
        %v2264 = vshll.u32 %v2255, %v2262
        %v2265 = vshrl.u32 %v2247, %v2263
        %v2266 = vor.u32 %v2264, %v2265
        %v2267 = vsub.s32 4294967266, %v2262
        %v2268 = vadd.s32 %v2267, 127
        %v2269 = vshll.u32 %v2268, 23
        %v2270 = vor.u32 4788187, %v2269
        %v2271 = vand.u32 2147483647, %v2270
        %v2273 = vcvt.s32.f32 %v2266
        %v2274 = vmul.f32 %v2273, %v2271
        %v2275 = vxor.u32 %v2274, 2147483648
        %v2276 = vsel %vm2193, %v2275, %v2274
        %v2277 = vsub.s32 4, %v2253
        %v2278 = vsel %vm2193, %v2277, %v2253
        %v2279 = vsel %vm2192, %v1303, %v2276
        %v2280 = vsel %vm2192, 0, %v2278
        %v2281 = vcosq.f32.pop %v2279
        %v2282 = vsinq.f32.pop %v2279
        %vm2283 = vweird.f32 %v1303
        %v2284 = vadd.s32 %v2280, 3
        %v2285 = vand.u32 %v2284, 3
        %vm2286 = vcmp.lt.s32.totalorder %v2285, 2
        %vm2287 = vcmp.eq.s32.totalorder %v2285, 0
        %v2288 = vxor.u32 %v2282, 2147483648
        %v2289 = vsel %vm2287, %v2281, %v2288
        %vm2290 = vcmp.eq.s32.totalorder %v2285, 2
        %v2291 = vxor.u32 %v2281, 2147483648
        %v2292 = vsel %vm2290, %v2291, %v2282
        %v2293 = vsel %vm2286, %v2289, %v2292
        %v2294 = vsel %vm2283, nan, %v2293
        %v2295 = vand.u32 2147483647, %v1304
        %vm2296 = vcmp.le.f32.partialorder %v2295, 0.7853982
        %vm2297 = vcmp.lt.s32.totalorder %v1304, 0
        %v2298 = vand.u32 %v1304, 2139095040
        %v2299 = vshrl.u32 %v2298, 23
        %v2300 = vsub.s32 %v2299, 127
        %v2301 = vand.u32 2147483647, %v1304
        %v2302 = vand.u32 %v2301, 8388607
        %v2303 = vor.u32 %v2302, 8388608
        %v2304 = vsub.s32 0, %v2303
        %v2305 = vadd.s32 %v2300, 1
        %vm2306 = vcmp.gt.s32.totalorder %v2305, 0
        %v2307 = vsel %vm2306, %v2305, 0
        %v2308 = vshrl.u32 %v2307, 5
        %v2309 = vand.u32 %v2307, 31
        %v2310 = vsub.s32 32, %v2309
        %v2311 = vshrl.u32 683565275, %v2310
        %v2312 = vshll.u32 683565275, %v2309
        %v2313 = vshrl.u32 2475754826, %v2310
        %v2314 = vor.u32 %v2312, %v2313
        %v2315 = vshll.u32 2475754826, %v2309
        %v2316 = vshrl.u32 2131351028, %v2310
        %v2317 = vor.u32 %v2315, %v2316
        %v2318 = vshll.u32 2131351028, %v2309
        %v2319 = vshrl.u32 2102212464, %v2310
        %v2320 = vor.u32 %v2318, %v2319
        %v2321 = vshll.u32 2102212464, %v2309
        %v2322 = vshrl.u32 920167782, %v2310
        %v2323 = vor.u32 %v2321, %v2322
        %v2324 = vshll.u32 920167782, %v2309
        %v2325 = vshrl.u32 1326507024, %v2310
        %v2326 = vor.u32 %v2324, %v2325
        %vm2327 = vcmp.lt.s32.totalorder %v2308, 1
        %vm2328 = vcmp.lt.s32.totalorder %v2308, 2
        %vm2329 = vcmp.lt.s32.totalorder %v2308, 3
        %vm2330 = vcmp.lt.s32.totalorder %v2308, 4
        %v2331 = vsel %vm2327, %v2311, %v2314
        %v2332 = vsel %vm2330, %v2320, 2102212464
        %v2333 = vsel %vm2329, %v2317, %v2332
        %v2334 = vsel %vm2328, %v2331, %v2333
        %v2335 = vsel %vm2327, %v2314, %v2317
        %v2336 = vsel %vm2330, %v2323, 920167782
        %v2337 = vsel %vm2329, %v2320, %v2336
        %v2338 = vsel %vm2328, %v2335, %v2337
        %v2339 = vsel %vm2327, %v2317, %v2320
        %v2340 = vsel %vm2330, %v2326, 1326507024
        %v2341 = vsel %vm2329, %v2323, %v2340
        %v2342 = vsel %vm2328, %v2339, %v2341
        %v2343 = vshll.u32 %v2303, 8
        %v2344 = vmul.u32.u64.compose %v2343, %v2342
        %v2345 = vextract.low.u32 %v2344
        %v2346 = vextract.high.u32 %v2344
        %v2347 = vmul.u32.u64.compose %v2343, %v2338
        %v2348 = vextract.low.u32 %v2347
        %v2349 = vextract.high.u32 %v2347
        %v2350 = vmul.u32 %v2343, %v2334
        %v2351 = vadd.s32 %v2346, %v2348
        %vm2352 = vc.u32 %v2346, %v2348
        %v2353 = vadd.s32 %v2349, 1
        %v2354 = vsel %vm2352, %v2353, %v2349
        %v2355 = vadd.s32 %v2350, %v2354
        %v2356 = vadd.s32 %v2355, 536870912
        %v2357 = vshrl.u32 %v2356, 30
        %v2358 = vshll.u32 %v2357, 30
        %v2359 = vsub.s32 %v2355, %v2358
        %vm2360 = vcmp.lt.s32.totalorder %v2359, 0
        %v2361 = vsub.s32 0, %v2359
        %v2362 = vsel %vm2360, %v2361, %v2359
        %v2363 = vclz %v2362
        %v2364 = vsub.s32 %v2363, 2
        %vm2365 = vcmp.gt.s32.totalorder 0, %v2364
        %v2366 = vsel %vm2365, 0, %v2364
        %v2367 = vsub.s32 32, %v2366
        %v2368 = vshll.u32 %v2359, %v2366
        %v2369 = vshrl.u32 %v2351, %v2367
        %v2370 = vor.u32 %v2368, %v2369
        %v2371 = vsub.s32 4294967266, %v2366
        %v2372 = vadd.s32 %v2371, 127
        %v2373 = vshll.u32 %v2372, 23
        %v2374 = vor.u32 4788187, %v2373
        %v2375 = vand.u32 2147483647, %v2374
        %v2377 = vcvt.s32.f32 %v2370
        %v2378 = vmul.f32 %v2377, %v2375
        %v2379 = vxor.u32 %v2378, 2147483648
        %v2380 = vsel %vm2297, %v2379, %v2378
        %v2381 = vsub.s32 4, %v2357
        %v2382 = vsel %vm2297, %v2381, %v2357
        %v2383 = vsel %vm2296, %v1304, %v2380
        %v2384 = vsel %vm2296, 0, %v2382
        %v2385 = vcosq.f32.pop %v2383
        %v2386 = vsinq.f32.pop %v2383
        %vm2387 = vweird.f32 %v1304
        %v2388 = vadd.s32 %v2384, 3
        %v2389 = vand.u32 %v2388, 3
        %vm2390 = vcmp.lt.s32.totalorder %v2389, 2
        %vm2391 = vcmp.eq.s32.totalorder %v2389, 0
        %v2392 = vxor.u32 %v2386, 2147483648
        %v2393 = vsel %vm2391, %v2385, %v2392
        %vm2394 = vcmp.eq.s32.totalorder %v2389, 2
        %v2395 = vxor.u32 %v2385, 2147483648
        %v2396 = vsel %vm2394, %v2395, %v2386
        %v2397 = vsel %vm2390, %v2393, %v2396
        %v2398 = vsel %vm2387, nan, %v2397
        %v2399 = vand.u32 2147483647, %v1305
        %vm2400 = vcmp.le.f32.partialorder %v2399, 0.7853982
        %vm2401 = vcmp.lt.s32.totalorder %v1305, 0
        %v2402 = vand.u32 %v1305, 2139095040
        %v2403 = vshrl.u32 %v2402, 23
        %v2404 = vsub.s32 %v2403, 127
        %v2405 = vand.u32 2147483647, %v1305
        %v2406 = vand.u32 %v2405, 8388607
        %v2407 = vor.u32 %v2406, 8388608
        %v2408 = vsub.s32 0, %v2407
        %v2409 = vadd.s32 %v2404, 1
        %vm2410 = vcmp.gt.s32.totalorder %v2409, 0
        %v2411 = vsel %vm2410, %v2409, 0
        %v2412 = vshrl.u32 %v2411, 5
        %v2413 = vand.u32 %v2411, 31
        %v2414 = vsub.s32 32, %v2413
        %v2415 = vshrl.u32 683565275, %v2414
        %v2416 = vshll.u32 683565275, %v2413
        %v2417 = vshrl.u32 2475754826, %v2414
        %v2418 = vor.u32 %v2416, %v2417
        %v2419 = vshll.u32 2475754826, %v2413
        %v2420 = vshrl.u32 2131351028, %v2414
        %v2421 = vor.u32 %v2419, %v2420
        %v2422 = vshll.u32 2131351028, %v2413
        %v2423 = vshrl.u32 2102212464, %v2414
        %v2424 = vor.u32 %v2422, %v2423
        %v2425 = vshll.u32 2102212464, %v2413
        %v2426 = vshrl.u32 920167782, %v2414
        %v2427 = vor.u32 %v2425, %v2426
        %v2428 = vshll.u32 920167782, %v2413
        %v2429 = vshrl.u32 1326507024, %v2414
        %v2430 = vor.u32 %v2428, %v2429
        %vm2431 = vcmp.lt.s32.totalorder %v2412, 1
        %vm2432 = vcmp.lt.s32.totalorder %v2412, 2
        %vm2433 = vcmp.lt.s32.totalorder %v2412, 3
        %vm2434 = vcmp.lt.s32.totalorder %v2412, 4
        %v2435 = vsel %vm2431, %v2415, %v2418
        %v2436 = vsel %vm2434, %v2424, 2102212464
        %v2437 = vsel %vm2433, %v2421, %v2436
        %v2438 = vsel %vm2432, %v2435, %v2437
        %v2439 = vsel %vm2431, %v2418, %v2421
        %v2440 = vsel %vm2434, %v2427, 920167782
        %v2441 = vsel %vm2433, %v2424, %v2440
        %v2442 = vsel %vm2432, %v2439, %v2441
        %v2443 = vsel %vm2431, %v2421, %v2424
        %v2444 = vsel %vm2434, %v2430, 1326507024
        %v2445 = vsel %vm2433, %v2427, %v2444
        %v2446 = vsel %vm2432, %v2443, %v2445
        %v2447 = vshll.u32 %v2407, 8
        %v2448 = vmul.u32.u64.compose %v2447, %v2446
        %v2449 = vextract.low.u32 %v2448
        %v2450 = vextract.high.u32 %v2448
        %v2451 = vmul.u32.u64.compose %v2447, %v2442
        %v2452 = vextract.low.u32 %v2451
        %v2453 = vextract.high.u32 %v2451
        %v2454 = vmul.u32 %v2447, %v2438
        %v2455 = vadd.s32 %v2450, %v2452
        %vm2456 = vc.u32 %v2450, %v2452
        %v2457 = vadd.s32 %v2453, 1
        %v2458 = vsel %vm2456, %v2457, %v2453
        %v2459 = vadd.s32 %v2454, %v2458
        %v2460 = vadd.s32 %v2459, 536870912
        %v2461 = vshrl.u32 %v2460, 30
        %v2462 = vshll.u32 %v2461, 30
        %v2463 = vsub.s32 %v2459, %v2462
        %vm2464 = vcmp.lt.s32.totalorder %v2463, 0
        %v2465 = vsub.s32 0, %v2463
        %v2466 = vsel %vm2464, %v2465, %v2463
        %v2467 = vclz %v2466
        %v2468 = vsub.s32 %v2467, 2
        %vm2469 = vcmp.gt.s32.totalorder 0, %v2468
        %v2470 = vsel %vm2469, 0, %v2468
        %v2471 = vsub.s32 32, %v2470
        %v2472 = vshll.u32 %v2463, %v2470
        %v2473 = vshrl.u32 %v2455, %v2471
        %v2474 = vor.u32 %v2472, %v2473
        %v2475 = vsub.s32 4294967266, %v2470
        %v2476 = vadd.s32 %v2475, 127
        %v2477 = vshll.u32 %v2476, 23
        %v2478 = vor.u32 4788187, %v2477
        %v2479 = vand.u32 2147483647, %v2478
        %v2481 = vcvt.s32.f32 %v2474
        %v2482 = vmul.f32 %v2481, %v2479
        %v2483 = vxor.u32 %v2482, 2147483648
        %v2484 = vsel %vm2401, %v2483, %v2482
        %v2485 = vsub.s32 4, %v2461
        %v2486 = vsel %vm2401, %v2485, %v2461
        %v2487 = vsel %vm2400, %v1305, %v2484
        %v2488 = vsel %vm2400, 0, %v2486
        %v2489 = vcosq.f32.pop %v2487
        %v2490 = vsinq.f32.pop %v2487
        %vm2491 = vweird.f32 %v1305
        %v2492 = vadd.s32 %v2488, 3
        %v2493 = vand.u32 %v2492, 3
        %vm2494 = vcmp.lt.s32.totalorder %v2493, 2
        %vm2495 = vcmp.eq.s32.totalorder %v2493, 0
        %v2496 = vxor.u32 %v2490, 2147483648
        %v2497 = vsel %vm2495, %v2489, %v2496
        %vm2498 = vcmp.eq.s32.totalorder %v2493, 2
        %v2499 = vxor.u32 %v2489, 2147483648
        %v2500 = vsel %vm2498, %v2499, %v2490
        %v2501 = vsel %vm2494, %v2497, %v2500
        %v2502 = vsel %vm2491, nan, %v2501
        %v2503 = vand.u32 2147483647, %v1306
        %vm2504 = vcmp.le.f32.partialorder %v2503, 0.7853982
        %vm2505 = vcmp.lt.s32.totalorder %v1306, 0
        %v2506 = vand.u32 %v1306, 2139095040
        %v2507 = vshrl.u32 %v2506, 23
        %v2508 = vsub.s32 %v2507, 127
        %v2509 = vand.u32 2147483647, %v1306
        %v2510 = vand.u32 %v2509, 8388607
        %v2511 = vor.u32 %v2510, 8388608
        %v2512 = vsub.s32 0, %v2511
        %v2513 = vadd.s32 %v2508, 1
        %vm2514 = vcmp.gt.s32.totalorder %v2513, 0
        %v2515 = vsel %vm2514, %v2513, 0
        %v2516 = vshrl.u32 %v2515, 5
        %v2517 = vand.u32 %v2515, 31
        %v2518 = vsub.s32 32, %v2517
        %v2519 = vshrl.u32 683565275, %v2518
        %v2520 = vshll.u32 683565275, %v2517
        %v2521 = vshrl.u32 2475754826, %v2518
        %v2522 = vor.u32 %v2520, %v2521
        %v2523 = vshll.u32 2475754826, %v2517
        %v2524 = vshrl.u32 2131351028, %v2518
        %v2525 = vor.u32 %v2523, %v2524
        %v2526 = vshll.u32 2131351028, %v2517
        %v2527 = vshrl.u32 2102212464, %v2518
        %v2528 = vor.u32 %v2526, %v2527
        %v2529 = vshll.u32 2102212464, %v2517
        %v2530 = vshrl.u32 920167782, %v2518
        %v2531 = vor.u32 %v2529, %v2530
        %v2532 = vshll.u32 920167782, %v2517
        %v2533 = vshrl.u32 1326507024, %v2518
        %v2534 = vor.u32 %v2532, %v2533
        %vm2535 = vcmp.lt.s32.totalorder %v2516, 1
        %vm2536 = vcmp.lt.s32.totalorder %v2516, 2
        %vm2537 = vcmp.lt.s32.totalorder %v2516, 3
        %vm2538 = vcmp.lt.s32.totalorder %v2516, 4
        %v2539 = vsel %vm2535, %v2519, %v2522
        %v2540 = vsel %vm2538, %v2528, 2102212464
        %v2541 = vsel %vm2537, %v2525, %v2540
        %v2542 = vsel %vm2536, %v2539, %v2541
        %v2543 = vsel %vm2535, %v2522, %v2525
        %v2544 = vsel %vm2538, %v2531, 920167782
        %v2545 = vsel %vm2537, %v2528, %v2544
        %v2546 = vsel %vm2536, %v2543, %v2545
        %v2547 = vsel %vm2535, %v2525, %v2528
        %v2548 = vsel %vm2538, %v2534, 1326507024
        %v2549 = vsel %vm2537, %v2531, %v2548
        %v2550 = vsel %vm2536, %v2547, %v2549
        %v2551 = vshll.u32 %v2511, 8
        %v2552 = vmul.u32.u64.compose %v2551, %v2550
        %v2553 = vextract.low.u32 %v2552
        %v2554 = vextract.high.u32 %v2552
        %v2555 = vmul.u32.u64.compose %v2551, %v2546
        %v2556 = vextract.low.u32 %v2555
        %v2557 = vextract.high.u32 %v2555
        %v2558 = vmul.u32 %v2551, %v2542
        %v2559 = vadd.s32 %v2554, %v2556
        %vm2560 = vc.u32 %v2554, %v2556
        %v2561 = vadd.s32 %v2557, 1
        %v2562 = vsel %vm2560, %v2561, %v2557
        %v2563 = vadd.s32 %v2558, %v2562
        %v2564 = vadd.s32 %v2563, 536870912
        %v2565 = vshrl.u32 %v2564, 30
        %v2566 = vshll.u32 %v2565, 30
        %v2567 = vsub.s32 %v2563, %v2566
        %vm2568 = vcmp.lt.s32.totalorder %v2567, 0
        %v2569 = vsub.s32 0, %v2567
        %v2570 = vsel %vm2568, %v2569, %v2567
        %v2571 = vclz %v2570
        %v2572 = vsub.s32 %v2571, 2
        %vm2573 = vcmp.gt.s32.totalorder 0, %v2572
        %v2574 = vsel %vm2573, 0, %v2572
        %v2575 = vsub.s32 32, %v2574
        %v2576 = vshll.u32 %v2567, %v2574
        %v2577 = vshrl.u32 %v2559, %v2575
        %v2578 = vor.u32 %v2576, %v2577
        %v2579 = vsub.s32 4294967266, %v2574
        %v2580 = vadd.s32 %v2579, 127
        %v2581 = vshll.u32 %v2580, 23
        %v2582 = vor.u32 4788187, %v2581
        %v2583 = vand.u32 2147483647, %v2582
        %v2585 = vcvt.s32.f32 %v2578
        %v2586 = vmul.f32 %v2585, %v2583
        %v2587 = vxor.u32 %v2586, 2147483648
        %v2588 = vsel %vm2505, %v2587, %v2586
        %v2589 = vsub.s32 4, %v2565
        %v2590 = vsel %vm2505, %v2589, %v2565
        %v2591 = vsel %vm2504, %v1306, %v2588
        %v2592 = vsel %vm2504, 0, %v2590
        %v2593 = vcosq.f32.pop %v2591
        %v2594 = vsinq.f32.pop %v2591
        %vm2595 = vweird.f32 %v1306
        %v2596 = vadd.s32 %v2592, 3
        %v2597 = vand.u32 %v2596, 3
        %vm2598 = vcmp.lt.s32.totalorder %v2597, 2
        %vm2599 = vcmp.eq.s32.totalorder %v2597, 0
        %v2600 = vxor.u32 %v2594, 2147483648
        %v2601 = vsel %vm2599, %v2593, %v2600
        %vm2602 = vcmp.eq.s32.totalorder %v2597, 2
        %v2603 = vxor.u32 %v2593, 2147483648
        %v2604 = vsel %vm2602, %v2603, %v2594
        %v2605 = vsel %vm2598, %v2601, %v2604
        %v2606 = vsel %vm2595, nan, %v2605
        %v2607 = vand.u32 2147483647, %v1307
        %vm2608 = vcmp.le.f32.partialorder %v2607, 0.7853982
        %vm2609 = vcmp.lt.s32.totalorder %v1307, 0
        %v2610 = vand.u32 %v1307, 2139095040
        %v2611 = vshrl.u32 %v2610, 23
        %v2612 = vsub.s32 %v2611, 127
        %v2613 = vand.u32 2147483647, %v1307
        %v2614 = vand.u32 %v2613, 8388607
        %v2615 = vor.u32 %v2614, 8388608
        %v2616 = vsub.s32 0, %v2615
        %v2617 = vadd.s32 %v2612, 1
        %vm2618 = vcmp.gt.s32.totalorder %v2617, 0
        %v2619 = vsel %vm2618, %v2617, 0
        %v2620 = vshrl.u32 %v2619, 5
        %v2621 = vand.u32 %v2619, 31
        %v2622 = vsub.s32 32, %v2621
        %v2623 = vshrl.u32 683565275, %v2622
        %v2624 = vshll.u32 683565275, %v2621
        %v2625 = vshrl.u32 2475754826, %v2622
        %v2626 = vor.u32 %v2624, %v2625
        %v2627 = vshll.u32 2475754826, %v2621
        %v2628 = vshrl.u32 2131351028, %v2622
        %v2629 = vor.u32 %v2627, %v2628
        %v2630 = vshll.u32 2131351028, %v2621
        %v2631 = vshrl.u32 2102212464, %v2622
        %v2632 = vor.u32 %v2630, %v2631
        %v2633 = vshll.u32 2102212464, %v2621
        %v2634 = vshrl.u32 920167782, %v2622
        %v2635 = vor.u32 %v2633, %v2634
        %v2636 = vshll.u32 920167782, %v2621
        %v2637 = vshrl.u32 1326507024, %v2622
        %v2638 = vor.u32 %v2636, %v2637
        %vm2639 = vcmp.lt.s32.totalorder %v2620, 1
        %vm2640 = vcmp.lt.s32.totalorder %v2620, 2
        %vm2641 = vcmp.lt.s32.totalorder %v2620, 3
        %vm2642 = vcmp.lt.s32.totalorder %v2620, 4
        %v2643 = vsel %vm2639, %v2623, %v2626
        %v2644 = vsel %vm2642, %v2632, 2102212464
        %v2645 = vsel %vm2641, %v2629, %v2644
        %v2646 = vsel %vm2640, %v2643, %v2645
        %v2647 = vsel %vm2639, %v2626, %v2629
        %v2648 = vsel %vm2642, %v2635, 920167782
        %v2649 = vsel %vm2641, %v2632, %v2648
        %v2650 = vsel %vm2640, %v2647, %v2649
        %v2651 = vsel %vm2639, %v2629, %v2632
        %v2652 = vsel %vm2642, %v2638, 1326507024
        %v2653 = vsel %vm2641, %v2635, %v2652
        %v2654 = vsel %vm2640, %v2651, %v2653
        %v2655 = vshll.u32 %v2615, 8
        %v2656 = vmul.u32.u64.compose %v2655, %v2654
        %v2657 = vextract.low.u32 %v2656
        %v2658 = vextract.high.u32 %v2656
        %v2659 = vmul.u32.u64.compose %v2655, %v2650
        %v2660 = vextract.low.u32 %v2659
        %v2661 = vextract.high.u32 %v2659
        %v2662 = vmul.u32 %v2655, %v2646
        %v2663 = vadd.s32 %v2658, %v2660
        %vm2664 = vc.u32 %v2658, %v2660
        %v2665 = vadd.s32 %v2661, 1
        %v2666 = vsel %vm2664, %v2665, %v2661
        %v2667 = vadd.s32 %v2662, %v2666
        %v2668 = vadd.s32 %v2667, 536870912
        %v2669 = vshrl.u32 %v2668, 30
        %v2670 = vshll.u32 %v2669, 30
        %v2671 = vsub.s32 %v2667, %v2670
        %vm2672 = vcmp.lt.s32.totalorder %v2671, 0
        %v2673 = vsub.s32 0, %v2671
        %v2674 = vsel %vm2672, %v2673, %v2671
        %v2675 = vclz %v2674
        %v2676 = vsub.s32 %v2675, 2
        %vm2677 = vcmp.gt.s32.totalorder 0, %v2676
        %v2678 = vsel %vm2677, 0, %v2676
        %v2679 = vsub.s32 32, %v2678
        %v2680 = vshll.u32 %v2671, %v2678
        %v2681 = vshrl.u32 %v2663, %v2679
        %v2682 = vor.u32 %v2680, %v2681
        %v2683 = vsub.s32 4294967266, %v2678
        %v2684 = vadd.s32 %v2683, 127
        %v2685 = vshll.u32 %v2684, 23
        %v2686 = vor.u32 4788187, %v2685
        %v2687 = vand.u32 2147483647, %v2686
        %v2689 = vcvt.s32.f32 %v2682
        %v2690 = vmul.f32 %v2689, %v2687
        %v2691 = vxor.u32 %v2690, 2147483648
        %v2692 = vsel %vm2609, %v2691, %v2690
        %v2693 = vsub.s32 4, %v2669
        %v2694 = vsel %vm2609, %v2693, %v2669
        %v2695 = vsel %vm2608, %v1307, %v2692
        %v2696 = vsel %vm2608, 0, %v2694
        %v2697 = vcosq.f32.pop %v2695
        %v2698 = vsinq.f32.pop %v2695
        %vm2699 = vweird.f32 %v1307
        %v2700 = vadd.s32 %v2696, 3
        %v2701 = vand.u32 %v2700, 3
        %vm2702 = vcmp.lt.s32.totalorder %v2701, 2
        %vm2703 = vcmp.eq.s32.totalorder %v2701, 0
        %v2704 = vxor.u32 %v2698, 2147483648
        %v2705 = vsel %vm2703, %v2697, %v2704
        %vm2706 = vcmp.eq.s32.totalorder %v2701, 2
        %v2707 = vxor.u32 %v2697, 2147483648
        %v2708 = vsel %vm2706, %v2707, %v2698
        %v2709 = vsel %vm2702, %v2705, %v2708
        %v2710 = vsel %vm2699, nan, %v2709
        %v2711 = vand.u32 2147483647, %v1308
        %vm2712 = vcmp.le.f32.partialorder %v2711, 0.7853982
        %vm2713 = vcmp.lt.s32.totalorder %v1308, 0
        %v2714 = vand.u32 %v1308, 2139095040
        %v2715 = vshrl.u32 %v2714, 23
        %v2716 = vsub.s32 %v2715, 127
        %v2717 = vand.u32 2147483647, %v1308
        %v2718 = vand.u32 %v2717, 8388607
        %v2719 = vor.u32 %v2718, 8388608
        %v2720 = vsub.s32 0, %v2719
        %v2721 = vadd.s32 %v2716, 1
        %vm2722 = vcmp.gt.s32.totalorder %v2721, 0
        %v2723 = vsel %vm2722, %v2721, 0
        %v2724 = vshrl.u32 %v2723, 5
        %v2725 = vand.u32 %v2723, 31
        %v2726 = vsub.s32 32, %v2725
        %v2727 = vshrl.u32 683565275, %v2726
        %v2728 = vshll.u32 683565275, %v2725
        %v2729 = vshrl.u32 2475754826, %v2726
        %v2730 = vor.u32 %v2728, %v2729
        %v2731 = vshll.u32 2475754826, %v2725
        %v2732 = vshrl.u32 2131351028, %v2726
        %v2733 = vor.u32 %v2731, %v2732
        %v2734 = vshll.u32 2131351028, %v2725
        %v2735 = vshrl.u32 2102212464, %v2726
        %v2736 = vor.u32 %v2734, %v2735
        %v2737 = vshll.u32 2102212464, %v2725
        %v2738 = vshrl.u32 920167782, %v2726
        %v2739 = vor.u32 %v2737, %v2738
        %v2740 = vshll.u32 920167782, %v2725
        %v2741 = vshrl.u32 1326507024, %v2726
        %v2742 = vor.u32 %v2740, %v2741
        %vm2743 = vcmp.lt.s32.totalorder %v2724, 1
        %vm2744 = vcmp.lt.s32.totalorder %v2724, 2
        %vm2745 = vcmp.lt.s32.totalorder %v2724, 3
        %vm2746 = vcmp.lt.s32.totalorder %v2724, 4
        %v2747 = vsel %vm2743, %v2727, %v2730
        %v2748 = vsel %vm2746, %v2736, 2102212464
        %v2749 = vsel %vm2745, %v2733, %v2748
        %v2750 = vsel %vm2744, %v2747, %v2749
        %v2751 = vsel %vm2743, %v2730, %v2733
        %v2752 = vsel %vm2746, %v2739, 920167782
        %v2753 = vsel %vm2745, %v2736, %v2752
        %v2754 = vsel %vm2744, %v2751, %v2753
        %v2755 = vsel %vm2743, %v2733, %v2736
        %v2756 = vsel %vm2746, %v2742, 1326507024
        %v2757 = vsel %vm2745, %v2739, %v2756
        %v2758 = vsel %vm2744, %v2755, %v2757
        %v2759 = vshll.u32 %v2719, 8
        %v2760 = vmul.u32.u64.compose %v2759, %v2758
        %v2761 = vextract.low.u32 %v2760
        %v2762 = vextract.high.u32 %v2760
        %v2763 = vmul.u32.u64.compose %v2759, %v2754
        %v2764 = vextract.low.u32 %v2763
        %v2765 = vextract.high.u32 %v2763
        %v2766 = vmul.u32 %v2759, %v2750
        %v2767 = vadd.s32 %v2762, %v2764
        %vm2768 = vc.u32 %v2762, %v2764
        %v2769 = vadd.s32 %v2765, 1
        %v2770 = vsel %vm2768, %v2769, %v2765
        %v2771 = vadd.s32 %v2766, %v2770
        %v2772 = vadd.s32 %v2771, 536870912
        %v2773 = vshrl.u32 %v2772, 30
        %v2774 = vshll.u32 %v2773, 30
        %v2775 = vsub.s32 %v2771, %v2774
        %vm2776 = vcmp.lt.s32.totalorder %v2775, 0
        %v2777 = vsub.s32 0, %v2775
        %v2778 = vsel %vm2776, %v2777, %v2775
        %v2779 = vclz %v2778
        %v2780 = vsub.s32 %v2779, 2
        %vm2781 = vcmp.gt.s32.totalorder 0, %v2780
        %v2782 = vsel %vm2781, 0, %v2780
        %v2783 = vsub.s32 32, %v2782
        %v2784 = vshll.u32 %v2775, %v2782
        %v2785 = vshrl.u32 %v2767, %v2783
        %v2786 = vor.u32 %v2784, %v2785
        %v2787 = vsub.s32 4294967266, %v2782
        %v2788 = vadd.s32 %v2787, 127
        %v2789 = vshll.u32 %v2788, 23
        %v2790 = vor.u32 4788187, %v2789
        %v2791 = vand.u32 2147483647, %v2790
        %v2793 = vcvt.s32.f32 %v2786
        %v2794 = vmul.f32 %v2793, %v2791
        %v2795 = vxor.u32 %v2794, 2147483648
        %v2796 = vsel %vm2713, %v2795, %v2794
        %v2797 = vsub.s32 4, %v2773
        %v2798 = vsel %vm2713, %v2797, %v2773
        %v2799 = vsel %vm2712, %v1308, %v2796
        %v2800 = vsel %vm2712, 0, %v2798
        %v2801 = vcosq.f32.pop %v2799
        %v2802 = vsinq.f32.pop %v2799
        %vm2803 = vweird.f32 %v1308
        %v2804 = vadd.s32 %v2800, 3
        %v2805 = vand.u32 %v2804, 3
        %vm2806 = vcmp.lt.s32.totalorder %v2805, 2
        %vm2807 = vcmp.eq.s32.totalorder %v2805, 0
        %v2808 = vxor.u32 %v2802, 2147483648
        %v2809 = vsel %vm2807, %v2801, %v2808
        %vm2810 = vcmp.eq.s32.totalorder %v2805, 2
        %v2811 = vxor.u32 %v2801, 2147483648
        %v2812 = vsel %vm2810, %v2811, %v2802
        %v2813 = vsel %vm2806, %v2809, %v2812
        %v2814 = vsel %vm2803, nan, %v2813
        %v2815 = vand.u32 2147483647, %v1309
        %vm2816 = vcmp.le.f32.partialorder %v2815, 0.7853982
        %vm2817 = vcmp.lt.s32.totalorder %v1309, 0
        %v2818 = vand.u32 %v1309, 2139095040
        %v2819 = vshrl.u32 %v2818, 23
        %v2820 = vsub.s32 %v2819, 127
        %v2821 = vand.u32 2147483647, %v1309
        %v2822 = vand.u32 %v2821, 8388607
        %v2823 = vor.u32 %v2822, 8388608
        %v2824 = vsub.s32 0, %v2823
        %v2825 = vadd.s32 %v2820, 1
        %vm2826 = vcmp.gt.s32.totalorder %v2825, 0
        %v2827 = vsel %vm2826, %v2825, 0
        %v2828 = vshrl.u32 %v2827, 5
        %v2829 = vand.u32 %v2827, 31
        %v2830 = vsub.s32 32, %v2829
        %v2831 = vshrl.u32 683565275, %v2830
        %v2832 = vshll.u32 683565275, %v2829
        %v2833 = vshrl.u32 2475754826, %v2830
        %v2834 = vor.u32 %v2832, %v2833
        %v2835 = vshll.u32 2475754826, %v2829
        %v2836 = vshrl.u32 2131351028, %v2830
        %v2837 = vor.u32 %v2835, %v2836
        %v2838 = vshll.u32 2131351028, %v2829
        %v2839 = vshrl.u32 2102212464, %v2830
        %v2840 = vor.u32 %v2838, %v2839
        %v2841 = vshll.u32 2102212464, %v2829
        %v2842 = vshrl.u32 920167782, %v2830
        %v2843 = vor.u32 %v2841, %v2842
        %v2844 = vshll.u32 920167782, %v2829
        %v2845 = vshrl.u32 1326507024, %v2830
        %v2846 = vor.u32 %v2844, %v2845
        %vm2847 = vcmp.lt.s32.totalorder %v2828, 1
        %vm2848 = vcmp.lt.s32.totalorder %v2828, 2
        %vm2849 = vcmp.lt.s32.totalorder %v2828, 3
        %vm2850 = vcmp.lt.s32.totalorder %v2828, 4
        %v2851 = vsel %vm2847, %v2831, %v2834
        %v2852 = vsel %vm2850, %v2840, 2102212464
        %v2853 = vsel %vm2849, %v2837, %v2852
        %v2854 = vsel %vm2848, %v2851, %v2853
        %v2855 = vsel %vm2847, %v2834, %v2837
        %v2856 = vsel %vm2850, %v2843, 920167782
        %v2857 = vsel %vm2849, %v2840, %v2856
        %v2858 = vsel %vm2848, %v2855, %v2857
        %v2859 = vsel %vm2847, %v2837, %v2840
        %v2860 = vsel %vm2850, %v2846, 1326507024
        %v2861 = vsel %vm2849, %v2843, %v2860
        %v2862 = vsel %vm2848, %v2859, %v2861
        %v2863 = vshll.u32 %v2823, 8
        %v2864 = vmul.u32.u64.compose %v2863, %v2862
        %v2865 = vextract.low.u32 %v2864
        %v2866 = vextract.high.u32 %v2864
        %v2867 = vmul.u32.u64.compose %v2863, %v2858
        %v2868 = vextract.low.u32 %v2867
        %v2869 = vextract.high.u32 %v2867
        %v2870 = vmul.u32 %v2863, %v2854
        %v2871 = vadd.s32 %v2866, %v2868
        %vm2872 = vc.u32 %v2866, %v2868
        %v2873 = vadd.s32 %v2869, 1
        %v2874 = vsel %vm2872, %v2873, %v2869
        %v2875 = vadd.s32 %v2870, %v2874
        %v2876 = vadd.s32 %v2875, 536870912
        %v2877 = vshrl.u32 %v2876, 30
        %v2878 = vshll.u32 %v2877, 30
        %v2879 = vsub.s32 %v2875, %v2878
        %vm2880 = vcmp.lt.s32.totalorder %v2879, 0
        %v2881 = vsub.s32 0, %v2879
        %v2882 = vsel %vm2880, %v2881, %v2879
        %v2883 = vclz %v2882
        %v2884 = vsub.s32 %v2883, 2
        %vm2885 = vcmp.gt.s32.totalorder 0, %v2884
        %v2886 = vsel %vm2885, 0, %v2884
        %v2887 = vsub.s32 32, %v2886
        %v2888 = vshll.u32 %v2879, %v2886
        %v2889 = vshrl.u32 %v2871, %v2887
        %v2890 = vor.u32 %v2888, %v2889
        %v2891 = vsub.s32 4294967266, %v2886
        %v2892 = vadd.s32 %v2891, 127
        %v2893 = vshll.u32 %v2892, 23
        %v2894 = vor.u32 4788187, %v2893
        %v2895 = vand.u32 2147483647, %v2894
        %v2897 = vcvt.s32.f32 %v2890
        %v2898 = vmul.f32 %v2897, %v2895
        %v2899 = vxor.u32 %v2898, 2147483648
        %v2900 = vsel %vm2817, %v2899, %v2898
        %v2901 = vsub.s32 4, %v2877
        %v2902 = vsel %vm2817, %v2901, %v2877
        %v2903 = vsel %vm2816, %v1309, %v2900
        %v2904 = vsel %vm2816, 0, %v2902
        %v2905 = vcosq.f32.pop %v2903
        %v2906 = vsinq.f32.pop %v2903
        %vm2907 = vweird.f32 %v1309
        %v2908 = vadd.s32 %v2904, 3
        %v2909 = vand.u32 %v2908, 3
        %vm2910 = vcmp.lt.s32.totalorder %v2909, 2
        %vm2911 = vcmp.eq.s32.totalorder %v2909, 0
        %v2912 = vxor.u32 %v2906, 2147483648
        %v2913 = vsel %vm2911, %v2905, %v2912
        %vm2914 = vcmp.eq.s32.totalorder %v2909, 2
        %v2915 = vxor.u32 %v2905, 2147483648
        %v2916 = vsel %vm2914, %v2915, %v2906
        %v2917 = vsel %vm2910, %v2913, %v2916
        %v2918 = vsel %vm2907, nan, %v2917
        %v2919 = vand.u32 2147483647, %v1310
        %vm2920 = vcmp.le.f32.partialorder %v2919, 0.7853982
        %vm2921 = vcmp.lt.s32.totalorder %v1310, 0
        %v2922 = vand.u32 %v1310, 2139095040
        %v2923 = vshrl.u32 %v2922, 23
        %v2924 = vsub.s32 %v2923, 127
        %v2925 = vand.u32 2147483647, %v1310
        %v2926 = vand.u32 %v2925, 8388607
        %v2927 = vor.u32 %v2926, 8388608
        %v2928 = vsub.s32 0, %v2927
        %v2929 = vadd.s32 %v2924, 1
        %vm2930 = vcmp.gt.s32.totalorder %v2929, 0
        %v2931 = vsel %vm2930, %v2929, 0
        %v2932 = vshrl.u32 %v2931, 5
        %v2933 = vand.u32 %v2931, 31
        %v2934 = vsub.s32 32, %v2933
        %v2935 = vshrl.u32 683565275, %v2934
        %v2936 = vshll.u32 683565275, %v2933
        %v2937 = vshrl.u32 2475754826, %v2934
        %v2938 = vor.u32 %v2936, %v2937
        %v2939 = vshll.u32 2475754826, %v2933
        %v2940 = vshrl.u32 2131351028, %v2934
        %v2941 = vor.u32 %v2939, %v2940
        %v2942 = vshll.u32 2131351028, %v2933
        %v2943 = vshrl.u32 2102212464, %v2934
        %v2944 = vor.u32 %v2942, %v2943
        %v2945 = vshll.u32 2102212464, %v2933
        %v2946 = vshrl.u32 920167782, %v2934
        %v2947 = vor.u32 %v2945, %v2946
        %v2948 = vshll.u32 920167782, %v2933
        %v2949 = vshrl.u32 1326507024, %v2934
        %v2950 = vor.u32 %v2948, %v2949
        %vm2951 = vcmp.lt.s32.totalorder %v2932, 1
        %vm2952 = vcmp.lt.s32.totalorder %v2932, 2
        %vm2953 = vcmp.lt.s32.totalorder %v2932, 3
        %vm2954 = vcmp.lt.s32.totalorder %v2932, 4
        %v2955 = vsel %vm2951, %v2935, %v2938
        %v2956 = vsel %vm2954, %v2944, 2102212464
        %v2957 = vsel %vm2953, %v2941, %v2956
        %v2958 = vsel %vm2952, %v2955, %v2957
        %v2959 = vsel %vm2951, %v2938, %v2941
        %v2960 = vsel %vm2954, %v2947, 920167782
        %v2961 = vsel %vm2953, %v2944, %v2960
        %v2962 = vsel %vm2952, %v2959, %v2961
        %v2963 = vsel %vm2951, %v2941, %v2944
        %v2964 = vsel %vm2954, %v2950, 1326507024
        %v2965 = vsel %vm2953, %v2947, %v2964
        %v2966 = vsel %vm2952, %v2963, %v2965
        %v2967 = vshll.u32 %v2927, 8
        %v2968 = vmul.u32.u64.compose %v2967, %v2966
        %v2969 = vextract.low.u32 %v2968
        %v2970 = vextract.high.u32 %v2968
        %v2971 = vmul.u32.u64.compose %v2967, %v2962
        %v2972 = vextract.low.u32 %v2971
        %v2973 = vextract.high.u32 %v2971
        %v2974 = vmul.u32 %v2967, %v2958
        %v2975 = vadd.s32 %v2970, %v2972
        %vm2976 = vc.u32 %v2970, %v2972
        %v2977 = vadd.s32 %v2973, 1
        %v2978 = vsel %vm2976, %v2977, %v2973
        %v2979 = vadd.s32 %v2974, %v2978
        %v2980 = vadd.s32 %v2979, 536870912
        %v2981 = vshrl.u32 %v2980, 30
        %v2982 = vshll.u32 %v2981, 30
        %v2983 = vsub.s32 %v2979, %v2982
        %vm2984 = vcmp.lt.s32.totalorder %v2983, 0
        %v2985 = vsub.s32 0, %v2983
        %v2986 = vsel %vm2984, %v2985, %v2983
        %v2987 = vclz %v2986
        %v2988 = vsub.s32 %v2987, 2
        %vm2989 = vcmp.gt.s32.totalorder 0, %v2988
        %v2990 = vsel %vm2989, 0, %v2988
        %v2991 = vsub.s32 32, %v2990
        %v2992 = vshll.u32 %v2983, %v2990
        %v2993 = vshrl.u32 %v2975, %v2991
        %v2994 = vor.u32 %v2992, %v2993
        %v2995 = vsub.s32 4294967266, %v2990
        %v2996 = vadd.s32 %v2995, 127
        %v2997 = vshll.u32 %v2996, 23
        %v2998 = vor.u32 4788187, %v2997
        %v2999 = vand.u32 2147483647, %v2998
        %v3001 = vcvt.s32.f32 %v2994
        %v3002 = vmul.f32 %v3001, %v2999
        %v3003 = vxor.u32 %v3002, 2147483648
        %v3004 = vsel %vm2921, %v3003, %v3002
        %v3005 = vsub.s32 4, %v2981
        %v3006 = vsel %vm2921, %v3005, %v2981
        %v3007 = vsel %vm2920, %v1310, %v3004
        %v3008 = vsel %vm2920, 0, %v3006
        %v3009 = vcosq.f32.pop %v3007
        %v3010 = vsinq.f32.pop %v3007
        %vm3011 = vweird.f32 %v1310
        %v3012 = vadd.s32 %v3008, 3
        %v3013 = vand.u32 %v3012, 3
        %vm3014 = vcmp.lt.s32.totalorder %v3013, 2
        %vm3015 = vcmp.eq.s32.totalorder %v3013, 0
        %v3016 = vxor.u32 %v3010, 2147483648
        %v3017 = vsel %vm3015, %v3009, %v3016
        %vm3018 = vcmp.eq.s32.totalorder %v3013, 2
        %v3019 = vxor.u32 %v3009, 2147483648
        %v3020 = vsel %vm3018, %v3019, %v3010
        %v3021 = vsel %vm3014, %v3017, %v3020
        %v3022 = vsel %vm3011, nan, %v3021
        %v3023 = vand.u32 2147483647, %v1311
        %vm3024 = vcmp.le.f32.partialorder %v3023, 0.7853982
        %vm3025 = vcmp.lt.s32.totalorder %v1311, 0
        %v3026 = vand.u32 %v1311, 2139095040
        %v3027 = vshrl.u32 %v3026, 23
        %v3028 = vsub.s32 %v3027, 127
        %v3029 = vand.u32 2147483647, %v1311
        %v3030 = vand.u32 %v3029, 8388607
        %v3031 = vor.u32 %v3030, 8388608
        %v3032 = vsub.s32 0, %v3031
        %v3033 = vadd.s32 %v3028, 1
        %vm3034 = vcmp.gt.s32.totalorder %v3033, 0
        %v3035 = vsel %vm3034, %v3033, 0
        %v3036 = vshrl.u32 %v3035, 5
        %v3037 = vand.u32 %v3035, 31
        %v3038 = vsub.s32 32, %v3037
        %v3039 = vshrl.u32 683565275, %v3038
        %v3040 = vshll.u32 683565275, %v3037
        %v3041 = vshrl.u32 2475754826, %v3038
        %v3042 = vor.u32 %v3040, %v3041
        %v3043 = vshll.u32 2475754826, %v3037
        %v3044 = vshrl.u32 2131351028, %v3038
        %v3045 = vor.u32 %v3043, %v3044
        %v3046 = vshll.u32 2131351028, %v3037
        %v3047 = vshrl.u32 2102212464, %v3038
        %v3048 = vor.u32 %v3046, %v3047
        %v3049 = vshll.u32 2102212464, %v3037
        %v3050 = vshrl.u32 920167782, %v3038
        %v3051 = vor.u32 %v3049, %v3050
        %v3052 = vshll.u32 920167782, %v3037
        %v3053 = vshrl.u32 1326507024, %v3038
        %v3054 = vor.u32 %v3052, %v3053
        %vm3055 = vcmp.lt.s32.totalorder %v3036, 1
        %vm3056 = vcmp.lt.s32.totalorder %v3036, 2
        %vm3057 = vcmp.lt.s32.totalorder %v3036, 3
        %vm3058 = vcmp.lt.s32.totalorder %v3036, 4
        %v3059 = vsel %vm3055, %v3039, %v3042
        %v3060 = vsel %vm3058, %v3048, 2102212464
        %v3061 = vsel %vm3057, %v3045, %v3060
        %v3062 = vsel %vm3056, %v3059, %v3061
        %v3063 = vsel %vm3055, %v3042, %v3045
        %v3064 = vsel %vm3058, %v3051, 920167782
        %v3065 = vsel %vm3057, %v3048, %v3064
        %v3066 = vsel %vm3056, %v3063, %v3065
        %v3067 = vsel %vm3055, %v3045, %v3048
        %v3068 = vsel %vm3058, %v3054, 1326507024
        %v3069 = vsel %vm3057, %v3051, %v3068
        %v3070 = vsel %vm3056, %v3067, %v3069
        %v3071 = vshll.u32 %v3031, 8
        %v3072 = vmul.u32.u64.compose %v3071, %v3070
        %v3073 = vextract.low.u32 %v3072
        %v3074 = vextract.high.u32 %v3072
        %v3075 = vmul.u32.u64.compose %v3071, %v3066
        %v3076 = vextract.low.u32 %v3075
        %v3077 = vextract.high.u32 %v3075
        %v3078 = vmul.u32 %v3071, %v3062
        %v3079 = vadd.s32 %v3074, %v3076
        %vm3080 = vc.u32 %v3074, %v3076
        %v3081 = vadd.s32 %v3077, 1
        %v3082 = vsel %vm3080, %v3081, %v3077
        %v3083 = vadd.s32 %v3078, %v3082
        %v3084 = vadd.s32 %v3083, 536870912
        %v3085 = vshrl.u32 %v3084, 30
        %v3086 = vshll.u32 %v3085, 30
        %v3087 = vsub.s32 %v3083, %v3086
        %vm3088 = vcmp.lt.s32.totalorder %v3087, 0
        %v3089 = vsub.s32 0, %v3087
        %v3090 = vsel %vm3088, %v3089, %v3087
        %v3091 = vclz %v3090
        %v3092 = vsub.s32 %v3091, 2
        %vm3093 = vcmp.gt.s32.totalorder 0, %v3092
        %v3094 = vsel %vm3093, 0, %v3092
        %v3095 = vsub.s32 32, %v3094
        %v3096 = vshll.u32 %v3087, %v3094
        %v3097 = vshrl.u32 %v3079, %v3095
        %v3098 = vor.u32 %v3096, %v3097
        %v3099 = vsub.s32 4294967266, %v3094
        %v3100 = vadd.s32 %v3099, 127
        %v3101 = vshll.u32 %v3100, 23
        %v3102 = vor.u32 4788187, %v3101
        %v3103 = vand.u32 2147483647, %v3102
        %v3105 = vcvt.s32.f32 %v3098
        %v3106 = vmul.f32 %v3105, %v3103
        %v3107 = vxor.u32 %v3106, 2147483648
        %v3108 = vsel %vm3025, %v3107, %v3106
        %v3109 = vsub.s32 4, %v3085
        %v3110 = vsel %vm3025, %v3109, %v3085
        %v3111 = vsel %vm3024, %v1311, %v3108
        %v3112 = vsel %vm3024, 0, %v3110
        %v3113 = vcosq.f32.pop %v3111
        %v3114 = vsinq.f32.pop %v3111
        %vm3115 = vweird.f32 %v1311
        %v3116 = vadd.s32 %v3112, 3
        %v3117 = vand.u32 %v3116, 3
        %vm3118 = vcmp.lt.s32.totalorder %v3117, 2
        %vm3119 = vcmp.eq.s32.totalorder %v3117, 0
        %v3120 = vxor.u32 %v3114, 2147483648
        %v3121 = vsel %vm3119, %v3113, %v3120
        %vm3122 = vcmp.eq.s32.totalorder %v3117, 2
        %v3123 = vxor.u32 %v3113, 2147483648
        %v3124 = vsel %vm3122, %v3123, %v3114
        %v3125 = vsel %vm3118, %v3121, %v3124
        %v3126 = vsel %vm3115, nan, %v3125
        %v3127 = vand.u32 2147483647, %v1312
        %vm3128 = vcmp.le.f32.partialorder %v3127, 0.7853982
        %vm3129 = vcmp.lt.s32.totalorder %v1312, 0
        %v3130 = vand.u32 %v1312, 2139095040
        %v3131 = vshrl.u32 %v3130, 23
        %v3132 = vsub.s32 %v3131, 127
        %v3133 = vand.u32 2147483647, %v1312
        %v3134 = vand.u32 %v3133, 8388607
        %v3135 = vor.u32 %v3134, 8388608
        %v3136 = vsub.s32 0, %v3135
        %v3137 = vadd.s32 %v3132, 1
        %vm3138 = vcmp.gt.s32.totalorder %v3137, 0
        %v3139 = vsel %vm3138, %v3137, 0
        %v3140 = vshrl.u32 %v3139, 5
        %v3141 = vand.u32 %v3139, 31
        %v3142 = vsub.s32 32, %v3141
        %v3143 = vshrl.u32 683565275, %v3142
        %v3144 = vshll.u32 683565275, %v3141
        %v3145 = vshrl.u32 2475754826, %v3142
        %v3146 = vor.u32 %v3144, %v3145
        %v3147 = vshll.u32 2475754826, %v3141
        %v3148 = vshrl.u32 2131351028, %v3142
        %v3149 = vor.u32 %v3147, %v3148
        %v3150 = vshll.u32 2131351028, %v3141
        %v3151 = vshrl.u32 2102212464, %v3142
        %v3152 = vor.u32 %v3150, %v3151
        %v3153 = vshll.u32 2102212464, %v3141
        %v3154 = vshrl.u32 920167782, %v3142
        %v3155 = vor.u32 %v3153, %v3154
        %v3156 = vshll.u32 920167782, %v3141
        %v3157 = vshrl.u32 1326507024, %v3142
        %v3158 = vor.u32 %v3156, %v3157
        %vm3159 = vcmp.lt.s32.totalorder %v3140, 1
        %vm3160 = vcmp.lt.s32.totalorder %v3140, 2
        %vm3161 = vcmp.lt.s32.totalorder %v3140, 3
        %vm3162 = vcmp.lt.s32.totalorder %v3140, 4
        %v3163 = vsel %vm3159, %v3143, %v3146
        %v3164 = vsel %vm3162, %v3152, 2102212464
        %v3165 = vsel %vm3161, %v3149, %v3164
        %v3166 = vsel %vm3160, %v3163, %v3165
        %v3167 = vsel %vm3159, %v3146, %v3149
        %v3168 = vsel %vm3162, %v3155, 920167782
        %v3169 = vsel %vm3161, %v3152, %v3168
        %v3170 = vsel %vm3160, %v3167, %v3169
        %v3171 = vsel %vm3159, %v3149, %v3152
        %v3172 = vsel %vm3162, %v3158, 1326507024
        %v3173 = vsel %vm3161, %v3155, %v3172
        %v3174 = vsel %vm3160, %v3171, %v3173
        %v3175 = vshll.u32 %v3135, 8
        %v3176 = vmul.u32.u64.compose %v3175, %v3174
        %v3177 = vextract.low.u32 %v3176
        %v3178 = vextract.high.u32 %v3176
        %v3179 = vmul.u32.u64.compose %v3175, %v3170
        %v3180 = vextract.low.u32 %v3179
        %v3181 = vextract.high.u32 %v3179
        %v3182 = vmul.u32 %v3175, %v3166
        %v3183 = vadd.s32 %v3178, %v3180
        %vm3184 = vc.u32 %v3178, %v3180
        %v3185 = vadd.s32 %v3181, 1
        %v3186 = vsel %vm3184, %v3185, %v3181
        %v3187 = vadd.s32 %v3182, %v3186
        %v3188 = vadd.s32 %v3187, 536870912
        %v3189 = vshrl.u32 %v3188, 30
        %v3190 = vshll.u32 %v3189, 30
        %v3191 = vsub.s32 %v3187, %v3190
        %vm3192 = vcmp.lt.s32.totalorder %v3191, 0
        %v3193 = vsub.s32 0, %v3191
        %v3194 = vsel %vm3192, %v3193, %v3191
        %v3195 = vclz %v3194
        %v3196 = vsub.s32 %v3195, 2
        %vm3197 = vcmp.gt.s32.totalorder 0, %v3196
        %v3198 = vsel %vm3197, 0, %v3196
        %v3199 = vsub.s32 32, %v3198
        %v3200 = vshll.u32 %v3191, %v3198
        %v3201 = vshrl.u32 %v3183, %v3199
        %v3202 = vor.u32 %v3200, %v3201
        %v3203 = vsub.s32 4294967266, %v3198
        %v3204 = vadd.s32 %v3203, 127
        %v3205 = vshll.u32 %v3204, 23
        %v3206 = vor.u32 4788187, %v3205
        %v3207 = vand.u32 2147483647, %v3206
        %v3209 = vcvt.s32.f32 %v3202
        %v3210 = vmul.f32 %v3209, %v3207
        %v3211 = vxor.u32 %v3210, 2147483648
        %v3212 = vsel %vm3129, %v3211, %v3210
        %v3213 = vsub.s32 4, %v3189
        %v3214 = vsel %vm3129, %v3213, %v3189
        %v3215 = vsel %vm3128, %v1312, %v3212
        %v3216 = vsel %vm3128, 0, %v3214
        %v3217 = vcosq.f32.pop %v3215
        %v3218 = vsinq.f32.pop %v3215
        %vm3219 = vweird.f32 %v1312
        %v3220 = vadd.s32 %v3216, 3
        %v3221 = vand.u32 %v3220, 3
        %vm3222 = vcmp.lt.s32.totalorder %v3221, 2
        %vm3223 = vcmp.eq.s32.totalorder %v3221, 0
        %v3224 = vxor.u32 %v3218, 2147483648
        %v3225 = vsel %vm3223, %v3217, %v3224
        %vm3226 = vcmp.eq.s32.totalorder %v3221, 2
        %v3227 = vxor.u32 %v3217, 2147483648
        %v3228 = vsel %vm3226, %v3227, %v3218
        %v3229 = vsel %vm3222, %v3225, %v3228
        %v3230 = vsel %vm3219, nan, %v3229
        %v3231 = vand.u32 2147483647, %v1313
        %vm3232 = vcmp.le.f32.partialorder %v3231, 0.7853982
        %vm3233 = vcmp.lt.s32.totalorder %v1313, 0
        %v3234 = vand.u32 %v1313, 2139095040
        %v3235 = vshrl.u32 %v3234, 23
        %v3236 = vsub.s32 %v3235, 127
        %v3237 = vand.u32 2147483647, %v1313
        %v3238 = vand.u32 %v3237, 8388607
        %v3239 = vor.u32 %v3238, 8388608
        %v3240 = vsub.s32 0, %v3239
        %v3241 = vadd.s32 %v3236, 1
        %vm3242 = vcmp.gt.s32.totalorder %v3241, 0
        %v3243 = vsel %vm3242, %v3241, 0
        %v3244 = vshrl.u32 %v3243, 5
        %v3245 = vand.u32 %v3243, 31
        %v3246 = vsub.s32 32, %v3245
        %v3247 = vshrl.u32 683565275, %v3246
        %v3248 = vshll.u32 683565275, %v3245
        %v3249 = vshrl.u32 2475754826, %v3246
        %v3250 = vor.u32 %v3248, %v3249
        %v3251 = vshll.u32 2475754826, %v3245
        %v3252 = vshrl.u32 2131351028, %v3246
        %v3253 = vor.u32 %v3251, %v3252
        %v3254 = vshll.u32 2131351028, %v3245
        %v3255 = vshrl.u32 2102212464, %v3246
        %v3256 = vor.u32 %v3254, %v3255
        %v3257 = vshll.u32 2102212464, %v3245
        %v3258 = vshrl.u32 920167782, %v3246
        %v3259 = vor.u32 %v3257, %v3258
        %v3260 = vshll.u32 920167782, %v3245
        %v3261 = vshrl.u32 1326507024, %v3246
        %v3262 = vor.u32 %v3260, %v3261
        %vm3263 = vcmp.lt.s32.totalorder %v3244, 1
        %vm3264 = vcmp.lt.s32.totalorder %v3244, 2
        %vm3265 = vcmp.lt.s32.totalorder %v3244, 3
        %vm3266 = vcmp.lt.s32.totalorder %v3244, 4
        %v3267 = vsel %vm3263, %v3247, %v3250
        %v3268 = vsel %vm3266, %v3256, 2102212464
        %v3269 = vsel %vm3265, %v3253, %v3268
        %v3270 = vsel %vm3264, %v3267, %v3269
        %v3271 = vsel %vm3263, %v3250, %v3253
        %v3272 = vsel %vm3266, %v3259, 920167782
        %v3273 = vsel %vm3265, %v3256, %v3272
        %v3274 = vsel %vm3264, %v3271, %v3273
        %v3275 = vsel %vm3263, %v3253, %v3256
        %v3276 = vsel %vm3266, %v3262, 1326507024
        %v3277 = vsel %vm3265, %v3259, %v3276
        %v3278 = vsel %vm3264, %v3275, %v3277
        %v3279 = vshll.u32 %v3239, 8
        %v3280 = vmul.u32.u64.compose %v3279, %v3278
        %v3281 = vextract.low.u32 %v3280
        %v3282 = vextract.high.u32 %v3280
        %v3283 = vmul.u32.u64.compose %v3279, %v3274
        %v3284 = vextract.low.u32 %v3283
        %v3285 = vextract.high.u32 %v3283
        %v3286 = vmul.u32 %v3279, %v3270
        %v3287 = vadd.s32 %v3282, %v3284
        %vm3288 = vc.u32 %v3282, %v3284
        %v3289 = vadd.s32 %v3285, 1
        %v3290 = vsel %vm3288, %v3289, %v3285
        %v3291 = vadd.s32 %v3286, %v3290
        %v3292 = vadd.s32 %v3291, 536870912
        %v3293 = vshrl.u32 %v3292, 30
        %v3294 = vshll.u32 %v3293, 30
        %v3295 = vsub.s32 %v3291, %v3294
        %vm3296 = vcmp.lt.s32.totalorder %v3295, 0
        %v3297 = vsub.s32 0, %v3295
        %v3298 = vsel %vm3296, %v3297, %v3295
        %v3299 = vclz %v3298
        %v3300 = vsub.s32 %v3299, 2
        %vm3301 = vcmp.gt.s32.totalorder 0, %v3300
        %v3302 = vsel %vm3301, 0, %v3300
        %v3303 = vsub.s32 32, %v3302
        %v3304 = vshll.u32 %v3295, %v3302
        %v3305 = vshrl.u32 %v3287, %v3303
        %v3306 = vor.u32 %v3304, %v3305
        %v3307 = vsub.s32 4294967266, %v3302
        %v3308 = vadd.s32 %v3307, 127
        %v3309 = vshll.u32 %v3308, 23
        %v3310 = vor.u32 4788187, %v3309
        %v3311 = vand.u32 2147483647, %v3310
        %v3313 = vcvt.s32.f32 %v3306
        %v3314 = vmul.f32 %v3313, %v3311
        %v3315 = vxor.u32 %v3314, 2147483648
        %v3316 = vsel %vm3233, %v3315, %v3314
        %v3317 = vsub.s32 4, %v3293
        %v3318 = vsel %vm3233, %v3317, %v3293
        %v3319 = vsel %vm3232, %v1313, %v3316
        %v3320 = vsel %vm3232, 0, %v3318
        %v3321 = vcosq.f32.pop %v3319
        %v3322 = vsinq.f32.pop %v3319
        %vm3323 = vweird.f32 %v1313
        %v3324 = vadd.s32 %v3320, 3
        %v3325 = vand.u32 %v3324, 3
        %vm3326 = vcmp.lt.s32.totalorder %v3325, 2
        %vm3327 = vcmp.eq.s32.totalorder %v3325, 0
        %v3328 = vxor.u32 %v3322, 2147483648
        %v3329 = vsel %vm3327, %v3321, %v3328
        %vm3330 = vcmp.eq.s32.totalorder %v3325, 2
        %v3331 = vxor.u32 %v3321, 2147483648
        %v3332 = vsel %vm3330, %v3331, %v3322
        %v3333 = vsel %vm3326, %v3329, %v3332
        %v3334 = vsel %vm3323, nan, %v3333
        %v3335 = vand.u32 2147483647, %v1314
        %vm3336 = vcmp.le.f32.partialorder %v3335, 0.7853982
        %vm3337 = vcmp.lt.s32.totalorder %v1314, 0
        %v3338 = vand.u32 %v1314, 2139095040
        %v3339 = vshrl.u32 %v3338, 23
        %v3340 = vsub.s32 %v3339, 127
        %v3341 = vand.u32 2147483647, %v1314
        %v3342 = vand.u32 %v3341, 8388607
        %v3343 = vor.u32 %v3342, 8388608
        %v3344 = vsub.s32 0, %v3343
        %v3345 = vadd.s32 %v3340, 1
        %vm3346 = vcmp.gt.s32.totalorder %v3345, 0
        %v3347 = vsel %vm3346, %v3345, 0
        %v3348 = vshrl.u32 %v3347, 5
        %v3349 = vand.u32 %v3347, 31
        %v3350 = vsub.s32 32, %v3349
        %v3351 = vshrl.u32 683565275, %v3350
        %v3352 = vshll.u32 683565275, %v3349
        %v3353 = vshrl.u32 2475754826, %v3350
        %v3354 = vor.u32 %v3352, %v3353
        %v3355 = vshll.u32 2475754826, %v3349
        %v3356 = vshrl.u32 2131351028, %v3350
        %v3357 = vor.u32 %v3355, %v3356
        %v3358 = vshll.u32 2131351028, %v3349
        %v3359 = vshrl.u32 2102212464, %v3350
        %v3360 = vor.u32 %v3358, %v3359
        %v3361 = vshll.u32 2102212464, %v3349
        %v3362 = vshrl.u32 920167782, %v3350
        %v3363 = vor.u32 %v3361, %v3362
        %v3364 = vshll.u32 920167782, %v3349
        %v3365 = vshrl.u32 1326507024, %v3350
        %v3366 = vor.u32 %v3364, %v3365
        %vm3367 = vcmp.lt.s32.totalorder %v3348, 1
        %vm3368 = vcmp.lt.s32.totalorder %v3348, 2
        %vm3369 = vcmp.lt.s32.totalorder %v3348, 3
        %vm3370 = vcmp.lt.s32.totalorder %v3348, 4
        %v3371 = vsel %vm3367, %v3351, %v3354
        %v3372 = vsel %vm3370, %v3360, 2102212464
        %v3373 = vsel %vm3369, %v3357, %v3372
        %v3374 = vsel %vm3368, %v3371, %v3373
        %v3375 = vsel %vm3367, %v3354, %v3357
        %v3376 = vsel %vm3370, %v3363, 920167782
        %v3377 = vsel %vm3369, %v3360, %v3376
        %v3378 = vsel %vm3368, %v3375, %v3377
        %v3379 = vsel %vm3367, %v3357, %v3360
        %v3380 = vsel %vm3370, %v3366, 1326507024
        %v3381 = vsel %vm3369, %v3363, %v3380
        %v3382 = vsel %vm3368, %v3379, %v3381
        %v3383 = vshll.u32 %v3343, 8
        %v3384 = vmul.u32.u64.compose %v3383, %v3382
        %v3385 = vextract.low.u32 %v3384
        %v3386 = vextract.high.u32 %v3384
        %v3387 = vmul.u32.u64.compose %v3383, %v3378
        %v3388 = vextract.low.u32 %v3387
        %v3389 = vextract.high.u32 %v3387
        %v3390 = vmul.u32 %v3383, %v3374
        %v3391 = vadd.s32 %v3386, %v3388
        %vm3392 = vc.u32 %v3386, %v3388
        %v3393 = vadd.s32 %v3389, 1
        %v3394 = vsel %vm3392, %v3393, %v3389
        %v3395 = vadd.s32 %v3390, %v3394
        %v3396 = vadd.s32 %v3395, 536870912
        %v3397 = vshrl.u32 %v3396, 30
        %v3398 = vshll.u32 %v3397, 30
        %v3399 = vsub.s32 %v3395, %v3398
        %vm3400 = vcmp.lt.s32.totalorder %v3399, 0
        %v3401 = vsub.s32 0, %v3399
        %v3402 = vsel %vm3400, %v3401, %v3399
        %v3403 = vclz %v3402
        %v3404 = vsub.s32 %v3403, 2
        %vm3405 = vcmp.gt.s32.totalorder 0, %v3404
        %v3406 = vsel %vm3405, 0, %v3404
        %v3407 = vsub.s32 32, %v3406
        %v3408 = vshll.u32 %v3399, %v3406
        %v3409 = vshrl.u32 %v3391, %v3407
        %v3410 = vor.u32 %v3408, %v3409
        %v3411 = vsub.s32 4294967266, %v3406
        %v3412 = vadd.s32 %v3411, 127
        %v3413 = vshll.u32 %v3412, 23
        %v3414 = vor.u32 4788187, %v3413
        %v3415 = vand.u32 2147483647, %v3414
        %v3417 = vcvt.s32.f32 %v3410
        %v3418 = vmul.f32 %v3417, %v3415
        %v3419 = vxor.u32 %v3418, 2147483648
        %v3420 = vsel %vm3337, %v3419, %v3418
        %v3421 = vsub.s32 4, %v3397
        %v3422 = vsel %vm3337, %v3421, %v3397
        %v3423 = vsel %vm3336, %v1314, %v3420
        %v3424 = vsel %vm3336, 0, %v3422
        %v3425 = vcosq.f32.pop %v3423
        %v3426 = vsinq.f32.pop %v3423
        %vm3427 = vweird.f32 %v1314
        %v3428 = vadd.s32 %v3424, 3
        %v3429 = vand.u32 %v3428, 3
        %vm3430 = vcmp.lt.s32.totalorder %v3429, 2
        %vm3431 = vcmp.eq.s32.totalorder %v3429, 0
        %v3432 = vxor.u32 %v3426, 2147483648
        %v3433 = vsel %vm3431, %v3425, %v3432
        %vm3434 = vcmp.eq.s32.totalorder %v3429, 2
        %v3435 = vxor.u32 %v3425, 2147483648
        %v3436 = vsel %vm3434, %v3435, %v3426
        %v3437 = vsel %vm3430, %v3433, %v3436
        %v3438 = vsel %vm3427, nan, %v3437
        %v3439 = vand.u32 2147483647, %v1315
        %vm3440 = vcmp.le.f32.partialorder %v3439, 0.7853982
        %vm3441 = vcmp.lt.s32.totalorder %v1315, 0
        %v3442 = vand.u32 %v1315, 2139095040
        %v3443 = vshrl.u32 %v3442, 23
        %v3444 = vsub.s32 %v3443, 127
        %v3445 = vand.u32 2147483647, %v1315
        %v3446 = vand.u32 %v3445, 8388607
        %v3447 = vor.u32 %v3446, 8388608
        %v3448 = vsub.s32 0, %v3447
        %v3449 = vadd.s32 %v3444, 1
        %vm3450 = vcmp.gt.s32.totalorder %v3449, 0
        %v3451 = vsel %vm3450, %v3449, 0
        %v3452 = vshrl.u32 %v3451, 5
        %v3453 = vand.u32 %v3451, 31
        %v3454 = vsub.s32 32, %v3453
        %v3455 = vshrl.u32 683565275, %v3454
        %v3456 = vshll.u32 683565275, %v3453
        %v3457 = vshrl.u32 2475754826, %v3454
        %v3458 = vor.u32 %v3456, %v3457
        %v3459 = vshll.u32 2475754826, %v3453
        %v3460 = vshrl.u32 2131351028, %v3454
        %v3461 = vor.u32 %v3459, %v3460
        %v3462 = vshll.u32 2131351028, %v3453
        %v3463 = vshrl.u32 2102212464, %v3454
        %v3464 = vor.u32 %v3462, %v3463
        %v3465 = vshll.u32 2102212464, %v3453
        %v3466 = vshrl.u32 920167782, %v3454
        %v3467 = vor.u32 %v3465, %v3466
        %v3468 = vshll.u32 920167782, %v3453
        %v3469 = vshrl.u32 1326507024, %v3454
        %v3470 = vor.u32 %v3468, %v3469
        %vm3471 = vcmp.lt.s32.totalorder %v3452, 1
        %vm3472 = vcmp.lt.s32.totalorder %v3452, 2
        %vm3473 = vcmp.lt.s32.totalorder %v3452, 3
        %vm3474 = vcmp.lt.s32.totalorder %v3452, 4
        %v3475 = vsel %vm3471, %v3455, %v3458
        %v3476 = vsel %vm3474, %v3464, 2102212464
        %v3477 = vsel %vm3473, %v3461, %v3476
        %v3478 = vsel %vm3472, %v3475, %v3477
        %v3479 = vsel %vm3471, %v3458, %v3461
        %v3480 = vsel %vm3474, %v3467, 920167782
        %v3481 = vsel %vm3473, %v3464, %v3480
        %v3482 = vsel %vm3472, %v3479, %v3481
        %v3483 = vsel %vm3471, %v3461, %v3464
        %v3484 = vsel %vm3474, %v3470, 1326507024
        %v3485 = vsel %vm3473, %v3467, %v3484
        %v3486 = vsel %vm3472, %v3483, %v3485
        %v3487 = vshll.u32 %v3447, 8
        %v3488 = vmul.u32.u64.compose %v3487, %v3486
        %v3489 = vextract.low.u32 %v3488
        %v3490 = vextract.high.u32 %v3488
        %v3491 = vmul.u32.u64.compose %v3487, %v3482
        %v3492 = vextract.low.u32 %v3491
        %v3493 = vextract.high.u32 %v3491
        %v3494 = vmul.u32 %v3487, %v3478
        %v3495 = vadd.s32 %v3490, %v3492
        %vm3496 = vc.u32 %v3490, %v3492
        %v3497 = vadd.s32 %v3493, 1
        %v3498 = vsel %vm3496, %v3497, %v3493
        %v3499 = vadd.s32 %v3494, %v3498
        %v3500 = vadd.s32 %v3499, 536870912
        %v3501 = vshrl.u32 %v3500, 30
        %v3502 = vshll.u32 %v3501, 30
        %v3503 = vsub.s32 %v3499, %v3502
        %vm3504 = vcmp.lt.s32.totalorder %v3503, 0
        %v3505 = vsub.s32 0, %v3503
        %v3506 = vsel %vm3504, %v3505, %v3503
        %v3507 = vclz %v3506
        %v3508 = vsub.s32 %v3507, 2
        %vm3509 = vcmp.gt.s32.totalorder 0, %v3508
        %v3510 = vsel %vm3509, 0, %v3508
        %v3511 = vsub.s32 32, %v3510
        %v3512 = vshll.u32 %v3503, %v3510
        %v3513 = vshrl.u32 %v3495, %v3511
        %v3514 = vor.u32 %v3512, %v3513
        %v3515 = vsub.s32 4294967266, %v3510
        %v3516 = vadd.s32 %v3515, 127
        %v3517 = vshll.u32 %v3516, 23
        %v3518 = vor.u32 4788187, %v3517
        %v3519 = vand.u32 2147483647, %v3518
        %v3521 = vcvt.s32.f32 %v3514
        %v3522 = vmul.f32 %v3521, %v3519
        %v3523 = vxor.u32 %v3522, 2147483648
        %v3524 = vsel %vm3441, %v3523, %v3522
        %v3525 = vsub.s32 4, %v3501
        %v3526 = vsel %vm3441, %v3525, %v3501
        %v3527 = vsel %vm3440, %v1315, %v3524
        %v3528 = vsel %vm3440, 0, %v3526
        %v3529 = vcosq.f32.pop %v3527
        %v3530 = vsinq.f32.pop %v3527
        %vm3531 = vweird.f32 %v1315
        %v3532 = vadd.s32 %v3528, 3
        %v3533 = vand.u32 %v3532, 3
        %vm3534 = vcmp.lt.s32.totalorder %v3533, 2
        %vm3535 = vcmp.eq.s32.totalorder %v3533, 0
        %v3536 = vxor.u32 %v3530, 2147483648
        %v3537 = vsel %vm3535, %v3529, %v3536
        %vm3538 = vcmp.eq.s32.totalorder %v3533, 2
        %v3539 = vxor.u32 %v3529, 2147483648
        %v3540 = vsel %vm3538, %v3539, %v3530
        %v3541 = vsel %vm3534, %v3537, %v3540
        %v3542 = vsel %vm3531, nan, %v3541
        %v3543 = vand.u32 2147483647, %v1316
        %vm3544 = vcmp.le.f32.partialorder %v3543, 0.7853982
        %vm3545 = vcmp.lt.s32.totalorder %v1316, 0
        %v3546 = vand.u32 %v1316, 2139095040
        %v3547 = vshrl.u32 %v3546, 23
        %v3548 = vsub.s32 %v3547, 127
        %v3549 = vand.u32 2147483647, %v1316
        %v3550 = vand.u32 %v3549, 8388607
        %v3551 = vor.u32 %v3550, 8388608
        %v3552 = vsub.s32 0, %v3551
        %v3553 = vadd.s32 %v3548, 1
        %vm3554 = vcmp.gt.s32.totalorder %v3553, 0
        %v3555 = vsel %vm3554, %v3553, 0
        %v3556 = vshrl.u32 %v3555, 5
        %v3557 = vand.u32 %v3555, 31
        %v3558 = vsub.s32 32, %v3557
        %v3559 = vshrl.u32 683565275, %v3558
        %v3560 = vshll.u32 683565275, %v3557
        %v3561 = vshrl.u32 2475754826, %v3558
        %v3562 = vor.u32 %v3560, %v3561
        %v3563 = vshll.u32 2475754826, %v3557
        %v3564 = vshrl.u32 2131351028, %v3558
        %v3565 = vor.u32 %v3563, %v3564
        %v3566 = vshll.u32 2131351028, %v3557
        %v3567 = vshrl.u32 2102212464, %v3558
        %v3568 = vor.u32 %v3566, %v3567
        %v3569 = vshll.u32 2102212464, %v3557
        %v3570 = vshrl.u32 920167782, %v3558
        %v3571 = vor.u32 %v3569, %v3570
        %v3572 = vshll.u32 920167782, %v3557
        %v3573 = vshrl.u32 1326507024, %v3558
        %v3574 = vor.u32 %v3572, %v3573
        %vm3575 = vcmp.lt.s32.totalorder %v3556, 1
        %vm3576 = vcmp.lt.s32.totalorder %v3556, 2
        %vm3577 = vcmp.lt.s32.totalorder %v3556, 3
        %vm3578 = vcmp.lt.s32.totalorder %v3556, 4
        %v3579 = vsel %vm3575, %v3559, %v3562
        %v3580 = vsel %vm3578, %v3568, 2102212464
        %v3581 = vsel %vm3577, %v3565, %v3580
        %v3582 = vsel %vm3576, %v3579, %v3581
        %v3583 = vsel %vm3575, %v3562, %v3565
        %v3584 = vsel %vm3578, %v3571, 920167782
        %v3585 = vsel %vm3577, %v3568, %v3584
        %v3586 = vsel %vm3576, %v3583, %v3585
        %v3587 = vsel %vm3575, %v3565, %v3568
        %v3588 = vsel %vm3578, %v3574, 1326507024
        %v3589 = vsel %vm3577, %v3571, %v3588
        %v3590 = vsel %vm3576, %v3587, %v3589
        %v3591 = vshll.u32 %v3551, 8
        %v3592 = vmul.u32.u64.compose %v3591, %v3590
        %v3593 = vextract.low.u32 %v3592
        %v3594 = vextract.high.u32 %v3592
        %v3595 = vmul.u32.u64.compose %v3591, %v3586
        %v3596 = vextract.low.u32 %v3595
        %v3597 = vextract.high.u32 %v3595
        %v3598 = vmul.u32 %v3591, %v3582
        %v3599 = vadd.s32 %v3594, %v3596
        %vm3600 = vc.u32 %v3594, %v3596
        %v3601 = vadd.s32 %v3597, 1
        %v3602 = vsel %vm3600, %v3601, %v3597
        %v3603 = vadd.s32 %v3598, %v3602
        %v3604 = vadd.s32 %v3603, 536870912
        %v3605 = vshrl.u32 %v3604, 30
        %v3606 = vshll.u32 %v3605, 30
        %v3607 = vsub.s32 %v3603, %v3606
        %vm3608 = vcmp.lt.s32.totalorder %v3607, 0
        %v3609 = vsub.s32 0, %v3607
        %v3610 = vsel %vm3608, %v3609, %v3607
        %v3611 = vclz %v3610
        %v3612 = vsub.s32 %v3611, 2
        %vm3613 = vcmp.gt.s32.totalorder 0, %v3612
        %v3614 = vsel %vm3613, 0, %v3612
        %v3615 = vsub.s32 32, %v3614
        %v3616 = vshll.u32 %v3607, %v3614
        %v3617 = vshrl.u32 %v3599, %v3615
        %v3618 = vor.u32 %v3616, %v3617
        %v3619 = vsub.s32 4294967266, %v3614
        %v3620 = vadd.s32 %v3619, 127
        %v3621 = vshll.u32 %v3620, 23
        %v3622 = vor.u32 4788187, %v3621
        %v3623 = vand.u32 2147483647, %v3622
        %v3625 = vcvt.s32.f32 %v3618
        %v3626 = vmul.f32 %v3625, %v3623
        %v3627 = vxor.u32 %v3626, 2147483648
        %v3628 = vsel %vm3545, %v3627, %v3626
        %v3629 = vsub.s32 4, %v3605
        %v3630 = vsel %vm3545, %v3629, %v3605
        %v3631 = vsel %vm3544, %v1316, %v3628
        %v3632 = vsel %vm3544, 0, %v3630
        %v3633 = vcosq.f32.pop %v3631
        %v3634 = vsinq.f32.pop %v3631
        %vm3635 = vweird.f32 %v1316
        %v3636 = vadd.s32 %v3632, 3
        %v3637 = vand.u32 %v3636, 3
        %vm3638 = vcmp.lt.s32.totalorder %v3637, 2
        %vm3639 = vcmp.eq.s32.totalorder %v3637, 0
        %v3640 = vxor.u32 %v3634, 2147483648
        %v3641 = vsel %vm3639, %v3633, %v3640
        %vm3642 = vcmp.eq.s32.totalorder %v3637, 2
        %v3643 = vxor.u32 %v3633, 2147483648
        %v3644 = vsel %vm3642, %v3643, %v3634
        %v3645 = vsel %vm3638, %v3641, %v3644
        %v3646 = vsel %vm3635, nan, %v3645
        %v3647 = vand.u32 2147483647, %v1317
        %vm3648 = vcmp.le.f32.partialorder %v3647, 0.7853982
        %vm3649 = vcmp.lt.s32.totalorder %v1317, 0
        %v3650 = vand.u32 %v1317, 2139095040
        %v3651 = vshrl.u32 %v3650, 23
        %v3652 = vsub.s32 %v3651, 127
        %v3653 = vand.u32 2147483647, %v1317
        %v3654 = vand.u32 %v3653, 8388607
        %v3655 = vor.u32 %v3654, 8388608
        %v3656 = vsub.s32 0, %v3655
        %v3657 = vadd.s32 %v3652, 1
        %vm3658 = vcmp.gt.s32.totalorder %v3657, 0
        %v3659 = vsel %vm3658, %v3657, 0
        %v3660 = vshrl.u32 %v3659, 5
        %v3661 = vand.u32 %v3659, 31
        %v3662 = vsub.s32 32, %v3661
        %v3663 = vshrl.u32 683565275, %v3662
        %v3664 = vshll.u32 683565275, %v3661
        %v3665 = vshrl.u32 2475754826, %v3662
        %v3666 = vor.u32 %v3664, %v3665
        %v3667 = vshll.u32 2475754826, %v3661
        %v3668 = vshrl.u32 2131351028, %v3662
        %v3669 = vor.u32 %v3667, %v3668
        %v3670 = vshll.u32 2131351028, %v3661
        %v3671 = vshrl.u32 2102212464, %v3662
        %v3672 = vor.u32 %v3670, %v3671
        %v3673 = vshll.u32 2102212464, %v3661
        %v3674 = vshrl.u32 920167782, %v3662
        %v3675 = vor.u32 %v3673, %v3674
        %v3676 = vshll.u32 920167782, %v3661
        %v3677 = vshrl.u32 1326507024, %v3662
        %v3678 = vor.u32 %v3676, %v3677
        %vm3679 = vcmp.lt.s32.totalorder %v3660, 1
        %vm3680 = vcmp.lt.s32.totalorder %v3660, 2
        %vm3681 = vcmp.lt.s32.totalorder %v3660, 3
        %vm3682 = vcmp.lt.s32.totalorder %v3660, 4
        %v3683 = vsel %vm3679, %v3663, %v3666
        %v3684 = vsel %vm3682, %v3672, 2102212464
        %v3685 = vsel %vm3681, %v3669, %v3684
        %v3686 = vsel %vm3680, %v3683, %v3685
        %v3687 = vsel %vm3679, %v3666, %v3669
        %v3688 = vsel %vm3682, %v3675, 920167782
        %v3689 = vsel %vm3681, %v3672, %v3688
        %v3690 = vsel %vm3680, %v3687, %v3689
        %v3691 = vsel %vm3679, %v3669, %v3672
        %v3692 = vsel %vm3682, %v3678, 1326507024
        %v3693 = vsel %vm3681, %v3675, %v3692
        %v3694 = vsel %vm3680, %v3691, %v3693
        %v3695 = vshll.u32 %v3655, 8
        %v3696 = vmul.u32.u64.compose %v3695, %v3694
        %v3697 = vextract.low.u32 %v3696
        %v3698 = vextract.high.u32 %v3696
        %v3699 = vmul.u32.u64.compose %v3695, %v3690
        %v3700 = vextract.low.u32 %v3699
        %v3701 = vextract.high.u32 %v3699
        %v3702 = vmul.u32 %v3695, %v3686
        %v3703 = vadd.s32 %v3698, %v3700
        %vm3704 = vc.u32 %v3698, %v3700
        %v3705 = vadd.s32 %v3701, 1
        %v3706 = vsel %vm3704, %v3705, %v3701
        %v3707 = vadd.s32 %v3702, %v3706
        %v3708 = vadd.s32 %v3707, 536870912
        %v3709 = vshrl.u32 %v3708, 30
        %v3710 = vshll.u32 %v3709, 30
        %v3711 = vsub.s32 %v3707, %v3710
        %vm3712 = vcmp.lt.s32.totalorder %v3711, 0
        %v3713 = vsub.s32 0, %v3711
        %v3714 = vsel %vm3712, %v3713, %v3711
        %v3715 = vclz %v3714
        %v3716 = vsub.s32 %v3715, 2
        %vm3717 = vcmp.gt.s32.totalorder 0, %v3716
        %v3718 = vsel %vm3717, 0, %v3716
        %v3719 = vsub.s32 32, %v3718
        %v3720 = vshll.u32 %v3711, %v3718
        %v3721 = vshrl.u32 %v3703, %v3719
        %v3722 = vor.u32 %v3720, %v3721
        %v3723 = vsub.s32 4294967266, %v3718
        %v3724 = vadd.s32 %v3723, 127
        %v3725 = vshll.u32 %v3724, 23
        %v3726 = vor.u32 4788187, %v3725
        %v3727 = vand.u32 2147483647, %v3726
        %v3729 = vcvt.s32.f32 %v3722
        %v3730 = vmul.f32 %v3729, %v3727
        %v3731 = vxor.u32 %v3730, 2147483648
        %v3732 = vsel %vm3649, %v3731, %v3730
        %v3733 = vsub.s32 4, %v3709
        %v3734 = vsel %vm3649, %v3733, %v3709
        %v3735 = vsel %vm3648, %v1317, %v3732
        %v3736 = vsel %vm3648, 0, %v3734
        %v3737 = vcosq.f32.pop %v3735
        %v3738 = vsinq.f32.pop %v3735
        %vm3739 = vweird.f32 %v1317
        %v3740 = vadd.s32 %v3736, 3
        %v3741 = vand.u32 %v3740, 3
        %vm3742 = vcmp.lt.s32.totalorder %v3741, 2
        %vm3743 = vcmp.eq.s32.totalorder %v3741, 0
        %v3744 = vxor.u32 %v3738, 2147483648
        %v3745 = vsel %vm3743, %v3737, %v3744
        %vm3746 = vcmp.eq.s32.totalorder %v3741, 2
        %v3747 = vxor.u32 %v3737, 2147483648
        %v3748 = vsel %vm3746, %v3747, %v3738
        %v3749 = vsel %vm3742, %v3745, %v3748
        %v3750 = vsel %vm3739, nan, %v3749
        %v3751 = vand.u32 2147483647, %v1318
        %vm3752 = vcmp.le.f32.partialorder %v3751, 0.7853982
        %vm3753 = vcmp.lt.s32.totalorder %v1318, 0
        %v3754 = vand.u32 %v1318, 2139095040
        %v3755 = vshrl.u32 %v3754, 23
        %v3756 = vsub.s32 %v3755, 127
        %v3757 = vand.u32 2147483647, %v1318
        %v3758 = vand.u32 %v3757, 8388607
        %v3759 = vor.u32 %v3758, 8388608
        %v3760 = vsub.s32 0, %v3759
        %v3761 = vadd.s32 %v3756, 1
        %vm3762 = vcmp.gt.s32.totalorder %v3761, 0
        %v3763 = vsel %vm3762, %v3761, 0
        %v3764 = vshrl.u32 %v3763, 5
        %v3765 = vand.u32 %v3763, 31
        %v3766 = vsub.s32 32, %v3765
        %v3767 = vshrl.u32 683565275, %v3766
        %v3768 = vshll.u32 683565275, %v3765
        %v3769 = vshrl.u32 2475754826, %v3766
        %v3770 = vor.u32 %v3768, %v3769
        %v3771 = vshll.u32 2475754826, %v3765
        %v3772 = vshrl.u32 2131351028, %v3766
        %v3773 = vor.u32 %v3771, %v3772
        %v3774 = vshll.u32 2131351028, %v3765
        %v3775 = vshrl.u32 2102212464, %v3766
        %v3776 = vor.u32 %v3774, %v3775
        %v3777 = vshll.u32 2102212464, %v3765
        %v3778 = vshrl.u32 920167782, %v3766
        %v3779 = vor.u32 %v3777, %v3778
        %v3780 = vshll.u32 920167782, %v3765
        %v3781 = vshrl.u32 1326507024, %v3766
        %v3782 = vor.u32 %v3780, %v3781
        %vm3783 = vcmp.lt.s32.totalorder %v3764, 1
        %vm3784 = vcmp.lt.s32.totalorder %v3764, 2
        %vm3785 = vcmp.lt.s32.totalorder %v3764, 3
        %vm3786 = vcmp.lt.s32.totalorder %v3764, 4
        %v3787 = vsel %vm3783, %v3767, %v3770
        %v3788 = vsel %vm3786, %v3776, 2102212464
        %v3789 = vsel %vm3785, %v3773, %v3788
        %v3790 = vsel %vm3784, %v3787, %v3789
        %v3791 = vsel %vm3783, %v3770, %v3773
        %v3792 = vsel %vm3786, %v3779, 920167782
        %v3793 = vsel %vm3785, %v3776, %v3792
        %v3794 = vsel %vm3784, %v3791, %v3793
        %v3795 = vsel %vm3783, %v3773, %v3776
        %v3796 = vsel %vm3786, %v3782, 1326507024
        %v3797 = vsel %vm3785, %v3779, %v3796
        %v3798 = vsel %vm3784, %v3795, %v3797
        %v3799 = vshll.u32 %v3759, 8
        %v3800 = vmul.u32.u64.compose %v3799, %v3798
        %v3801 = vextract.low.u32 %v3800
        %v3802 = vextract.high.u32 %v3800
        %v3803 = vmul.u32.u64.compose %v3799, %v3794
        %v3804 = vextract.low.u32 %v3803
        %v3805 = vextract.high.u32 %v3803
        %v3806 = vmul.u32 %v3799, %v3790
        %v3807 = vadd.s32 %v3802, %v3804
        %vm3808 = vc.u32 %v3802, %v3804
        %v3809 = vadd.s32 %v3805, 1
        %v3810 = vsel %vm3808, %v3809, %v3805
        %v3811 = vadd.s32 %v3806, %v3810
        %v3812 = vadd.s32 %v3811, 536870912
        %v3813 = vshrl.u32 %v3812, 30
        %v3814 = vshll.u32 %v3813, 30
        %v3815 = vsub.s32 %v3811, %v3814
        %vm3816 = vcmp.lt.s32.totalorder %v3815, 0
        %v3817 = vsub.s32 0, %v3815
        %v3818 = vsel %vm3816, %v3817, %v3815
        %v3819 = vclz %v3818
        %v3820 = vsub.s32 %v3819, 2
        %vm3821 = vcmp.gt.s32.totalorder 0, %v3820
        %v3822 = vsel %vm3821, 0, %v3820
        %v3823 = vsub.s32 32, %v3822
        %v3824 = vshll.u32 %v3815, %v3822
        %v3825 = vshrl.u32 %v3807, %v3823
        %v3826 = vor.u32 %v3824, %v3825
        %v3827 = vsub.s32 4294967266, %v3822
        %v3828 = vadd.s32 %v3827, 127
        %v3829 = vshll.u32 %v3828, 23
        %v3830 = vor.u32 4788187, %v3829
        %v3831 = vand.u32 2147483647, %v3830
        %v3833 = vcvt.s32.f32 %v3826
        %v3834 = vmul.f32 %v3833, %v3831
        %v3835 = vxor.u32 %v3834, 2147483648
        %v3836 = vsel %vm3753, %v3835, %v3834
        %v3837 = vsub.s32 4, %v3813
        %v3838 = vsel %vm3753, %v3837, %v3813
        %v3839 = vsel %vm3752, %v1318, %v3836
        %v3840 = vsel %vm3752, 0, %v3838
        %v3841 = vcosq.f32.pop %v3839
        %v3842 = vsinq.f32.pop %v3839
        %vm3843 = vweird.f32 %v1318
        %v3844 = vadd.s32 %v3840, 3
        %v3845 = vand.u32 %v3844, 3
        %vm3846 = vcmp.lt.s32.totalorder %v3845, 2
        %vm3847 = vcmp.eq.s32.totalorder %v3845, 0
        %v3848 = vxor.u32 %v3842, 2147483648
        %v3849 = vsel %vm3847, %v3841, %v3848
        %vm3850 = vcmp.eq.s32.totalorder %v3845, 2
        %v3851 = vxor.u32 %v3841, 2147483648
        %v3852 = vsel %vm3850, %v3851, %v3842
        %v3853 = vsel %vm3846, %v3849, %v3852
        %v3854 = vsel %vm3843, nan, %v3853
        %v3855 = vand.u32 2147483647, %v1319
        %vm3856 = vcmp.le.f32.partialorder %v3855, 0.7853982
        %vm3857 = vcmp.lt.s32.totalorder %v1319, 0
        %v3858 = vand.u32 %v1319, 2139095040
        %v3859 = vshrl.u32 %v3858, 23
        %v3860 = vsub.s32 %v3859, 127
        %v3861 = vand.u32 2147483647, %v1319
        %v3862 = vand.u32 %v3861, 8388607
        %v3863 = vor.u32 %v3862, 8388608
        %v3864 = vsub.s32 0, %v3863
        %v3865 = vadd.s32 %v3860, 1
        %vm3866 = vcmp.gt.s32.totalorder %v3865, 0
        %v3867 = vsel %vm3866, %v3865, 0
        %v3868 = vshrl.u32 %v3867, 5
        %v3869 = vand.u32 %v3867, 31
        %v3870 = vsub.s32 32, %v3869
        %v3871 = vshrl.u32 683565275, %v3870
        %v3872 = vshll.u32 683565275, %v3869
        %v3873 = vshrl.u32 2475754826, %v3870
        %v3874 = vor.u32 %v3872, %v3873
        %v3875 = vshll.u32 2475754826, %v3869
        %v3876 = vshrl.u32 2131351028, %v3870
        %v3877 = vor.u32 %v3875, %v3876
        %v3878 = vshll.u32 2131351028, %v3869
        %v3879 = vshrl.u32 2102212464, %v3870
        %v3880 = vor.u32 %v3878, %v3879
        %v3881 = vshll.u32 2102212464, %v3869
        %v3882 = vshrl.u32 920167782, %v3870
        %v3883 = vor.u32 %v3881, %v3882
        %v3884 = vshll.u32 920167782, %v3869
        %v3885 = vshrl.u32 1326507024, %v3870
        %v3886 = vor.u32 %v3884, %v3885
        %vm3887 = vcmp.lt.s32.totalorder %v3868, 1
        %vm3888 = vcmp.lt.s32.totalorder %v3868, 2
        %vm3889 = vcmp.lt.s32.totalorder %v3868, 3
        %vm3890 = vcmp.lt.s32.totalorder %v3868, 4
        %v3891 = vsel %vm3887, %v3871, %v3874
        %v3892 = vsel %vm3890, %v3880, 2102212464
        %v3893 = vsel %vm3889, %v3877, %v3892
        %v3894 = vsel %vm3888, %v3891, %v3893
        %v3895 = vsel %vm3887, %v3874, %v3877
        %v3896 = vsel %vm3890, %v3883, 920167782
        %v3897 = vsel %vm3889, %v3880, %v3896
        %v3898 = vsel %vm3888, %v3895, %v3897
        %v3899 = vsel %vm3887, %v3877, %v3880
        %v3900 = vsel %vm3890, %v3886, 1326507024
        %v3901 = vsel %vm3889, %v3883, %v3900
        %v3902 = vsel %vm3888, %v3899, %v3901
        %v3903 = vshll.u32 %v3863, 8
        %v3904 = vmul.u32.u64.compose %v3903, %v3902
        %v3905 = vextract.low.u32 %v3904
        %v3906 = vextract.high.u32 %v3904
        %v3907 = vmul.u32.u64.compose %v3903, %v3898
        %v3908 = vextract.low.u32 %v3907
        %v3909 = vextract.high.u32 %v3907
        %v3910 = vmul.u32 %v3903, %v3894
        %v3911 = vadd.s32 %v3906, %v3908
        %vm3912 = vc.u32 %v3906, %v3908
        %v3913 = vadd.s32 %v3909, 1
        %v3914 = vsel %vm3912, %v3913, %v3909
        %v3915 = vadd.s32 %v3910, %v3914
        %v3916 = vadd.s32 %v3915, 536870912
        %v3917 = vshrl.u32 %v3916, 30
        %v3918 = vshll.u32 %v3917, 30
        %v3919 = vsub.s32 %v3915, %v3918
        %vm3920 = vcmp.lt.s32.totalorder %v3919, 0
        %v3921 = vsub.s32 0, %v3919
        %v3922 = vsel %vm3920, %v3921, %v3919
        %v3923 = vclz %v3922
        %v3924 = vsub.s32 %v3923, 2
        %vm3925 = vcmp.gt.s32.totalorder 0, %v3924
        %v3926 = vsel %vm3925, 0, %v3924
        %v3927 = vsub.s32 32, %v3926
        %v3928 = vshll.u32 %v3919, %v3926
        %v3929 = vshrl.u32 %v3911, %v3927
        %v3930 = vor.u32 %v3928, %v3929
        %v3931 = vsub.s32 4294967266, %v3926
        %v3932 = vadd.s32 %v3931, 127
        %v3933 = vshll.u32 %v3932, 23
        %v3934 = vor.u32 4788187, %v3933
        %v3935 = vand.u32 2147483647, %v3934
        %v3937 = vcvt.s32.f32 %v3930
        %v3938 = vmul.f32 %v3937, %v3935
        %v3939 = vxor.u32 %v3938, 2147483648
        %v3940 = vsel %vm3857, %v3939, %v3938
        %v3941 = vsub.s32 4, %v3917
        %v3942 = vsel %vm3857, %v3941, %v3917
        %v3943 = vsel %vm3856, %v1319, %v3940
        %v3944 = vsel %vm3856, 0, %v3942
        %v3945 = vcosq.f32.pop %v3943
        %v3946 = vsinq.f32.pop %v3943
        %vm3947 = vweird.f32 %v1319
        %v3948 = vadd.s32 %v3944, 3
        %v3949 = vand.u32 %v3948, 3
        %vm3950 = vcmp.lt.s32.totalorder %v3949, 2
        %vm3951 = vcmp.eq.s32.totalorder %v3949, 0
        %v3952 = vxor.u32 %v3946, 2147483648
        %v3953 = vsel %vm3951, %v3945, %v3952
        %vm3954 = vcmp.eq.s32.totalorder %v3949, 2
        %v3955 = vxor.u32 %v3945, 2147483648
        %v3956 = vsel %vm3954, %v3955, %v3946
        %v3957 = vsel %vm3950, %v3953, %v3956
        %v3958 = vsel %vm3947, nan, %v3957
        %v3959 = vand.u32 2147483647, %v1320
        %vm3960 = vcmp.le.f32.partialorder %v3959, 0.7853982
        %vm3961 = vcmp.lt.s32.totalorder %v1320, 0
        %v3962 = vand.u32 %v1320, 2139095040
        %v3963 = vshrl.u32 %v3962, 23
        %v3964 = vsub.s32 %v3963, 127
        %v3965 = vand.u32 2147483647, %v1320
        %v3966 = vand.u32 %v3965, 8388607
        %v3967 = vor.u32 %v3966, 8388608
        %v3968 = vsub.s32 0, %v3967
        %v3969 = vadd.s32 %v3964, 1
        %vm3970 = vcmp.gt.s32.totalorder %v3969, 0
        %v3971 = vsel %vm3970, %v3969, 0
        %v3972 = vshrl.u32 %v3971, 5
        %v3973 = vand.u32 %v3971, 31
        %v3974 = vsub.s32 32, %v3973
        %v3975 = vshrl.u32 683565275, %v3974
        %v3976 = vshll.u32 683565275, %v3973
        %v3977 = vshrl.u32 2475754826, %v3974
        %v3978 = vor.u32 %v3976, %v3977
        %v3979 = vshll.u32 2475754826, %v3973
        %v3980 = vshrl.u32 2131351028, %v3974
        %v3981 = vor.u32 %v3979, %v3980
        %v3982 = vshll.u32 2131351028, %v3973
        %v3983 = vshrl.u32 2102212464, %v3974
        %v3984 = vor.u32 %v3982, %v3983
        %v3985 = vshll.u32 2102212464, %v3973
        %v3986 = vshrl.u32 920167782, %v3974
        %v3987 = vor.u32 %v3985, %v3986
        %v3988 = vshll.u32 920167782, %v3973
        %v3989 = vshrl.u32 1326507024, %v3974
        %v3990 = vor.u32 %v3988, %v3989
        %vm3991 = vcmp.lt.s32.totalorder %v3972, 1
        %vm3992 = vcmp.lt.s32.totalorder %v3972, 2
        %vm3993 = vcmp.lt.s32.totalorder %v3972, 3
        %vm3994 = vcmp.lt.s32.totalorder %v3972, 4
        %v3995 = vsel %vm3991, %v3975, %v3978
        %v3996 = vsel %vm3994, %v3984, 2102212464
        %v3997 = vsel %vm3993, %v3981, %v3996
        %v3998 = vsel %vm3992, %v3995, %v3997
        %v3999 = vsel %vm3991, %v3978, %v3981
        %v4000 = vsel %vm3994, %v3987, 920167782
        %v4001 = vsel %vm3993, %v3984, %v4000
        %v4002 = vsel %vm3992, %v3999, %v4001
        %v4003 = vsel %vm3991, %v3981, %v3984
        %v4004 = vsel %vm3994, %v3990, 1326507024
        %v4005 = vsel %vm3993, %v3987, %v4004
        %v4006 = vsel %vm3992, %v4003, %v4005
        %v4007 = vshll.u32 %v3967, 8
        %v4008 = vmul.u32.u64.compose %v4007, %v4006
        %v4009 = vextract.low.u32 %v4008
        %v4010 = vextract.high.u32 %v4008
        %v4011 = vmul.u32.u64.compose %v4007, %v4002
        %v4012 = vextract.low.u32 %v4011
        %v4013 = vextract.high.u32 %v4011
        %v4014 = vmul.u32 %v4007, %v3998
        %v4015 = vadd.s32 %v4010, %v4012
        %vm4016 = vc.u32 %v4010, %v4012
        %v4017 = vadd.s32 %v4013, 1
        %v4018 = vsel %vm4016, %v4017, %v4013
        %v4019 = vadd.s32 %v4014, %v4018
        %v4020 = vadd.s32 %v4019, 536870912
        %v4021 = vshrl.u32 %v4020, 30
        %v4022 = vshll.u32 %v4021, 30
        %v4023 = vsub.s32 %v4019, %v4022
        %vm4024 = vcmp.lt.s32.totalorder %v4023, 0
        %v4025 = vsub.s32 0, %v4023
        %v4026 = vsel %vm4024, %v4025, %v4023
        %v4027 = vclz %v4026
        %v4028 = vsub.s32 %v4027, 2
        %vm4029 = vcmp.gt.s32.totalorder 0, %v4028
        %v4030 = vsel %vm4029, 0, %v4028
        %v4031 = vsub.s32 32, %v4030
        %v4032 = vshll.u32 %v4023, %v4030
        %v4033 = vshrl.u32 %v4015, %v4031
        %v4034 = vor.u32 %v4032, %v4033
        %v4035 = vsub.s32 4294967266, %v4030
        %v4036 = vadd.s32 %v4035, 127
        %v4037 = vshll.u32 %v4036, 23
        %v4038 = vor.u32 4788187, %v4037
        %v4039 = vand.u32 2147483647, %v4038
        %v4041 = vcvt.s32.f32 %v4034
        %v4042 = vmul.f32 %v4041, %v4039
        %v4043 = vxor.u32 %v4042, 2147483648
        %v4044 = vsel %vm3961, %v4043, %v4042
        %v4045 = vsub.s32 4, %v4021
        %v4046 = vsel %vm3961, %v4045, %v4021
        %v4047 = vsel %vm3960, %v1320, %v4044
        %v4048 = vsel %vm3960, 0, %v4046
        %v4049 = vcosq.f32.pop %v4047
        %v4050 = vsinq.f32.pop %v4047
        %vm4051 = vweird.f32 %v1320
        %v4052 = vadd.s32 %v4048, 3
        %v4053 = vand.u32 %v4052, 3
        %vm4054 = vcmp.lt.s32.totalorder %v4053, 2
        %vm4055 = vcmp.eq.s32.totalorder %v4053, 0
        %v4056 = vxor.u32 %v4050, 2147483648
        %v4057 = vsel %vm4055, %v4049, %v4056
        %vm4058 = vcmp.eq.s32.totalorder %v4053, 2
        %v4059 = vxor.u32 %v4049, 2147483648
        %v4060 = vsel %vm4058, %v4059, %v4050
        %v4061 = vsel %vm4054, %v4057, %v4060
        %v4062 = vsel %vm4051, nan, %v4061
        %v4063 = vand.u32 2147483647, %v1321
        %vm4064 = vcmp.le.f32.partialorder %v4063, 0.7853982
        %vm4065 = vcmp.lt.s32.totalorder %v1321, 0
        %v4066 = vand.u32 %v1321, 2139095040
        %v4067 = vshrl.u32 %v4066, 23
        %v4068 = vsub.s32 %v4067, 127
        %v4069 = vand.u32 2147483647, %v1321
        %v4070 = vand.u32 %v4069, 8388607
        %v4071 = vor.u32 %v4070, 8388608
        %v4072 = vsub.s32 0, %v4071
        %v4073 = vadd.s32 %v4068, 1
        %vm4074 = vcmp.gt.s32.totalorder %v4073, 0
        %v4075 = vsel %vm4074, %v4073, 0
        %v4076 = vshrl.u32 %v4075, 5
        %v4077 = vand.u32 %v4075, 31
        %v4078 = vsub.s32 32, %v4077
        %v4079 = vshrl.u32 683565275, %v4078
        %v4080 = vshll.u32 683565275, %v4077
        %v4081 = vshrl.u32 2475754826, %v4078
        %v4082 = vor.u32 %v4080, %v4081
        %v4083 = vshll.u32 2475754826, %v4077
        %v4084 = vshrl.u32 2131351028, %v4078
        %v4085 = vor.u32 %v4083, %v4084
        %v4086 = vshll.u32 2131351028, %v4077
        %v4087 = vshrl.u32 2102212464, %v4078
        %v4088 = vor.u32 %v4086, %v4087
        %v4089 = vshll.u32 2102212464, %v4077
        %v4090 = vshrl.u32 920167782, %v4078
        %v4091 = vor.u32 %v4089, %v4090
        %v4092 = vshll.u32 920167782, %v4077
        %v4093 = vshrl.u32 1326507024, %v4078
        %v4094 = vor.u32 %v4092, %v4093
        %vm4095 = vcmp.lt.s32.totalorder %v4076, 1
        %vm4096 = vcmp.lt.s32.totalorder %v4076, 2
        %vm4097 = vcmp.lt.s32.totalorder %v4076, 3
        %vm4098 = vcmp.lt.s32.totalorder %v4076, 4
        %v4099 = vsel %vm4095, %v4079, %v4082
        %v4100 = vsel %vm4098, %v4088, 2102212464
        %v4101 = vsel %vm4097, %v4085, %v4100
        %v4102 = vsel %vm4096, %v4099, %v4101
        %v4103 = vsel %vm4095, %v4082, %v4085
        %v4104 = vsel %vm4098, %v4091, 920167782
        %v4105 = vsel %vm4097, %v4088, %v4104
        %v4106 = vsel %vm4096, %v4103, %v4105
        %v4107 = vsel %vm4095, %v4085, %v4088
        %v4108 = vsel %vm4098, %v4094, 1326507024
        %v4109 = vsel %vm4097, %v4091, %v4108
        %v4110 = vsel %vm4096, %v4107, %v4109
        %v4111 = vshll.u32 %v4071, 8
        %v4112 = vmul.u32.u64.compose %v4111, %v4110
        %v4113 = vextract.low.u32 %v4112
        %v4114 = vextract.high.u32 %v4112
        %v4115 = vmul.u32.u64.compose %v4111, %v4106
        %v4116 = vextract.low.u32 %v4115
        %v4117 = vextract.high.u32 %v4115
        %v4118 = vmul.u32 %v4111, %v4102
        %v4119 = vadd.s32 %v4114, %v4116
        %vm4120 = vc.u32 %v4114, %v4116
        %v4121 = vadd.s32 %v4117, 1
        %v4122 = vsel %vm4120, %v4121, %v4117
        %v4123 = vadd.s32 %v4118, %v4122
        %v4124 = vadd.s32 %v4123, 536870912
        %v4125 = vshrl.u32 %v4124, 30
        %v4126 = vshll.u32 %v4125, 30
        %v4127 = vsub.s32 %v4123, %v4126
        %vm4128 = vcmp.lt.s32.totalorder %v4127, 0
        %v4129 = vsub.s32 0, %v4127
        %v4130 = vsel %vm4128, %v4129, %v4127
        %v4131 = vclz %v4130
        %v4132 = vsub.s32 %v4131, 2
        %vm4133 = vcmp.gt.s32.totalorder 0, %v4132
        %v4134 = vsel %vm4133, 0, %v4132
        %v4135 = vsub.s32 32, %v4134
        %v4136 = vshll.u32 %v4127, %v4134
        %v4137 = vshrl.u32 %v4119, %v4135
        %v4138 = vor.u32 %v4136, %v4137
        %v4139 = vsub.s32 4294967266, %v4134
        %v4140 = vadd.s32 %v4139, 127
        %v4141 = vshll.u32 %v4140, 23
        %v4142 = vor.u32 4788187, %v4141
        %v4143 = vand.u32 2147483647, %v4142
        %v4145 = vcvt.s32.f32 %v4138
        %v4146 = vmul.f32 %v4145, %v4143
        %v4147 = vxor.u32 %v4146, 2147483648
        %v4148 = vsel %vm4065, %v4147, %v4146
        %v4149 = vsub.s32 4, %v4125
        %v4150 = vsel %vm4065, %v4149, %v4125
        %v4151 = vsel %vm4064, %v1321, %v4148
        %v4152 = vsel %vm4064, 0, %v4150
        %v4153 = vcosq.f32.pop %v4151
        %v4154 = vsinq.f32.pop %v4151
        %vm4155 = vweird.f32 %v1321
        %v4156 = vadd.s32 %v4152, 3
        %v4157 = vand.u32 %v4156, 3
        %vm4158 = vcmp.lt.s32.totalorder %v4157, 2
        %vm4159 = vcmp.eq.s32.totalorder %v4157, 0
        %v4160 = vxor.u32 %v4154, 2147483648
        %v4161 = vsel %vm4159, %v4153, %v4160
        %vm4162 = vcmp.eq.s32.totalorder %v4157, 2
        %v4163 = vxor.u32 %v4153, 2147483648
        %v4164 = vsel %vm4162, %v4163, %v4154
        %v4165 = vsel %vm4158, %v4161, %v4164
        %v4166 = vsel %vm4155, nan, %v4165
        %v4167 = vand.u32 2147483647, %v1322
        %vm4168 = vcmp.le.f32.partialorder %v4167, 0.7853982
        %vm4169 = vcmp.lt.s32.totalorder %v1322, 0
        %v4170 = vand.u32 %v1322, 2139095040
        %v4171 = vshrl.u32 %v4170, 23
        %v4172 = vsub.s32 %v4171, 127
        %v4173 = vand.u32 2147483647, %v1322
        %v4174 = vand.u32 %v4173, 8388607
        %v4175 = vor.u32 %v4174, 8388608
        %v4176 = vsub.s32 0, %v4175
        %v4177 = vadd.s32 %v4172, 1
        %vm4178 = vcmp.gt.s32.totalorder %v4177, 0
        %v4179 = vsel %vm4178, %v4177, 0
        %v4180 = vshrl.u32 %v4179, 5
        %v4181 = vand.u32 %v4179, 31
        %v4182 = vsub.s32 32, %v4181
        %v4183 = vshrl.u32 683565275, %v4182
        %v4184 = vshll.u32 683565275, %v4181
        %v4185 = vshrl.u32 2475754826, %v4182
        %v4186 = vor.u32 %v4184, %v4185
        %v4187 = vshll.u32 2475754826, %v4181
        %v4188 = vshrl.u32 2131351028, %v4182
        %v4189 = vor.u32 %v4187, %v4188
        %v4190 = vshll.u32 2131351028, %v4181
        %v4191 = vshrl.u32 2102212464, %v4182
        %v4192 = vor.u32 %v4190, %v4191
        %v4193 = vshll.u32 2102212464, %v4181
        %v4194 = vshrl.u32 920167782, %v4182
        %v4195 = vor.u32 %v4193, %v4194
        %v4196 = vshll.u32 920167782, %v4181
        %v4197 = vshrl.u32 1326507024, %v4182
        %v4198 = vor.u32 %v4196, %v4197
        %vm4199 = vcmp.lt.s32.totalorder %v4180, 1
        %vm4200 = vcmp.lt.s32.totalorder %v4180, 2
        %vm4201 = vcmp.lt.s32.totalorder %v4180, 3
        %vm4202 = vcmp.lt.s32.totalorder %v4180, 4
        %v4203 = vsel %vm4199, %v4183, %v4186
        %v4204 = vsel %vm4202, %v4192, 2102212464
        %v4205 = vsel %vm4201, %v4189, %v4204
        %v4206 = vsel %vm4200, %v4203, %v4205
        %v4207 = vsel %vm4199, %v4186, %v4189
        %v4208 = vsel %vm4202, %v4195, 920167782
        %v4209 = vsel %vm4201, %v4192, %v4208
        %v4210 = vsel %vm4200, %v4207, %v4209
        %v4211 = vsel %vm4199, %v4189, %v4192
        %v4212 = vsel %vm4202, %v4198, 1326507024
        %v4213 = vsel %vm4201, %v4195, %v4212
        %v4214 = vsel %vm4200, %v4211, %v4213
        %v4215 = vshll.u32 %v4175, 8
        %v4216 = vmul.u32.u64.compose %v4215, %v4214
        %v4217 = vextract.low.u32 %v4216
        %v4218 = vextract.high.u32 %v4216
        %v4219 = vmul.u32.u64.compose %v4215, %v4210
        %v4220 = vextract.low.u32 %v4219
        %v4221 = vextract.high.u32 %v4219
        %v4222 = vmul.u32 %v4215, %v4206
        %v4223 = vadd.s32 %v4218, %v4220
        %vm4224 = vc.u32 %v4218, %v4220
        %v4225 = vadd.s32 %v4221, 1
        %v4226 = vsel %vm4224, %v4225, %v4221
        %v4227 = vadd.s32 %v4222, %v4226
        %v4228 = vadd.s32 %v4227, 536870912
        %v4229 = vshrl.u32 %v4228, 30
        %v4230 = vshll.u32 %v4229, 30
        %v4231 = vsub.s32 %v4227, %v4230
        %vm4232 = vcmp.lt.s32.totalorder %v4231, 0
        %v4233 = vsub.s32 0, %v4231
        %v4234 = vsel %vm4232, %v4233, %v4231
        %v4235 = vclz %v4234
        %v4236 = vsub.s32 %v4235, 2
        %vm4237 = vcmp.gt.s32.totalorder 0, %v4236
        %v4238 = vsel %vm4237, 0, %v4236
        %v4239 = vsub.s32 32, %v4238
        %v4240 = vshll.u32 %v4231, %v4238
        %v4241 = vshrl.u32 %v4223, %v4239
        %v4242 = vor.u32 %v4240, %v4241
        %v4243 = vsub.s32 4294967266, %v4238
        %v4244 = vadd.s32 %v4243, 127
        %v4245 = vshll.u32 %v4244, 23
        %v4246 = vor.u32 4788187, %v4245
        %v4247 = vand.u32 2147483647, %v4246
        %v4249 = vcvt.s32.f32 %v4242
        %v4250 = vmul.f32 %v4249, %v4247
        %v4251 = vxor.u32 %v4250, 2147483648
        %v4252 = vsel %vm4169, %v4251, %v4250
        %v4253 = vsub.s32 4, %v4229
        %v4254 = vsel %vm4169, %v4253, %v4229
        %v4255 = vsel %vm4168, %v1322, %v4252
        %v4256 = vsel %vm4168, 0, %v4254
        %v4257 = vcosq.f32.pop %v4255
        %v4258 = vsinq.f32.pop %v4255
        %vm4259 = vweird.f32 %v1322
        %v4260 = vadd.s32 %v4256, 3
        %v4261 = vand.u32 %v4260, 3
        %vm4262 = vcmp.lt.s32.totalorder %v4261, 2
        %vm4263 = vcmp.eq.s32.totalorder %v4261, 0
        %v4264 = vxor.u32 %v4258, 2147483648
        %v4265 = vsel %vm4263, %v4257, %v4264
        %vm4266 = vcmp.eq.s32.totalorder %v4261, 2
        %v4267 = vxor.u32 %v4257, 2147483648
        %v4268 = vsel %vm4266, %v4267, %v4258
        %v4269 = vsel %vm4262, %v4265, %v4268
        %v4270 = vsel %vm4259, nan, %v4269
        %v4271 = vand.u32 2147483647, %v1323
        %vm4272 = vcmp.le.f32.partialorder %v4271, 0.7853982
        %vm4273 = vcmp.lt.s32.totalorder %v1323, 0
        %v4274 = vand.u32 %v1323, 2139095040
        %v4275 = vshrl.u32 %v4274, 23
        %v4276 = vsub.s32 %v4275, 127
        %v4277 = vand.u32 2147483647, %v1323
        %v4278 = vand.u32 %v4277, 8388607
        %v4279 = vor.u32 %v4278, 8388608
        %v4280 = vsub.s32 0, %v4279
        %v4281 = vadd.s32 %v4276, 1
        %vm4282 = vcmp.gt.s32.totalorder %v4281, 0
        %v4283 = vsel %vm4282, %v4281, 0
        %v4284 = vshrl.u32 %v4283, 5
        %v4285 = vand.u32 %v4283, 31
        %v4286 = vsub.s32 32, %v4285
        %v4287 = vshrl.u32 683565275, %v4286
        %v4288 = vshll.u32 683565275, %v4285
        %v4289 = vshrl.u32 2475754826, %v4286
        %v4290 = vor.u32 %v4288, %v4289
        %v4291 = vshll.u32 2475754826, %v4285
        %v4292 = vshrl.u32 2131351028, %v4286
        %v4293 = vor.u32 %v4291, %v4292
        %v4294 = vshll.u32 2131351028, %v4285
        %v4295 = vshrl.u32 2102212464, %v4286
        %v4296 = vor.u32 %v4294, %v4295
        %v4297 = vshll.u32 2102212464, %v4285
        %v4298 = vshrl.u32 920167782, %v4286
        %v4299 = vor.u32 %v4297, %v4298
        %v4300 = vshll.u32 920167782, %v4285
        %v4301 = vshrl.u32 1326507024, %v4286
        %v4302 = vor.u32 %v4300, %v4301
        %vm4303 = vcmp.lt.s32.totalorder %v4284, 1
        %vm4304 = vcmp.lt.s32.totalorder %v4284, 2
        %vm4305 = vcmp.lt.s32.totalorder %v4284, 3
        %vm4306 = vcmp.lt.s32.totalorder %v4284, 4
        %v4307 = vsel %vm4303, %v4287, %v4290
        %v4308 = vsel %vm4306, %v4296, 2102212464
        %v4309 = vsel %vm4305, %v4293, %v4308
        %v4310 = vsel %vm4304, %v4307, %v4309
        %v4311 = vsel %vm4303, %v4290, %v4293
        %v4312 = vsel %vm4306, %v4299, 920167782
        %v4313 = vsel %vm4305, %v4296, %v4312
        %v4314 = vsel %vm4304, %v4311, %v4313
        %v4315 = vsel %vm4303, %v4293, %v4296
        %v4316 = vsel %vm4306, %v4302, 1326507024
        %v4317 = vsel %vm4305, %v4299, %v4316
        %v4318 = vsel %vm4304, %v4315, %v4317
        %v4319 = vshll.u32 %v4279, 8
        %v4320 = vmul.u32.u64.compose %v4319, %v4318
        %v4321 = vextract.low.u32 %v4320
        %v4322 = vextract.high.u32 %v4320
        %v4323 = vmul.u32.u64.compose %v4319, %v4314
        %v4324 = vextract.low.u32 %v4323
        %v4325 = vextract.high.u32 %v4323
        %v4326 = vmul.u32 %v4319, %v4310
        %v4327 = vadd.s32 %v4322, %v4324
        %vm4328 = vc.u32 %v4322, %v4324
        %v4329 = vadd.s32 %v4325, 1
        %v4330 = vsel %vm4328, %v4329, %v4325
        %v4331 = vadd.s32 %v4326, %v4330
        %v4332 = vadd.s32 %v4331, 536870912
        %v4333 = vshrl.u32 %v4332, 30
        %v4334 = vshll.u32 %v4333, 30
        %v4335 = vsub.s32 %v4331, %v4334
        %vm4336 = vcmp.lt.s32.totalorder %v4335, 0
        %v4337 = vsub.s32 0, %v4335
        %v4338 = vsel %vm4336, %v4337, %v4335
        %v4339 = vclz %v4338
        %v4340 = vsub.s32 %v4339, 2
        %vm4341 = vcmp.gt.s32.totalorder 0, %v4340
        %v4342 = vsel %vm4341, 0, %v4340
        %v4343 = vsub.s32 32, %v4342
        %v4344 = vshll.u32 %v4335, %v4342
        %v4345 = vshrl.u32 %v4327, %v4343
        %v4346 = vor.u32 %v4344, %v4345
        %v4347 = vsub.s32 4294967266, %v4342
        %v4348 = vadd.s32 %v4347, 127
        %v4349 = vshll.u32 %v4348, 23
        %v4350 = vor.u32 4788187, %v4349
        %v4351 = vand.u32 2147483647, %v4350
        %v4353 = vcvt.s32.f32 %v4346
        %v4354 = vmul.f32 %v4353, %v4351
        %v4355 = vxor.u32 %v4354, 2147483648
        %v4356 = vsel %vm4273, %v4355, %v4354
        %v4357 = vsub.s32 4, %v4333
        %v4358 = vsel %vm4273, %v4357, %v4333
        %v4359 = vsel %vm4272, %v1323, %v4356
        %v4360 = vsel %vm4272, 0, %v4358
        %v4361 = vcosq.f32.pop %v4359
        %v4362 = vsinq.f32.pop %v4359
        %vm4363 = vweird.f32 %v1323
        %v4364 = vadd.s32 %v4360, 3
        %v4365 = vand.u32 %v4364, 3
        %vm4366 = vcmp.lt.s32.totalorder %v4365, 2
        %vm4367 = vcmp.eq.s32.totalorder %v4365, 0
        %v4368 = vxor.u32 %v4362, 2147483648
        %v4369 = vsel %vm4367, %v4361, %v4368
        %vm4370 = vcmp.eq.s32.totalorder %v4365, 2
        %v4371 = vxor.u32 %v4361, 2147483648
        %v4372 = vsel %vm4370, %v4371, %v4362
        %v4373 = vsel %vm4366, %v4369, %v4372
        %v4374 = vsel %vm4363, nan, %v4373
        %v4375 = vand.u32 2147483647, %v1324
        %vm4376 = vcmp.le.f32.partialorder %v4375, 0.7853982
        %vm4377 = vcmp.lt.s32.totalorder %v1324, 0
        %v4378 = vand.u32 %v1324, 2139095040
        %v4379 = vshrl.u32 %v4378, 23
        %v4380 = vsub.s32 %v4379, 127
        %v4381 = vand.u32 2147483647, %v1324
        %v4382 = vand.u32 %v4381, 8388607
        %v4383 = vor.u32 %v4382, 8388608
        %v4384 = vsub.s32 0, %v4383
        %v4385 = vadd.s32 %v4380, 1
        %vm4386 = vcmp.gt.s32.totalorder %v4385, 0
        %v4387 = vsel %vm4386, %v4385, 0
        %v4388 = vshrl.u32 %v4387, 5
        %v4389 = vand.u32 %v4387, 31
        %v4390 = vsub.s32 32, %v4389
        %v4391 = vshrl.u32 683565275, %v4390
        %v4392 = vshll.u32 683565275, %v4389
        %v4393 = vshrl.u32 2475754826, %v4390
        %v4394 = vor.u32 %v4392, %v4393
        %v4395 = vshll.u32 2475754826, %v4389
        %v4396 = vshrl.u32 2131351028, %v4390
        %v4397 = vor.u32 %v4395, %v4396
        %v4398 = vshll.u32 2131351028, %v4389
        %v4399 = vshrl.u32 2102212464, %v4390
        %v4400 = vor.u32 %v4398, %v4399
        %v4401 = vshll.u32 2102212464, %v4389
        %v4402 = vshrl.u32 920167782, %v4390
        %v4403 = vor.u32 %v4401, %v4402
        %v4404 = vshll.u32 920167782, %v4389
        %v4405 = vshrl.u32 1326507024, %v4390
        %v4406 = vor.u32 %v4404, %v4405
        %vm4407 = vcmp.lt.s32.totalorder %v4388, 1
        %vm4408 = vcmp.lt.s32.totalorder %v4388, 2
        %vm4409 = vcmp.lt.s32.totalorder %v4388, 3
        %vm4410 = vcmp.lt.s32.totalorder %v4388, 4
        %v4411 = vsel %vm4407, %v4391, %v4394
        %v4412 = vsel %vm4410, %v4400, 2102212464
        %v4413 = vsel %vm4409, %v4397, %v4412
        %v4414 = vsel %vm4408, %v4411, %v4413
        %v4415 = vsel %vm4407, %v4394, %v4397
        %v4416 = vsel %vm4410, %v4403, 920167782
        %v4417 = vsel %vm4409, %v4400, %v4416
        %v4418 = vsel %vm4408, %v4415, %v4417
        %v4419 = vsel %vm4407, %v4397, %v4400
        %v4420 = vsel %vm4410, %v4406, 1326507024
        %v4421 = vsel %vm4409, %v4403, %v4420
        %v4422 = vsel %vm4408, %v4419, %v4421
        %v4423 = vshll.u32 %v4383, 8
        %v4424 = vmul.u32.u64.compose %v4423, %v4422
        %v4425 = vextract.low.u32 %v4424
        %v4426 = vextract.high.u32 %v4424
        %v4427 = vmul.u32.u64.compose %v4423, %v4418
        %v4428 = vextract.low.u32 %v4427
        %v4429 = vextract.high.u32 %v4427
        %v4430 = vmul.u32 %v4423, %v4414
        %v4431 = vadd.s32 %v4426, %v4428
        %vm4432 = vc.u32 %v4426, %v4428
        %v4433 = vadd.s32 %v4429, 1
        %v4434 = vsel %vm4432, %v4433, %v4429
        %v4435 = vadd.s32 %v4430, %v4434
        %v4436 = vadd.s32 %v4435, 536870912
        %v4437 = vshrl.u32 %v4436, 30
        %v4438 = vshll.u32 %v4437, 30
        %v4439 = vsub.s32 %v4435, %v4438
        %vm4440 = vcmp.lt.s32.totalorder %v4439, 0
        %v4441 = vsub.s32 0, %v4439
        %v4442 = vsel %vm4440, %v4441, %v4439
        %v4443 = vclz %v4442
        %v4444 = vsub.s32 %v4443, 2
        %vm4445 = vcmp.gt.s32.totalorder 0, %v4444
        %v4446 = vsel %vm4445, 0, %v4444
        %v4447 = vsub.s32 32, %v4446
        %v4448 = vshll.u32 %v4439, %v4446
        %v4449 = vshrl.u32 %v4431, %v4447
        %v4450 = vor.u32 %v4448, %v4449
        %v4451 = vsub.s32 4294967266, %v4446
        %v4452 = vadd.s32 %v4451, 127
        %v4453 = vshll.u32 %v4452, 23
        %v4454 = vor.u32 4788187, %v4453
        %v4455 = vand.u32 2147483647, %v4454
        %v4457 = vcvt.s32.f32 %v4450
        %v4458 = vmul.f32 %v4457, %v4455
        %v4459 = vxor.u32 %v4458, 2147483648
        %v4460 = vsel %vm4377, %v4459, %v4458
        %v4461 = vsub.s32 4, %v4437
        %v4462 = vsel %vm4377, %v4461, %v4437
        %v4463 = vsel %vm4376, %v1324, %v4460
        %v4464 = vsel %vm4376, 0, %v4462
        %v4465 = vcosq.f32.pop %v4463
        %v4466 = vsinq.f32.pop %v4463
        %vm4467 = vweird.f32 %v1324
        %v4468 = vadd.s32 %v4464, 3
        %v4469 = vand.u32 %v4468, 3
        %vm4470 = vcmp.lt.s32.totalorder %v4469, 2
        %vm4471 = vcmp.eq.s32.totalorder %v4469, 0
        %v4472 = vxor.u32 %v4466, 2147483648
        %v4473 = vsel %vm4471, %v4465, %v4472
        %vm4474 = vcmp.eq.s32.totalorder %v4469, 2
        %v4475 = vxor.u32 %v4465, 2147483648
        %v4476 = vsel %vm4474, %v4475, %v4466
        %v4477 = vsel %vm4470, %v4473, %v4476
        %v4478 = vsel %vm4467, nan, %v4477
        %v4479 = vand.u32 2147483647, %v1325
        %vm4480 = vcmp.le.f32.partialorder %v4479, 0.7853982
        %vm4481 = vcmp.lt.s32.totalorder %v1325, 0
        %v4482 = vand.u32 %v1325, 2139095040
        %v4483 = vshrl.u32 %v4482, 23
        %v4484 = vsub.s32 %v4483, 127
        %v4485 = vand.u32 2147483647, %v1325
        %v4486 = vand.u32 %v4485, 8388607
        %v4487 = vor.u32 %v4486, 8388608
        %v4488 = vsub.s32 0, %v4487
        %v4489 = vadd.s32 %v4484, 1
        %vm4490 = vcmp.gt.s32.totalorder %v4489, 0
        %v4491 = vsel %vm4490, %v4489, 0
        %v4492 = vshrl.u32 %v4491, 5
        %v4493 = vand.u32 %v4491, 31
        %v4494 = vsub.s32 32, %v4493
        %v4495 = vshrl.u32 683565275, %v4494
        %v4496 = vshll.u32 683565275, %v4493
        %v4497 = vshrl.u32 2475754826, %v4494
        %v4498 = vor.u32 %v4496, %v4497
        %v4499 = vshll.u32 2475754826, %v4493
        %v4500 = vshrl.u32 2131351028, %v4494
        %v4501 = vor.u32 %v4499, %v4500
        %v4502 = vshll.u32 2131351028, %v4493
        %v4503 = vshrl.u32 2102212464, %v4494
        %v4504 = vor.u32 %v4502, %v4503
        %v4505 = vshll.u32 2102212464, %v4493
        %v4506 = vshrl.u32 920167782, %v4494
        %v4507 = vor.u32 %v4505, %v4506
        %v4508 = vshll.u32 920167782, %v4493
        %v4509 = vshrl.u32 1326507024, %v4494
        %v4510 = vor.u32 %v4508, %v4509
        %vm4511 = vcmp.lt.s32.totalorder %v4492, 1
        %vm4512 = vcmp.lt.s32.totalorder %v4492, 2
        %vm4513 = vcmp.lt.s32.totalorder %v4492, 3
        %vm4514 = vcmp.lt.s32.totalorder %v4492, 4
        %v4515 = vsel %vm4511, %v4495, %v4498
        %v4516 = vsel %vm4514, %v4504, 2102212464
        %v4517 = vsel %vm4513, %v4501, %v4516
        %v4518 = vsel %vm4512, %v4515, %v4517
        %v4519 = vsel %vm4511, %v4498, %v4501
        %v4520 = vsel %vm4514, %v4507, 920167782
        %v4521 = vsel %vm4513, %v4504, %v4520
        %v4522 = vsel %vm4512, %v4519, %v4521
        %v4523 = vsel %vm4511, %v4501, %v4504
        %v4524 = vsel %vm4514, %v4510, 1326507024
        %v4525 = vsel %vm4513, %v4507, %v4524
        %v4526 = vsel %vm4512, %v4523, %v4525
        %v4527 = vshll.u32 %v4487, 8
        %v4528 = vmul.u32.u64.compose %v4527, %v4526
        %v4529 = vextract.low.u32 %v4528
        %v4530 = vextract.high.u32 %v4528
        %v4531 = vmul.u32.u64.compose %v4527, %v4522
        %v4532 = vextract.low.u32 %v4531
        %v4533 = vextract.high.u32 %v4531
        %v4534 = vmul.u32 %v4527, %v4518
        %v4535 = vadd.s32 %v4530, %v4532
        %vm4536 = vc.u32 %v4530, %v4532
        %v4537 = vadd.s32 %v4533, 1
        %v4538 = vsel %vm4536, %v4537, %v4533
        %v4539 = vadd.s32 %v4534, %v4538
        %v4540 = vadd.s32 %v4539, 536870912
        %v4541 = vshrl.u32 %v4540, 30
        %v4542 = vshll.u32 %v4541, 30
        %v4543 = vsub.s32 %v4539, %v4542
        %vm4544 = vcmp.lt.s32.totalorder %v4543, 0
        %v4545 = vsub.s32 0, %v4543
        %v4546 = vsel %vm4544, %v4545, %v4543
        %v4547 = vclz %v4546
        %v4548 = vsub.s32 %v4547, 2
        %vm4549 = vcmp.gt.s32.totalorder 0, %v4548
        %v4550 = vsel %vm4549, 0, %v4548
        %v4551 = vsub.s32 32, %v4550
        %v4552 = vshll.u32 %v4543, %v4550
        %v4553 = vshrl.u32 %v4535, %v4551
        %v4554 = vor.u32 %v4552, %v4553
        %v4555 = vsub.s32 4294967266, %v4550
        %v4556 = vadd.s32 %v4555, 127
        %v4557 = vshll.u32 %v4556, 23
        %v4558 = vor.u32 4788187, %v4557
        %v4559 = vand.u32 2147483647, %v4558
        %v4561 = vcvt.s32.f32 %v4554
        %v4562 = vmul.f32 %v4561, %v4559
        %v4563 = vxor.u32 %v4562, 2147483648
        %v4564 = vsel %vm4481, %v4563, %v4562
        %v4565 = vsub.s32 4, %v4541
        %v4566 = vsel %vm4481, %v4565, %v4541
        %v4567 = vsel %vm4480, %v1325, %v4564
        %v4568 = vsel %vm4480, 0, %v4566
        %v4569 = vcosq.f32.pop %v4567
        %v4570 = vsinq.f32.pop %v4567
        %vm4571 = vweird.f32 %v1325
        %v4572 = vadd.s32 %v4568, 3
        %v4573 = vand.u32 %v4572, 3
        %vm4574 = vcmp.lt.s32.totalorder %v4573, 2
        %vm4575 = vcmp.eq.s32.totalorder %v4573, 0
        %v4576 = vxor.u32 %v4570, 2147483648
        %v4577 = vsel %vm4575, %v4569, %v4576
        %vm4578 = vcmp.eq.s32.totalorder %v4573, 2
        %v4579 = vxor.u32 %v4569, 2147483648
        %v4580 = vsel %vm4578, %v4579, %v4570
        %v4581 = vsel %vm4574, %v4577, %v4580
        %v4582 = vsel %vm4571, nan, %v4581
        %v4583 = vand.u32 2147483647, %v1326
        %vm4584 = vcmp.le.f32.partialorder %v4583, 0.7853982
        %vm4585 = vcmp.lt.s32.totalorder %v1326, 0
        %v4586 = vand.u32 %v1326, 2139095040
        %v4587 = vshrl.u32 %v4586, 23
        %v4588 = vsub.s32 %v4587, 127
        %v4589 = vand.u32 2147483647, %v1326
        %v4590 = vand.u32 %v4589, 8388607
        %v4591 = vor.u32 %v4590, 8388608
        %v4592 = vsub.s32 0, %v4591
        %v4593 = vadd.s32 %v4588, 1
        %vm4594 = vcmp.gt.s32.totalorder %v4593, 0
        %v4595 = vsel %vm4594, %v4593, 0
        %v4596 = vshrl.u32 %v4595, 5
        %v4597 = vand.u32 %v4595, 31
        %v4598 = vsub.s32 32, %v4597
        %v4599 = vshrl.u32 683565275, %v4598
        %v4600 = vshll.u32 683565275, %v4597
        %v4601 = vshrl.u32 2475754826, %v4598
        %v4602 = vor.u32 %v4600, %v4601
        %v4603 = vshll.u32 2475754826, %v4597
        %v4604 = vshrl.u32 2131351028, %v4598
        %v4605 = vor.u32 %v4603, %v4604
        %v4606 = vshll.u32 2131351028, %v4597
        %v4607 = vshrl.u32 2102212464, %v4598
        %v4608 = vor.u32 %v4606, %v4607
        %v4609 = vshll.u32 2102212464, %v4597
        %v4610 = vshrl.u32 920167782, %v4598
        %v4611 = vor.u32 %v4609, %v4610
        %v4612 = vshll.u32 920167782, %v4597
        %v4613 = vshrl.u32 1326507024, %v4598
        %v4614 = vor.u32 %v4612, %v4613
        %vm4615 = vcmp.lt.s32.totalorder %v4596, 1
        %vm4616 = vcmp.lt.s32.totalorder %v4596, 2
        %vm4617 = vcmp.lt.s32.totalorder %v4596, 3
        %vm4618 = vcmp.lt.s32.totalorder %v4596, 4
        %v4619 = vsel %vm4615, %v4599, %v4602
        %v4620 = vsel %vm4618, %v4608, 2102212464
        %v4621 = vsel %vm4617, %v4605, %v4620
        %v4622 = vsel %vm4616, %v4619, %v4621
        %v4623 = vsel %vm4615, %v4602, %v4605
        %v4624 = vsel %vm4618, %v4611, 920167782
        %v4625 = vsel %vm4617, %v4608, %v4624
        %v4626 = vsel %vm4616, %v4623, %v4625
        %v4627 = vsel %vm4615, %v4605, %v4608
        %v4628 = vsel %vm4618, %v4614, 1326507024
        %v4629 = vsel %vm4617, %v4611, %v4628
        %v4630 = vsel %vm4616, %v4627, %v4629
        %v4631 = vshll.u32 %v4591, 8
        %v4632 = vmul.u32.u64.compose %v4631, %v4630
        %v4633 = vextract.low.u32 %v4632
        %v4634 = vextract.high.u32 %v4632
        %v4635 = vmul.u32.u64.compose %v4631, %v4626
        %v4636 = vextract.low.u32 %v4635
        %v4637 = vextract.high.u32 %v4635
        %v4638 = vmul.u32 %v4631, %v4622
        %v4639 = vadd.s32 %v4634, %v4636
        %vm4640 = vc.u32 %v4634, %v4636
        %v4641 = vadd.s32 %v4637, 1
        %v4642 = vsel %vm4640, %v4641, %v4637
        %v4643 = vadd.s32 %v4638, %v4642
        %v4644 = vadd.s32 %v4643, 536870912
        %v4645 = vshrl.u32 %v4644, 30
        %v4646 = vshll.u32 %v4645, 30
        %v4647 = vsub.s32 %v4643, %v4646
        %vm4648 = vcmp.lt.s32.totalorder %v4647, 0
        %v4649 = vsub.s32 0, %v4647
        %v4650 = vsel %vm4648, %v4649, %v4647
        %v4651 = vclz %v4650
        %v4652 = vsub.s32 %v4651, 2
        %vm4653 = vcmp.gt.s32.totalorder 0, %v4652
        %v4654 = vsel %vm4653, 0, %v4652
        %v4655 = vsub.s32 32, %v4654
        %v4656 = vshll.u32 %v4647, %v4654
        %v4657 = vshrl.u32 %v4639, %v4655
        %v4658 = vor.u32 %v4656, %v4657
        %v4659 = vsub.s32 4294967266, %v4654
        %v4660 = vadd.s32 %v4659, 127
        %v4661 = vshll.u32 %v4660, 23
        %v4662 = vor.u32 4788187, %v4661
        %v4663 = vand.u32 2147483647, %v4662
        %v4665 = vcvt.s32.f32 %v4658
        %v4666 = vmul.f32 %v4665, %v4663
        %v4667 = vxor.u32 %v4666, 2147483648
        %v4668 = vsel %vm4585, %v4667, %v4666
        %v4669 = vsub.s32 4, %v4645
        %v4670 = vsel %vm4585, %v4669, %v4645
        %v4671 = vsel %vm4584, %v1326, %v4668
        %v4672 = vsel %vm4584, 0, %v4670
        %v4673 = vcosq.f32.pop %v4671
        %v4674 = vsinq.f32.pop %v4671
        %vm4675 = vweird.f32 %v1326
        %v4676 = vadd.s32 %v4672, 3
        %v4677 = vand.u32 %v4676, 3
        %vm4678 = vcmp.lt.s32.totalorder %v4677, 2
        %vm4679 = vcmp.eq.s32.totalorder %v4677, 0
        %v4680 = vxor.u32 %v4674, 2147483648
        %v4681 = vsel %vm4679, %v4673, %v4680
        %vm4682 = vcmp.eq.s32.totalorder %v4677, 2
        %v4683 = vxor.u32 %v4673, 2147483648
        %v4684 = vsel %vm4682, %v4683, %v4674
        %v4685 = vsel %vm4678, %v4681, %v4684
        %v4686 = vsel %vm4675, nan, %v4685
        %v4687 = vand.u32 2147483647, %v1327
        %vm4688 = vcmp.le.f32.partialorder %v4687, 0.7853982
        %vm4689 = vcmp.lt.s32.totalorder %v1327, 0
        %v4690 = vand.u32 %v1327, 2139095040
        %v4691 = vshrl.u32 %v4690, 23
        %v4692 = vsub.s32 %v4691, 127
        %v4693 = vand.u32 2147483647, %v1327
        %v4694 = vand.u32 %v4693, 8388607
        %v4695 = vor.u32 %v4694, 8388608
        %v4696 = vsub.s32 0, %v4695
        %v4697 = vadd.s32 %v4692, 1
        %vm4698 = vcmp.gt.s32.totalorder %v4697, 0
        %v4699 = vsel %vm4698, %v4697, 0
        %v4700 = vshrl.u32 %v4699, 5
        %v4701 = vand.u32 %v4699, 31
        %v4702 = vsub.s32 32, %v4701
        %v4703 = vshrl.u32 683565275, %v4702
        %v4704 = vshll.u32 683565275, %v4701
        %v4705 = vshrl.u32 2475754826, %v4702
        %v4706 = vor.u32 %v4704, %v4705
        %v4707 = vshll.u32 2475754826, %v4701
        %v4708 = vshrl.u32 2131351028, %v4702
        %v4709 = vor.u32 %v4707, %v4708
        %v4710 = vshll.u32 2131351028, %v4701
        %v4711 = vshrl.u32 2102212464, %v4702
        %v4712 = vor.u32 %v4710, %v4711
        %v4713 = vshll.u32 2102212464, %v4701
        %v4714 = vshrl.u32 920167782, %v4702
        %v4715 = vor.u32 %v4713, %v4714
        %v4716 = vshll.u32 920167782, %v4701
        %v4717 = vshrl.u32 1326507024, %v4702
        %v4718 = vor.u32 %v4716, %v4717
        %vm4719 = vcmp.lt.s32.totalorder %v4700, 1
        %vm4720 = vcmp.lt.s32.totalorder %v4700, 2
        %vm4721 = vcmp.lt.s32.totalorder %v4700, 3
        %vm4722 = vcmp.lt.s32.totalorder %v4700, 4
        %v4723 = vsel %vm4719, %v4703, %v4706
        %v4724 = vsel %vm4722, %v4712, 2102212464
        %v4725 = vsel %vm4721, %v4709, %v4724
        %v4726 = vsel %vm4720, %v4723, %v4725
        %v4727 = vsel %vm4719, %v4706, %v4709
        %v4728 = vsel %vm4722, %v4715, 920167782
        %v4729 = vsel %vm4721, %v4712, %v4728
        %v4730 = vsel %vm4720, %v4727, %v4729
        %v4731 = vsel %vm4719, %v4709, %v4712
        %v4732 = vsel %vm4722, %v4718, 1326507024
        %v4733 = vsel %vm4721, %v4715, %v4732
        %v4734 = vsel %vm4720, %v4731, %v4733
        %v4735 = vshll.u32 %v4695, 8
        %v4736 = vmul.u32.u64.compose %v4735, %v4734
        %v4737 = vextract.low.u32 %v4736
        %v4738 = vextract.high.u32 %v4736
        %v4739 = vmul.u32.u64.compose %v4735, %v4730
        %v4740 = vextract.low.u32 %v4739
        %v4741 = vextract.high.u32 %v4739
        %v4742 = vmul.u32 %v4735, %v4726
        %v4743 = vadd.s32 %v4738, %v4740
        %vm4744 = vc.u32 %v4738, %v4740
        %v4745 = vadd.s32 %v4741, 1
        %v4746 = vsel %vm4744, %v4745, %v4741
        %v4747 = vadd.s32 %v4742, %v4746
        %v4748 = vadd.s32 %v4747, 536870912
        %v4749 = vshrl.u32 %v4748, 30
        %v4750 = vshll.u32 %v4749, 30
        %v4751 = vsub.s32 %v4747, %v4750
        %vm4752 = vcmp.lt.s32.totalorder %v4751, 0
        %v4753 = vsub.s32 0, %v4751
        %v4754 = vsel %vm4752, %v4753, %v4751
        %v4755 = vclz %v4754
        %v4756 = vsub.s32 %v4755, 2
        %vm4757 = vcmp.gt.s32.totalorder 0, %v4756
        %v4758 = vsel %vm4757, 0, %v4756
        %v4759 = vsub.s32 32, %v4758
        %v4760 = vshll.u32 %v4751, %v4758
        %v4761 = vshrl.u32 %v4743, %v4759
        %v4762 = vor.u32 %v4760, %v4761
        %v4763 = vsub.s32 4294967266, %v4758
        %v4764 = vadd.s32 %v4763, 127
        %v4765 = vshll.u32 %v4764, 23
        %v4766 = vor.u32 4788187, %v4765
        %v4767 = vand.u32 2147483647, %v4766
        %v4769 = vcvt.s32.f32 %v4762
        %v4770 = vmul.f32 %v4769, %v4767
        %v4771 = vxor.u32 %v4770, 2147483648
        %v4772 = vsel %vm4689, %v4771, %v4770
        %v4773 = vsub.s32 4, %v4749
        %v4774 = vsel %vm4689, %v4773, %v4749
        %v4775 = vsel %vm4688, %v1327, %v4772
        %v4776 = vsel %vm4688, 0, %v4774
        %v4777 = vcosq.f32.pop %v4775
        %v4778 = vsinq.f32.pop %v4775
        %vm4779 = vweird.f32 %v1327
        %v4780 = vadd.s32 %v4776, 3
        %v4781 = vand.u32 %v4780, 3
        %vm4782 = vcmp.lt.s32.totalorder %v4781, 2
        %vm4783 = vcmp.eq.s32.totalorder %v4781, 0
        %v4784 = vxor.u32 %v4778, 2147483648
        %v4785 = vsel %vm4783, %v4777, %v4784
        %vm4786 = vcmp.eq.s32.totalorder %v4781, 2
        %v4787 = vxor.u32 %v4777, 2147483648
        %v4788 = vsel %vm4786, %v4787, %v4778
        %v4789 = vsel %vm4782, %v4785, %v4788
        %v4790 = vsel %vm4779, nan, %v4789
        %v4791 = vand.u32 2147483647, %v1328
        %vm4792 = vcmp.le.f32.partialorder %v4791, 0.7853982
        %vm4793 = vcmp.lt.s32.totalorder %v1328, 0
        %v4794 = vand.u32 %v1328, 2139095040
        %v4795 = vshrl.u32 %v4794, 23
        %v4796 = vsub.s32 %v4795, 127
        %v4797 = vand.u32 2147483647, %v1328
        %v4798 = vand.u32 %v4797, 8388607
        %v4799 = vor.u32 %v4798, 8388608
        %v4800 = vsub.s32 0, %v4799
        %v4801 = vadd.s32 %v4796, 1
        %vm4802 = vcmp.gt.s32.totalorder %v4801, 0
        %v4803 = vsel %vm4802, %v4801, 0
        %v4804 = vshrl.u32 %v4803, 5
        %v4805 = vand.u32 %v4803, 31
        %v4806 = vsub.s32 32, %v4805
        %v4807 = vshrl.u32 683565275, %v4806
        %v4808 = vshll.u32 683565275, %v4805
        %v4809 = vshrl.u32 2475754826, %v4806
        %v4810 = vor.u32 %v4808, %v4809
        %v4811 = vshll.u32 2475754826, %v4805
        %v4812 = vshrl.u32 2131351028, %v4806
        %v4813 = vor.u32 %v4811, %v4812
        %v4814 = vshll.u32 2131351028, %v4805
        %v4815 = vshrl.u32 2102212464, %v4806
        %v4816 = vor.u32 %v4814, %v4815
        %v4817 = vshll.u32 2102212464, %v4805
        %v4818 = vshrl.u32 920167782, %v4806
        %v4819 = vor.u32 %v4817, %v4818
        %v4820 = vshll.u32 920167782, %v4805
        %v4821 = vshrl.u32 1326507024, %v4806
        %v4822 = vor.u32 %v4820, %v4821
        %vm4823 = vcmp.lt.s32.totalorder %v4804, 1
        %vm4824 = vcmp.lt.s32.totalorder %v4804, 2
        %vm4825 = vcmp.lt.s32.totalorder %v4804, 3
        %vm4826 = vcmp.lt.s32.totalorder %v4804, 4
        %v4827 = vsel %vm4823, %v4807, %v4810
        %v4828 = vsel %vm4826, %v4816, 2102212464
        %v4829 = vsel %vm4825, %v4813, %v4828
        %v4830 = vsel %vm4824, %v4827, %v4829
        %v4831 = vsel %vm4823, %v4810, %v4813
        %v4832 = vsel %vm4826, %v4819, 920167782
        %v4833 = vsel %vm4825, %v4816, %v4832
        %v4834 = vsel %vm4824, %v4831, %v4833
        %v4835 = vsel %vm4823, %v4813, %v4816
        %v4836 = vsel %vm4826, %v4822, 1326507024
        %v4837 = vsel %vm4825, %v4819, %v4836
        %v4838 = vsel %vm4824, %v4835, %v4837
        %v4839 = vshll.u32 %v4799, 8
        %v4840 = vmul.u32.u64.compose %v4839, %v4838
        %v4841 = vextract.low.u32 %v4840
        %v4842 = vextract.high.u32 %v4840
        %v4843 = vmul.u32.u64.compose %v4839, %v4834
        %v4844 = vextract.low.u32 %v4843
        %v4845 = vextract.high.u32 %v4843
        %v4846 = vmul.u32 %v4839, %v4830
        %v4847 = vadd.s32 %v4842, %v4844
        %vm4848 = vc.u32 %v4842, %v4844
        %v4849 = vadd.s32 %v4845, 1
        %v4850 = vsel %vm4848, %v4849, %v4845
        %v4851 = vadd.s32 %v4846, %v4850
        %v4852 = vadd.s32 %v4851, 536870912
        %v4853 = vshrl.u32 %v4852, 30
        %v4854 = vshll.u32 %v4853, 30
        %v4855 = vsub.s32 %v4851, %v4854
        %vm4856 = vcmp.lt.s32.totalorder %v4855, 0
        %v4857 = vsub.s32 0, %v4855
        %v4858 = vsel %vm4856, %v4857, %v4855
        %v4859 = vclz %v4858
        %v4860 = vsub.s32 %v4859, 2
        %vm4861 = vcmp.gt.s32.totalorder 0, %v4860
        %v4862 = vsel %vm4861, 0, %v4860
        %v4863 = vsub.s32 32, %v4862
        %v4864 = vshll.u32 %v4855, %v4862
        %v4865 = vshrl.u32 %v4847, %v4863
        %v4866 = vor.u32 %v4864, %v4865
        %v4867 = vsub.s32 4294967266, %v4862
        %v4868 = vadd.s32 %v4867, 127
        %v4869 = vshll.u32 %v4868, 23
        %v4870 = vor.u32 4788187, %v4869
        %v4871 = vand.u32 2147483647, %v4870
        %v4873 = vcvt.s32.f32 %v4866
        %v4874 = vmul.f32 %v4873, %v4871
        %v4875 = vxor.u32 %v4874, 2147483648
        %v4876 = vsel %vm4793, %v4875, %v4874
        %v4877 = vsub.s32 4, %v4853
        %v4878 = vsel %vm4793, %v4877, %v4853
        %v4879 = vsel %vm4792, %v1328, %v4876
        %v4880 = vsel %vm4792, 0, %v4878
        %v4881 = vcosq.f32.pop %v4879
        %v4882 = vsinq.f32.pop %v4879
        %vm4883 = vweird.f32 %v1328
        %v4884 = vadd.s32 %v4880, 3
        %v4885 = vand.u32 %v4884, 3
        %vm4886 = vcmp.lt.s32.totalorder %v4885, 2
        %vm4887 = vcmp.eq.s32.totalorder %v4885, 0
        %v4888 = vxor.u32 %v4882, 2147483648
        %v4889 = vsel %vm4887, %v4881, %v4888
        %vm4890 = vcmp.eq.s32.totalorder %v4885, 2
        %v4891 = vxor.u32 %v4881, 2147483648
        %v4892 = vsel %vm4890, %v4891, %v4882
        %v4893 = vsel %vm4886, %v4889, %v4892
        %v4894 = vsel %vm4883, nan, %v4893
        %v4895 = vand.u32 2147483647, %v1329
        %vm4896 = vcmp.le.f32.partialorder %v4895, 0.7853982
        %vm4897 = vcmp.lt.s32.totalorder %v1329, 0
        %v4898 = vand.u32 %v1329, 2139095040
        %v4899 = vshrl.u32 %v4898, 23
        %v4900 = vsub.s32 %v4899, 127
        %v4901 = vand.u32 2147483647, %v1329
        %v4902 = vand.u32 %v4901, 8388607
        %v4903 = vor.u32 %v4902, 8388608
        %v4904 = vsub.s32 0, %v4903
        %v4905 = vadd.s32 %v4900, 1
        %vm4906 = vcmp.gt.s32.totalorder %v4905, 0
        %v4907 = vsel %vm4906, %v4905, 0
        %v4908 = vshrl.u32 %v4907, 5
        %v4909 = vand.u32 %v4907, 31
        %v4910 = vsub.s32 32, %v4909
        %v4911 = vshrl.u32 683565275, %v4910
        %v4912 = vshll.u32 683565275, %v4909
        %v4913 = vshrl.u32 2475754826, %v4910
        %v4914 = vor.u32 %v4912, %v4913
        %v4915 = vshll.u32 2475754826, %v4909
        %v4916 = vshrl.u32 2131351028, %v4910
        %v4917 = vor.u32 %v4915, %v4916
        %v4918 = vshll.u32 2131351028, %v4909
        %v4919 = vshrl.u32 2102212464, %v4910
        %v4920 = vor.u32 %v4918, %v4919
        %v4921 = vshll.u32 2102212464, %v4909
        %v4922 = vshrl.u32 920167782, %v4910
        %v4923 = vor.u32 %v4921, %v4922
        %v4924 = vshll.u32 920167782, %v4909
        %v4925 = vshrl.u32 1326507024, %v4910
        %v4926 = vor.u32 %v4924, %v4925
        %vm4927 = vcmp.lt.s32.totalorder %v4908, 1
        %vm4928 = vcmp.lt.s32.totalorder %v4908, 2
        %vm4929 = vcmp.lt.s32.totalorder %v4908, 3
        %vm4930 = vcmp.lt.s32.totalorder %v4908, 4
        %v4931 = vsel %vm4927, %v4911, %v4914
        %v4932 = vsel %vm4930, %v4920, 2102212464
        %v4933 = vsel %vm4929, %v4917, %v4932
        %v4934 = vsel %vm4928, %v4931, %v4933
        %v4935 = vsel %vm4927, %v4914, %v4917
        %v4936 = vsel %vm4930, %v4923, 920167782
        %v4937 = vsel %vm4929, %v4920, %v4936
        %v4938 = vsel %vm4928, %v4935, %v4937
        %v4939 = vsel %vm4927, %v4917, %v4920
        %v4940 = vsel %vm4930, %v4926, 1326507024
        %v4941 = vsel %vm4929, %v4923, %v4940
        %v4942 = vsel %vm4928, %v4939, %v4941
        %v4943 = vshll.u32 %v4903, 8
        %v4944 = vmul.u32.u64.compose %v4943, %v4942
        %v4945 = vextract.low.u32 %v4944
        %v4946 = vextract.high.u32 %v4944
        %v4947 = vmul.u32.u64.compose %v4943, %v4938
        %v4948 = vextract.low.u32 %v4947
        %v4949 = vextract.high.u32 %v4947
        %v4950 = vmul.u32 %v4943, %v4934
        %v4951 = vadd.s32 %v4946, %v4948
        %vm4952 = vc.u32 %v4946, %v4948
        %v4953 = vadd.s32 %v4949, 1
        %v4954 = vsel %vm4952, %v4953, %v4949
        %v4955 = vadd.s32 %v4950, %v4954
        %v4956 = vadd.s32 %v4955, 536870912
        %v4957 = vshrl.u32 %v4956, 30
        %v4958 = vshll.u32 %v4957, 30
        %v4959 = vsub.s32 %v4955, %v4958
        %vm4960 = vcmp.lt.s32.totalorder %v4959, 0
        %v4961 = vsub.s32 0, %v4959
        %v4962 = vsel %vm4960, %v4961, %v4959
        %v4963 = vclz %v4962
        %v4964 = vsub.s32 %v4963, 2
        %vm4965 = vcmp.gt.s32.totalorder 0, %v4964
        %v4966 = vsel %vm4965, 0, %v4964
        %v4967 = vsub.s32 32, %v4966
        %v4968 = vshll.u32 %v4959, %v4966
        %v4969 = vshrl.u32 %v4951, %v4967
        %v4970 = vor.u32 %v4968, %v4969
        %v4971 = vsub.s32 4294967266, %v4966
        %v4972 = vadd.s32 %v4971, 127
        %v4973 = vshll.u32 %v4972, 23
        %v4974 = vor.u32 4788187, %v4973
        %v4975 = vand.u32 2147483647, %v4974
        %v4977 = vcvt.s32.f32 %v4970
        %v4978 = vmul.f32 %v4977, %v4975
        %v4979 = vxor.u32 %v4978, 2147483648
        %v4980 = vsel %vm4897, %v4979, %v4978
        %v4981 = vsub.s32 4, %v4957
        %v4982 = vsel %vm4897, %v4981, %v4957
        %v4983 = vsel %vm4896, %v1329, %v4980
        %v4984 = vsel %vm4896, 0, %v4982
        %v4985 = vcosq.f32.pop %v4983
        %v4986 = vsinq.f32.pop %v4983
        %vm4987 = vweird.f32 %v1329
        %v4988 = vadd.s32 %v4984, 3
        %v4989 = vand.u32 %v4988, 3
        %vm4990 = vcmp.lt.s32.totalorder %v4989, 2
        %vm4991 = vcmp.eq.s32.totalorder %v4989, 0
        %v4992 = vxor.u32 %v4986, 2147483648
        %v4993 = vsel %vm4991, %v4985, %v4992
        %vm4994 = vcmp.eq.s32.totalorder %v4989, 2
        %v4995 = vxor.u32 %v4985, 2147483648
        %v4996 = vsel %vm4994, %v4995, %v4986
        %v4997 = vsel %vm4990, %v4993, %v4996
        %v4998 = vsel %vm4987, nan, %v4997
        %v4999 = vand.u32 2147483647, %v1330
        %vm5000 = vcmp.le.f32.partialorder %v4999, 0.7853982
        %vm5001 = vcmp.lt.s32.totalorder %v1330, 0
        %v5002 = vand.u32 %v1330, 2139095040
        %v5003 = vshrl.u32 %v5002, 23
        %v5004 = vsub.s32 %v5003, 127
        %v5005 = vand.u32 2147483647, %v1330
        %v5006 = vand.u32 %v5005, 8388607
        %v5007 = vor.u32 %v5006, 8388608
        %v5008 = vsub.s32 0, %v5007
        %v5009 = vadd.s32 %v5004, 1
        %vm5010 = vcmp.gt.s32.totalorder %v5009, 0
        %v5011 = vsel %vm5010, %v5009, 0
        %v5012 = vshrl.u32 %v5011, 5
        %v5013 = vand.u32 %v5011, 31
        %v5014 = vsub.s32 32, %v5013
        %v5015 = vshrl.u32 683565275, %v5014
        %v5016 = vshll.u32 683565275, %v5013
        %v5017 = vshrl.u32 2475754826, %v5014
        %v5018 = vor.u32 %v5016, %v5017
        %v5019 = vshll.u32 2475754826, %v5013
        %v5020 = vshrl.u32 2131351028, %v5014
        %v5021 = vor.u32 %v5019, %v5020
        %v5022 = vshll.u32 2131351028, %v5013
        %v5023 = vshrl.u32 2102212464, %v5014
        %v5024 = vor.u32 %v5022, %v5023
        %v5025 = vshll.u32 2102212464, %v5013
        %v5026 = vshrl.u32 920167782, %v5014
        %v5027 = vor.u32 %v5025, %v5026
        %v5028 = vshll.u32 920167782, %v5013
        %v5029 = vshrl.u32 1326507024, %v5014
        %v5030 = vor.u32 %v5028, %v5029
        %vm5031 = vcmp.lt.s32.totalorder %v5012, 1
        %vm5032 = vcmp.lt.s32.totalorder %v5012, 2
        %vm5033 = vcmp.lt.s32.totalorder %v5012, 3
        %vm5034 = vcmp.lt.s32.totalorder %v5012, 4
        %v5035 = vsel %vm5031, %v5015, %v5018
        %v5036 = vsel %vm5034, %v5024, 2102212464
        %v5037 = vsel %vm5033, %v5021, %v5036
        %v5038 = vsel %vm5032, %v5035, %v5037
        %v5039 = vsel %vm5031, %v5018, %v5021
        %v5040 = vsel %vm5034, %v5027, 920167782
        %v5041 = vsel %vm5033, %v5024, %v5040
        %v5042 = vsel %vm5032, %v5039, %v5041
        %v5043 = vsel %vm5031, %v5021, %v5024
        %v5044 = vsel %vm5034, %v5030, 1326507024
        %v5045 = vsel %vm5033, %v5027, %v5044
        %v5046 = vsel %vm5032, %v5043, %v5045
        %v5047 = vshll.u32 %v5007, 8
        %v5048 = vmul.u32.u64.compose %v5047, %v5046
        %v5049 = vextract.low.u32 %v5048
        %v5050 = vextract.high.u32 %v5048
        %v5051 = vmul.u32.u64.compose %v5047, %v5042
        %v5052 = vextract.low.u32 %v5051
        %v5053 = vextract.high.u32 %v5051
        %v5054 = vmul.u32 %v5047, %v5038
        %v5055 = vadd.s32 %v5050, %v5052
        %vm5056 = vc.u32 %v5050, %v5052
        %v5057 = vadd.s32 %v5053, 1
        %v5058 = vsel %vm5056, %v5057, %v5053
        %v5059 = vadd.s32 %v5054, %v5058
        %v5060 = vadd.s32 %v5059, 536870912
        %v5061 = vshrl.u32 %v5060, 30
        %v5062 = vshll.u32 %v5061, 30
        %v5063 = vsub.s32 %v5059, %v5062
        %vm5064 = vcmp.lt.s32.totalorder %v5063, 0
        %v5065 = vsub.s32 0, %v5063
        %v5066 = vsel %vm5064, %v5065, %v5063
        %v5067 = vclz %v5066
        %v5068 = vsub.s32 %v5067, 2
        %vm5069 = vcmp.gt.s32.totalorder 0, %v5068
        %v5070 = vsel %vm5069, 0, %v5068
        %v5071 = vsub.s32 32, %v5070
        %v5072 = vshll.u32 %v5063, %v5070
        %v5073 = vshrl.u32 %v5055, %v5071
        %v5074 = vor.u32 %v5072, %v5073
        %v5075 = vsub.s32 4294967266, %v5070
        %v5076 = vadd.s32 %v5075, 127
        %v5077 = vshll.u32 %v5076, 23
        %v5078 = vor.u32 4788187, %v5077
        %v5079 = vand.u32 2147483647, %v5078
        %v5081 = vcvt.s32.f32 %v5074
        %v5082 = vmul.f32 %v5081, %v5079
        %v5083 = vxor.u32 %v5082, 2147483648
        %v5084 = vsel %vm5001, %v5083, %v5082
        %v5085 = vsub.s32 4, %v5061
        %v5086 = vsel %vm5001, %v5085, %v5061
        %v5087 = vsel %vm5000, %v1330, %v5084
        %v5088 = vsel %vm5000, 0, %v5086
        %v5089 = vcosq.f32.pop %v5087
        %v5090 = vsinq.f32.pop %v5087
        %vm5091 = vweird.f32 %v1330
        %v5092 = vadd.s32 %v5088, 3
        %v5093 = vand.u32 %v5092, 3
        %vm5094 = vcmp.lt.s32.totalorder %v5093, 2
        %vm5095 = vcmp.eq.s32.totalorder %v5093, 0
        %v5096 = vxor.u32 %v5090, 2147483648
        %v5097 = vsel %vm5095, %v5089, %v5096
        %vm5098 = vcmp.eq.s32.totalorder %v5093, 2
        %v5099 = vxor.u32 %v5089, 2147483648
        %v5100 = vsel %vm5098, %v5099, %v5090
        %v5101 = vsel %vm5094, %v5097, %v5100
        %v5102 = vsel %vm5091, nan, %v5101
        %v5103 = vand.u32 2147483647, %v1331
        %vm5104 = vcmp.le.f32.partialorder %v5103, 0.7853982
        %vm5105 = vcmp.lt.s32.totalorder %v1331, 0
        %v5106 = vand.u32 %v1331, 2139095040
        %v5107 = vshrl.u32 %v5106, 23
        %v5108 = vsub.s32 %v5107, 127
        %v5109 = vand.u32 2147483647, %v1331
        %v5110 = vand.u32 %v5109, 8388607
        %v5111 = vor.u32 %v5110, 8388608
        %v5112 = vsub.s32 0, %v5111
        %v5113 = vadd.s32 %v5108, 1
        %vm5114 = vcmp.gt.s32.totalorder %v5113, 0
        %v5115 = vsel %vm5114, %v5113, 0
        %v5116 = vshrl.u32 %v5115, 5
        %v5117 = vand.u32 %v5115, 31
        %v5118 = vsub.s32 32, %v5117
        %v5119 = vshrl.u32 683565275, %v5118
        %v5120 = vshll.u32 683565275, %v5117
        %v5121 = vshrl.u32 2475754826, %v5118
        %v5122 = vor.u32 %v5120, %v5121
        %v5123 = vshll.u32 2475754826, %v5117
        %v5124 = vshrl.u32 2131351028, %v5118
        %v5125 = vor.u32 %v5123, %v5124
        %v5126 = vshll.u32 2131351028, %v5117
        %v5127 = vshrl.u32 2102212464, %v5118
        %v5128 = vor.u32 %v5126, %v5127
        %v5129 = vshll.u32 2102212464, %v5117
        %v5130 = vshrl.u32 920167782, %v5118
        %v5131 = vor.u32 %v5129, %v5130
        %v5132 = vshll.u32 920167782, %v5117
        %v5133 = vshrl.u32 1326507024, %v5118
        %v5134 = vor.u32 %v5132, %v5133
        %vm5135 = vcmp.lt.s32.totalorder %v5116, 1
        %vm5136 = vcmp.lt.s32.totalorder %v5116, 2
        %vm5137 = vcmp.lt.s32.totalorder %v5116, 3
        %vm5138 = vcmp.lt.s32.totalorder %v5116, 4
        %v5139 = vsel %vm5135, %v5119, %v5122
        %v5140 = vsel %vm5138, %v5128, 2102212464
        %v5141 = vsel %vm5137, %v5125, %v5140
        %v5142 = vsel %vm5136, %v5139, %v5141
        %v5143 = vsel %vm5135, %v5122, %v5125
        %v5144 = vsel %vm5138, %v5131, 920167782
        %v5145 = vsel %vm5137, %v5128, %v5144
        %v5146 = vsel %vm5136, %v5143, %v5145
        %v5147 = vsel %vm5135, %v5125, %v5128
        %v5148 = vsel %vm5138, %v5134, 1326507024
        %v5149 = vsel %vm5137, %v5131, %v5148
        %v5150 = vsel %vm5136, %v5147, %v5149
        %v5151 = vshll.u32 %v5111, 8
        %v5152 = vmul.u32.u64.compose %v5151, %v5150
        %v5153 = vextract.low.u32 %v5152
        %v5154 = vextract.high.u32 %v5152
        %v5155 = vmul.u32.u64.compose %v5151, %v5146
        %v5156 = vextract.low.u32 %v5155
        %v5157 = vextract.high.u32 %v5155
        %v5158 = vmul.u32 %v5151, %v5142
        %v5159 = vadd.s32 %v5154, %v5156
        %vm5160 = vc.u32 %v5154, %v5156
        %v5161 = vadd.s32 %v5157, 1
        %v5162 = vsel %vm5160, %v5161, %v5157
        %v5163 = vadd.s32 %v5158, %v5162
        %v5164 = vadd.s32 %v5163, 536870912
        %v5165 = vshrl.u32 %v5164, 30
        %v5166 = vshll.u32 %v5165, 30
        %v5167 = vsub.s32 %v5163, %v5166
        %vm5168 = vcmp.lt.s32.totalorder %v5167, 0
        %v5169 = vsub.s32 0, %v5167
        %v5170 = vsel %vm5168, %v5169, %v5167
        %v5171 = vclz %v5170
        %v5172 = vsub.s32 %v5171, 2
        %vm5173 = vcmp.gt.s32.totalorder 0, %v5172
        %v5174 = vsel %vm5173, 0, %v5172
        %v5175 = vsub.s32 32, %v5174
        %v5176 = vshll.u32 %v5167, %v5174
        %v5177 = vshrl.u32 %v5159, %v5175
        %v5178 = vor.u32 %v5176, %v5177
        %v5179 = vsub.s32 4294967266, %v5174
        %v5180 = vadd.s32 %v5179, 127
        %v5181 = vshll.u32 %v5180, 23
        %v5182 = vor.u32 4788187, %v5181
        %v5183 = vand.u32 2147483647, %v5182
        %v5185 = vcvt.s32.f32 %v5178
        %v5186 = vmul.f32 %v5185, %v5183
        %v5187 = vxor.u32 %v5186, 2147483648
        %v5188 = vsel %vm5105, %v5187, %v5186
        %v5189 = vsub.s32 4, %v5165
        %v5190 = vsel %vm5105, %v5189, %v5165
        %v5191 = vsel %vm5104, %v1331, %v5188
        %v5192 = vsel %vm5104, 0, %v5190
        %v5193 = vcosq.f32.pop %v5191
        %v5194 = vsinq.f32.pop %v5191
        %vm5195 = vweird.f32 %v1331
        %v5196 = vadd.s32 %v5192, 3
        %v5197 = vand.u32 %v5196, 3
        %vm5198 = vcmp.lt.s32.totalorder %v5197, 2
        %vm5199 = vcmp.eq.s32.totalorder %v5197, 0
        %v5200 = vxor.u32 %v5194, 2147483648
        %v5201 = vsel %vm5199, %v5193, %v5200
        %vm5202 = vcmp.eq.s32.totalorder %v5197, 2
        %v5203 = vxor.u32 %v5193, 2147483648
        %v5204 = vsel %vm5202, %v5203, %v5194
        %v5205 = vsel %vm5198, %v5201, %v5204
        %v5206 = vsel %vm5195, nan, %v5205
        %v5207 = vand.u32 2147483647, %v1332
        %vm5208 = vcmp.le.f32.partialorder %v5207, 0.7853982
        %vm5209 = vcmp.lt.s32.totalorder %v1332, 0
        %v5210 = vand.u32 %v1332, 2139095040
        %v5211 = vshrl.u32 %v5210, 23
        %v5212 = vsub.s32 %v5211, 127
        %v5213 = vand.u32 2147483647, %v1332
        %v5214 = vand.u32 %v5213, 8388607
        %v5215 = vor.u32 %v5214, 8388608
        %v5216 = vsub.s32 0, %v5215
        %v5217 = vadd.s32 %v5212, 1
        %vm5218 = vcmp.gt.s32.totalorder %v5217, 0
        %v5219 = vsel %vm5218, %v5217, 0
        %v5220 = vshrl.u32 %v5219, 5
        %v5221 = vand.u32 %v5219, 31
        %v5222 = vsub.s32 32, %v5221
        %v5223 = vshrl.u32 683565275, %v5222
        %v5224 = vshll.u32 683565275, %v5221
        %v5225 = vshrl.u32 2475754826, %v5222
        %v5226 = vor.u32 %v5224, %v5225
        %v5227 = vshll.u32 2475754826, %v5221
        %v5228 = vshrl.u32 2131351028, %v5222
        %v5229 = vor.u32 %v5227, %v5228
        %v5230 = vshll.u32 2131351028, %v5221
        %v5231 = vshrl.u32 2102212464, %v5222
        %v5232 = vor.u32 %v5230, %v5231
        %v5233 = vshll.u32 2102212464, %v5221
        %v5234 = vshrl.u32 920167782, %v5222
        %v5235 = vor.u32 %v5233, %v5234
        %v5236 = vshll.u32 920167782, %v5221
        %v5237 = vshrl.u32 1326507024, %v5222
        %v5238 = vor.u32 %v5236, %v5237
        %vm5239 = vcmp.lt.s32.totalorder %v5220, 1
        %vm5240 = vcmp.lt.s32.totalorder %v5220, 2
        %vm5241 = vcmp.lt.s32.totalorder %v5220, 3
        %vm5242 = vcmp.lt.s32.totalorder %v5220, 4
        %v5243 = vsel %vm5239, %v5223, %v5226
        %v5244 = vsel %vm5242, %v5232, 2102212464
        %v5245 = vsel %vm5241, %v5229, %v5244
        %v5246 = vsel %vm5240, %v5243, %v5245
        %v5247 = vsel %vm5239, %v5226, %v5229
        %v5248 = vsel %vm5242, %v5235, 920167782
        %v5249 = vsel %vm5241, %v5232, %v5248
        %v5250 = vsel %vm5240, %v5247, %v5249
        %v5251 = vsel %vm5239, %v5229, %v5232
        %v5252 = vsel %vm5242, %v5238, 1326507024
        %v5253 = vsel %vm5241, %v5235, %v5252
        %v5254 = vsel %vm5240, %v5251, %v5253
        %v5255 = vshll.u32 %v5215, 8
        %v5256 = vmul.u32.u64.compose %v5255, %v5254
        %v5257 = vextract.low.u32 %v5256
        %v5258 = vextract.high.u32 %v5256
        %v5259 = vmul.u32.u64.compose %v5255, %v5250
        %v5260 = vextract.low.u32 %v5259
        %v5261 = vextract.high.u32 %v5259
        %v5262 = vmul.u32 %v5255, %v5246
        %v5263 = vadd.s32 %v5258, %v5260
        %vm5264 = vc.u32 %v5258, %v5260
        %v5265 = vadd.s32 %v5261, 1
        %v5266 = vsel %vm5264, %v5265, %v5261
        %v5267 = vadd.s32 %v5262, %v5266
        %v5268 = vadd.s32 %v5267, 536870912
        %v5269 = vshrl.u32 %v5268, 30
        %v5270 = vshll.u32 %v5269, 30
        %v5271 = vsub.s32 %v5267, %v5270
        %vm5272 = vcmp.lt.s32.totalorder %v5271, 0
        %v5273 = vsub.s32 0, %v5271
        %v5274 = vsel %vm5272, %v5273, %v5271
        %v5275 = vclz %v5274
        %v5276 = vsub.s32 %v5275, 2
        %vm5277 = vcmp.gt.s32.totalorder 0, %v5276
        %v5278 = vsel %vm5277, 0, %v5276
        %v5279 = vsub.s32 32, %v5278
        %v5280 = vshll.u32 %v5271, %v5278
        %v5281 = vshrl.u32 %v5263, %v5279
        %v5282 = vor.u32 %v5280, %v5281
        %v5283 = vsub.s32 4294967266, %v5278
        %v5284 = vadd.s32 %v5283, 127
        %v5285 = vshll.u32 %v5284, 23
        %v5286 = vor.u32 4788187, %v5285
        %v5287 = vand.u32 2147483647, %v5286
        %v5289 = vcvt.s32.f32 %v5282
        %v5290 = vmul.f32 %v5289, %v5287
        %v5291 = vxor.u32 %v5290, 2147483648
        %v5292 = vsel %vm5209, %v5291, %v5290
        %v5293 = vsub.s32 4, %v5269
        %v5294 = vsel %vm5209, %v5293, %v5269
        %v5295 = vsel %vm5208, %v1332, %v5292
        %v5296 = vsel %vm5208, 0, %v5294
        %v5297 = vcosq.f32.pop %v5295
        %v5298 = vsinq.f32.pop %v5295
        %vm5299 = vweird.f32 %v1332
        %v5300 = vadd.s32 %v5296, 3
        %v5301 = vand.u32 %v5300, 3
        %vm5302 = vcmp.lt.s32.totalorder %v5301, 2
        %vm5303 = vcmp.eq.s32.totalorder %v5301, 0
        %v5304 = vxor.u32 %v5298, 2147483648
        %v5305 = vsel %vm5303, %v5297, %v5304
        %vm5306 = vcmp.eq.s32.totalorder %v5301, 2
        %v5307 = vxor.u32 %v5297, 2147483648
        %v5308 = vsel %vm5306, %v5307, %v5298
        %v5309 = vsel %vm5302, %v5305, %v5308
        %v5310 = vsel %vm5299, nan, %v5309
        %v5311 = vand.u32 2147483647, %v1333
        %vm5312 = vcmp.le.f32.partialorder %v5311, 0.7853982
        %vm5313 = vcmp.lt.s32.totalorder %v1333, 0
        %v5314 = vand.u32 %v1333, 2139095040
        %v5315 = vshrl.u32 %v5314, 23
        %v5316 = vsub.s32 %v5315, 127
        %v5317 = vand.u32 2147483647, %v1333
        %v5318 = vand.u32 %v5317, 8388607
        %v5319 = vor.u32 %v5318, 8388608
        %v5320 = vsub.s32 0, %v5319
        %v5321 = vadd.s32 %v5316, 1
        %vm5322 = vcmp.gt.s32.totalorder %v5321, 0
        %v5323 = vsel %vm5322, %v5321, 0
        %v5324 = vshrl.u32 %v5323, 5
        %v5325 = vand.u32 %v5323, 31
        %v5326 = vsub.s32 32, %v5325
        %v5327 = vshrl.u32 683565275, %v5326
        %v5328 = vshll.u32 683565275, %v5325
        %v5329 = vshrl.u32 2475754826, %v5326
        %v5330 = vor.u32 %v5328, %v5329
        %v5331 = vshll.u32 2475754826, %v5325
        %v5332 = vshrl.u32 2131351028, %v5326
        %v5333 = vor.u32 %v5331, %v5332
        %v5334 = vshll.u32 2131351028, %v5325
        %v5335 = vshrl.u32 2102212464, %v5326
        %v5336 = vor.u32 %v5334, %v5335
        %v5337 = vshll.u32 2102212464, %v5325
        %v5338 = vshrl.u32 920167782, %v5326
        %v5339 = vor.u32 %v5337, %v5338
        %v5340 = vshll.u32 920167782, %v5325
        %v5341 = vshrl.u32 1326507024, %v5326
        %v5342 = vor.u32 %v5340, %v5341
        %vm5343 = vcmp.lt.s32.totalorder %v5324, 1
        %vm5344 = vcmp.lt.s32.totalorder %v5324, 2
        %vm5345 = vcmp.lt.s32.totalorder %v5324, 3
        %vm5346 = vcmp.lt.s32.totalorder %v5324, 4
        %v5347 = vsel %vm5343, %v5327, %v5330
        %v5348 = vsel %vm5346, %v5336, 2102212464
        %v5349 = vsel %vm5345, %v5333, %v5348
        %v5350 = vsel %vm5344, %v5347, %v5349
        %v5351 = vsel %vm5343, %v5330, %v5333
        %v5352 = vsel %vm5346, %v5339, 920167782
        %v5353 = vsel %vm5345, %v5336, %v5352
        %v5354 = vsel %vm5344, %v5351, %v5353
        %v5355 = vsel %vm5343, %v5333, %v5336
        %v5356 = vsel %vm5346, %v5342, 1326507024
        %v5357 = vsel %vm5345, %v5339, %v5356
        %v5358 = vsel %vm5344, %v5355, %v5357
        %v5359 = vshll.u32 %v5319, 8
        %v5360 = vmul.u32.u64.compose %v5359, %v5358
        %v5361 = vextract.low.u32 %v5360
        %v5362 = vextract.high.u32 %v5360
        %v5363 = vmul.u32.u64.compose %v5359, %v5354
        %v5364 = vextract.low.u32 %v5363
        %v5365 = vextract.high.u32 %v5363
        %v5366 = vmul.u32 %v5359, %v5350
        %v5367 = vadd.s32 %v5362, %v5364
        %vm5368 = vc.u32 %v5362, %v5364
        %v5369 = vadd.s32 %v5365, 1
        %v5370 = vsel %vm5368, %v5369, %v5365
        %v5371 = vadd.s32 %v5366, %v5370
        %v5372 = vadd.s32 %v5371, 536870912
        %v5373 = vshrl.u32 %v5372, 30
        %v5374 = vshll.u32 %v5373, 30
        %v5375 = vsub.s32 %v5371, %v5374
        %vm5376 = vcmp.lt.s32.totalorder %v5375, 0
        %v5377 = vsub.s32 0, %v5375
        %v5378 = vsel %vm5376, %v5377, %v5375
        %v5379 = vclz %v5378
        %v5380 = vsub.s32 %v5379, 2
        %vm5381 = vcmp.gt.s32.totalorder 0, %v5380
        %v5382 = vsel %vm5381, 0, %v5380
        %v5383 = vsub.s32 32, %v5382
        %v5384 = vshll.u32 %v5375, %v5382
        %v5385 = vshrl.u32 %v5367, %v5383
        %v5386 = vor.u32 %v5384, %v5385
        %v5387 = vsub.s32 4294967266, %v5382
        %v5388 = vadd.s32 %v5387, 127
        %v5389 = vshll.u32 %v5388, 23
        %v5390 = vor.u32 4788187, %v5389
        %v5391 = vand.u32 2147483647, %v5390
        %v5393 = vcvt.s32.f32 %v5386
        %v5394 = vmul.f32 %v5393, %v5391
        %v5395 = vxor.u32 %v5394, 2147483648
        %v5396 = vsel %vm5313, %v5395, %v5394
        %v5397 = vsub.s32 4, %v5373
        %v5398 = vsel %vm5313, %v5397, %v5373
        %v5399 = vsel %vm5312, %v1333, %v5396
        %v5400 = vsel %vm5312, 0, %v5398
        %v5401 = vcosq.f32.pop %v5399
        %v5402 = vsinq.f32.pop %v5399
        %vm5403 = vweird.f32 %v1333
        %v5404 = vadd.s32 %v5400, 3
        %v5405 = vand.u32 %v5404, 3
        %vm5406 = vcmp.lt.s32.totalorder %v5405, 2
        %vm5407 = vcmp.eq.s32.totalorder %v5405, 0
        %v5408 = vxor.u32 %v5402, 2147483648
        %v5409 = vsel %vm5407, %v5401, %v5408
        %vm5410 = vcmp.eq.s32.totalorder %v5405, 2
        %v5411 = vxor.u32 %v5401, 2147483648
        %v5412 = vsel %vm5410, %v5411, %v5402
        %v5413 = vsel %vm5406, %v5409, %v5412
        %v5414 = vsel %vm5403, nan, %v5413
        %v5415 = vand.u32 2147483647, %v1334
        %vm5416 = vcmp.le.f32.partialorder %v5415, 0.7853982
        %vm5417 = vcmp.lt.s32.totalorder %v1334, 0
        %v5418 = vand.u32 %v1334, 2139095040
        %v5419 = vshrl.u32 %v5418, 23
        %v5420 = vsub.s32 %v5419, 127
        %v5421 = vand.u32 2147483647, %v1334
        %v5422 = vand.u32 %v5421, 8388607
        %v5423 = vor.u32 %v5422, 8388608
        %v5424 = vsub.s32 0, %v5423
        %v5425 = vadd.s32 %v5420, 1
        %vm5426 = vcmp.gt.s32.totalorder %v5425, 0
        %v5427 = vsel %vm5426, %v5425, 0
        %v5428 = vshrl.u32 %v5427, 5
        %v5429 = vand.u32 %v5427, 31
        %v5430 = vsub.s32 32, %v5429
        %v5431 = vshrl.u32 683565275, %v5430
        %v5432 = vshll.u32 683565275, %v5429
        %v5433 = vshrl.u32 2475754826, %v5430
        %v5434 = vor.u32 %v5432, %v5433
        %v5435 = vshll.u32 2475754826, %v5429
        %v5436 = vshrl.u32 2131351028, %v5430
        %v5437 = vor.u32 %v5435, %v5436
        %v5438 = vshll.u32 2131351028, %v5429
        %v5439 = vshrl.u32 2102212464, %v5430
        %v5440 = vor.u32 %v5438, %v5439
        %v5441 = vshll.u32 2102212464, %v5429
        %v5442 = vshrl.u32 920167782, %v5430
        %v5443 = vor.u32 %v5441, %v5442
        %v5444 = vshll.u32 920167782, %v5429
        %v5445 = vshrl.u32 1326507024, %v5430
        %v5446 = vor.u32 %v5444, %v5445
        %vm5447 = vcmp.lt.s32.totalorder %v5428, 1
        %vm5448 = vcmp.lt.s32.totalorder %v5428, 2
        %vm5449 = vcmp.lt.s32.totalorder %v5428, 3
        %vm5450 = vcmp.lt.s32.totalorder %v5428, 4
        %v5451 = vsel %vm5447, %v5431, %v5434
        %v5452 = vsel %vm5450, %v5440, 2102212464
        %v5453 = vsel %vm5449, %v5437, %v5452
        %v5454 = vsel %vm5448, %v5451, %v5453
        %v5455 = vsel %vm5447, %v5434, %v5437
        %v5456 = vsel %vm5450, %v5443, 920167782
        %v5457 = vsel %vm5449, %v5440, %v5456
        %v5458 = vsel %vm5448, %v5455, %v5457
        %v5459 = vsel %vm5447, %v5437, %v5440
        %v5460 = vsel %vm5450, %v5446, 1326507024
        %v5461 = vsel %vm5449, %v5443, %v5460
        %v5462 = vsel %vm5448, %v5459, %v5461
        %v5463 = vshll.u32 %v5423, 8
        %v5464 = vmul.u32.u64.compose %v5463, %v5462
        %v5465 = vextract.low.u32 %v5464
        %v5466 = vextract.high.u32 %v5464
        %v5467 = vmul.u32.u64.compose %v5463, %v5458
        %v5468 = vextract.low.u32 %v5467
        %v5469 = vextract.high.u32 %v5467
        %v5470 = vmul.u32 %v5463, %v5454
        %v5471 = vadd.s32 %v5466, %v5468
        %vm5472 = vc.u32 %v5466, %v5468
        %v5473 = vadd.s32 %v5469, 1
        %v5474 = vsel %vm5472, %v5473, %v5469
        %v5475 = vadd.s32 %v5470, %v5474
        %v5476 = vadd.s32 %v5475, 536870912
        %v5477 = vshrl.u32 %v5476, 30
        %v5478 = vshll.u32 %v5477, 30
        %v5479 = vsub.s32 %v5475, %v5478
        %vm5480 = vcmp.lt.s32.totalorder %v5479, 0
        %v5481 = vsub.s32 0, %v5479
        %v5482 = vsel %vm5480, %v5481, %v5479
        %v5483 = vclz %v5482
        %v5484 = vsub.s32 %v5483, 2
        %vm5485 = vcmp.gt.s32.totalorder 0, %v5484
        %v5486 = vsel %vm5485, 0, %v5484
        %v5487 = vsub.s32 32, %v5486
        %v5488 = vshll.u32 %v5479, %v5486
        %v5489 = vshrl.u32 %v5471, %v5487
        %v5490 = vor.u32 %v5488, %v5489
        %v5491 = vsub.s32 4294967266, %v5486
        %v5492 = vadd.s32 %v5491, 127
        %v5493 = vshll.u32 %v5492, 23
        %v5494 = vor.u32 4788187, %v5493
        %v5495 = vand.u32 2147483647, %v5494
        %v5497 = vcvt.s32.f32 %v5490
        %v5498 = vmul.f32 %v5497, %v5495
        %v5499 = vxor.u32 %v5498, 2147483648
        %v5500 = vsel %vm5417, %v5499, %v5498
        %v5501 = vsub.s32 4, %v5477
        %v5502 = vsel %vm5417, %v5501, %v5477
        %v5503 = vsel %vm5416, %v1334, %v5500
        %v5504 = vsel %vm5416, 0, %v5502
        %v5505 = vcosq.f32.pop %v5503
        %v5506 = vsinq.f32.pop %v5503
        %vm5507 = vweird.f32 %v1334
        %v5508 = vadd.s32 %v5504, 3
        %v5509 = vand.u32 %v5508, 3
        %vm5510 = vcmp.lt.s32.totalorder %v5509, 2
        %vm5511 = vcmp.eq.s32.totalorder %v5509, 0
        %v5512 = vxor.u32 %v5506, 2147483648
        %v5513 = vsel %vm5511, %v5505, %v5512
        %vm5514 = vcmp.eq.s32.totalorder %v5509, 2
        %v5515 = vxor.u32 %v5505, 2147483648
        %v5516 = vsel %vm5514, %v5515, %v5506
        %v5517 = vsel %vm5510, %v5513, %v5516
        %v5518 = vsel %vm5507, nan, %v5517
        %v5519 = vand.u32 2147483647, %v1335
        %vm5520 = vcmp.le.f32.partialorder %v5519, 0.7853982
        %vm5521 = vcmp.lt.s32.totalorder %v1335, 0
        %v5522 = vand.u32 %v1335, 2139095040
        %v5523 = vshrl.u32 %v5522, 23
        %v5524 = vsub.s32 %v5523, 127
        %v5525 = vand.u32 2147483647, %v1335
        %v5526 = vand.u32 %v5525, 8388607
        %v5527 = vor.u32 %v5526, 8388608
        %v5528 = vsub.s32 0, %v5527
        %v5529 = vadd.s32 %v5524, 1
        %vm5530 = vcmp.gt.s32.totalorder %v5529, 0
        %v5531 = vsel %vm5530, %v5529, 0
        %v5532 = vshrl.u32 %v5531, 5
        %v5533 = vand.u32 %v5531, 31
        %v5534 = vsub.s32 32, %v5533
        %v5535 = vshrl.u32 683565275, %v5534
        %v5536 = vshll.u32 683565275, %v5533
        %v5537 = vshrl.u32 2475754826, %v5534
        %v5538 = vor.u32 %v5536, %v5537
        %v5539 = vshll.u32 2475754826, %v5533
        %v5540 = vshrl.u32 2131351028, %v5534
        %v5541 = vor.u32 %v5539, %v5540
        %v5542 = vshll.u32 2131351028, %v5533
        %v5543 = vshrl.u32 2102212464, %v5534
        %v5544 = vor.u32 %v5542, %v5543
        %v5545 = vshll.u32 2102212464, %v5533
        %v5546 = vshrl.u32 920167782, %v5534
        %v5547 = vor.u32 %v5545, %v5546
        %v5548 = vshll.u32 920167782, %v5533
        %v5549 = vshrl.u32 1326507024, %v5534
        %v5550 = vor.u32 %v5548, %v5549
        %vm5551 = vcmp.lt.s32.totalorder %v5532, 1
        %vm5552 = vcmp.lt.s32.totalorder %v5532, 2
        %vm5553 = vcmp.lt.s32.totalorder %v5532, 3
        %vm5554 = vcmp.lt.s32.totalorder %v5532, 4
        %v5555 = vsel %vm5551, %v5535, %v5538
        %v5556 = vsel %vm5554, %v5544, 2102212464
        %v5557 = vsel %vm5553, %v5541, %v5556
        %v5558 = vsel %vm5552, %v5555, %v5557
        %v5559 = vsel %vm5551, %v5538, %v5541
        %v5560 = vsel %vm5554, %v5547, 920167782
        %v5561 = vsel %vm5553, %v5544, %v5560
        %v5562 = vsel %vm5552, %v5559, %v5561
        %v5563 = vsel %vm5551, %v5541, %v5544
        %v5564 = vsel %vm5554, %v5550, 1326507024
        %v5565 = vsel %vm5553, %v5547, %v5564
        %v5566 = vsel %vm5552, %v5563, %v5565
        %v5567 = vshll.u32 %v5527, 8
        %v5568 = vmul.u32.u64.compose %v5567, %v5566
        %v5569 = vextract.low.u32 %v5568
        %v5570 = vextract.high.u32 %v5568
        %v5571 = vmul.u32.u64.compose %v5567, %v5562
        %v5572 = vextract.low.u32 %v5571
        %v5573 = vextract.high.u32 %v5571
        %v5574 = vmul.u32 %v5567, %v5558
        %v5575 = vadd.s32 %v5570, %v5572
        %vm5576 = vc.u32 %v5570, %v5572
        %v5577 = vadd.s32 %v5573, 1
        %v5578 = vsel %vm5576, %v5577, %v5573
        %v5579 = vadd.s32 %v5574, %v5578
        %v5580 = vadd.s32 %v5579, 536870912
        %v5581 = vshrl.u32 %v5580, 30
        %v5582 = vshll.u32 %v5581, 30
        %v5583 = vsub.s32 %v5579, %v5582
        %vm5584 = vcmp.lt.s32.totalorder %v5583, 0
        %v5585 = vsub.s32 0, %v5583
        %v5586 = vsel %vm5584, %v5585, %v5583
        %v5587 = vclz %v5586
        %v5588 = vsub.s32 %v5587, 2
        %vm5589 = vcmp.gt.s32.totalorder 0, %v5588
        %v5590 = vsel %vm5589, 0, %v5588
        %v5591 = vsub.s32 32, %v5590
        %v5592 = vshll.u32 %v5583, %v5590
        %v5593 = vshrl.u32 %v5575, %v5591
        %v5594 = vor.u32 %v5592, %v5593
        %v5595 = vsub.s32 4294967266, %v5590
        %v5596 = vadd.s32 %v5595, 127
        %v5597 = vshll.u32 %v5596, 23
        %v5598 = vor.u32 4788187, %v5597
        %v5599 = vand.u32 2147483647, %v5598
        %v5601 = vcvt.s32.f32 %v5594
        %v5602 = vmul.f32 %v5601, %v5599
        %v5603 = vxor.u32 %v5602, 2147483648
        %v5604 = vsel %vm5521, %v5603, %v5602
        %v5605 = vsub.s32 4, %v5581
        %v5606 = vsel %vm5521, %v5605, %v5581
        %v5607 = vsel %vm5520, %v1335, %v5604
        %v5608 = vsel %vm5520, 0, %v5606
        %v5609 = vcosq.f32.pop %v5607
        %v5610 = vsinq.f32.pop %v5607
        %vm5611 = vweird.f32 %v1335
        %v5612 = vadd.s32 %v5608, 3
        %v5613 = vand.u32 %v5612, 3
        %vm5614 = vcmp.lt.s32.totalorder %v5613, 2
        %vm5615 = vcmp.eq.s32.totalorder %v5613, 0
        %v5616 = vxor.u32 %v5610, 2147483648
        %v5617 = vsel %vm5615, %v5609, %v5616
        %vm5618 = vcmp.eq.s32.totalorder %v5613, 2
        %v5619 = vxor.u32 %v5609, 2147483648
        %v5620 = vsel %vm5618, %v5619, %v5610
        %v5621 = vsel %vm5614, %v5617, %v5620
        %v5622 = vsel %vm5611, nan, %v5621
        %v5623 = vand.u32 2147483647, %v1336
        %vm5624 = vcmp.le.f32.partialorder %v5623, 0.7853982
        %vm5625 = vcmp.lt.s32.totalorder %v1336, 0
        %v5626 = vand.u32 %v1336, 2139095040
        %v5627 = vshrl.u32 %v5626, 23
        %v5628 = vsub.s32 %v5627, 127
        %v5629 = vand.u32 2147483647, %v1336
        %v5630 = vand.u32 %v5629, 8388607
        %v5631 = vor.u32 %v5630, 8388608
        %v5632 = vsub.s32 0, %v5631
        %v5633 = vadd.s32 %v5628, 1
        %vm5634 = vcmp.gt.s32.totalorder %v5633, 0
        %v5635 = vsel %vm5634, %v5633, 0
        %v5636 = vshrl.u32 %v5635, 5
        %v5637 = vand.u32 %v5635, 31
        %v5638 = vsub.s32 32, %v5637
        %v5639 = vshrl.u32 683565275, %v5638
        %v5640 = vshll.u32 683565275, %v5637
        %v5641 = vshrl.u32 2475754826, %v5638
        %v5642 = vor.u32 %v5640, %v5641
        %v5643 = vshll.u32 2475754826, %v5637
        %v5644 = vshrl.u32 2131351028, %v5638
        %v5645 = vor.u32 %v5643, %v5644
        %v5646 = vshll.u32 2131351028, %v5637
        %v5647 = vshrl.u32 2102212464, %v5638
        %v5648 = vor.u32 %v5646, %v5647
        %v5649 = vshll.u32 2102212464, %v5637
        %v5650 = vshrl.u32 920167782, %v5638
        %v5651 = vor.u32 %v5649, %v5650
        %v5652 = vshll.u32 920167782, %v5637
        %v5653 = vshrl.u32 1326507024, %v5638
        %v5654 = vor.u32 %v5652, %v5653
        %vm5655 = vcmp.lt.s32.totalorder %v5636, 1
        %vm5656 = vcmp.lt.s32.totalorder %v5636, 2
        %vm5657 = vcmp.lt.s32.totalorder %v5636, 3
        %vm5658 = vcmp.lt.s32.totalorder %v5636, 4
        %v5659 = vsel %vm5655, %v5639, %v5642
        %v5660 = vsel %vm5658, %v5648, 2102212464
        %v5661 = vsel %vm5657, %v5645, %v5660
        %v5662 = vsel %vm5656, %v5659, %v5661
        %v5663 = vsel %vm5655, %v5642, %v5645
        %v5664 = vsel %vm5658, %v5651, 920167782
        %v5665 = vsel %vm5657, %v5648, %v5664
        %v5666 = vsel %vm5656, %v5663, %v5665
        %v5667 = vsel %vm5655, %v5645, %v5648
        %v5668 = vsel %vm5658, %v5654, 1326507024
        %v5669 = vsel %vm5657, %v5651, %v5668
        %v5670 = vsel %vm5656, %v5667, %v5669
        %v5671 = vshll.u32 %v5631, 8
        %v5672 = vmul.u32.u64.compose %v5671, %v5670
        %v5673 = vextract.low.u32 %v5672
        %v5674 = vextract.high.u32 %v5672
        %v5675 = vmul.u32.u64.compose %v5671, %v5666
        %v5676 = vextract.low.u32 %v5675
        %v5677 = vextract.high.u32 %v5675
        %v5678 = vmul.u32 %v5671, %v5662
        %v5679 = vadd.s32 %v5674, %v5676
        %vm5680 = vc.u32 %v5674, %v5676
        %v5681 = vadd.s32 %v5677, 1
        %v5682 = vsel %vm5680, %v5681, %v5677
        %v5683 = vadd.s32 %v5678, %v5682
        %v5684 = vadd.s32 %v5683, 536870912
        %v5685 = vshrl.u32 %v5684, 30
        %v5686 = vshll.u32 %v5685, 30
        %v5687 = vsub.s32 %v5683, %v5686
        %vm5688 = vcmp.lt.s32.totalorder %v5687, 0
        %v5689 = vsub.s32 0, %v5687
        %v5690 = vsel %vm5688, %v5689, %v5687
        %v5691 = vclz %v5690
        %v5692 = vsub.s32 %v5691, 2
        %vm5693 = vcmp.gt.s32.totalorder 0, %v5692
        %v5694 = vsel %vm5693, 0, %v5692
        %v5695 = vsub.s32 32, %v5694
        %v5696 = vshll.u32 %v5687, %v5694
        %v5697 = vshrl.u32 %v5679, %v5695
        %v5698 = vor.u32 %v5696, %v5697
        %v5699 = vsub.s32 4294967266, %v5694
        %v5700 = vadd.s32 %v5699, 127
        %v5701 = vshll.u32 %v5700, 23
        %v5702 = vor.u32 4788187, %v5701
        %v5703 = vand.u32 2147483647, %v5702
        %v5705 = vcvt.s32.f32 %v5698
        %v5706 = vmul.f32 %v5705, %v5703
        %v5707 = vxor.u32 %v5706, 2147483648
        %v5708 = vsel %vm5625, %v5707, %v5706
        %v5709 = vsub.s32 4, %v5685
        %v5710 = vsel %vm5625, %v5709, %v5685
        %v5711 = vsel %vm5624, %v1336, %v5708
        %v5712 = vsel %vm5624, 0, %v5710
        %v5713 = vcosq.f32.pop %v5711
        %v5714 = vsinq.f32.pop %v5711
        %vm5715 = vweird.f32 %v1336
        %v5716 = vadd.s32 %v5712, 3
        %v5717 = vand.u32 %v5716, 3
        %vm5718 = vcmp.lt.s32.totalorder %v5717, 2
        %vm5719 = vcmp.eq.s32.totalorder %v5717, 0
        %v5720 = vxor.u32 %v5714, 2147483648
        %v5721 = vsel %vm5719, %v5713, %v5720
        %vm5722 = vcmp.eq.s32.totalorder %v5717, 2
        %v5723 = vxor.u32 %v5713, 2147483648
        %v5724 = vsel %vm5722, %v5723, %v5714
        %v5725 = vsel %vm5718, %v5721, %v5724
        %v5726 = vsel %vm5715, nan, %v5725
        %v5727 = vand.u32 2147483647, %v1337
        %vm5728 = vcmp.le.f32.partialorder %v5727, 0.7853982
        %vm5729 = vcmp.lt.s32.totalorder %v1337, 0
        %v5730 = vand.u32 %v1337, 2139095040
        %v5731 = vshrl.u32 %v5730, 23
        %v5732 = vsub.s32 %v5731, 127
        %v5733 = vand.u32 2147483647, %v1337
        %v5734 = vand.u32 %v5733, 8388607
        %v5735 = vor.u32 %v5734, 8388608
        %v5736 = vsub.s32 0, %v5735
        %v5737 = vadd.s32 %v5732, 1
        %vm5738 = vcmp.gt.s32.totalorder %v5737, 0
        %v5739 = vsel %vm5738, %v5737, 0
        %v5740 = vshrl.u32 %v5739, 5
        %v5741 = vand.u32 %v5739, 31
        %v5742 = vsub.s32 32, %v5741
        %v5743 = vshrl.u32 683565275, %v5742
        %v5744 = vshll.u32 683565275, %v5741
        %v5745 = vshrl.u32 2475754826, %v5742
        %v5746 = vor.u32 %v5744, %v5745
        %v5747 = vshll.u32 2475754826, %v5741
        %v5748 = vshrl.u32 2131351028, %v5742
        %v5749 = vor.u32 %v5747, %v5748
        %v5750 = vshll.u32 2131351028, %v5741
        %v5751 = vshrl.u32 2102212464, %v5742
        %v5752 = vor.u32 %v5750, %v5751
        %v5753 = vshll.u32 2102212464, %v5741
        %v5754 = vshrl.u32 920167782, %v5742
        %v5755 = vor.u32 %v5753, %v5754
        %v5756 = vshll.u32 920167782, %v5741
        %v5757 = vshrl.u32 1326507024, %v5742
        %v5758 = vor.u32 %v5756, %v5757
        %vm5759 = vcmp.lt.s32.totalorder %v5740, 1
        %vm5760 = vcmp.lt.s32.totalorder %v5740, 2
        %vm5761 = vcmp.lt.s32.totalorder %v5740, 3
        %vm5762 = vcmp.lt.s32.totalorder %v5740, 4
        %v5763 = vsel %vm5759, %v5743, %v5746
        %v5764 = vsel %vm5762, %v5752, 2102212464
        %v5765 = vsel %vm5761, %v5749, %v5764
        %v5766 = vsel %vm5760, %v5763, %v5765
        %v5767 = vsel %vm5759, %v5746, %v5749
        %v5768 = vsel %vm5762, %v5755, 920167782
        %v5769 = vsel %vm5761, %v5752, %v5768
        %v5770 = vsel %vm5760, %v5767, %v5769
        %v5771 = vsel %vm5759, %v5749, %v5752
        %v5772 = vsel %vm5762, %v5758, 1326507024
        %v5773 = vsel %vm5761, %v5755, %v5772
        %v5774 = vsel %vm5760, %v5771, %v5773
        %v5775 = vshll.u32 %v5735, 8
        %v5776 = vmul.u32.u64.compose %v5775, %v5774
        %v5777 = vextract.low.u32 %v5776
        %v5778 = vextract.high.u32 %v5776
        %v5779 = vmul.u32.u64.compose %v5775, %v5770
        %v5780 = vextract.low.u32 %v5779
        %v5781 = vextract.high.u32 %v5779
        %v5782 = vmul.u32 %v5775, %v5766
        %v5783 = vadd.s32 %v5778, %v5780
        %vm5784 = vc.u32 %v5778, %v5780
        %v5785 = vadd.s32 %v5781, 1
        %v5786 = vsel %vm5784, %v5785, %v5781
        %v5787 = vadd.s32 %v5782, %v5786
        %v5788 = vadd.s32 %v5787, 536870912
        %v5789 = vshrl.u32 %v5788, 30
        %v5790 = vshll.u32 %v5789, 30
        %v5791 = vsub.s32 %v5787, %v5790
        %vm5792 = vcmp.lt.s32.totalorder %v5791, 0
        %v5793 = vsub.s32 0, %v5791
        %v5794 = vsel %vm5792, %v5793, %v5791
        %v5795 = vclz %v5794
        %v5796 = vsub.s32 %v5795, 2
        %vm5797 = vcmp.gt.s32.totalorder 0, %v5796
        %v5798 = vsel %vm5797, 0, %v5796
        %v5799 = vsub.s32 32, %v5798
        %v5800 = vshll.u32 %v5791, %v5798
        %v5801 = vshrl.u32 %v5783, %v5799
        %v5802 = vor.u32 %v5800, %v5801
        %v5803 = vsub.s32 4294967266, %v5798
        %v5804 = vadd.s32 %v5803, 127
        %v5805 = vshll.u32 %v5804, 23
        %v5806 = vor.u32 4788187, %v5805
        %v5807 = vand.u32 2147483647, %v5806
        %v5809 = vcvt.s32.f32 %v5802
        %v5810 = vmul.f32 %v5809, %v5807
        %v5811 = vxor.u32 %v5810, 2147483648
        %v5812 = vsel %vm5729, %v5811, %v5810
        %v5813 = vsub.s32 4, %v5789
        %v5814 = vsel %vm5729, %v5813, %v5789
        %v5815 = vsel %vm5728, %v1337, %v5812
        %v5816 = vsel %vm5728, 0, %v5814
        %v5817 = vcosq.f32.pop %v5815
        %v5818 = vsinq.f32.pop %v5815
        %vm5819 = vweird.f32 %v1337
        %v5820 = vadd.s32 %v5816, 3
        %v5821 = vand.u32 %v5820, 3
        %vm5822 = vcmp.lt.s32.totalorder %v5821, 2
        %vm5823 = vcmp.eq.s32.totalorder %v5821, 0
        %v5824 = vxor.u32 %v5818, 2147483648
        %v5825 = vsel %vm5823, %v5817, %v5824
        %vm5826 = vcmp.eq.s32.totalorder %v5821, 2
        %v5827 = vxor.u32 %v5817, 2147483648
        %v5828 = vsel %vm5826, %v5827, %v5818
        %v5829 = vsel %vm5822, %v5825, %v5828
        %v5830 = vsel %vm5819, nan, %v5829
        %v5831 = vand.u32 2147483647, %v1338
        %vm5832 = vcmp.le.f32.partialorder %v5831, 0.7853982
        %vm5833 = vcmp.lt.s32.totalorder %v1338, 0
        %v5834 = vand.u32 %v1338, 2139095040
        %v5835 = vshrl.u32 %v5834, 23
        %v5836 = vsub.s32 %v5835, 127
        %v5837 = vand.u32 2147483647, %v1338
        %v5838 = vand.u32 %v5837, 8388607
        %v5839 = vor.u32 %v5838, 8388608
        %v5840 = vsub.s32 0, %v5839
        %v5841 = vadd.s32 %v5836, 1
        %vm5842 = vcmp.gt.s32.totalorder %v5841, 0
        %v5843 = vsel %vm5842, %v5841, 0
        %v5844 = vshrl.u32 %v5843, 5
        %v5845 = vand.u32 %v5843, 31
        %v5846 = vsub.s32 32, %v5845
        %v5847 = vshrl.u32 683565275, %v5846
        %v5848 = vshll.u32 683565275, %v5845
        %v5849 = vshrl.u32 2475754826, %v5846
        %v5850 = vor.u32 %v5848, %v5849
        %v5851 = vshll.u32 2475754826, %v5845
        %v5852 = vshrl.u32 2131351028, %v5846
        %v5853 = vor.u32 %v5851, %v5852
        %v5854 = vshll.u32 2131351028, %v5845
        %v5855 = vshrl.u32 2102212464, %v5846
        %v5856 = vor.u32 %v5854, %v5855
        %v5857 = vshll.u32 2102212464, %v5845
        %v5858 = vshrl.u32 920167782, %v5846
        %v5859 = vor.u32 %v5857, %v5858
        %v5860 = vshll.u32 920167782, %v5845
        %v5861 = vshrl.u32 1326507024, %v5846
        %v5862 = vor.u32 %v5860, %v5861
        %vm5863 = vcmp.lt.s32.totalorder %v5844, 1
        %vm5864 = vcmp.lt.s32.totalorder %v5844, 2
        %vm5865 = vcmp.lt.s32.totalorder %v5844, 3
        %vm5866 = vcmp.lt.s32.totalorder %v5844, 4
        %v5867 = vsel %vm5863, %v5847, %v5850
        %v5868 = vsel %vm5866, %v5856, 2102212464
        %v5869 = vsel %vm5865, %v5853, %v5868
        %v5870 = vsel %vm5864, %v5867, %v5869
        %v5871 = vsel %vm5863, %v5850, %v5853
        %v5872 = vsel %vm5866, %v5859, 920167782
        %v5873 = vsel %vm5865, %v5856, %v5872
        %v5874 = vsel %vm5864, %v5871, %v5873
        %v5875 = vsel %vm5863, %v5853, %v5856
        %v5876 = vsel %vm5866, %v5862, 1326507024
        %v5877 = vsel %vm5865, %v5859, %v5876
        %v5878 = vsel %vm5864, %v5875, %v5877
        %v5879 = vshll.u32 %v5839, 8
        %v5880 = vmul.u32.u64.compose %v5879, %v5878
        %v5881 = vextract.low.u32 %v5880
        %v5882 = vextract.high.u32 %v5880
        %v5883 = vmul.u32.u64.compose %v5879, %v5874
        %v5884 = vextract.low.u32 %v5883
        %v5885 = vextract.high.u32 %v5883
        %v5886 = vmul.u32 %v5879, %v5870
        %v5887 = vadd.s32 %v5882, %v5884
        %vm5888 = vc.u32 %v5882, %v5884
        %v5889 = vadd.s32 %v5885, 1
        %v5890 = vsel %vm5888, %v5889, %v5885
        %v5891 = vadd.s32 %v5886, %v5890
        %v5892 = vadd.s32 %v5891, 536870912
        %v5893 = vshrl.u32 %v5892, 30
        %v5894 = vshll.u32 %v5893, 30
        %v5895 = vsub.s32 %v5891, %v5894
        %vm5896 = vcmp.lt.s32.totalorder %v5895, 0
        %v5897 = vsub.s32 0, %v5895
        %v5898 = vsel %vm5896, %v5897, %v5895
        %v5899 = vclz %v5898
        %v5900 = vsub.s32 %v5899, 2
        %vm5901 = vcmp.gt.s32.totalorder 0, %v5900
        %v5902 = vsel %vm5901, 0, %v5900
        %v5903 = vsub.s32 32, %v5902
        %v5904 = vshll.u32 %v5895, %v5902
        %v5905 = vshrl.u32 %v5887, %v5903
        %v5906 = vor.u32 %v5904, %v5905
        %v5907 = vsub.s32 4294967266, %v5902
        %v5908 = vadd.s32 %v5907, 127
        %v5909 = vshll.u32 %v5908, 23
        %v5910 = vor.u32 4788187, %v5909
        %v5911 = vand.u32 2147483647, %v5910
        %v5913 = vcvt.s32.f32 %v5906
        %v5914 = vmul.f32 %v5913, %v5911
        %v5915 = vxor.u32 %v5914, 2147483648
        %v5916 = vsel %vm5833, %v5915, %v5914
        %v5917 = vsub.s32 4, %v5893
        %v5918 = vsel %vm5833, %v5917, %v5893
        %v5919 = vsel %vm5832, %v1338, %v5916
        %v5920 = vsel %vm5832, 0, %v5918
        %v5921 = vcosq.f32.pop %v5919
        %v5922 = vsinq.f32.pop %v5919
        %vm5923 = vweird.f32 %v1338
        %v5924 = vadd.s32 %v5920, 3
        %v5925 = vand.u32 %v5924, 3
        %vm5926 = vcmp.lt.s32.totalorder %v5925, 2
        %vm5927 = vcmp.eq.s32.totalorder %v5925, 0
        %v5928 = vxor.u32 %v5922, 2147483648
        %v5929 = vsel %vm5927, %v5921, %v5928
        %vm5930 = vcmp.eq.s32.totalorder %v5925, 2
        %v5931 = vxor.u32 %v5921, 2147483648
        %v5932 = vsel %vm5930, %v5931, %v5922
        %v5933 = vsel %vm5926, %v5929, %v5932
        %v5934 = vsel %vm5923, nan, %v5933
        %v5935 = vand.u32 2147483647, %v1339
        %vm5936 = vcmp.le.f32.partialorder %v5935, 0.7853982
        %vm5937 = vcmp.lt.s32.totalorder %v1339, 0
        %v5938 = vand.u32 %v1339, 2139095040
        %v5939 = vshrl.u32 %v5938, 23
        %v5940 = vsub.s32 %v5939, 127
        %v5941 = vand.u32 2147483647, %v1339
        %v5942 = vand.u32 %v5941, 8388607
        %v5943 = vor.u32 %v5942, 8388608
        %v5944 = vsub.s32 0, %v5943
        %v5945 = vadd.s32 %v5940, 1
        %vm5946 = vcmp.gt.s32.totalorder %v5945, 0
        %v5947 = vsel %vm5946, %v5945, 0
        %v5948 = vshrl.u32 %v5947, 5
        %v5949 = vand.u32 %v5947, 31
        %v5950 = vsub.s32 32, %v5949
        %v5951 = vshrl.u32 683565275, %v5950
        %v5952 = vshll.u32 683565275, %v5949
        %v5953 = vshrl.u32 2475754826, %v5950
        %v5954 = vor.u32 %v5952, %v5953
        %v5955 = vshll.u32 2475754826, %v5949
        %v5956 = vshrl.u32 2131351028, %v5950
        %v5957 = vor.u32 %v5955, %v5956
        %v5958 = vshll.u32 2131351028, %v5949
        %v5959 = vshrl.u32 2102212464, %v5950
        %v5960 = vor.u32 %v5958, %v5959
        %v5961 = vshll.u32 2102212464, %v5949
        %v5962 = vshrl.u32 920167782, %v5950
        %v5963 = vor.u32 %v5961, %v5962
        %v5964 = vshll.u32 920167782, %v5949
        %v5965 = vshrl.u32 1326507024, %v5950
        %v5966 = vor.u32 %v5964, %v5965
        %vm5967 = vcmp.lt.s32.totalorder %v5948, 1
        %vm5968 = vcmp.lt.s32.totalorder %v5948, 2
        %vm5969 = vcmp.lt.s32.totalorder %v5948, 3
        %vm5970 = vcmp.lt.s32.totalorder %v5948, 4
        %v5971 = vsel %vm5967, %v5951, %v5954
        %v5972 = vsel %vm5970, %v5960, 2102212464
        %v5973 = vsel %vm5969, %v5957, %v5972
        %v5974 = vsel %vm5968, %v5971, %v5973
        %v5975 = vsel %vm5967, %v5954, %v5957
        %v5976 = vsel %vm5970, %v5963, 920167782
        %v5977 = vsel %vm5969, %v5960, %v5976
        %v5978 = vsel %vm5968, %v5975, %v5977
        %v5979 = vsel %vm5967, %v5957, %v5960
        %v5980 = vsel %vm5970, %v5966, 1326507024
        %v5981 = vsel %vm5969, %v5963, %v5980
        %v5982 = vsel %vm5968, %v5979, %v5981
        %v5983 = vshll.u32 %v5943, 8
        %v5984 = vmul.u32.u64.compose %v5983, %v5982
        %v5985 = vextract.low.u32 %v5984
        %v5986 = vextract.high.u32 %v5984
        %v5987 = vmul.u32.u64.compose %v5983, %v5978
        %v5988 = vextract.low.u32 %v5987
        %v5989 = vextract.high.u32 %v5987
        %v5990 = vmul.u32 %v5983, %v5974
        %v5991 = vadd.s32 %v5986, %v5988
        %vm5992 = vc.u32 %v5986, %v5988
        %v5993 = vadd.s32 %v5989, 1
        %v5994 = vsel %vm5992, %v5993, %v5989
        %v5995 = vadd.s32 %v5990, %v5994
        %v5996 = vadd.s32 %v5995, 536870912
        %v5997 = vshrl.u32 %v5996, 30
        %v5998 = vshll.u32 %v5997, 30
        %v5999 = vsub.s32 %v5995, %v5998
        %vm6000 = vcmp.lt.s32.totalorder %v5999, 0
        %v6001 = vsub.s32 0, %v5999
        %v6002 = vsel %vm6000, %v6001, %v5999
        %v6003 = vclz %v6002
        %v6004 = vsub.s32 %v6003, 2
        %vm6005 = vcmp.gt.s32.totalorder 0, %v6004
        %v6006 = vsel %vm6005, 0, %v6004
        %v6007 = vsub.s32 32, %v6006
        %v6008 = vshll.u32 %v5999, %v6006
        %v6009 = vshrl.u32 %v5991, %v6007
        %v6010 = vor.u32 %v6008, %v6009
        %v6011 = vsub.s32 4294967266, %v6006
        %v6012 = vadd.s32 %v6011, 127
        %v6013 = vshll.u32 %v6012, 23
        %v6014 = vor.u32 4788187, %v6013
        %v6015 = vand.u32 2147483647, %v6014
        %v6017 = vcvt.s32.f32 %v6010
        %v6018 = vmul.f32 %v6017, %v6015
        %v6019 = vxor.u32 %v6018, 2147483648
        %v6020 = vsel %vm5937, %v6019, %v6018
        %v6021 = vsub.s32 4, %v5997
        %v6022 = vsel %vm5937, %v6021, %v5997
        %v6023 = vsel %vm5936, %v1339, %v6020
        %v6024 = vsel %vm5936, 0, %v6022
        %v6025 = vcosq.f32.pop %v6023
        %v6026 = vsinq.f32.pop %v6023
        %vm6027 = vweird.f32 %v1339
        %v6028 = vadd.s32 %v6024, 3
        %v6029 = vand.u32 %v6028, 3
        %vm6030 = vcmp.lt.s32.totalorder %v6029, 2
        %vm6031 = vcmp.eq.s32.totalorder %v6029, 0
        %v6032 = vxor.u32 %v6026, 2147483648
        %v6033 = vsel %vm6031, %v6025, %v6032
        %vm6034 = vcmp.eq.s32.totalorder %v6029, 2
        %v6035 = vxor.u32 %v6025, 2147483648
        %v6036 = vsel %vm6034, %v6035, %v6026
        %v6037 = vsel %vm6030, %v6033, %v6036
        %v6038 = vsel %vm6027, nan, %v6037
        %v6039 = vand.u32 2147483647, %v1340
        %vm6040 = vcmp.le.f32.partialorder %v6039, 0.7853982
        %vm6041 = vcmp.lt.s32.totalorder %v1340, 0
        %v6042 = vand.u32 %v1340, 2139095040
        %v6043 = vshrl.u32 %v6042, 23
        %v6044 = vsub.s32 %v6043, 127
        %v6045 = vand.u32 2147483647, %v1340
        %v6046 = vand.u32 %v6045, 8388607
        %v6047 = vor.u32 %v6046, 8388608
        %v6048 = vsub.s32 0, %v6047
        %v6049 = vadd.s32 %v6044, 1
        %vm6050 = vcmp.gt.s32.totalorder %v6049, 0
        %v6051 = vsel %vm6050, %v6049, 0
        %v6052 = vshrl.u32 %v6051, 5
        %v6053 = vand.u32 %v6051, 31
        %v6054 = vsub.s32 32, %v6053
        %v6055 = vshrl.u32 683565275, %v6054
        %v6056 = vshll.u32 683565275, %v6053
        %v6057 = vshrl.u32 2475754826, %v6054
        %v6058 = vor.u32 %v6056, %v6057
        %v6059 = vshll.u32 2475754826, %v6053
        %v6060 = vshrl.u32 2131351028, %v6054
        %v6061 = vor.u32 %v6059, %v6060
        %v6062 = vshll.u32 2131351028, %v6053
        %v6063 = vshrl.u32 2102212464, %v6054
        %v6064 = vor.u32 %v6062, %v6063
        %v6065 = vshll.u32 2102212464, %v6053
        %v6066 = vshrl.u32 920167782, %v6054
        %v6067 = vor.u32 %v6065, %v6066
        %v6068 = vshll.u32 920167782, %v6053
        %v6069 = vshrl.u32 1326507024, %v6054
        %v6070 = vor.u32 %v6068, %v6069
        %vm6071 = vcmp.lt.s32.totalorder %v6052, 1
        %vm6072 = vcmp.lt.s32.totalorder %v6052, 2
        %vm6073 = vcmp.lt.s32.totalorder %v6052, 3
        %vm6074 = vcmp.lt.s32.totalorder %v6052, 4
        %v6075 = vsel %vm6071, %v6055, %v6058
        %v6076 = vsel %vm6074, %v6064, 2102212464
        %v6077 = vsel %vm6073, %v6061, %v6076
        %v6078 = vsel %vm6072, %v6075, %v6077
        %v6079 = vsel %vm6071, %v6058, %v6061
        %v6080 = vsel %vm6074, %v6067, 920167782
        %v6081 = vsel %vm6073, %v6064, %v6080
        %v6082 = vsel %vm6072, %v6079, %v6081
        %v6083 = vsel %vm6071, %v6061, %v6064
        %v6084 = vsel %vm6074, %v6070, 1326507024
        %v6085 = vsel %vm6073, %v6067, %v6084
        %v6086 = vsel %vm6072, %v6083, %v6085
        %v6087 = vshll.u32 %v6047, 8
        %v6088 = vmul.u32.u64.compose %v6087, %v6086
        %v6089 = vextract.low.u32 %v6088
        %v6090 = vextract.high.u32 %v6088
        %v6091 = vmul.u32.u64.compose %v6087, %v6082
        %v6092 = vextract.low.u32 %v6091
        %v6093 = vextract.high.u32 %v6091
        %v6094 = vmul.u32 %v6087, %v6078
        %v6095 = vadd.s32 %v6090, %v6092
        %vm6096 = vc.u32 %v6090, %v6092
        %v6097 = vadd.s32 %v6093, 1
        %v6098 = vsel %vm6096, %v6097, %v6093
        %v6099 = vadd.s32 %v6094, %v6098
        %v6100 = vadd.s32 %v6099, 536870912
        %v6101 = vshrl.u32 %v6100, 30
        %v6102 = vshll.u32 %v6101, 30
        %v6103 = vsub.s32 %v6099, %v6102
        %vm6104 = vcmp.lt.s32.totalorder %v6103, 0
        %v6105 = vsub.s32 0, %v6103
        %v6106 = vsel %vm6104, %v6105, %v6103
        %v6107 = vclz %v6106
        %v6108 = vsub.s32 %v6107, 2
        %vm6109 = vcmp.gt.s32.totalorder 0, %v6108
        %v6110 = vsel %vm6109, 0, %v6108
        %v6111 = vsub.s32 32, %v6110
        %v6112 = vshll.u32 %v6103, %v6110
        %v6113 = vshrl.u32 %v6095, %v6111
        %v6114 = vor.u32 %v6112, %v6113
        %v6115 = vsub.s32 4294967266, %v6110
        %v6116 = vadd.s32 %v6115, 127
        %v6117 = vshll.u32 %v6116, 23
        %v6118 = vor.u32 4788187, %v6117
        %v6119 = vand.u32 2147483647, %v6118
        %v6121 = vcvt.s32.f32 %v6114
        %v6122 = vmul.f32 %v6121, %v6119
        %v6123 = vxor.u32 %v6122, 2147483648
        %v6124 = vsel %vm6041, %v6123, %v6122
        %v6125 = vsub.s32 4, %v6101
        %v6126 = vsel %vm6041, %v6125, %v6101
        %v6127 = vsel %vm6040, %v1340, %v6124
        %v6128 = vsel %vm6040, 0, %v6126
        %v6129 = vcosq.f32.pop %v6127
        %v6130 = vsinq.f32.pop %v6127
        %vm6131 = vweird.f32 %v1340
        %v6132 = vadd.s32 %v6128, 3
        %v6133 = vand.u32 %v6132, 3
        %vm6134 = vcmp.lt.s32.totalorder %v6133, 2
        %vm6135 = vcmp.eq.s32.totalorder %v6133, 0
        %v6136 = vxor.u32 %v6130, 2147483648
        %v6137 = vsel %vm6135, %v6129, %v6136
        %vm6138 = vcmp.eq.s32.totalorder %v6133, 2
        %v6139 = vxor.u32 %v6129, 2147483648
        %v6140 = vsel %vm6138, %v6139, %v6130
        %v6141 = vsel %vm6134, %v6137, %v6140
        %v6142 = vsel %vm6131, nan, %v6141
        %v6143 = vand.u32 2147483647, %v1341
        %vm6144 = vcmp.le.f32.partialorder %v6143, 0.7853982
        %vm6145 = vcmp.lt.s32.totalorder %v1341, 0
        %v6146 = vand.u32 %v1341, 2139095040
        %v6147 = vshrl.u32 %v6146, 23
        %v6148 = vsub.s32 %v6147, 127
        %v6149 = vand.u32 2147483647, %v1341
        %v6150 = vand.u32 %v6149, 8388607
        %v6151 = vor.u32 %v6150, 8388608
        %v6152 = vsub.s32 0, %v6151
        %v6153 = vadd.s32 %v6148, 1
        %vm6154 = vcmp.gt.s32.totalorder %v6153, 0
        %v6155 = vsel %vm6154, %v6153, 0
        %v6156 = vshrl.u32 %v6155, 5
        %v6157 = vand.u32 %v6155, 31
        %v6158 = vsub.s32 32, %v6157
        %v6159 = vshrl.u32 683565275, %v6158
        %v6160 = vshll.u32 683565275, %v6157
        %v6161 = vshrl.u32 2475754826, %v6158
        %v6162 = vor.u32 %v6160, %v6161
        %v6163 = vshll.u32 2475754826, %v6157
        %v6164 = vshrl.u32 2131351028, %v6158
        %v6165 = vor.u32 %v6163, %v6164
        %v6166 = vshll.u32 2131351028, %v6157
        %v6167 = vshrl.u32 2102212464, %v6158
        %v6168 = vor.u32 %v6166, %v6167
        %v6169 = vshll.u32 2102212464, %v6157
        %v6170 = vshrl.u32 920167782, %v6158
        %v6171 = vor.u32 %v6169, %v6170
        %v6172 = vshll.u32 920167782, %v6157
        %v6173 = vshrl.u32 1326507024, %v6158
        %v6174 = vor.u32 %v6172, %v6173
        %vm6175 = vcmp.lt.s32.totalorder %v6156, 1
        %vm6176 = vcmp.lt.s32.totalorder %v6156, 2
        %vm6177 = vcmp.lt.s32.totalorder %v6156, 3
        %vm6178 = vcmp.lt.s32.totalorder %v6156, 4
        %v6179 = vsel %vm6175, %v6159, %v6162
        %v6180 = vsel %vm6178, %v6168, 2102212464
        %v6181 = vsel %vm6177, %v6165, %v6180
        %v6182 = vsel %vm6176, %v6179, %v6181
        %v6183 = vsel %vm6175, %v6162, %v6165
        %v6184 = vsel %vm6178, %v6171, 920167782
        %v6185 = vsel %vm6177, %v6168, %v6184
        %v6186 = vsel %vm6176, %v6183, %v6185
        %v6187 = vsel %vm6175, %v6165, %v6168
        %v6188 = vsel %vm6178, %v6174, 1326507024
        %v6189 = vsel %vm6177, %v6171, %v6188
        %v6190 = vsel %vm6176, %v6187, %v6189
        %v6191 = vshll.u32 %v6151, 8
        %v6192 = vmul.u32.u64.compose %v6191, %v6190
        %v6193 = vextract.low.u32 %v6192
        %v6194 = vextract.high.u32 %v6192
        %v6195 = vmul.u32.u64.compose %v6191, %v6186
        %v6196 = vextract.low.u32 %v6195
        %v6197 = vextract.high.u32 %v6195
        %v6198 = vmul.u32 %v6191, %v6182
        %v6199 = vadd.s32 %v6194, %v6196
        %vm6200 = vc.u32 %v6194, %v6196
        %v6201 = vadd.s32 %v6197, 1
        %v6202 = vsel %vm6200, %v6201, %v6197
        %v6203 = vadd.s32 %v6198, %v6202
        %v6204 = vadd.s32 %v6203, 536870912
        %v6205 = vshrl.u32 %v6204, 30
        %v6206 = vshll.u32 %v6205, 30
        %v6207 = vsub.s32 %v6203, %v6206
        %vm6208 = vcmp.lt.s32.totalorder %v6207, 0
        %v6209 = vsub.s32 0, %v6207
        %v6210 = vsel %vm6208, %v6209, %v6207
        %v6211 = vclz %v6210
        %v6212 = vsub.s32 %v6211, 2
        %vm6213 = vcmp.gt.s32.totalorder 0, %v6212
        %v6214 = vsel %vm6213, 0, %v6212
        %v6215 = vsub.s32 32, %v6214
        %v6216 = vshll.u32 %v6207, %v6214
        %v6217 = vshrl.u32 %v6199, %v6215
        %v6218 = vor.u32 %v6216, %v6217
        %v6219 = vsub.s32 4294967266, %v6214
        %v6220 = vadd.s32 %v6219, 127
        %v6221 = vshll.u32 %v6220, 23
        %v6222 = vor.u32 4788187, %v6221
        %v6223 = vand.u32 2147483647, %v6222
        %v6225 = vcvt.s32.f32 %v6218
        %v6226 = vmul.f32 %v6225, %v6223
        %v6227 = vxor.u32 %v6226, 2147483648
        %v6228 = vsel %vm6145, %v6227, %v6226
        %v6229 = vsub.s32 4, %v6205
        %v6230 = vsel %vm6145, %v6229, %v6205
        %v6231 = vsel %vm6144, %v1341, %v6228
        %v6232 = vsel %vm6144, 0, %v6230
        %v6233 = vcosq.f32.pop %v6231
        %v6234 = vsinq.f32.pop %v6231
        %vm6235 = vweird.f32 %v1341
        %v6236 = vadd.s32 %v6232, 3
        %v6237 = vand.u32 %v6236, 3
        %vm6238 = vcmp.lt.s32.totalorder %v6237, 2
        %vm6239 = vcmp.eq.s32.totalorder %v6237, 0
        %v6240 = vxor.u32 %v6234, 2147483648
        %v6241 = vsel %vm6239, %v6233, %v6240
        %vm6242 = vcmp.eq.s32.totalorder %v6237, 2
        %v6243 = vxor.u32 %v6233, 2147483648
        %v6244 = vsel %vm6242, %v6243, %v6234
        %v6245 = vsel %vm6238, %v6241, %v6244
        %v6246 = vsel %vm6235, nan, %v6245
        %v6247 = vand.u32 2147483647, %v1342
        %vm6248 = vcmp.le.f32.partialorder %v6247, 0.7853982
        %vm6249 = vcmp.lt.s32.totalorder %v1342, 0
        %v6250 = vand.u32 %v1342, 2139095040
        %v6251 = vshrl.u32 %v6250, 23
        %v6252 = vsub.s32 %v6251, 127
        %v6253 = vand.u32 2147483647, %v1342
        %v6254 = vand.u32 %v6253, 8388607
        %v6255 = vor.u32 %v6254, 8388608
        %v6256 = vsub.s32 0, %v6255
        %v6257 = vadd.s32 %v6252, 1
        %vm6258 = vcmp.gt.s32.totalorder %v6257, 0
        %v6259 = vsel %vm6258, %v6257, 0
        %v6260 = vshrl.u32 %v6259, 5
        %v6261 = vand.u32 %v6259, 31
        %v6262 = vsub.s32 32, %v6261
        %v6263 = vshrl.u32 683565275, %v6262
        %v6264 = vshll.u32 683565275, %v6261
        %v6265 = vshrl.u32 2475754826, %v6262
        %v6266 = vor.u32 %v6264, %v6265
        %v6267 = vshll.u32 2475754826, %v6261
        %v6268 = vshrl.u32 2131351028, %v6262
        %v6269 = vor.u32 %v6267, %v6268
        %v6270 = vshll.u32 2131351028, %v6261
        %v6271 = vshrl.u32 2102212464, %v6262
        %v6272 = vor.u32 %v6270, %v6271
        %v6273 = vshll.u32 2102212464, %v6261
        %v6274 = vshrl.u32 920167782, %v6262
        %v6275 = vor.u32 %v6273, %v6274
        %v6276 = vshll.u32 920167782, %v6261
        %v6277 = vshrl.u32 1326507024, %v6262
        %v6278 = vor.u32 %v6276, %v6277
        %vm6279 = vcmp.lt.s32.totalorder %v6260, 1
        %vm6280 = vcmp.lt.s32.totalorder %v6260, 2
        %vm6281 = vcmp.lt.s32.totalorder %v6260, 3
        %vm6282 = vcmp.lt.s32.totalorder %v6260, 4
        %v6283 = vsel %vm6279, %v6263, %v6266
        %v6284 = vsel %vm6282, %v6272, 2102212464
        %v6285 = vsel %vm6281, %v6269, %v6284
        %v6286 = vsel %vm6280, %v6283, %v6285
        %v6287 = vsel %vm6279, %v6266, %v6269
        %v6288 = vsel %vm6282, %v6275, 920167782
        %v6289 = vsel %vm6281, %v6272, %v6288
        %v6290 = vsel %vm6280, %v6287, %v6289
        %v6291 = vsel %vm6279, %v6269, %v6272
        %v6292 = vsel %vm6282, %v6278, 1326507024
        %v6293 = vsel %vm6281, %v6275, %v6292
        %v6294 = vsel %vm6280, %v6291, %v6293
        %v6295 = vshll.u32 %v6255, 8
        %v6296 = vmul.u32.u64.compose %v6295, %v6294
        %v6297 = vextract.low.u32 %v6296
        %v6298 = vextract.high.u32 %v6296
        %v6299 = vmul.u32.u64.compose %v6295, %v6290
        %v6300 = vextract.low.u32 %v6299
        %v6301 = vextract.high.u32 %v6299
        %v6302 = vmul.u32 %v6295, %v6286
        %v6303 = vadd.s32 %v6298, %v6300
        %vm6304 = vc.u32 %v6298, %v6300
        %v6305 = vadd.s32 %v6301, 1
        %v6306 = vsel %vm6304, %v6305, %v6301
        %v6307 = vadd.s32 %v6302, %v6306
        %v6308 = vadd.s32 %v6307, 536870912
        %v6309 = vshrl.u32 %v6308, 30
        %v6310 = vshll.u32 %v6309, 30
        %v6311 = vsub.s32 %v6307, %v6310
        %vm6312 = vcmp.lt.s32.totalorder %v6311, 0
        %v6313 = vsub.s32 0, %v6311
        %v6314 = vsel %vm6312, %v6313, %v6311
        %v6315 = vclz %v6314
        %v6316 = vsub.s32 %v6315, 2
        %vm6317 = vcmp.gt.s32.totalorder 0, %v6316
        %v6318 = vsel %vm6317, 0, %v6316
        %v6319 = vsub.s32 32, %v6318
        %v6320 = vshll.u32 %v6311, %v6318
        %v6321 = vshrl.u32 %v6303, %v6319
        %v6322 = vor.u32 %v6320, %v6321
        %v6323 = vsub.s32 4294967266, %v6318
        %v6324 = vadd.s32 %v6323, 127
        %v6325 = vshll.u32 %v6324, 23
        %v6326 = vor.u32 4788187, %v6325
        %v6327 = vand.u32 2147483647, %v6326
        %v6329 = vcvt.s32.f32 %v6322
        %v6330 = vmul.f32 %v6329, %v6327
        %v6331 = vxor.u32 %v6330, 2147483648
        %v6332 = vsel %vm6249, %v6331, %v6330
        %v6333 = vsub.s32 4, %v6309
        %v6334 = vsel %vm6249, %v6333, %v6309
        %v6335 = vsel %vm6248, %v1342, %v6332
        %v6336 = vsel %vm6248, 0, %v6334
        %v6337 = vcosq.f32.pop %v6335
        %v6338 = vsinq.f32.pop %v6335
        %vm6339 = vweird.f32 %v1342
        %v6340 = vadd.s32 %v6336, 3
        %v6341 = vand.u32 %v6340, 3
        %vm6342 = vcmp.lt.s32.totalorder %v6341, 2
        %vm6343 = vcmp.eq.s32.totalorder %v6341, 0
        %v6344 = vxor.u32 %v6338, 2147483648
        %v6345 = vsel %vm6343, %v6337, %v6344
        %vm6346 = vcmp.eq.s32.totalorder %v6341, 2
        %v6347 = vxor.u32 %v6337, 2147483648
        %v6348 = vsel %vm6346, %v6347, %v6338
        %v6349 = vsel %vm6342, %v6345, %v6348
        %v6350 = vsel %vm6339, nan, %v6349
        %v6351 = vand.u32 2147483647, %v1343
        %vm6352 = vcmp.le.f32.partialorder %v6351, 0.7853982
        %vm6353 = vcmp.lt.s32.totalorder %v1343, 0
        %v6354 = vand.u32 %v1343, 2139095040
        %v6355 = vshrl.u32 %v6354, 23
        %v6356 = vsub.s32 %v6355, 127
        %v6357 = vand.u32 2147483647, %v1343
        %v6358 = vand.u32 %v6357, 8388607
        %v6359 = vor.u32 %v6358, 8388608
        %v6360 = vsub.s32 0, %v6359
        %v6361 = vadd.s32 %v6356, 1
        %vm6362 = vcmp.gt.s32.totalorder %v6361, 0
        %v6363 = vsel %vm6362, %v6361, 0
        %v6364 = vshrl.u32 %v6363, 5
        %v6365 = vand.u32 %v6363, 31
        %v6366 = vsub.s32 32, %v6365
        %v6367 = vshrl.u32 683565275, %v6366
        %v6368 = vshll.u32 683565275, %v6365
        %v6369 = vshrl.u32 2475754826, %v6366
        %v6370 = vor.u32 %v6368, %v6369
        %v6371 = vshll.u32 2475754826, %v6365
        %v6372 = vshrl.u32 2131351028, %v6366
        %v6373 = vor.u32 %v6371, %v6372
        %v6374 = vshll.u32 2131351028, %v6365
        %v6375 = vshrl.u32 2102212464, %v6366
        %v6376 = vor.u32 %v6374, %v6375
        %v6377 = vshll.u32 2102212464, %v6365
        %v6378 = vshrl.u32 920167782, %v6366
        %v6379 = vor.u32 %v6377, %v6378
        %v6380 = vshll.u32 920167782, %v6365
        %v6381 = vshrl.u32 1326507024, %v6366
        %v6382 = vor.u32 %v6380, %v6381
        %vm6383 = vcmp.lt.s32.totalorder %v6364, 1
        %vm6384 = vcmp.lt.s32.totalorder %v6364, 2
        %vm6385 = vcmp.lt.s32.totalorder %v6364, 3
        %vm6386 = vcmp.lt.s32.totalorder %v6364, 4
        %v6387 = vsel %vm6383, %v6367, %v6370
        %v6388 = vsel %vm6386, %v6376, 2102212464
        %v6389 = vsel %vm6385, %v6373, %v6388
        %v6390 = vsel %vm6384, %v6387, %v6389
        %v6391 = vsel %vm6383, %v6370, %v6373
        %v6392 = vsel %vm6386, %v6379, 920167782
        %v6393 = vsel %vm6385, %v6376, %v6392
        %v6394 = vsel %vm6384, %v6391, %v6393
        %v6395 = vsel %vm6383, %v6373, %v6376
        %v6396 = vsel %vm6386, %v6382, 1326507024
        %v6397 = vsel %vm6385, %v6379, %v6396
        %v6398 = vsel %vm6384, %v6395, %v6397
        %v6399 = vshll.u32 %v6359, 8
        %v6400 = vmul.u32.u64.compose %v6399, %v6398
        %v6401 = vextract.low.u32 %v6400
        %v6402 = vextract.high.u32 %v6400
        %v6403 = vmul.u32.u64.compose %v6399, %v6394
        %v6404 = vextract.low.u32 %v6403
        %v6405 = vextract.high.u32 %v6403
        %v6406 = vmul.u32 %v6399, %v6390
        %v6407 = vadd.s32 %v6402, %v6404
        %vm6408 = vc.u32 %v6402, %v6404
        %v6409 = vadd.s32 %v6405, 1
        %v6410 = vsel %vm6408, %v6409, %v6405
        %v6411 = vadd.s32 %v6406, %v6410
        %v6412 = vadd.s32 %v6411, 536870912
        %v6413 = vshrl.u32 %v6412, 30
        %v6414 = vshll.u32 %v6413, 30
        %v6415 = vsub.s32 %v6411, %v6414
        %vm6416 = vcmp.lt.s32.totalorder %v6415, 0
        %v6417 = vsub.s32 0, %v6415
        %v6418 = vsel %vm6416, %v6417, %v6415
        %v6419 = vclz %v6418
        %v6420 = vsub.s32 %v6419, 2
        %vm6421 = vcmp.gt.s32.totalorder 0, %v6420
        %v6422 = vsel %vm6421, 0, %v6420
        %v6423 = vsub.s32 32, %v6422
        %v6424 = vshll.u32 %v6415, %v6422
        %v6425 = vshrl.u32 %v6407, %v6423
        %v6426 = vor.u32 %v6424, %v6425
        %v6427 = vsub.s32 4294967266, %v6422
        %v6428 = vadd.s32 %v6427, 127
        %v6429 = vshll.u32 %v6428, 23
        %v6430 = vor.u32 4788187, %v6429
        %v6431 = vand.u32 2147483647, %v6430
        %v6433 = vcvt.s32.f32 %v6426
        %v6434 = vmul.f32 %v6433, %v6431
        %v6435 = vxor.u32 %v6434, 2147483648
        %v6436 = vsel %vm6353, %v6435, %v6434
        %v6437 = vsub.s32 4, %v6413
        %v6438 = vsel %vm6353, %v6437, %v6413
        %v6439 = vsel %vm6352, %v1343, %v6436
        %v6440 = vsel %vm6352, 0, %v6438
        %v6441 = vcosq.f32.pop %v6439
        %v6442 = vsinq.f32.pop %v6439
        %vm6443 = vweird.f32 %v1343
        %v6444 = vadd.s32 %v6440, 3
        %v6445 = vand.u32 %v6444, 3
        %vm6446 = vcmp.lt.s32.totalorder %v6445, 2
        %vm6447 = vcmp.eq.s32.totalorder %v6445, 0
        %v6448 = vxor.u32 %v6442, 2147483648
        %v6449 = vsel %vm6447, %v6441, %v6448
        %vm6450 = vcmp.eq.s32.totalorder %v6445, 2
        %v6451 = vxor.u32 %v6441, 2147483648
        %v6452 = vsel %vm6450, %v6451, %v6442
        %v6453 = vsel %vm6446, %v6449, %v6452
        %v6454 = vsel %vm6443, nan, %v6453
        %v6455 = vand.u32 2147483647, %v1344
        %vm6456 = vcmp.le.f32.partialorder %v6455, 0.7853982
        %vm6457 = vcmp.lt.s32.totalorder %v1344, 0
        %v6458 = vand.u32 %v1344, 2139095040
        %v6459 = vshrl.u32 %v6458, 23
        %v6460 = vsub.s32 %v6459, 127
        %v6461 = vand.u32 2147483647, %v1344
        %v6462 = vand.u32 %v6461, 8388607
        %v6463 = vor.u32 %v6462, 8388608
        %v6464 = vsub.s32 0, %v6463
        %v6465 = vadd.s32 %v6460, 1
        %vm6466 = vcmp.gt.s32.totalorder %v6465, 0
        %v6467 = vsel %vm6466, %v6465, 0
        %v6468 = vshrl.u32 %v6467, 5
        %v6469 = vand.u32 %v6467, 31
        %v6470 = vsub.s32 32, %v6469
        %v6471 = vshrl.u32 683565275, %v6470
        %v6472 = vshll.u32 683565275, %v6469
        %v6473 = vshrl.u32 2475754826, %v6470
        %v6474 = vor.u32 %v6472, %v6473
        %v6475 = vshll.u32 2475754826, %v6469
        %v6476 = vshrl.u32 2131351028, %v6470
        %v6477 = vor.u32 %v6475, %v6476
        %v6478 = vshll.u32 2131351028, %v6469
        %v6479 = vshrl.u32 2102212464, %v6470
        %v6480 = vor.u32 %v6478, %v6479
        %v6481 = vshll.u32 2102212464, %v6469
        %v6482 = vshrl.u32 920167782, %v6470
        %v6483 = vor.u32 %v6481, %v6482
        %v6484 = vshll.u32 920167782, %v6469
        %v6485 = vshrl.u32 1326507024, %v6470
        %v6486 = vor.u32 %v6484, %v6485
        %vm6487 = vcmp.lt.s32.totalorder %v6468, 1
        %vm6488 = vcmp.lt.s32.totalorder %v6468, 2
        %vm6489 = vcmp.lt.s32.totalorder %v6468, 3
        %vm6490 = vcmp.lt.s32.totalorder %v6468, 4
        %v6491 = vsel %vm6487, %v6471, %v6474
        %v6492 = vsel %vm6490, %v6480, 2102212464
        %v6493 = vsel %vm6489, %v6477, %v6492
        %v6494 = vsel %vm6488, %v6491, %v6493
        %v6495 = vsel %vm6487, %v6474, %v6477
        %v6496 = vsel %vm6490, %v6483, 920167782
        %v6497 = vsel %vm6489, %v6480, %v6496
        %v6498 = vsel %vm6488, %v6495, %v6497
        %v6499 = vsel %vm6487, %v6477, %v6480
        %v6500 = vsel %vm6490, %v6486, 1326507024
        %v6501 = vsel %vm6489, %v6483, %v6500
        %v6502 = vsel %vm6488, %v6499, %v6501
        %v6503 = vshll.u32 %v6463, 8
        %v6504 = vmul.u32.u64.compose %v6503, %v6502
        %v6505 = vextract.low.u32 %v6504
        %v6506 = vextract.high.u32 %v6504
        %v6507 = vmul.u32.u64.compose %v6503, %v6498
        %v6508 = vextract.low.u32 %v6507
        %v6509 = vextract.high.u32 %v6507
        %v6510 = vmul.u32 %v6503, %v6494
        %v6511 = vadd.s32 %v6506, %v6508
        %vm6512 = vc.u32 %v6506, %v6508
        %v6513 = vadd.s32 %v6509, 1
        %v6514 = vsel %vm6512, %v6513, %v6509
        %v6515 = vadd.s32 %v6510, %v6514
        %v6516 = vadd.s32 %v6515, 536870912
        %v6517 = vshrl.u32 %v6516, 30
        %v6518 = vshll.u32 %v6517, 30
        %v6519 = vsub.s32 %v6515, %v6518
        %vm6520 = vcmp.lt.s32.totalorder %v6519, 0
        %v6521 = vsub.s32 0, %v6519
        %v6522 = vsel %vm6520, %v6521, %v6519
        %v6523 = vclz %v6522
        %v6524 = vsub.s32 %v6523, 2
        %vm6525 = vcmp.gt.s32.totalorder 0, %v6524
        %v6526 = vsel %vm6525, 0, %v6524
        %v6527 = vsub.s32 32, %v6526
        %v6528 = vshll.u32 %v6519, %v6526
        %v6529 = vshrl.u32 %v6511, %v6527
        %v6530 = vor.u32 %v6528, %v6529
        %v6531 = vsub.s32 4294967266, %v6526
        %v6532 = vadd.s32 %v6531, 127
        %v6533 = vshll.u32 %v6532, 23
        %v6534 = vor.u32 4788187, %v6533
        %v6535 = vand.u32 2147483647, %v6534
        %v6537 = vcvt.s32.f32 %v6530
        %v6538 = vmul.f32 %v6537, %v6535
        %v6539 = vxor.u32 %v6538, 2147483648
        %v6540 = vsel %vm6457, %v6539, %v6538
        %v6541 = vsub.s32 4, %v6517
        %v6542 = vsel %vm6457, %v6541, %v6517
        %v6543 = vsel %vm6456, %v1344, %v6540
        %v6544 = vsel %vm6456, 0, %v6542
        %v6545 = vcosq.f32.pop %v6543
        %v6546 = vsinq.f32.pop %v6543
        %vm6547 = vweird.f32 %v1344
        %v6548 = vadd.s32 %v6544, 3
        %v6549 = vand.u32 %v6548, 3
        %vm6550 = vcmp.lt.s32.totalorder %v6549, 2
        %vm6551 = vcmp.eq.s32.totalorder %v6549, 0
        %v6552 = vxor.u32 %v6546, 2147483648
        %v6553 = vsel %vm6551, %v6545, %v6552
        %vm6554 = vcmp.eq.s32.totalorder %v6549, 2
        %v6555 = vxor.u32 %v6545, 2147483648
        %v6556 = vsel %vm6554, %v6555, %v6546
        %v6557 = vsel %vm6550, %v6553, %v6556
        %v6558 = vsel %vm6547, nan, %v6557
        %v6559 = vand.u32 2147483647, %v1345
        %vm6560 = vcmp.le.f32.partialorder %v6559, 0.7853982
        %vm6561 = vcmp.lt.s32.totalorder %v1345, 0
        %v6562 = vand.u32 %v1345, 2139095040
        %v6563 = vshrl.u32 %v6562, 23
        %v6564 = vsub.s32 %v6563, 127
        %v6565 = vand.u32 2147483647, %v1345
        %v6566 = vand.u32 %v6565, 8388607
        %v6567 = vor.u32 %v6566, 8388608
        %v6568 = vsub.s32 0, %v6567
        %v6569 = vadd.s32 %v6564, 1
        %vm6570 = vcmp.gt.s32.totalorder %v6569, 0
        %v6571 = vsel %vm6570, %v6569, 0
        %v6572 = vshrl.u32 %v6571, 5
        %v6573 = vand.u32 %v6571, 31
        %v6574 = vsub.s32 32, %v6573
        %v6575 = vshrl.u32 683565275, %v6574
        %v6576 = vshll.u32 683565275, %v6573
        %v6577 = vshrl.u32 2475754826, %v6574
        %v6578 = vor.u32 %v6576, %v6577
        %v6579 = vshll.u32 2475754826, %v6573
        %v6580 = vshrl.u32 2131351028, %v6574
        %v6581 = vor.u32 %v6579, %v6580
        %v6582 = vshll.u32 2131351028, %v6573
        %v6583 = vshrl.u32 2102212464, %v6574
        %v6584 = vor.u32 %v6582, %v6583
        %v6585 = vshll.u32 2102212464, %v6573
        %v6586 = vshrl.u32 920167782, %v6574
        %v6587 = vor.u32 %v6585, %v6586
        %v6588 = vshll.u32 920167782, %v6573
        %v6589 = vshrl.u32 1326507024, %v6574
        %v6590 = vor.u32 %v6588, %v6589
        %vm6591 = vcmp.lt.s32.totalorder %v6572, 1
        %vm6592 = vcmp.lt.s32.totalorder %v6572, 2
        %vm6593 = vcmp.lt.s32.totalorder %v6572, 3
        %vm6594 = vcmp.lt.s32.totalorder %v6572, 4
        %v6595 = vsel %vm6591, %v6575, %v6578
        %v6596 = vsel %vm6594, %v6584, 2102212464
        %v6597 = vsel %vm6593, %v6581, %v6596
        %v6598 = vsel %vm6592, %v6595, %v6597
        %v6599 = vsel %vm6591, %v6578, %v6581
        %v6600 = vsel %vm6594, %v6587, 920167782
        %v6601 = vsel %vm6593, %v6584, %v6600
        %v6602 = vsel %vm6592, %v6599, %v6601
        %v6603 = vsel %vm6591, %v6581, %v6584
        %v6604 = vsel %vm6594, %v6590, 1326507024
        %v6605 = vsel %vm6593, %v6587, %v6604
        %v6606 = vsel %vm6592, %v6603, %v6605
        %v6607 = vshll.u32 %v6567, 8
        %v6608 = vmul.u32.u64.compose %v6607, %v6606
        %v6609 = vextract.low.u32 %v6608
        %v6610 = vextract.high.u32 %v6608
        %v6611 = vmul.u32.u64.compose %v6607, %v6602
        %v6612 = vextract.low.u32 %v6611
        %v6613 = vextract.high.u32 %v6611
        %v6614 = vmul.u32 %v6607, %v6598
        %v6615 = vadd.s32 %v6610, %v6612
        %vm6616 = vc.u32 %v6610, %v6612
        %v6617 = vadd.s32 %v6613, 1
        %v6618 = vsel %vm6616, %v6617, %v6613
        %v6619 = vadd.s32 %v6614, %v6618
        %v6620 = vadd.s32 %v6619, 536870912
        %v6621 = vshrl.u32 %v6620, 30
        %v6622 = vshll.u32 %v6621, 30
        %v6623 = vsub.s32 %v6619, %v6622
        %vm6624 = vcmp.lt.s32.totalorder %v6623, 0
        %v6625 = vsub.s32 0, %v6623
        %v6626 = vsel %vm6624, %v6625, %v6623
        %v6627 = vclz %v6626
        %v6628 = vsub.s32 %v6627, 2
        %vm6629 = vcmp.gt.s32.totalorder 0, %v6628
        %v6630 = vsel %vm6629, 0, %v6628
        %v6631 = vsub.s32 32, %v6630
        %v6632 = vshll.u32 %v6623, %v6630
        %v6633 = vshrl.u32 %v6615, %v6631
        %v6634 = vor.u32 %v6632, %v6633
        %v6635 = vsub.s32 4294967266, %v6630
        %v6636 = vadd.s32 %v6635, 127
        %v6637 = vshll.u32 %v6636, 23
        %v6638 = vor.u32 4788187, %v6637
        %v6639 = vand.u32 2147483647, %v6638
        %v6641 = vcvt.s32.f32 %v6634
        %v6642 = vmul.f32 %v6641, %v6639
        %v6643 = vxor.u32 %v6642, 2147483648
        %v6644 = vsel %vm6561, %v6643, %v6642
        %v6645 = vsub.s32 4, %v6621
        %v6646 = vsel %vm6561, %v6645, %v6621
        %v6647 = vsel %vm6560, %v1345, %v6644
        %v6648 = vsel %vm6560, 0, %v6646
        %v6649 = vcosq.f32.pop %v6647
        %v6650 = vsinq.f32.pop %v6647
        %vm6651 = vweird.f32 %v1345
        %v6652 = vadd.s32 %v6648, 3
        %v6653 = vand.u32 %v6652, 3
        %vm6654 = vcmp.lt.s32.totalorder %v6653, 2
        %vm6655 = vcmp.eq.s32.totalorder %v6653, 0
        %v6656 = vxor.u32 %v6650, 2147483648
        %v6657 = vsel %vm6655, %v6649, %v6656
        %vm6658 = vcmp.eq.s32.totalorder %v6653, 2
        %v6659 = vxor.u32 %v6649, 2147483648
        %v6660 = vsel %vm6658, %v6659, %v6650
        %v6661 = vsel %vm6654, %v6657, %v6660
        %v6662 = vsel %vm6651, nan, %v6661
        %v6663 = vand.u32 2147483647, %v1346
        %vm6664 = vcmp.le.f32.partialorder %v6663, 0.7853982
        %vm6665 = vcmp.lt.s32.totalorder %v1346, 0
        %v6666 = vand.u32 %v1346, 2139095040
        %v6667 = vshrl.u32 %v6666, 23
        %v6668 = vsub.s32 %v6667, 127
        %v6669 = vand.u32 2147483647, %v1346
        %v6670 = vand.u32 %v6669, 8388607
        %v6671 = vor.u32 %v6670, 8388608
        %v6672 = vsub.s32 0, %v6671
        %v6673 = vadd.s32 %v6668, 1
        %vm6674 = vcmp.gt.s32.totalorder %v6673, 0
        %v6675 = vsel %vm6674, %v6673, 0
        %v6676 = vshrl.u32 %v6675, 5
        %v6677 = vand.u32 %v6675, 31
        %v6678 = vsub.s32 32, %v6677
        %v6679 = vshrl.u32 683565275, %v6678
        %v6680 = vshll.u32 683565275, %v6677
        %v6681 = vshrl.u32 2475754826, %v6678
        %v6682 = vor.u32 %v6680, %v6681
        %v6683 = vshll.u32 2475754826, %v6677
        %v6684 = vshrl.u32 2131351028, %v6678
        %v6685 = vor.u32 %v6683, %v6684
        %v6686 = vshll.u32 2131351028, %v6677
        %v6687 = vshrl.u32 2102212464, %v6678
        %v6688 = vor.u32 %v6686, %v6687
        %v6689 = vshll.u32 2102212464, %v6677
        %v6690 = vshrl.u32 920167782, %v6678
        %v6691 = vor.u32 %v6689, %v6690
        %v6692 = vshll.u32 920167782, %v6677
        %v6693 = vshrl.u32 1326507024, %v6678
        %v6694 = vor.u32 %v6692, %v6693
        %vm6695 = vcmp.lt.s32.totalorder %v6676, 1
        %vm6696 = vcmp.lt.s32.totalorder %v6676, 2
        %vm6697 = vcmp.lt.s32.totalorder %v6676, 3
        %vm6698 = vcmp.lt.s32.totalorder %v6676, 4
        %v6699 = vsel %vm6695, %v6679, %v6682
        %v6700 = vsel %vm6698, %v6688, 2102212464
        %v6701 = vsel %vm6697, %v6685, %v6700
        %v6702 = vsel %vm6696, %v6699, %v6701
        %v6703 = vsel %vm6695, %v6682, %v6685
        %v6704 = vsel %vm6698, %v6691, 920167782
        %v6705 = vsel %vm6697, %v6688, %v6704
        %v6706 = vsel %vm6696, %v6703, %v6705
        %v6707 = vsel %vm6695, %v6685, %v6688
        %v6708 = vsel %vm6698, %v6694, 1326507024
        %v6709 = vsel %vm6697, %v6691, %v6708
        %v6710 = vsel %vm6696, %v6707, %v6709
        %v6711 = vshll.u32 %v6671, 8
        %v6712 = vmul.u32.u64.compose %v6711, %v6710
        %v6713 = vextract.low.u32 %v6712
        %v6714 = vextract.high.u32 %v6712
        %v6715 = vmul.u32.u64.compose %v6711, %v6706
        %v6716 = vextract.low.u32 %v6715
        %v6717 = vextract.high.u32 %v6715
        %v6718 = vmul.u32 %v6711, %v6702
        %v6719 = vadd.s32 %v6714, %v6716
        %vm6720 = vc.u32 %v6714, %v6716
        %v6721 = vadd.s32 %v6717, 1
        %v6722 = vsel %vm6720, %v6721, %v6717
        %v6723 = vadd.s32 %v6718, %v6722
        %v6724 = vadd.s32 %v6723, 536870912
        %v6725 = vshrl.u32 %v6724, 30
        %v6726 = vshll.u32 %v6725, 30
        %v6727 = vsub.s32 %v6723, %v6726
        %vm6728 = vcmp.lt.s32.totalorder %v6727, 0
        %v6729 = vsub.s32 0, %v6727
        %v6730 = vsel %vm6728, %v6729, %v6727
        %v6731 = vclz %v6730
        %v6732 = vsub.s32 %v6731, 2
        %vm6733 = vcmp.gt.s32.totalorder 0, %v6732
        %v6734 = vsel %vm6733, 0, %v6732
        %v6735 = vsub.s32 32, %v6734
        %v6736 = vshll.u32 %v6727, %v6734
        %v6737 = vshrl.u32 %v6719, %v6735
        %v6738 = vor.u32 %v6736, %v6737
        %v6739 = vsub.s32 4294967266, %v6734
        %v6740 = vadd.s32 %v6739, 127
        %v6741 = vshll.u32 %v6740, 23
        %v6742 = vor.u32 4788187, %v6741
        %v6743 = vand.u32 2147483647, %v6742
        %v6745 = vcvt.s32.f32 %v6738
        %v6746 = vmul.f32 %v6745, %v6743
        %v6747 = vxor.u32 %v6746, 2147483648
        %v6748 = vsel %vm6665, %v6747, %v6746
        %v6749 = vsub.s32 4, %v6725
        %v6750 = vsel %vm6665, %v6749, %v6725
        %v6751 = vsel %vm6664, %v1346, %v6748
        %v6752 = vsel %vm6664, 0, %v6750
        %v6753 = vcosq.f32.pop %v6751
        %v6754 = vsinq.f32.pop %v6751
        %vm6755 = vweird.f32 %v1346
        %v6756 = vadd.s32 %v6752, 3
        %v6757 = vand.u32 %v6756, 3
        %vm6758 = vcmp.lt.s32.totalorder %v6757, 2
        %vm6759 = vcmp.eq.s32.totalorder %v6757, 0
        %v6760 = vxor.u32 %v6754, 2147483648
        %v6761 = vsel %vm6759, %v6753, %v6760
        %vm6762 = vcmp.eq.s32.totalorder %v6757, 2
        %v6763 = vxor.u32 %v6753, 2147483648
        %v6764 = vsel %vm6762, %v6763, %v6754
        %v6765 = vsel %vm6758, %v6761, %v6764
        %v6766 = vsel %vm6755, nan, %v6765
        %v6767 = vand.u32 2147483647, %v1347
        %vm6768 = vcmp.le.f32.partialorder %v6767, 0.7853982
        %vm6769 = vcmp.lt.s32.totalorder %v1347, 0
        %v6770 = vand.u32 %v1347, 2139095040
        %v6771 = vshrl.u32 %v6770, 23
        %v6772 = vsub.s32 %v6771, 127
        %v6773 = vand.u32 2147483647, %v1347
        %v6774 = vand.u32 %v6773, 8388607
        %v6775 = vor.u32 %v6774, 8388608
        %v6776 = vsub.s32 0, %v6775
        %v6777 = vadd.s32 %v6772, 1
        %vm6778 = vcmp.gt.s32.totalorder %v6777, 0
        %v6779 = vsel %vm6778, %v6777, 0
        %v6780 = vshrl.u32 %v6779, 5
        %v6781 = vand.u32 %v6779, 31
        %v6782 = vsub.s32 32, %v6781
        %v6783 = vshrl.u32 683565275, %v6782
        %v6784 = vshll.u32 683565275, %v6781
        %v6785 = vshrl.u32 2475754826, %v6782
        %v6786 = vor.u32 %v6784, %v6785
        %v6787 = vshll.u32 2475754826, %v6781
        %v6788 = vshrl.u32 2131351028, %v6782
        %v6789 = vor.u32 %v6787, %v6788
        %v6790 = vshll.u32 2131351028, %v6781
        %v6791 = vshrl.u32 2102212464, %v6782
        %v6792 = vor.u32 %v6790, %v6791
        %v6793 = vshll.u32 2102212464, %v6781
        %v6794 = vshrl.u32 920167782, %v6782
        %v6795 = vor.u32 %v6793, %v6794
        %v6796 = vshll.u32 920167782, %v6781
        %v6797 = vshrl.u32 1326507024, %v6782
        %v6798 = vor.u32 %v6796, %v6797
        %vm6799 = vcmp.lt.s32.totalorder %v6780, 1
        %vm6800 = vcmp.lt.s32.totalorder %v6780, 2
        %vm6801 = vcmp.lt.s32.totalorder %v6780, 3
        %vm6802 = vcmp.lt.s32.totalorder %v6780, 4
        %v6803 = vsel %vm6799, %v6783, %v6786
        %v6804 = vsel %vm6802, %v6792, 2102212464
        %v6805 = vsel %vm6801, %v6789, %v6804
        %v6806 = vsel %vm6800, %v6803, %v6805
        %v6807 = vsel %vm6799, %v6786, %v6789
        %v6808 = vsel %vm6802, %v6795, 920167782
        %v6809 = vsel %vm6801, %v6792, %v6808
        %v6810 = vsel %vm6800, %v6807, %v6809
        %v6811 = vsel %vm6799, %v6789, %v6792
        %v6812 = vsel %vm6802, %v6798, 1326507024
        %v6813 = vsel %vm6801, %v6795, %v6812
        %v6814 = vsel %vm6800, %v6811, %v6813
        %v6815 = vshll.u32 %v6775, 8
        %v6816 = vmul.u32.u64.compose %v6815, %v6814
        %v6817 = vextract.low.u32 %v6816
        %v6818 = vextract.high.u32 %v6816
        %v6819 = vmul.u32.u64.compose %v6815, %v6810
        %v6820 = vextract.low.u32 %v6819
        %v6821 = vextract.high.u32 %v6819
        %v6822 = vmul.u32 %v6815, %v6806
        %v6823 = vadd.s32 %v6818, %v6820
        %vm6824 = vc.u32 %v6818, %v6820
        %v6825 = vadd.s32 %v6821, 1
        %v6826 = vsel %vm6824, %v6825, %v6821
        %v6827 = vadd.s32 %v6822, %v6826
        %v6828 = vadd.s32 %v6827, 536870912
        %v6829 = vshrl.u32 %v6828, 30
        %v6830 = vshll.u32 %v6829, 30
        %v6831 = vsub.s32 %v6827, %v6830
        %vm6832 = vcmp.lt.s32.totalorder %v6831, 0
        %v6833 = vsub.s32 0, %v6831
        %v6834 = vsel %vm6832, %v6833, %v6831
        %v6835 = vclz %v6834
        %v6836 = vsub.s32 %v6835, 2
        %vm6837 = vcmp.gt.s32.totalorder 0, %v6836
        %v6838 = vsel %vm6837, 0, %v6836
        %v6839 = vsub.s32 32, %v6838
        %v6840 = vshll.u32 %v6831, %v6838
        %v6841 = vshrl.u32 %v6823, %v6839
        %v6842 = vor.u32 %v6840, %v6841
        %v6843 = vsub.s32 4294967266, %v6838
        %v6844 = vadd.s32 %v6843, 127
        %v6845 = vshll.u32 %v6844, 23
        %v6846 = vor.u32 4788187, %v6845
        %v6847 = vand.u32 2147483647, %v6846
        %v6849 = vcvt.s32.f32 %v6842
        %v6850 = vmul.f32 %v6849, %v6847
        %v6851 = vxor.u32 %v6850, 2147483648
        %v6852 = vsel %vm6769, %v6851, %v6850
        %v6853 = vsub.s32 4, %v6829
        %v6854 = vsel %vm6769, %v6853, %v6829
        %v6855 = vsel %vm6768, %v1347, %v6852
        %v6856 = vsel %vm6768, 0, %v6854
        %v6857 = vcosq.f32.pop %v6855
        %v6858 = vsinq.f32.pop %v6855
        %vm6859 = vweird.f32 %v1347
        %v6860 = vadd.s32 %v6856, 3
        %v6861 = vand.u32 %v6860, 3
        %vm6862 = vcmp.lt.s32.totalorder %v6861, 2
        %vm6863 = vcmp.eq.s32.totalorder %v6861, 0
        %v6864 = vxor.u32 %v6858, 2147483648
        %v6865 = vsel %vm6863, %v6857, %v6864
        %vm6866 = vcmp.eq.s32.totalorder %v6861, 2
        %v6867 = vxor.u32 %v6857, 2147483648
        %v6868 = vsel %vm6866, %v6867, %v6858
        %v6869 = vsel %vm6862, %v6865, %v6868
        %v6870 = vsel %vm6859, nan, %v6869
        %v6871 = vand.u32 2147483647, %v1348
        %vm6872 = vcmp.le.f32.partialorder %v6871, 0.7853982
        %vm6873 = vcmp.lt.s32.totalorder %v1348, 0
        %v6874 = vand.u32 %v1348, 2139095040
        %v6875 = vshrl.u32 %v6874, 23
        %v6876 = vsub.s32 %v6875, 127
        %v6877 = vand.u32 2147483647, %v1348
        %v6878 = vand.u32 %v6877, 8388607
        %v6879 = vor.u32 %v6878, 8388608
        %v6880 = vsub.s32 0, %v6879
        %v6881 = vadd.s32 %v6876, 1
        %vm6882 = vcmp.gt.s32.totalorder %v6881, 0
        %v6883 = vsel %vm6882, %v6881, 0
        %v6884 = vshrl.u32 %v6883, 5
        %v6885 = vand.u32 %v6883, 31
        %v6886 = vsub.s32 32, %v6885
        %v6887 = vshrl.u32 683565275, %v6886
        %v6888 = vshll.u32 683565275, %v6885
        %v6889 = vshrl.u32 2475754826, %v6886
        %v6890 = vor.u32 %v6888, %v6889
        %v6891 = vshll.u32 2475754826, %v6885
        %v6892 = vshrl.u32 2131351028, %v6886
        %v6893 = vor.u32 %v6891, %v6892
        %v6894 = vshll.u32 2131351028, %v6885
        %v6895 = vshrl.u32 2102212464, %v6886
        %v6896 = vor.u32 %v6894, %v6895
        %v6897 = vshll.u32 2102212464, %v6885
        %v6898 = vshrl.u32 920167782, %v6886
        %v6899 = vor.u32 %v6897, %v6898
        %v6900 = vshll.u32 920167782, %v6885
        %v6901 = vshrl.u32 1326507024, %v6886
        %v6902 = vor.u32 %v6900, %v6901
        %vm6903 = vcmp.lt.s32.totalorder %v6884, 1
        %vm6904 = vcmp.lt.s32.totalorder %v6884, 2
        %vm6905 = vcmp.lt.s32.totalorder %v6884, 3
        %vm6906 = vcmp.lt.s32.totalorder %v6884, 4
        %v6907 = vsel %vm6903, %v6887, %v6890
        %v6908 = vsel %vm6906, %v6896, 2102212464
        %v6909 = vsel %vm6905, %v6893, %v6908
        %v6910 = vsel %vm6904, %v6907, %v6909
        %v6911 = vsel %vm6903, %v6890, %v6893
        %v6912 = vsel %vm6906, %v6899, 920167782
        %v6913 = vsel %vm6905, %v6896, %v6912
        %v6914 = vsel %vm6904, %v6911, %v6913
        %v6915 = vsel %vm6903, %v6893, %v6896
        %v6916 = vsel %vm6906, %v6902, 1326507024
        %v6917 = vsel %vm6905, %v6899, %v6916
        %v6918 = vsel %vm6904, %v6915, %v6917
        %v6919 = vshll.u32 %v6879, 8
        %v6920 = vmul.u32.u64.compose %v6919, %v6918
        %v6921 = vextract.low.u32 %v6920
        %v6922 = vextract.high.u32 %v6920
        %v6923 = vmul.u32.u64.compose %v6919, %v6914
        %v6924 = vextract.low.u32 %v6923
        %v6925 = vextract.high.u32 %v6923
        %v6926 = vmul.u32 %v6919, %v6910
        %v6927 = vadd.s32 %v6922, %v6924
        %vm6928 = vc.u32 %v6922, %v6924
        %v6929 = vadd.s32 %v6925, 1
        %v6930 = vsel %vm6928, %v6929, %v6925
        %v6931 = vadd.s32 %v6926, %v6930
        %v6932 = vadd.s32 %v6931, 536870912
        %v6933 = vshrl.u32 %v6932, 30
        %v6934 = vshll.u32 %v6933, 30
        %v6935 = vsub.s32 %v6931, %v6934
        %vm6936 = vcmp.lt.s32.totalorder %v6935, 0
        %v6937 = vsub.s32 0, %v6935
        %v6938 = vsel %vm6936, %v6937, %v6935
        %v6939 = vclz %v6938
        %v6940 = vsub.s32 %v6939, 2
        %vm6941 = vcmp.gt.s32.totalorder 0, %v6940
        %v6942 = vsel %vm6941, 0, %v6940
        %v6943 = vsub.s32 32, %v6942
        %v6944 = vshll.u32 %v6935, %v6942
        %v6945 = vshrl.u32 %v6927, %v6943
        %v6946 = vor.u32 %v6944, %v6945
        %v6947 = vsub.s32 4294967266, %v6942
        %v6948 = vadd.s32 %v6947, 127
        %v6949 = vshll.u32 %v6948, 23
        %v6950 = vor.u32 4788187, %v6949
        %v6951 = vand.u32 2147483647, %v6950
        %v6953 = vcvt.s32.f32 %v6946
        %v6954 = vmul.f32 %v6953, %v6951
        %v6955 = vxor.u32 %v6954, 2147483648
        %v6956 = vsel %vm6873, %v6955, %v6954
        %v6957 = vsub.s32 4, %v6933
        %v6958 = vsel %vm6873, %v6957, %v6933
        %v6959 = vsel %vm6872, %v1348, %v6956
        %v6960 = vsel %vm6872, 0, %v6958
        %v6961 = vcosq.f32.pop %v6959
        %v6962 = vsinq.f32.pop %v6959
        %vm6963 = vweird.f32 %v1348
        %v6964 = vadd.s32 %v6960, 3
        %v6965 = vand.u32 %v6964, 3
        %vm6966 = vcmp.lt.s32.totalorder %v6965, 2
        %vm6967 = vcmp.eq.s32.totalorder %v6965, 0
        %v6968 = vxor.u32 %v6962, 2147483648
        %v6969 = vsel %vm6967, %v6961, %v6968
        %vm6970 = vcmp.eq.s32.totalorder %v6965, 2
        %v6971 = vxor.u32 %v6961, 2147483648
        %v6972 = vsel %vm6970, %v6971, %v6962
        %v6973 = vsel %vm6966, %v6969, %v6972
        %v6974 = vsel %vm6963, nan, %v6973
        %v6975 = vand.u32 2147483647, %v1349
        %vm6976 = vcmp.le.f32.partialorder %v6975, 0.7853982
        %vm6977 = vcmp.lt.s32.totalorder %v1349, 0
        %v6978 = vand.u32 %v1349, 2139095040
        %v6979 = vshrl.u32 %v6978, 23
        %v6980 = vsub.s32 %v6979, 127
        %v6981 = vand.u32 2147483647, %v1349
        %v6982 = vand.u32 %v6981, 8388607
        %v6983 = vor.u32 %v6982, 8388608
        %v6984 = vsub.s32 0, %v6983
        %v6985 = vadd.s32 %v6980, 1
        %vm6986 = vcmp.gt.s32.totalorder %v6985, 0
        %v6987 = vsel %vm6986, %v6985, 0
        %v6988 = vshrl.u32 %v6987, 5
        %v6989 = vand.u32 %v6987, 31
        %v6990 = vsub.s32 32, %v6989
        %v6991 = vshrl.u32 683565275, %v6990
        %v6992 = vshll.u32 683565275, %v6989
        %v6993 = vshrl.u32 2475754826, %v6990
        %v6994 = vor.u32 %v6992, %v6993
        %v6995 = vshll.u32 2475754826, %v6989
        %v6996 = vshrl.u32 2131351028, %v6990
        %v6997 = vor.u32 %v6995, %v6996
        %v6998 = vshll.u32 2131351028, %v6989
        %v6999 = vshrl.u32 2102212464, %v6990
        %v7000 = vor.u32 %v6998, %v6999
        %v7001 = vshll.u32 2102212464, %v6989
        %v7002 = vshrl.u32 920167782, %v6990
        %v7003 = vor.u32 %v7001, %v7002
        %v7004 = vshll.u32 920167782, %v6989
        %v7005 = vshrl.u32 1326507024, %v6990
        %v7006 = vor.u32 %v7004, %v7005
        %vm7007 = vcmp.lt.s32.totalorder %v6988, 1
        %vm7008 = vcmp.lt.s32.totalorder %v6988, 2
        %vm7009 = vcmp.lt.s32.totalorder %v6988, 3
        %vm7010 = vcmp.lt.s32.totalorder %v6988, 4
        %v7011 = vsel %vm7007, %v6991, %v6994
        %v7012 = vsel %vm7010, %v7000, 2102212464
        %v7013 = vsel %vm7009, %v6997, %v7012
        %v7014 = vsel %vm7008, %v7011, %v7013
        %v7015 = vsel %vm7007, %v6994, %v6997
        %v7016 = vsel %vm7010, %v7003, 920167782
        %v7017 = vsel %vm7009, %v7000, %v7016
        %v7018 = vsel %vm7008, %v7015, %v7017
        %v7019 = vsel %vm7007, %v6997, %v7000
        %v7020 = vsel %vm7010, %v7006, 1326507024
        %v7021 = vsel %vm7009, %v7003, %v7020
        %v7022 = vsel %vm7008, %v7019, %v7021
        %v7023 = vshll.u32 %v6983, 8
        %v7024 = vmul.u32.u64.compose %v7023, %v7022
        %v7025 = vextract.low.u32 %v7024
        %v7026 = vextract.high.u32 %v7024
        %v7027 = vmul.u32.u64.compose %v7023, %v7018
        %v7028 = vextract.low.u32 %v7027
        %v7029 = vextract.high.u32 %v7027
        %v7030 = vmul.u32 %v7023, %v7014
        %v7031 = vadd.s32 %v7026, %v7028
        %vm7032 = vc.u32 %v7026, %v7028
        %v7033 = vadd.s32 %v7029, 1
        %v7034 = vsel %vm7032, %v7033, %v7029
        %v7035 = vadd.s32 %v7030, %v7034
        %v7036 = vadd.s32 %v7035, 536870912
        %v7037 = vshrl.u32 %v7036, 30
        %v7038 = vshll.u32 %v7037, 30
        %v7039 = vsub.s32 %v7035, %v7038
        %vm7040 = vcmp.lt.s32.totalorder %v7039, 0
        %v7041 = vsub.s32 0, %v7039
        %v7042 = vsel %vm7040, %v7041, %v7039
        %v7043 = vclz %v7042
        %v7044 = vsub.s32 %v7043, 2
        %vm7045 = vcmp.gt.s32.totalorder 0, %v7044
        %v7046 = vsel %vm7045, 0, %v7044
        %v7047 = vsub.s32 32, %v7046
        %v7048 = vshll.u32 %v7039, %v7046
        %v7049 = vshrl.u32 %v7031, %v7047
        %v7050 = vor.u32 %v7048, %v7049
        %v7051 = vsub.s32 4294967266, %v7046
        %v7052 = vadd.s32 %v7051, 127
        %v7053 = vshll.u32 %v7052, 23
        %v7054 = vor.u32 4788187, %v7053
        %v7055 = vand.u32 2147483647, %v7054
        %v7057 = vcvt.s32.f32 %v7050
        %v7058 = vmul.f32 %v7057, %v7055
        %v7059 = vxor.u32 %v7058, 2147483648
        %v7060 = vsel %vm6977, %v7059, %v7058
        %v7061 = vsub.s32 4, %v7037
        %v7062 = vsel %vm6977, %v7061, %v7037
        %v7063 = vsel %vm6976, %v1349, %v7060
        %v7064 = vsel %vm6976, 0, %v7062
        %v7065 = vcosq.f32.pop %v7063
        %v7066 = vsinq.f32.pop %v7063
        %vm7067 = vweird.f32 %v1349
        %v7068 = vadd.s32 %v7064, 3
        %v7069 = vand.u32 %v7068, 3
        %vm7070 = vcmp.lt.s32.totalorder %v7069, 2
        %vm7071 = vcmp.eq.s32.totalorder %v7069, 0
        %v7072 = vxor.u32 %v7066, 2147483648
        %v7073 = vsel %vm7071, %v7065, %v7072
        %vm7074 = vcmp.eq.s32.totalorder %v7069, 2
        %v7075 = vxor.u32 %v7065, 2147483648
        %v7076 = vsel %vm7074, %v7075, %v7066
        %v7077 = vsel %vm7070, %v7073, %v7076
        %v7078 = vsel %vm7067, nan, %v7077
        %v7079 = vand.u32 2147483647, %v1350
        %vm7080 = vcmp.le.f32.partialorder %v7079, 0.7853982
        %vm7081 = vcmp.lt.s32.totalorder %v1350, 0
        %v7082 = vand.u32 %v1350, 2139095040
        %v7083 = vshrl.u32 %v7082, 23
        %v7084 = vsub.s32 %v7083, 127
        %v7085 = vand.u32 2147483647, %v1350
        %v7086 = vand.u32 %v7085, 8388607
        %v7087 = vor.u32 %v7086, 8388608
        %v7088 = vsub.s32 0, %v7087
        %v7089 = vadd.s32 %v7084, 1
        %vm7090 = vcmp.gt.s32.totalorder %v7089, 0
        %v7091 = vsel %vm7090, %v7089, 0
        %v7092 = vshrl.u32 %v7091, 5
        %v7093 = vand.u32 %v7091, 31
        %v7094 = vsub.s32 32, %v7093
        %v7095 = vshrl.u32 683565275, %v7094
        %v7096 = vshll.u32 683565275, %v7093
        %v7097 = vshrl.u32 2475754826, %v7094
        %v7098 = vor.u32 %v7096, %v7097
        %v7099 = vshll.u32 2475754826, %v7093
        %v7100 = vshrl.u32 2131351028, %v7094
        %v7101 = vor.u32 %v7099, %v7100
        %v7102 = vshll.u32 2131351028, %v7093
        %v7103 = vshrl.u32 2102212464, %v7094
        %v7104 = vor.u32 %v7102, %v7103
        %v7105 = vshll.u32 2102212464, %v7093
        %v7106 = vshrl.u32 920167782, %v7094
        %v7107 = vor.u32 %v7105, %v7106
        %v7108 = vshll.u32 920167782, %v7093
        %v7109 = vshrl.u32 1326507024, %v7094
        %v7110 = vor.u32 %v7108, %v7109
        %vm7111 = vcmp.lt.s32.totalorder %v7092, 1
        %vm7112 = vcmp.lt.s32.totalorder %v7092, 2
        %vm7113 = vcmp.lt.s32.totalorder %v7092, 3
        %vm7114 = vcmp.lt.s32.totalorder %v7092, 4
        %v7115 = vsel %vm7111, %v7095, %v7098
        %v7116 = vsel %vm7114, %v7104, 2102212464
        %v7117 = vsel %vm7113, %v7101, %v7116
        %v7118 = vsel %vm7112, %v7115, %v7117
        %v7119 = vsel %vm7111, %v7098, %v7101
        %v7120 = vsel %vm7114, %v7107, 920167782
        %v7121 = vsel %vm7113, %v7104, %v7120
        %v7122 = vsel %vm7112, %v7119, %v7121
        %v7123 = vsel %vm7111, %v7101, %v7104
        %v7124 = vsel %vm7114, %v7110, 1326507024
        %v7125 = vsel %vm7113, %v7107, %v7124
        %v7126 = vsel %vm7112, %v7123, %v7125
        %v7127 = vshll.u32 %v7087, 8
        %v7128 = vmul.u32.u64.compose %v7127, %v7126
        %v7129 = vextract.low.u32 %v7128
        %v7130 = vextract.high.u32 %v7128
        %v7131 = vmul.u32.u64.compose %v7127, %v7122
        %v7132 = vextract.low.u32 %v7131
        %v7133 = vextract.high.u32 %v7131
        %v7134 = vmul.u32 %v7127, %v7118
        %v7135 = vadd.s32 %v7130, %v7132
        %vm7136 = vc.u32 %v7130, %v7132
        %v7137 = vadd.s32 %v7133, 1
        %v7138 = vsel %vm7136, %v7137, %v7133
        %v7139 = vadd.s32 %v7134, %v7138
        %v7140 = vadd.s32 %v7139, 536870912
        %v7141 = vshrl.u32 %v7140, 30
        %v7142 = vshll.u32 %v7141, 30
        %v7143 = vsub.s32 %v7139, %v7142
        %vm7144 = vcmp.lt.s32.totalorder %v7143, 0
        %v7145 = vsub.s32 0, %v7143
        %v7146 = vsel %vm7144, %v7145, %v7143
        %v7147 = vclz %v7146
        %v7148 = vsub.s32 %v7147, 2
        %vm7149 = vcmp.gt.s32.totalorder 0, %v7148
        %v7150 = vsel %vm7149, 0, %v7148
        %v7151 = vsub.s32 32, %v7150
        %v7152 = vshll.u32 %v7143, %v7150
        %v7153 = vshrl.u32 %v7135, %v7151
        %v7154 = vor.u32 %v7152, %v7153
        %v7155 = vsub.s32 4294967266, %v7150
        %v7156 = vadd.s32 %v7155, 127
        %v7157 = vshll.u32 %v7156, 23
        %v7158 = vor.u32 4788187, %v7157
        %v7159 = vand.u32 2147483647, %v7158
        %v7161 = vcvt.s32.f32 %v7154
        %v7162 = vmul.f32 %v7161, %v7159
        %v7163 = vxor.u32 %v7162, 2147483648
        %v7164 = vsel %vm7081, %v7163, %v7162
        %v7165 = vsub.s32 4, %v7141
        %v7166 = vsel %vm7081, %v7165, %v7141
        %v7167 = vsel %vm7080, %v1350, %v7164
        %v7168 = vsel %vm7080, 0, %v7166
        %v7169 = vcosq.f32.pop %v7167
        %v7170 = vsinq.f32.pop %v7167
        %vm7171 = vweird.f32 %v1350
        %v7172 = vadd.s32 %v7168, 3
        %v7173 = vand.u32 %v7172, 3
        %vm7174 = vcmp.lt.s32.totalorder %v7173, 2
        %vm7175 = vcmp.eq.s32.totalorder %v7173, 0
        %v7176 = vxor.u32 %v7170, 2147483648
        %v7177 = vsel %vm7175, %v7169, %v7176
        %vm7178 = vcmp.eq.s32.totalorder %v7173, 2
        %v7179 = vxor.u32 %v7169, 2147483648
        %v7180 = vsel %vm7178, %v7179, %v7170
        %v7181 = vsel %vm7174, %v7177, %v7180
        %v7182 = vsel %vm7171, nan, %v7181
        %v7183 = vand.u32 2147483647, %v1351
        %vm7184 = vcmp.le.f32.partialorder %v7183, 0.7853982
        %vm7185 = vcmp.lt.s32.totalorder %v1351, 0
        %v7186 = vand.u32 %v1351, 2139095040
        %v7187 = vshrl.u32 %v7186, 23
        %v7188 = vsub.s32 %v7187, 127
        %v7189 = vand.u32 2147483647, %v1351
        %v7190 = vand.u32 %v7189, 8388607
        %v7191 = vor.u32 %v7190, 8388608
        %v7192 = vsub.s32 0, %v7191
        %v7193 = vadd.s32 %v7188, 1
        %vm7194 = vcmp.gt.s32.totalorder %v7193, 0
        %v7195 = vsel %vm7194, %v7193, 0
        %v7196 = vshrl.u32 %v7195, 5
        %v7197 = vand.u32 %v7195, 31
        %v7198 = vsub.s32 32, %v7197
        %v7199 = vshrl.u32 683565275, %v7198
        %v7200 = vshll.u32 683565275, %v7197
        %v7201 = vshrl.u32 2475754826, %v7198
        %v7202 = vor.u32 %v7200, %v7201
        %v7203 = vshll.u32 2475754826, %v7197
        %v7204 = vshrl.u32 2131351028, %v7198
        %v7205 = vor.u32 %v7203, %v7204
        %v7206 = vshll.u32 2131351028, %v7197
        %v7207 = vshrl.u32 2102212464, %v7198
        %v7208 = vor.u32 %v7206, %v7207
        %v7209 = vshll.u32 2102212464, %v7197
        %v7210 = vshrl.u32 920167782, %v7198
        %v7211 = vor.u32 %v7209, %v7210
        %v7212 = vshll.u32 920167782, %v7197
        %v7213 = vshrl.u32 1326507024, %v7198
        %v7214 = vor.u32 %v7212, %v7213
        %vm7215 = vcmp.lt.s32.totalorder %v7196, 1
        %vm7216 = vcmp.lt.s32.totalorder %v7196, 2
        %vm7217 = vcmp.lt.s32.totalorder %v7196, 3
        %vm7218 = vcmp.lt.s32.totalorder %v7196, 4
        %v7219 = vsel %vm7215, %v7199, %v7202
        %v7220 = vsel %vm7218, %v7208, 2102212464
        %v7221 = vsel %vm7217, %v7205, %v7220
        %v7222 = vsel %vm7216, %v7219, %v7221
        %v7223 = vsel %vm7215, %v7202, %v7205
        %v7224 = vsel %vm7218, %v7211, 920167782
        %v7225 = vsel %vm7217, %v7208, %v7224
        %v7226 = vsel %vm7216, %v7223, %v7225
        %v7227 = vsel %vm7215, %v7205, %v7208
        %v7228 = vsel %vm7218, %v7214, 1326507024
        %v7229 = vsel %vm7217, %v7211, %v7228
        %v7230 = vsel %vm7216, %v7227, %v7229
        %v7231 = vshll.u32 %v7191, 8
        %v7232 = vmul.u32.u64.compose %v7231, %v7230
        %v7233 = vextract.low.u32 %v7232
        %v7234 = vextract.high.u32 %v7232
        %v7235 = vmul.u32.u64.compose %v7231, %v7226
        %v7236 = vextract.low.u32 %v7235
        %v7237 = vextract.high.u32 %v7235
        %v7238 = vmul.u32 %v7231, %v7222
        %v7239 = vadd.s32 %v7234, %v7236
        %vm7240 = vc.u32 %v7234, %v7236
        %v7241 = vadd.s32 %v7237, 1
        %v7242 = vsel %vm7240, %v7241, %v7237
        %v7243 = vadd.s32 %v7238, %v7242
        %v7244 = vadd.s32 %v7243, 536870912
        %v7245 = vshrl.u32 %v7244, 30
        %v7246 = vshll.u32 %v7245, 30
        %v7247 = vsub.s32 %v7243, %v7246
        %vm7248 = vcmp.lt.s32.totalorder %v7247, 0
        %v7249 = vsub.s32 0, %v7247
        %v7250 = vsel %vm7248, %v7249, %v7247
        %v7251 = vclz %v7250
        %v7252 = vsub.s32 %v7251, 2
        %vm7253 = vcmp.gt.s32.totalorder 0, %v7252
        %v7254 = vsel %vm7253, 0, %v7252
        %v7255 = vsub.s32 32, %v7254
        %v7256 = vshll.u32 %v7247, %v7254
        %v7257 = vshrl.u32 %v7239, %v7255
        %v7258 = vor.u32 %v7256, %v7257
        %v7259 = vsub.s32 4294967266, %v7254
        %v7260 = vadd.s32 %v7259, 127
        %v7261 = vshll.u32 %v7260, 23
        %v7262 = vor.u32 4788187, %v7261
        %v7263 = vand.u32 2147483647, %v7262
        %v7265 = vcvt.s32.f32 %v7258
        %v7266 = vmul.f32 %v7265, %v7263
        %v7267 = vxor.u32 %v7266, 2147483648
        %v7268 = vsel %vm7185, %v7267, %v7266
        %v7269 = vsub.s32 4, %v7245
        %v7270 = vsel %vm7185, %v7269, %v7245
        %v7271 = vsel %vm7184, %v1351, %v7268
        %v7272 = vsel %vm7184, 0, %v7270
        %v7273 = vcosq.f32.pop %v7271
        %v7274 = vsinq.f32.pop %v7271
        %vm7275 = vweird.f32 %v1351
        %v7276 = vadd.s32 %v7272, 3
        %v7277 = vand.u32 %v7276, 3
        %vm7278 = vcmp.lt.s32.totalorder %v7277, 2
        %vm7279 = vcmp.eq.s32.totalorder %v7277, 0
        %v7280 = vxor.u32 %v7274, 2147483648
        %v7281 = vsel %vm7279, %v7273, %v7280
        %vm7282 = vcmp.eq.s32.totalorder %v7277, 2
        %v7283 = vxor.u32 %v7273, 2147483648
        %v7284 = vsel %vm7282, %v7283, %v7274
        %v7285 = vsel %vm7278, %v7281, %v7284
        %v7286 = vsel %vm7275, nan, %v7285
        %v7287 = vand.u32 2147483647, %v1352
        %vm7288 = vcmp.le.f32.partialorder %v7287, 0.7853982
        %vm7289 = vcmp.lt.s32.totalorder %v1352, 0
        %v7290 = vand.u32 %v1352, 2139095040
        %v7291 = vshrl.u32 %v7290, 23
        %v7292 = vsub.s32 %v7291, 127
        %v7293 = vand.u32 2147483647, %v1352
        %v7294 = vand.u32 %v7293, 8388607
        %v7295 = vor.u32 %v7294, 8388608
        %v7296 = vsub.s32 0, %v7295
        %v7297 = vadd.s32 %v7292, 1
        %vm7298 = vcmp.gt.s32.totalorder %v7297, 0
        %v7299 = vsel %vm7298, %v7297, 0
        %v7300 = vshrl.u32 %v7299, 5
        %v7301 = vand.u32 %v7299, 31
        %v7302 = vsub.s32 32, %v7301
        %v7303 = vshrl.u32 683565275, %v7302
        %v7304 = vshll.u32 683565275, %v7301
        %v7305 = vshrl.u32 2475754826, %v7302
        %v7306 = vor.u32 %v7304, %v7305
        %v7307 = vshll.u32 2475754826, %v7301
        %v7308 = vshrl.u32 2131351028, %v7302
        %v7309 = vor.u32 %v7307, %v7308
        %v7310 = vshll.u32 2131351028, %v7301
        %v7311 = vshrl.u32 2102212464, %v7302
        %v7312 = vor.u32 %v7310, %v7311
        %v7313 = vshll.u32 2102212464, %v7301
        %v7314 = vshrl.u32 920167782, %v7302
        %v7315 = vor.u32 %v7313, %v7314
        %v7316 = vshll.u32 920167782, %v7301
        %v7317 = vshrl.u32 1326507024, %v7302
        %v7318 = vor.u32 %v7316, %v7317
        %vm7319 = vcmp.lt.s32.totalorder %v7300, 1
        %vm7320 = vcmp.lt.s32.totalorder %v7300, 2
        %vm7321 = vcmp.lt.s32.totalorder %v7300, 3
        %vm7322 = vcmp.lt.s32.totalorder %v7300, 4
        %v7323 = vsel %vm7319, %v7303, %v7306
        %v7324 = vsel %vm7322, %v7312, 2102212464
        %v7325 = vsel %vm7321, %v7309, %v7324
        %v7326 = vsel %vm7320, %v7323, %v7325
        %v7327 = vsel %vm7319, %v7306, %v7309
        %v7328 = vsel %vm7322, %v7315, 920167782
        %v7329 = vsel %vm7321, %v7312, %v7328
        %v7330 = vsel %vm7320, %v7327, %v7329
        %v7331 = vsel %vm7319, %v7309, %v7312
        %v7332 = vsel %vm7322, %v7318, 1326507024
        %v7333 = vsel %vm7321, %v7315, %v7332
        %v7334 = vsel %vm7320, %v7331, %v7333
        %v7335 = vshll.u32 %v7295, 8
        %v7336 = vmul.u32.u64.compose %v7335, %v7334
        %v7337 = vextract.low.u32 %v7336
        %v7338 = vextract.high.u32 %v7336
        %v7339 = vmul.u32.u64.compose %v7335, %v7330
        %v7340 = vextract.low.u32 %v7339
        %v7341 = vextract.high.u32 %v7339
        %v7342 = vmul.u32 %v7335, %v7326
        %v7343 = vadd.s32 %v7338, %v7340
        %vm7344 = vc.u32 %v7338, %v7340
        %v7345 = vadd.s32 %v7341, 1
        %v7346 = vsel %vm7344, %v7345, %v7341
        %v7347 = vadd.s32 %v7342, %v7346
        %v7348 = vadd.s32 %v7347, 536870912
        %v7349 = vshrl.u32 %v7348, 30
        %v7350 = vshll.u32 %v7349, 30
        %v7351 = vsub.s32 %v7347, %v7350
        %vm7352 = vcmp.lt.s32.totalorder %v7351, 0
        %v7353 = vsub.s32 0, %v7351
        %v7354 = vsel %vm7352, %v7353, %v7351
        %v7355 = vclz %v7354
        %v7356 = vsub.s32 %v7355, 2
        %vm7357 = vcmp.gt.s32.totalorder 0, %v7356
        %v7358 = vsel %vm7357, 0, %v7356
        %v7359 = vsub.s32 32, %v7358
        %v7360 = vshll.u32 %v7351, %v7358
        %v7361 = vshrl.u32 %v7343, %v7359
        %v7362 = vor.u32 %v7360, %v7361
        %v7363 = vsub.s32 4294967266, %v7358
        %v7364 = vadd.s32 %v7363, 127
        %v7365 = vshll.u32 %v7364, 23
        %v7366 = vor.u32 4788187, %v7365
        %v7367 = vand.u32 2147483647, %v7366
        %v7369 = vcvt.s32.f32 %v7362
        %v7370 = vmul.f32 %v7369, %v7367
        %v7371 = vxor.u32 %v7370, 2147483648
        %v7372 = vsel %vm7289, %v7371, %v7370
        %v7373 = vsub.s32 4, %v7349
        %v7374 = vsel %vm7289, %v7373, %v7349
        %v7375 = vsel %vm7288, %v1352, %v7372
        %v7376 = vsel %vm7288, 0, %v7374
        %v7377 = vcosq.f32.pop %v7375
        %v7378 = vsinq.f32.pop %v7375
        %vm7379 = vweird.f32 %v1352
        %v7380 = vadd.s32 %v7376, 3
        %v7381 = vand.u32 %v7380, 3
        %vm7382 = vcmp.lt.s32.totalorder %v7381, 2
        %vm7383 = vcmp.eq.s32.totalorder %v7381, 0
        %v7384 = vxor.u32 %v7378, 2147483648
        %v7385 = vsel %vm7383, %v7377, %v7384
        %vm7386 = vcmp.eq.s32.totalorder %v7381, 2
        %v7387 = vxor.u32 %v7377, 2147483648
        %v7388 = vsel %vm7386, %v7387, %v7378
        %v7389 = vsel %vm7382, %v7385, %v7388
        %v7390 = vsel %vm7379, nan, %v7389
        %v7391 = vand.u32 2147483647, %v1353
        %vm7392 = vcmp.le.f32.partialorder %v7391, 0.7853982
        %vm7393 = vcmp.lt.s32.totalorder %v1353, 0
        %v7394 = vand.u32 %v1353, 2139095040
        %v7395 = vshrl.u32 %v7394, 23
        %v7396 = vsub.s32 %v7395, 127
        %v7397 = vand.u32 2147483647, %v1353
        %v7398 = vand.u32 %v7397, 8388607
        %v7399 = vor.u32 %v7398, 8388608
        %v7400 = vsub.s32 0, %v7399
        %v7401 = vadd.s32 %v7396, 1
        %vm7402 = vcmp.gt.s32.totalorder %v7401, 0
        %v7403 = vsel %vm7402, %v7401, 0
        %v7404 = vshrl.u32 %v7403, 5
        %v7405 = vand.u32 %v7403, 31
        %v7406 = vsub.s32 32, %v7405
        %v7407 = vshrl.u32 683565275, %v7406
        %v7408 = vshll.u32 683565275, %v7405
        %v7409 = vshrl.u32 2475754826, %v7406
        %v7410 = vor.u32 %v7408, %v7409
        %v7411 = vshll.u32 2475754826, %v7405
        %v7412 = vshrl.u32 2131351028, %v7406
        %v7413 = vor.u32 %v7411, %v7412
        %v7414 = vshll.u32 2131351028, %v7405
        %v7415 = vshrl.u32 2102212464, %v7406
        %v7416 = vor.u32 %v7414, %v7415
        %v7417 = vshll.u32 2102212464, %v7405
        %v7418 = vshrl.u32 920167782, %v7406
        %v7419 = vor.u32 %v7417, %v7418
        %v7420 = vshll.u32 920167782, %v7405
        %v7421 = vshrl.u32 1326507024, %v7406
        %v7422 = vor.u32 %v7420, %v7421
        %vm7423 = vcmp.lt.s32.totalorder %v7404, 1
        %vm7424 = vcmp.lt.s32.totalorder %v7404, 2
        %vm7425 = vcmp.lt.s32.totalorder %v7404, 3
        %vm7426 = vcmp.lt.s32.totalorder %v7404, 4
        %v7427 = vsel %vm7423, %v7407, %v7410
        %v7428 = vsel %vm7426, %v7416, 2102212464
        %v7429 = vsel %vm7425, %v7413, %v7428
        %v7430 = vsel %vm7424, %v7427, %v7429
        %v7431 = vsel %vm7423, %v7410, %v7413
        %v7432 = vsel %vm7426, %v7419, 920167782
        %v7433 = vsel %vm7425, %v7416, %v7432
        %v7434 = vsel %vm7424, %v7431, %v7433
        %v7435 = vsel %vm7423, %v7413, %v7416
        %v7436 = vsel %vm7426, %v7422, 1326507024
        %v7437 = vsel %vm7425, %v7419, %v7436
        %v7438 = vsel %vm7424, %v7435, %v7437
        %v7439 = vshll.u32 %v7399, 8
        %v7440 = vmul.u32.u64.compose %v7439, %v7438
        %v7441 = vextract.low.u32 %v7440
        %v7442 = vextract.high.u32 %v7440
        %v7443 = vmul.u32.u64.compose %v7439, %v7434
        %v7444 = vextract.low.u32 %v7443
        %v7445 = vextract.high.u32 %v7443
        %v7446 = vmul.u32 %v7439, %v7430
        %v7447 = vadd.s32 %v7442, %v7444
        %vm7448 = vc.u32 %v7442, %v7444
        %v7449 = vadd.s32 %v7445, 1
        %v7450 = vsel %vm7448, %v7449, %v7445
        %v7451 = vadd.s32 %v7446, %v7450
        %v7452 = vadd.s32 %v7451, 536870912
        %v7453 = vshrl.u32 %v7452, 30
        %v7454 = vshll.u32 %v7453, 30
        %v7455 = vsub.s32 %v7451, %v7454
        %vm7456 = vcmp.lt.s32.totalorder %v7455, 0
        %v7457 = vsub.s32 0, %v7455
        %v7458 = vsel %vm7456, %v7457, %v7455
        %v7459 = vclz %v7458
        %v7460 = vsub.s32 %v7459, 2
        %vm7461 = vcmp.gt.s32.totalorder 0, %v7460
        %v7462 = vsel %vm7461, 0, %v7460
        %v7463 = vsub.s32 32, %v7462
        %v7464 = vshll.u32 %v7455, %v7462
        %v7465 = vshrl.u32 %v7447, %v7463
        %v7466 = vor.u32 %v7464, %v7465
        %v7467 = vsub.s32 4294967266, %v7462
        %v7468 = vadd.s32 %v7467, 127
        %v7469 = vshll.u32 %v7468, 23
        %v7470 = vor.u32 4788187, %v7469
        %v7471 = vand.u32 2147483647, %v7470
        %v7473 = vcvt.s32.f32 %v7466
        %v7474 = vmul.f32 %v7473, %v7471
        %v7475 = vxor.u32 %v7474, 2147483648
        %v7476 = vsel %vm7393, %v7475, %v7474
        %v7477 = vsub.s32 4, %v7453
        %v7478 = vsel %vm7393, %v7477, %v7453
        %v7479 = vsel %vm7392, %v1353, %v7476
        %v7480 = vsel %vm7392, 0, %v7478
        %v7481 = vcosq.f32.pop %v7479
        %v7482 = vsinq.f32.pop %v7479
        %vm7483 = vweird.f32 %v1353
        %v7484 = vadd.s32 %v7480, 3
        %v7485 = vand.u32 %v7484, 3
        %vm7486 = vcmp.lt.s32.totalorder %v7485, 2
        %vm7487 = vcmp.eq.s32.totalorder %v7485, 0
        %v7488 = vxor.u32 %v7482, 2147483648
        %v7489 = vsel %vm7487, %v7481, %v7488
        %vm7490 = vcmp.eq.s32.totalorder %v7485, 2
        %v7491 = vxor.u32 %v7481, 2147483648
        %v7492 = vsel %vm7490, %v7491, %v7482
        %v7493 = vsel %vm7486, %v7489, %v7492
        %v7494 = vsel %vm7483, nan, %v7493
        %v7495 = vand.u32 2147483647, %v1354
        %vm7496 = vcmp.le.f32.partialorder %v7495, 0.7853982
        %vm7497 = vcmp.lt.s32.totalorder %v1354, 0
        %v7498 = vand.u32 %v1354, 2139095040
        %v7499 = vshrl.u32 %v7498, 23
        %v7500 = vsub.s32 %v7499, 127
        %v7501 = vand.u32 2147483647, %v1354
        %v7502 = vand.u32 %v7501, 8388607
        %v7503 = vor.u32 %v7502, 8388608
        %v7504 = vsub.s32 0, %v7503
        %v7505 = vadd.s32 %v7500, 1
        %vm7506 = vcmp.gt.s32.totalorder %v7505, 0
        %v7507 = vsel %vm7506, %v7505, 0
        %v7508 = vshrl.u32 %v7507, 5
        %v7509 = vand.u32 %v7507, 31
        %v7510 = vsub.s32 32, %v7509
        %v7511 = vshrl.u32 683565275, %v7510
        %v7512 = vshll.u32 683565275, %v7509
        %v7513 = vshrl.u32 2475754826, %v7510
        %v7514 = vor.u32 %v7512, %v7513
        %v7515 = vshll.u32 2475754826, %v7509
        %v7516 = vshrl.u32 2131351028, %v7510
        %v7517 = vor.u32 %v7515, %v7516
        %v7518 = vshll.u32 2131351028, %v7509
        %v7519 = vshrl.u32 2102212464, %v7510
        %v7520 = vor.u32 %v7518, %v7519
        %v7521 = vshll.u32 2102212464, %v7509
        %v7522 = vshrl.u32 920167782, %v7510
        %v7523 = vor.u32 %v7521, %v7522
        %v7524 = vshll.u32 920167782, %v7509
        %v7525 = vshrl.u32 1326507024, %v7510
        %v7526 = vor.u32 %v7524, %v7525
        %vm7527 = vcmp.lt.s32.totalorder %v7508, 1
        %vm7528 = vcmp.lt.s32.totalorder %v7508, 2
        %vm7529 = vcmp.lt.s32.totalorder %v7508, 3
        %vm7530 = vcmp.lt.s32.totalorder %v7508, 4
        %v7531 = vsel %vm7527, %v7511, %v7514
        %v7532 = vsel %vm7530, %v7520, 2102212464
        %v7533 = vsel %vm7529, %v7517, %v7532
        %v7534 = vsel %vm7528, %v7531, %v7533
        %v7535 = vsel %vm7527, %v7514, %v7517
        %v7536 = vsel %vm7530, %v7523, 920167782
        %v7537 = vsel %vm7529, %v7520, %v7536
        %v7538 = vsel %vm7528, %v7535, %v7537
        %v7539 = vsel %vm7527, %v7517, %v7520
        %v7540 = vsel %vm7530, %v7526, 1326507024
        %v7541 = vsel %vm7529, %v7523, %v7540
        %v7542 = vsel %vm7528, %v7539, %v7541
        %v7543 = vshll.u32 %v7503, 8
        %v7544 = vmul.u32.u64.compose %v7543, %v7542
        %v7545 = vextract.low.u32 %v7544
        %v7546 = vextract.high.u32 %v7544
        %v7547 = vmul.u32.u64.compose %v7543, %v7538
        %v7548 = vextract.low.u32 %v7547
        %v7549 = vextract.high.u32 %v7547
        %v7550 = vmul.u32 %v7543, %v7534
        %v7551 = vadd.s32 %v7546, %v7548
        %vm7552 = vc.u32 %v7546, %v7548
        %v7553 = vadd.s32 %v7549, 1
        %v7554 = vsel %vm7552, %v7553, %v7549
        %v7555 = vadd.s32 %v7550, %v7554
        %v7556 = vadd.s32 %v7555, 536870912
        %v7557 = vshrl.u32 %v7556, 30
        %v7558 = vshll.u32 %v7557, 30
        %v7559 = vsub.s32 %v7555, %v7558
        %vm7560 = vcmp.lt.s32.totalorder %v7559, 0
        %v7561 = vsub.s32 0, %v7559
        %v7562 = vsel %vm7560, %v7561, %v7559
        %v7563 = vclz %v7562
        %v7564 = vsub.s32 %v7563, 2
        %vm7565 = vcmp.gt.s32.totalorder 0, %v7564
        %v7566 = vsel %vm7565, 0, %v7564
        %v7567 = vsub.s32 32, %v7566
        %v7568 = vshll.u32 %v7559, %v7566
        %v7569 = vshrl.u32 %v7551, %v7567
        %v7570 = vor.u32 %v7568, %v7569
        %v7571 = vsub.s32 4294967266, %v7566
        %v7572 = vadd.s32 %v7571, 127
        %v7573 = vshll.u32 %v7572, 23
        %v7574 = vor.u32 4788187, %v7573
        %v7575 = vand.u32 2147483647, %v7574
        %v7577 = vcvt.s32.f32 %v7570
        %v7578 = vmul.f32 %v7577, %v7575
        %v7579 = vxor.u32 %v7578, 2147483648
        %v7580 = vsel %vm7497, %v7579, %v7578
        %v7581 = vsub.s32 4, %v7557
        %v7582 = vsel %vm7497, %v7581, %v7557
        %v7583 = vsel %vm7496, %v1354, %v7580
        %v7584 = vsel %vm7496, 0, %v7582
        %v7585 = vcosq.f32.pop %v7583
        %v7586 = vsinq.f32.pop %v7583
        %vm7587 = vweird.f32 %v1354
        %v7588 = vadd.s32 %v7584, 3
        %v7589 = vand.u32 %v7588, 3
        %vm7590 = vcmp.lt.s32.totalorder %v7589, 2
        %vm7591 = vcmp.eq.s32.totalorder %v7589, 0
        %v7592 = vxor.u32 %v7586, 2147483648
        %v7593 = vsel %vm7591, %v7585, %v7592
        %vm7594 = vcmp.eq.s32.totalorder %v7589, 2
        %v7595 = vxor.u32 %v7585, 2147483648
        %v7596 = vsel %vm7594, %v7595, %v7586
        %v7597 = vsel %vm7590, %v7593, %v7596
        %v7598 = vsel %vm7587, nan, %v7597
        %v7599 = vand.u32 2147483647, %v1355
        %vm7600 = vcmp.le.f32.partialorder %v7599, 0.7853982
        %vm7601 = vcmp.lt.s32.totalorder %v1355, 0
        %v7602 = vand.u32 %v1355, 2139095040
        %v7603 = vshrl.u32 %v7602, 23
        %v7604 = vsub.s32 %v7603, 127
        %v7605 = vand.u32 2147483647, %v1355
        %v7606 = vand.u32 %v7605, 8388607
        %v7607 = vor.u32 %v7606, 8388608
        %v7608 = vsub.s32 0, %v7607
        %v7609 = vadd.s32 %v7604, 1
        %vm7610 = vcmp.gt.s32.totalorder %v7609, 0
        %v7611 = vsel %vm7610, %v7609, 0
        %v7612 = vshrl.u32 %v7611, 5
        %v7613 = vand.u32 %v7611, 31
        %v7614 = vsub.s32 32, %v7613
        %v7615 = vshrl.u32 683565275, %v7614
        %v7616 = vshll.u32 683565275, %v7613
        %v7617 = vshrl.u32 2475754826, %v7614
        %v7618 = vor.u32 %v7616, %v7617
        %v7619 = vshll.u32 2475754826, %v7613
        %v7620 = vshrl.u32 2131351028, %v7614
        %v7621 = vor.u32 %v7619, %v7620
        %v7622 = vshll.u32 2131351028, %v7613
        %v7623 = vshrl.u32 2102212464, %v7614
        %v7624 = vor.u32 %v7622, %v7623
        %v7625 = vshll.u32 2102212464, %v7613
        %v7626 = vshrl.u32 920167782, %v7614
        %v7627 = vor.u32 %v7625, %v7626
        %v7628 = vshll.u32 920167782, %v7613
        %v7629 = vshrl.u32 1326507024, %v7614
        %v7630 = vor.u32 %v7628, %v7629
        %vm7631 = vcmp.lt.s32.totalorder %v7612, 1
        %vm7632 = vcmp.lt.s32.totalorder %v7612, 2
        %vm7633 = vcmp.lt.s32.totalorder %v7612, 3
        %vm7634 = vcmp.lt.s32.totalorder %v7612, 4
        %v7635 = vsel %vm7631, %v7615, %v7618
        %v7636 = vsel %vm7634, %v7624, 2102212464
        %v7637 = vsel %vm7633, %v7621, %v7636
        %v7638 = vsel %vm7632, %v7635, %v7637
        %v7639 = vsel %vm7631, %v7618, %v7621
        %v7640 = vsel %vm7634, %v7627, 920167782
        %v7641 = vsel %vm7633, %v7624, %v7640
        %v7642 = vsel %vm7632, %v7639, %v7641
        %v7643 = vsel %vm7631, %v7621, %v7624
        %v7644 = vsel %vm7634, %v7630, 1326507024
        %v7645 = vsel %vm7633, %v7627, %v7644
        %v7646 = vsel %vm7632, %v7643, %v7645
        %v7647 = vshll.u32 %v7607, 8
        %v7648 = vmul.u32.u64.compose %v7647, %v7646
        %v7649 = vextract.low.u32 %v7648
        %v7650 = vextract.high.u32 %v7648
        %v7651 = vmul.u32.u64.compose %v7647, %v7642
        %v7652 = vextract.low.u32 %v7651
        %v7653 = vextract.high.u32 %v7651
        %v7654 = vmul.u32 %v7647, %v7638
        %v7655 = vadd.s32 %v7650, %v7652
        %vm7656 = vc.u32 %v7650, %v7652
        %v7657 = vadd.s32 %v7653, 1
        %v7658 = vsel %vm7656, %v7657, %v7653
        %v7659 = vadd.s32 %v7654, %v7658
        %v7660 = vadd.s32 %v7659, 536870912
        %v7661 = vshrl.u32 %v7660, 30
        %v7662 = vshll.u32 %v7661, 30
        %v7663 = vsub.s32 %v7659, %v7662
        %vm7664 = vcmp.lt.s32.totalorder %v7663, 0
        %v7665 = vsub.s32 0, %v7663
        %v7666 = vsel %vm7664, %v7665, %v7663
        %v7667 = vclz %v7666
        %v7668 = vsub.s32 %v7667, 2
        %vm7669 = vcmp.gt.s32.totalorder 0, %v7668
        %v7670 = vsel %vm7669, 0, %v7668
        %v7671 = vsub.s32 32, %v7670
        %v7672 = vshll.u32 %v7663, %v7670
        %v7673 = vshrl.u32 %v7655, %v7671
        %v7674 = vor.u32 %v7672, %v7673
        %v7675 = vsub.s32 4294967266, %v7670
        %v7676 = vadd.s32 %v7675, 127
        %v7677 = vshll.u32 %v7676, 23
        %v7678 = vor.u32 4788187, %v7677
        %v7679 = vand.u32 2147483647, %v7678
        %v7681 = vcvt.s32.f32 %v7674
        %v7682 = vmul.f32 %v7681, %v7679
        %v7683 = vxor.u32 %v7682, 2147483648
        %v7684 = vsel %vm7601, %v7683, %v7682
        %v7685 = vsub.s32 4, %v7661
        %v7686 = vsel %vm7601, %v7685, %v7661
        %v7687 = vsel %vm7600, %v1355, %v7684
        %v7688 = vsel %vm7600, 0, %v7686
        %v7689 = vcosq.f32.pop %v7687
        %v7690 = vsinq.f32.pop %v7687
        %vm7691 = vweird.f32 %v1355
        %v7692 = vadd.s32 %v7688, 3
        %v7693 = vand.u32 %v7692, 3
        %vm7694 = vcmp.lt.s32.totalorder %v7693, 2
        %vm7695 = vcmp.eq.s32.totalorder %v7693, 0
        %v7696 = vxor.u32 %v7690, 2147483648
        %v7697 = vsel %vm7695, %v7689, %v7696
        %vm7698 = vcmp.eq.s32.totalorder %v7693, 2
        %v7699 = vxor.u32 %v7689, 2147483648
        %v7700 = vsel %vm7698, %v7699, %v7690
        %v7701 = vsel %vm7694, %v7697, %v7700
        %v7702 = vsel %vm7691, nan, %v7701
        %v7703 = vand.u32 2147483647, %v1356
        %vm7704 = vcmp.le.f32.partialorder %v7703, 0.7853982
        %vm7705 = vcmp.lt.s32.totalorder %v1356, 0
        %v7706 = vand.u32 %v1356, 2139095040
        %v7707 = vshrl.u32 %v7706, 23
        %v7708 = vsub.s32 %v7707, 127
        %v7709 = vand.u32 2147483647, %v1356
        %v7710 = vand.u32 %v7709, 8388607
        %v7711 = vor.u32 %v7710, 8388608
        %v7712 = vsub.s32 0, %v7711
        %v7713 = vadd.s32 %v7708, 1
        %vm7714 = vcmp.gt.s32.totalorder %v7713, 0
        %v7715 = vsel %vm7714, %v7713, 0
        %v7716 = vshrl.u32 %v7715, 5
        %v7717 = vand.u32 %v7715, 31
        %v7718 = vsub.s32 32, %v7717
        %v7719 = vshrl.u32 683565275, %v7718
        %v7720 = vshll.u32 683565275, %v7717
        %v7721 = vshrl.u32 2475754826, %v7718
        %v7722 = vor.u32 %v7720, %v7721
        %v7723 = vshll.u32 2475754826, %v7717
        %v7724 = vshrl.u32 2131351028, %v7718
        %v7725 = vor.u32 %v7723, %v7724
        %v7726 = vshll.u32 2131351028, %v7717
        %v7727 = vshrl.u32 2102212464, %v7718
        %v7728 = vor.u32 %v7726, %v7727
        %v7729 = vshll.u32 2102212464, %v7717
        %v7730 = vshrl.u32 920167782, %v7718
        %v7731 = vor.u32 %v7729, %v7730
        %v7732 = vshll.u32 920167782, %v7717
        %v7733 = vshrl.u32 1326507024, %v7718
        %v7734 = vor.u32 %v7732, %v7733
        %vm7735 = vcmp.lt.s32.totalorder %v7716, 1
        %vm7736 = vcmp.lt.s32.totalorder %v7716, 2
        %vm7737 = vcmp.lt.s32.totalorder %v7716, 3
        %vm7738 = vcmp.lt.s32.totalorder %v7716, 4
        %v7739 = vsel %vm7735, %v7719, %v7722
        %v7740 = vsel %vm7738, %v7728, 2102212464
        %v7741 = vsel %vm7737, %v7725, %v7740
        %v7742 = vsel %vm7736, %v7739, %v7741
        %v7743 = vsel %vm7735, %v7722, %v7725
        %v7744 = vsel %vm7738, %v7731, 920167782
        %v7745 = vsel %vm7737, %v7728, %v7744
        %v7746 = vsel %vm7736, %v7743, %v7745
        %v7747 = vsel %vm7735, %v7725, %v7728
        %v7748 = vsel %vm7738, %v7734, 1326507024
        %v7749 = vsel %vm7737, %v7731, %v7748
        %v7750 = vsel %vm7736, %v7747, %v7749
        %v7751 = vshll.u32 %v7711, 8
        %v7752 = vmul.u32.u64.compose %v7751, %v7750
        %v7753 = vextract.low.u32 %v7752
        %v7754 = vextract.high.u32 %v7752
        %v7755 = vmul.u32.u64.compose %v7751, %v7746
        %v7756 = vextract.low.u32 %v7755
        %v7757 = vextract.high.u32 %v7755
        %v7758 = vmul.u32 %v7751, %v7742
        %v7759 = vadd.s32 %v7754, %v7756
        %vm7760 = vc.u32 %v7754, %v7756
        %v7761 = vadd.s32 %v7757, 1
        %v7762 = vsel %vm7760, %v7761, %v7757
        %v7763 = vadd.s32 %v7758, %v7762
        %v7764 = vadd.s32 %v7763, 536870912
        %v7765 = vshrl.u32 %v7764, 30
        %v7766 = vshll.u32 %v7765, 30
        %v7767 = vsub.s32 %v7763, %v7766
        %vm7768 = vcmp.lt.s32.totalorder %v7767, 0
        %v7769 = vsub.s32 0, %v7767
        %v7770 = vsel %vm7768, %v7769, %v7767
        %v7771 = vclz %v7770
        %v7772 = vsub.s32 %v7771, 2
        %vm7773 = vcmp.gt.s32.totalorder 0, %v7772
        %v7774 = vsel %vm7773, 0, %v7772
        %v7775 = vsub.s32 32, %v7774
        %v7776 = vshll.u32 %v7767, %v7774
        %v7777 = vshrl.u32 %v7759, %v7775
        %v7778 = vor.u32 %v7776, %v7777
        %v7779 = vsub.s32 4294967266, %v7774
        %v7780 = vadd.s32 %v7779, 127
        %v7781 = vshll.u32 %v7780, 23
        %v7782 = vor.u32 4788187, %v7781
        %v7783 = vand.u32 2147483647, %v7782
        %v7785 = vcvt.s32.f32 %v7778
        %v7786 = vmul.f32 %v7785, %v7783
        %v7787 = vxor.u32 %v7786, 2147483648
        %v7788 = vsel %vm7705, %v7787, %v7786
        %v7789 = vsub.s32 4, %v7765
        %v7790 = vsel %vm7705, %v7789, %v7765
        %v7791 = vsel %vm7704, %v1356, %v7788
        %v7792 = vsel %vm7704, 0, %v7790
        %v7793 = vcosq.f32.pop %v7791
        %v7794 = vsinq.f32.pop %v7791
        %vm7795 = vweird.f32 %v1356
        %v7796 = vadd.s32 %v7792, 3
        %v7797 = vand.u32 %v7796, 3
        %vm7798 = vcmp.lt.s32.totalorder %v7797, 2
        %vm7799 = vcmp.eq.s32.totalorder %v7797, 0
        %v7800 = vxor.u32 %v7794, 2147483648
        %v7801 = vsel %vm7799, %v7793, %v7800
        %vm7802 = vcmp.eq.s32.totalorder %v7797, 2
        %v7803 = vxor.u32 %v7793, 2147483648
        %v7804 = vsel %vm7802, %v7803, %v7794
        %v7805 = vsel %vm7798, %v7801, %v7804
        %v7806 = vsel %vm7795, nan, %v7805
        %v7807 = vand.u32 2147483647, %v1357
        %vm7808 = vcmp.le.f32.partialorder %v7807, 0.7853982
        %vm7809 = vcmp.lt.s32.totalorder %v1357, 0
        %v7810 = vand.u32 %v1357, 2139095040
        %v7811 = vshrl.u32 %v7810, 23
        %v7812 = vsub.s32 %v7811, 127
        %v7813 = vand.u32 2147483647, %v1357
        %v7814 = vand.u32 %v7813, 8388607
        %v7815 = vor.u32 %v7814, 8388608
        %v7816 = vsub.s32 0, %v7815
        %v7817 = vadd.s32 %v7812, 1
        %vm7818 = vcmp.gt.s32.totalorder %v7817, 0
        %v7819 = vsel %vm7818, %v7817, 0
        %v7820 = vshrl.u32 %v7819, 5
        %v7821 = vand.u32 %v7819, 31
        %v7822 = vsub.s32 32, %v7821
        %v7823 = vshrl.u32 683565275, %v7822
        %v7824 = vshll.u32 683565275, %v7821
        %v7825 = vshrl.u32 2475754826, %v7822
        %v7826 = vor.u32 %v7824, %v7825
        %v7827 = vshll.u32 2475754826, %v7821
        %v7828 = vshrl.u32 2131351028, %v7822
        %v7829 = vor.u32 %v7827, %v7828
        %v7830 = vshll.u32 2131351028, %v7821
        %v7831 = vshrl.u32 2102212464, %v7822
        %v7832 = vor.u32 %v7830, %v7831
        %v7833 = vshll.u32 2102212464, %v7821
        %v7834 = vshrl.u32 920167782, %v7822
        %v7835 = vor.u32 %v7833, %v7834
        %v7836 = vshll.u32 920167782, %v7821
        %v7837 = vshrl.u32 1326507024, %v7822
        %v7838 = vor.u32 %v7836, %v7837
        %vm7839 = vcmp.lt.s32.totalorder %v7820, 1
        %vm7840 = vcmp.lt.s32.totalorder %v7820, 2
        %vm7841 = vcmp.lt.s32.totalorder %v7820, 3
        %vm7842 = vcmp.lt.s32.totalorder %v7820, 4
        %v7843 = vsel %vm7839, %v7823, %v7826
        %v7844 = vsel %vm7842, %v7832, 2102212464
        %v7845 = vsel %vm7841, %v7829, %v7844
        %v7846 = vsel %vm7840, %v7843, %v7845
        %v7847 = vsel %vm7839, %v7826, %v7829
        %v7848 = vsel %vm7842, %v7835, 920167782
        %v7849 = vsel %vm7841, %v7832, %v7848
        %v7850 = vsel %vm7840, %v7847, %v7849
        %v7851 = vsel %vm7839, %v7829, %v7832
        %v7852 = vsel %vm7842, %v7838, 1326507024
        %v7853 = vsel %vm7841, %v7835, %v7852
        %v7854 = vsel %vm7840, %v7851, %v7853
        %v7855 = vshll.u32 %v7815, 8
        %v7856 = vmul.u32.u64.compose %v7855, %v7854
        %v7857 = vextract.low.u32 %v7856
        %v7858 = vextract.high.u32 %v7856
        %v7859 = vmul.u32.u64.compose %v7855, %v7850
        %v7860 = vextract.low.u32 %v7859
        %v7861 = vextract.high.u32 %v7859
        %v7862 = vmul.u32 %v7855, %v7846
        %v7863 = vadd.s32 %v7858, %v7860
        %vm7864 = vc.u32 %v7858, %v7860
        %v7865 = vadd.s32 %v7861, 1
        %v7866 = vsel %vm7864, %v7865, %v7861
        %v7867 = vadd.s32 %v7862, %v7866
        %v7868 = vadd.s32 %v7867, 536870912
        %v7869 = vshrl.u32 %v7868, 30
        %v7870 = vshll.u32 %v7869, 30
        %v7871 = vsub.s32 %v7867, %v7870
        %vm7872 = vcmp.lt.s32.totalorder %v7871, 0
        %v7873 = vsub.s32 0, %v7871
        %v7874 = vsel %vm7872, %v7873, %v7871
        %v7875 = vclz %v7874
        %v7876 = vsub.s32 %v7875, 2
        %vm7877 = vcmp.gt.s32.totalorder 0, %v7876
        %v7878 = vsel %vm7877, 0, %v7876
        %v7879 = vsub.s32 32, %v7878
        %v7880 = vshll.u32 %v7871, %v7878
        %v7881 = vshrl.u32 %v7863, %v7879
        %v7882 = vor.u32 %v7880, %v7881
        %v7883 = vsub.s32 4294967266, %v7878
        %v7884 = vadd.s32 %v7883, 127
        %v7885 = vshll.u32 %v7884, 23
        %v7886 = vor.u32 4788187, %v7885
        %v7887 = vand.u32 2147483647, %v7886
        %v7889 = vcvt.s32.f32 %v7882
        %v7890 = vmul.f32 %v7889, %v7887
        %v7891 = vxor.u32 %v7890, 2147483648
        %v7892 = vsel %vm7809, %v7891, %v7890
        %v7893 = vsub.s32 4, %v7869
        %v7894 = vsel %vm7809, %v7893, %v7869
        %v7895 = vsel %vm7808, %v1357, %v7892
        %v7896 = vsel %vm7808, 0, %v7894
        %v7897 = vcosq.f32.pop %v7895
        %v7898 = vsinq.f32.pop %v7895
        %vm7899 = vweird.f32 %v1357
        %v7900 = vadd.s32 %v7896, 3
        %v7901 = vand.u32 %v7900, 3
        %vm7902 = vcmp.lt.s32.totalorder %v7901, 2
        %vm7903 = vcmp.eq.s32.totalorder %v7901, 0
        %v7904 = vxor.u32 %v7898, 2147483648
        %v7905 = vsel %vm7903, %v7897, %v7904
        %vm7906 = vcmp.eq.s32.totalorder %v7901, 2
        %v7907 = vxor.u32 %v7897, 2147483648
        %v7908 = vsel %vm7906, %v7907, %v7898
        %v7909 = vsel %vm7902, %v7905, %v7908
        %v7910 = vsel %vm7899, nan, %v7909
        %v7911 = vand.u32 2147483647, %v1358
        %vm7912 = vcmp.le.f32.partialorder %v7911, 0.7853982
        %vm7913 = vcmp.lt.s32.totalorder %v1358, 0
        %v7914 = vand.u32 %v1358, 2139095040
        %v7915 = vshrl.u32 %v7914, 23
        %v7916 = vsub.s32 %v7915, 127
        %v7917 = vand.u32 2147483647, %v1358
        %v7918 = vand.u32 %v7917, 8388607
        %v7919 = vor.u32 %v7918, 8388608
        %v7920 = vsub.s32 0, %v7919
        %v7921 = vadd.s32 %v7916, 1
        %vm7922 = vcmp.gt.s32.totalorder %v7921, 0
        %v7923 = vsel %vm7922, %v7921, 0
        %v7924 = vshrl.u32 %v7923, 5
        %v7925 = vand.u32 %v7923, 31
        %v7926 = vsub.s32 32, %v7925
        %v7927 = vshrl.u32 683565275, %v7926
        %v7928 = vshll.u32 683565275, %v7925
        %v7929 = vshrl.u32 2475754826, %v7926
        %v7930 = vor.u32 %v7928, %v7929
        %v7931 = vshll.u32 2475754826, %v7925
        %v7932 = vshrl.u32 2131351028, %v7926
        %v7933 = vor.u32 %v7931, %v7932
        %v7934 = vshll.u32 2131351028, %v7925
        %v7935 = vshrl.u32 2102212464, %v7926
        %v7936 = vor.u32 %v7934, %v7935
        %v7937 = vshll.u32 2102212464, %v7925
        %v7938 = vshrl.u32 920167782, %v7926
        %v7939 = vor.u32 %v7937, %v7938
        %v7940 = vshll.u32 920167782, %v7925
        %v7941 = vshrl.u32 1326507024, %v7926
        %v7942 = vor.u32 %v7940, %v7941
        %vm7943 = vcmp.lt.s32.totalorder %v7924, 1
        %vm7944 = vcmp.lt.s32.totalorder %v7924, 2
        %vm7945 = vcmp.lt.s32.totalorder %v7924, 3
        %vm7946 = vcmp.lt.s32.totalorder %v7924, 4
        %v7947 = vsel %vm7943, %v7927, %v7930
        %v7948 = vsel %vm7946, %v7936, 2102212464
        %v7949 = vsel %vm7945, %v7933, %v7948
        %v7950 = vsel %vm7944, %v7947, %v7949
        %v7951 = vsel %vm7943, %v7930, %v7933
        %v7952 = vsel %vm7946, %v7939, 920167782
        %v7953 = vsel %vm7945, %v7936, %v7952
        %v7954 = vsel %vm7944, %v7951, %v7953
        %v7955 = vsel %vm7943, %v7933, %v7936
        %v7956 = vsel %vm7946, %v7942, 1326507024
        %v7957 = vsel %vm7945, %v7939, %v7956
        %v7958 = vsel %vm7944, %v7955, %v7957
        %v7959 = vshll.u32 %v7919, 8
        %v7960 = vmul.u32.u64.compose %v7959, %v7958
        %v7961 = vextract.low.u32 %v7960
        %v7962 = vextract.high.u32 %v7960
        %v7963 = vmul.u32.u64.compose %v7959, %v7954
        %v7964 = vextract.low.u32 %v7963
        %v7965 = vextract.high.u32 %v7963
        %v7966 = vmul.u32 %v7959, %v7950
        %v7967 = vadd.s32 %v7962, %v7964
        %vm7968 = vc.u32 %v7962, %v7964
        %v7969 = vadd.s32 %v7965, 1
        %v7970 = vsel %vm7968, %v7969, %v7965
        %v7971 = vadd.s32 %v7966, %v7970
        %v7972 = vadd.s32 %v7971, 536870912
        %v7973 = vshrl.u32 %v7972, 30
        %v7974 = vshll.u32 %v7973, 30
        %v7975 = vsub.s32 %v7971, %v7974
        %vm7976 = vcmp.lt.s32.totalorder %v7975, 0
        %v7977 = vsub.s32 0, %v7975
        %v7978 = vsel %vm7976, %v7977, %v7975
        %v7979 = vclz %v7978
        %v7980 = vsub.s32 %v7979, 2
        %vm7981 = vcmp.gt.s32.totalorder 0, %v7980
        %v7982 = vsel %vm7981, 0, %v7980
        %v7983 = vsub.s32 32, %v7982
        %v7984 = vshll.u32 %v7975, %v7982
        %v7985 = vshrl.u32 %v7967, %v7983
        %v7986 = vor.u32 %v7984, %v7985
        %v7987 = vsub.s32 4294967266, %v7982
        %v7988 = vadd.s32 %v7987, 127
        %v7989 = vshll.u32 %v7988, 23
        %v7990 = vor.u32 4788187, %v7989
        %v7991 = vand.u32 2147483647, %v7990
        %v7993 = vcvt.s32.f32 %v7986
        %v7994 = vmul.f32 %v7993, %v7991
        %v7995 = vxor.u32 %v7994, 2147483648
        %v7996 = vsel %vm7913, %v7995, %v7994
        %v7997 = vsub.s32 4, %v7973
        %v7998 = vsel %vm7913, %v7997, %v7973
        %v7999 = vsel %vm7912, %v1358, %v7996
        %v8000 = vsel %vm7912, 0, %v7998
        %v8001 = vcosq.f32.pop %v7999
        %v8002 = vsinq.f32.pop %v7999
        %vm8003 = vweird.f32 %v1358
        %v8004 = vadd.s32 %v8000, 3
        %v8005 = vand.u32 %v8004, 3
        %vm8006 = vcmp.lt.s32.totalorder %v8005, 2
        %vm8007 = vcmp.eq.s32.totalorder %v8005, 0
        %v8008 = vxor.u32 %v8002, 2147483648
        %v8009 = vsel %vm8007, %v8001, %v8008
        %vm8010 = vcmp.eq.s32.totalorder %v8005, 2
        %v8011 = vxor.u32 %v8001, 2147483648
        %v8012 = vsel %vm8010, %v8011, %v8002
        %v8013 = vsel %vm8006, %v8009, %v8012
        %v8014 = vsel %vm8003, nan, %v8013
        %8015 = vst [vmem:[%s370] sm:$0xff] %v1462
        %8016 = vst [vmem:[%s370 + $0x8] sm:$0xff] %v1566
        %8017 = vst [vmem:[%s370 + $0x10] sm:$0xff] %v1670
        %8018 = vst [vmem:[%s370 + $0x18] sm:$0xff] %v1774
        %8019 = vst [vmem:[%s370 + $0x20] sm:$0xff] %v1878
        %8020 = vst [vmem:[%s370 + $0x28] sm:$0xff] %v1982
        %8021 = vst [vmem:[%s370 + $0x30] sm:$0xff] %v2086
        %8022 = vst [vmem:[%s370 + $0x38] sm:$0xff] %v2190
        %8023 = vst [vmem:[%s370 + $0x40] sm:$0xff] %v2294
        %8024 = vst [vmem:[%s370 + $0x48] sm:$0xff] %v2398
        %8025 = vst [vmem:[%s370 + $0x50] sm:$0xff] %v2502
        %8026 = vst [vmem:[%s370 + $0x58] sm:$0xff] %v2606
        %8027 = vst [vmem:[%s370 + $0x60] sm:$0xff] %v2710
        %8028 = vst [vmem:[%s370 + $0x68] sm:$0xff] %v2814
        %8029 = vst [vmem:[%s370 + $0x70] sm:$0xff] %v2918
        %8030 = vst [vmem:[%s370 + $0x78] sm:$0xff] %v3022
        %8031 = vst [vmem:[%s370 + $0x80] sm:$0xff] %v3126
        %8032 = vst [vmem:[%s370 + $0x88] sm:$0xff] %v3230
        %8033 = vst [vmem:[%s370 + $0x90] sm:$0xff] %v3334
        %8034 = vst [vmem:[%s370 + $0x98] sm:$0xff] %v3438
        %8035 = vst [vmem:[%s370 + $0xa0] sm:$0xff] %v3542
        %8036 = vst [vmem:[%s370 + $0xa8] sm:$0xff] %v3646
        %8037 = vst [vmem:[%s370 + $0xb0] sm:$0xff] %v3750
        %8038 = vst [vmem:[%s370 + $0xb8] sm:$0xff] %v3854
        %8039 = vst [vmem:[%s370 + $0xc0] sm:$0xff] %v3958
        %8040 = vst [vmem:[%s370 + $0xc8] sm:$0xff] %v4062
        %8041 = vst [vmem:[%s370 + $0xd0] sm:$0xff] %v4166
        %8042 = vst [vmem:[%s370 + $0xd8] sm:$0xff] %v4270
        %8043 = vst [vmem:[%s370 + $0xe0] sm:$0xff] %v4374
        %8044 = vst [vmem:[%s370 + $0xe8] sm:$0xff] %v4478
        %8045 = vst [vmem:[%s370 + $0xf0] sm:$0xff] %v4582
        %8046 = vst [vmem:[%s370 + $0xf8] sm:$0xff] %v4686
        %8047 = vst [vmem:[%s370 + $0x100] sm:$0xff] %v4790
        %8048 = vst [vmem:[%s370 + $0x108] sm:$0xff] %v4894
        %8049 = vst [vmem:[%s370 + $0x110] sm:$0xff] %v4998
        %8050 = vst [vmem:[%s370 + $0x118] sm:$0xff] %v5102
        %8051 = vst [vmem:[%s370 + $0x120] sm:$0xff] %v5206
        %8052 = vst [vmem:[%s370 + $0x128] sm:$0xff] %v5310
        %8053 = vst [vmem:[%s370 + $0x130] sm:$0xff] %v5414
        %8054 = vst [vmem:[%s370 + $0x138] sm:$0xff] %v5518
        %8055 = vst [vmem:[%s370 + $0x140] sm:$0xff] %v5622
        %8056 = vst [vmem:[%s370 + $0x148] sm:$0xff] %v5726
        %8057 = vst [vmem:[%s370 + $0x150] sm:$0xff] %v5830
        %8058 = vst [vmem:[%s370 + $0x158] sm:$0xff] %v5934
        %8059 = vst [vmem:[%s370 + $0x160] sm:$0xff] %v6038
        %8060 = vst [vmem:[%s370 + $0x168] sm:$0xff] %v6142
        %8061 = vst [vmem:[%s370 + $0x170] sm:$0xff] %v6246
        %8062 = vst [vmem:[%s370 + $0x178] sm:$0xff] %v6350
        %8063 = vst [vmem:[%s370 + $0x180] sm:$0xff] %v6454
        %8064 = vst [vmem:[%s370 + $0x188] sm:$0xff] %v6558
        %8065 = vst [vmem:[%s370 + $0x190] sm:$0xff] %v6662
        %8066 = vst [vmem:[%s370 + $0x198] sm:$0xff] %v6766
        %8067 = vst [vmem:[%s370 + $0x1a0] sm:$0xff] %v6870
        %8068 = vst [vmem:[%s370 + $0x1a8] sm:$0xff] %v6974
        %8069 = vst [vmem:[%s370 + $0x1b0] sm:$0xff] %v7078
        %8070 = vst [vmem:[%s370 + $0x1b8] sm:$0xff] %v7182
        %8071 = vst [vmem:[%s370 + $0x1c0] sm:$0xff] %v7286
        %8072 = vst [vmem:[%s370 + $0x1c8] sm:$0xff] %v7390
        %8073 = vst [vmem:[%s370 + $0x1d0] sm:$0xff] %v7494
        %8074 = vst [vmem:[%s370 + $0x1d8] sm:$0xff] %v7598
        %8075 = vst [vmem:[%s370 + $0x1e0] sm:$0xff] %v7702
        %8076 = vst [vmem:[%s370 + $0x1e8] sm:$0xff] %v7806
        %8077 = vst [vmem:[%s370 + $0x1f0] sm:$0xff] %v7910
        %8078 = vst [vmem:[%s370 + $0x1f8] sm:$0xff] %v8014
        %s8079 = sand.u32 %s187, 1
        %s8080 = scalar_lea.sflag [#allocation6], %s8079
        %s8081 = sand.u32 %s187, 1
        %s8082 = smul.addr %s8081, 512
        %s8083 = scalar_lea.vmem [#allocation11], %s8082
        // Predicated region
        $region57: #{tpu_custom_call.1} parent=39 // pred_check
          %p8084 = pneg %p197
        $region58: #{tpu_custom_call.1} parent=39 // pred_check_branch
          %8086 = sbr.rel (%p8084) target = $region60
        $region59: #{tpu_custom_call.1} parent=39 // pred_region
          %s8087 = smul.u32 64, %s27
          %s8089 = ssub.s32 8192, 8192
          %8090 = vsyncadd %s8080, %s8089
          %s8091 = sadd.s32 %s28, %s8087
          %s8092 = smul.addr %s8091, 128
          %s8093 = scalar_lea.hbm %s6, %s8092
          %s8094 = sshll.u32 %s8083, 4
          %s8095 = int_to_ptr.vmem [resolvable:$true] %s8094
          %8100 = dma.vmem_to_hbm [thread:$0]  %s8095, 8192, %s8093, %s8080, 128, 128, 8
        $region60: #{tpu_custom_call.1} parent=39 // pred_fallthru
          _
      $region40: #{tpu_custom_call.1} parent=5 // pred_fallthru
        _
      %p8101 = scmp.le.s32.totalorder 2, %s18
      // Predicated region
      $region61: #{tpu_custom_call.1} parent=5 // pred_check
        %p8102 = pneg %p8101
      $region62: #{tpu_custom_call.1} parent=5 // pred_check_branch
        %8104 = sbr.rel (%p8102) target = $region64
      $region63: #{tpu_custom_call.1} parent=5 // pred_region
        %s8105 = ssub.s32 %s18, 2
        // Predicated region
        $region65: #{tpu_custom_call.1} parent=63 // pred_check
          %p8106 = pneg %p203
        $region66: #{tpu_custom_call.1} parent=63 // pred_check_branch
          %8108 = sbr.rel (%p8106) target = $region68
        $region67: #{tpu_custom_call.1} parent=63 // pred_region
          %s8109 = sand.u32 %s188, 1
          %s8110 = scalar_lea.sflag [#allocation6], %s8109
          %s8111 = sand.u32 %s188, 1
          %s8112 = smul.addr %s8111, 512
          %s8113 = scalar_lea.vmem [#allocation11], %s8112
          %8114 = dma.done %s8110, 8192
        $region68: #{tpu_custom_call.1} parent=63 // pred_fallthru
          _
      $region64: #{tpu_custom_call.1} parent=5 // pred_fallthru
        _
    $region6: #{tpu_custom_call.1} parent=1 // loop_footer
      %s22 = sadd.s32 1, %s18
    $region7: #{tpu_custom_call.1} parent=1 // loop_footer_branch
      %17 = sbr.rel target = $region3
    $region8: #{tpu_custom_call.1} parent=1 // loop_exit
      _
    %8115 = vsyncpa [#allocation5], 1
    %s8116 = scalar_lea.sflag [#allocation5], 1
    %8117 = vsyncpa %s8116, 1
    %8118 = vsyncpa [#allocation8], 1
    %8119 = vsyncpa [#allocation6], 1
    %s8120 = scalar_lea.sflag [#allocation6], 1
    %8121 = vsyncpa %s8120, 1

</llo_original>
